<compile_context>
chip_gen: v6e
topology: v6e:2x2x1
jax: 0.10.0
libtpu: 0.0.40
codegen_flags: <defaults>
</compile_context>

<pallas_src>
import jax
import jax.numpy as jnp
from jax.experimental import pallas as pl
from jax.experimental.pallas import tpu as pltpu

NUM_FEATURES = 784
NUM_HIDDEN_1 = 500
NUM_LATENT = 15


def _round_up(x, m):
    return ((x + m - 1) // m) * m


def _leaky_relu(x, slope):
    return jnp.where(x > 0, x, slope * x)


def vae_kernel(x_ref, eps_ref,
               w1_ref, b1_ref,          # (784, 500) bf16, (1, 500) f32
               wh_ref, bh_ref,          # fused [mu|logvar] head: (500, 30) bf16, (1, 30) f32
               w3_ref, b3_ref,          # (15, 500) bf16, (1, 500) f32
               w4_ref, b4_ref,          # (500, 784) bf16, (1, 784) f32
               lat_ref, dec_ref):
    # encoder hidden layer: bf16 operands, f32 accumulation on the MXU
    x = x_ref[...].astype(jnp.bfloat16)
    h1 = jnp.dot(x, w1_ref[...], preferred_element_type=jnp.float32) + b1_ref[...]
    h1 = _leaky_relu(h1, 0.0001)

    # fused z_mean / z_log_var head: one (B, 30) slab, bf16-in / f32-acc
    head = jnp.dot(h1.astype(jnp.bfloat16), wh_ref[...],
                   preferred_element_type=jnp.float32) + bh_ref[...]
    z_mu = head[:, :NUM_LATENT]
    z_lv = head[:, NUM_LATENT:]

    # reparameterize: z = mu + eps * exp(log_var / 2)
    z = z_mu + eps_ref[...] * jnp.exp(0.5 * z_lv)

    # decoder: linear_3 + leaky_relu (default slope 0.01), bf16-in / f32-acc
    h3 = jnp.dot(z.astype(jnp.bfloat16), w3_ref[...],
                 preferred_element_type=jnp.float32) + b3_ref[...]
    h3 = _leaky_relu(h3, 0.01)

    # linear_4 + sigmoid.  sigmoid(x) = 0.5*(tanh(x/2)+1) -> single EUP op/element
    logits = jnp.dot(h3.astype(jnp.bfloat16), w4_ref[...],
                     preferred_element_type=jnp.float32) + b4_ref[...]
    dec = 0.5 * (jnp.tanh(0.5 * logits) + 1.0)

    # single merged latent slab [mu | logvar | z] -> one store / one DMA stream
    lat_ref[...] = jnp.concatenate([head, z], axis=1)
    dec_ref[...] = dec


def _choose_tile(batch, tile_b):
    tile_b = max(8, _round_up(tile_b, 8))
    b8 = _round_up(batch, 8)
    if b8 <= tile_b:
        return b8          # small batch: one tile, no wasted padded rows
    return tile_b


def vae_forward(x, eps, params, tile_b=256):
    """x: (B, 784) f32 features, eps: (B, 15) f32 reparameterization noise.

    Returns (z_mean, z_log_var, encoded, decoded) like the PyTorch module."""
    B = x.shape[0]
    w1, b1, wmu, bmu, wlv, blv, w3, b3, w4, b4 = params

    # fuse the two latent heads into one (500, 30) matmul
    wh = jnp.concatenate([wmu, wlv], axis=1)
    bh = jnp.concatenate([bmu, blv], axis=1)

    # all weights in bf16 (halves weight DMA + resident footprint); f32 accumulation
    w1 = w1.astype(jnp.bfloat16)
    wh = wh.astype(jnp.bfloat16)
    w3 = w3.astype(jnp.bfloat16)
    w4 = w4.astype(jnp.bfloat16)

    # batch tiling: tile multiple of 8, pad batch to a whole number of tiles.
    # Default 256 fills the 256-wide MXU (v6e/v7x); B>=2*tile keeps >=2 grid
    # steps so "parallel" can shard across the 2 TensorCores on v7x.
    tile_b = _choose_tile(B, tile_b)
    b_pad = _round_up(B, tile_b)
    if b_pad != B:
        x = jnp.pad(x, ((0, b_pad - B), (0, 0)))
        eps = jnp.pad(eps, ((0, b_pad - B), (0, 0)))

    grid = (b_pad // tile_b,)
    batch_map = lambda i: (i, 0)   # tiles march over the batch
    const_map = lambda i: (0, 0)   # weights/biases stay resident in VMEM

    in_specs = [
        pl.BlockSpec((tile_b, NUM_FEATURES), batch_map),          # x
        pl.BlockSpec((tile_b, NUM_LATENT), batch_map),            # eps
        pl.BlockSpec((NUM_FEATURES, NUM_HIDDEN_1), const_map),    # w1
        pl.BlockSpec((1, NUM_HIDDEN_1), const_map),               # b1
        pl.BlockSpec((NUM_HIDDEN_1, 2 * NUM_LATENT), const_map),  # wh (fused heads)
        pl.BlockSpec((1, 2 * NUM_LATENT), const_map),             # bh
        pl.BlockSpec((NUM_LATENT, NUM_HIDDEN_1), const_map),      # w3
        pl.BlockSpec((1, NUM_HIDDEN_1), const_map),               # b3
        pl.BlockSpec((NUM_HIDDEN_1, NUM_FEATURES), const_map),    # w4
        pl.BlockSpec((1, NUM_FEATURES), const_map),               # b4
    ]
    out_shapes = (
        jax.ShapeDtypeStruct((b_pad, 3 * NUM_LATENT), jnp.float32),  # [mu|logvar|z]
        jax.ShapeDtypeStruct((b_pad, NUM_FEATURES), jnp.float32),    # decoded
    )
    out_specs = (
        pl.BlockSpec((tile_b, 3 * NUM_LATENT), batch_map),
        pl.BlockSpec((tile_b, NUM_FEATURES), batch_map),
    )

    lat, dec = pl.pallas_call(
        vae_kernel,
        out_shape=out_shapes,
        grid=grid,
        in_specs=in_specs,
        out_specs=out_specs,
        compiler_params=pltpu.CompilerParams(
            dimension_semantics=("parallel",),      # 2 TCs on v7x; harmless elsewhere
            vmem_limit_bytes=48 * 1024 * 1024),
    )(x, eps, w1, b1, wh, bh, w3, b3, w4, b4)

    z_mu = lat[:B, :NUM_LATENT]
    z_lv = lat[:B, NUM_LATENT:2 * NUM_LATENT]
    z = lat[:B, 2 * NUM_LATENT:]
    return z_mu, z_lv, z, dec[:B]


def init_params(key):
    """torch.nn.Linear-style init (uniform +/- 1/sqrt(fan_in)).
    Weights stored (in, out); biases (1, out) for 2-D VMEM layout."""
    def linear(k, fan_in, fan_out):
        kw, kb = jax.random.split(k)
        bound = 1.0 / jnp.sqrt(fan_in)
        w = jax.random.uniform(kw, (fan_in, fan_out), jnp.float32, -bound, bound)
        b = jax.random.uniform(kb, (1, fan_out), jnp.float32, -bound, bound)
        return w, b

    k1, k2, k3, k4, k5 = jax.random.split(key, 5)
    w1, b1 = linear(k1, NUM_FEATURES, NUM_HIDDEN_1)     # hidden_1
    wmu, bmu = linear(k2, NUM_HIDDEN_1, NUM_LATENT)     # z_mean
    wlv, blv = linear(k3, NUM_HIDDEN_1, NUM_LATENT)     # z_log_var
    w3, b3 = linear(k4, NUM_LATENT, NUM_HIDDEN_1)       # linear_3
    w4, b4 = linear(k5, NUM_HIDDEN_1, NUM_FEATURES)     # linear_4
    return (w1, b1, wmu, bmu, wlv, blv, w3, b3, w4, b4)


def _reference(x, eps, params):
    """Pure-JAX f32 reference matching the PyTorch module."""
    w1, b1, wmu, bmu, wlv, blv, w3, b3, w4, b4 = params
    h1 = jax.nn.leaky_relu(x @ w1 + b1, 0.0001)
    z_mu = h1 @ wmu + bmu
    z_lv = h1 @ wlv + blv
    z = z_mu + eps * jnp.exp(z_lv / 2.0)
    h3 = jax.nn.leaky_relu(z @ w3 + b3, 0.01)
    dec = jax.nn.sigmoid(h3 @ w4 + b4)
    return z_mu, z_lv, z, dec


if __name__ == "__main__":
    # TODO(synk): torch.randn inside forward() has no in-kernel equivalent here; the
    # reparameterization noise `eps` is passed in explicitly (deterministic).
    key = jax.random.PRNGKey(0)
    k_params, k_x, k_eps = jax.random.split(key, 3)

    B = 512  # two 256-row batch tiles -> exercises the grid + resident weights
    params = init_params(k_params)
    x = jax.random.uniform(k_x, (B, NUM_FEATURES), jnp.float32)      # MNIST-like pixels
    eps = jax.random.normal(k_eps, (B, NUM_LATENT), jnp.float32)     # reparam noise

    fwd = jax.jit(lambda xb, eb: vae_forward(xb, eb, params, tile_b=256))
    z_mean, z_log_var, encoded, decoded = jax.block_until_ready(fwd(x, eps))

    # sanity check against pure-JAX f32 reference (bf16 matmul operands => looser tol)
    ref = _reference(x, eps, params)
    for name, got, want in zip(("z_mean", "z_log_var", "encoded", "decoded"),
                               (z_mean, z_log_var, encoded, decoded), ref):
        assert got.shape == want.shape and got.dtype == want.dtype, name
        err = float(jnp.max(jnp.abs(got - want)))
        assert err < 2e-2, f"{name}: max abs err {err}"

    print("KERNEL_OK")
</pallas_src>

<mosaic_0001>
module attributes {stable_mosaic.version = 11 : i64} {
  func.func @vae_kernel(%arg0: i32, %arg1: memref<256x784xf32, #tpu.memory_space<vmem>>, %arg2: memref<256x15xf32, #tpu.memory_space<vmem>>, %arg3: memref<784x500xbf16, #tpu.memory_space<vmem>>, %arg4: memref<1x500xf32, #tpu.memory_space<vmem>>, %arg5: memref<500x30xbf16, #tpu.memory_space<vmem>>, %arg6: memref<1x30xf32, #tpu.memory_space<vmem>>, %arg7: memref<15x500xbf16, #tpu.memory_space<vmem>>, %arg8: memref<1x500xf32, #tpu.memory_space<vmem>>, %arg9: memref<500x784xbf16, #tpu.memory_space<vmem>>, %arg10: memref<1x784xf32, #tpu.memory_space<vmem>>, %arg11: memref<256x45xf32, #tpu.memory_space<vmem>>, %arg12: memref<256x784xf32, #tpu.memory_space<vmem>>) attributes {dimension_semantics = [#tpu.dimension_semantics<parallel>], iteration_bounds = array<i64: 2>, scalar_prefetch = 0 : i64, scratch_operands = 0 : i64, tpu.core_type = #tpu.core_type<tc>, window_params = [{transform_indices = @transform_0, window_bounds = array<i64: 256, 784>}, {transform_indices = @transform_1, window_bounds = array<i64: 256, 15>}, {pipeline_mode = #tpu.pipeline_mode<synchronous>, transform_indices = @transform_2, window_bounds = array<i64: 784, 500>}, {pipeline_mode = #tpu.pipeline_mode<synchronous>, transform_indices = @transform_3, window_bounds = array<i64: 1, 500>}, {pipeline_mode = #tpu.pipeline_mode<synchronous>, transform_indices = @transform_4, window_bounds = array<i64: 500, 30>}, {pipeline_mode = #tpu.pipeline_mode<synchronous>, transform_indices = @transform_5, window_bounds = array<i64: 1, 30>}, {pipeline_mode = #tpu.pipeline_mode<synchronous>, transform_indices = @transform_6, window_bounds = array<i64: 15, 500>}, {pipeline_mode = #tpu.pipeline_mode<synchronous>, transform_indices = @transform_7, window_bounds = array<i64: 1, 500>}, {pipeline_mode = #tpu.pipeline_mode<synchronous>, transform_indices = @transform_8, window_bounds = array<i64: 500, 784>}, {pipeline_mode = #tpu.pipeline_mode<synchronous>, transform_indices = @transform_9, window_bounds = array<i64: 1, 784>}, {transform_indices = @transform_10, window_bounds = array<i64: 256, 45>}, {transform_indices = @transform_11, window_bounds = array<i64: 256, 784>}]} {
    %c0 = arith.constant 0 : index
    %c0_0 = arith.constant 0 : index
    %0 = vector.load %arg1[%c0, %c0_0] : memref<256x784xf32, #tpu.memory_space<vmem>>, vector<256x784xf32>
    %1 = arith.truncf %0 : vector<256x784xf32> to vector<256x784xbf16>
    %c0_1 = arith.constant 0 : index
    %c0_2 = arith.constant 0 : index
    %2 = vector.load %arg3[%c0_1, %c0_2] : memref<784x500xbf16, #tpu.memory_space<vmem>>, vector<784x500xbf16>
    %cst = arith.constant dense<0.000000e+00> : vector<256x500xf32>
    %3 = tpu.matmul %1, %2, %cst {dimension_numbers = #tpu.dot_dimension_numbers<[1], [0], [0], [1], [0, 0, 1, 1], [], []>} : vector<256x784xbf16>, vector<784x500xbf16>, vector<256x500xf32> -> vector<256x500xf32>
    %c0_3 = arith.constant 0 : index
    %c0_4 = arith.constant 0 : index
    %4 = vector.load %arg4[%c0_3, %c0_4] : memref<1x500xf32, #tpu.memory_space<vmem>>, vector<1x500xf32>
    %5 = vector.broadcast %4 : vector<1x500xf32> to vector<256x500xf32>
    %6 = arith.addf %3, %5 : vector<256x500xf32>
    %cst_5 = arith.constant 0.000000e+00 : f32
    %7 = vector.broadcast %cst_5 : f32 to vector<256x500xf32>
    %8 = arith.cmpf ogt, %6, %7 : vector<256x500xf32>
    %cst_6 = arith.constant 9.99999974E-5 : f32
    %9 = vector.broadcast %cst_6 : f32 to vector<256x500xf32>
    %10 = arith.mulf %9, %6 : vector<256x500xf32>
    %11 = arith.select %8, %6, %10 : vector<256x500xi1>, vector<256x500xf32>
    %12 = arith.truncf %11 : vector<256x500xf32> to vector<256x500xbf16>
    %c0_7 = arith.constant 0 : index
    %c0_8 = arith.constant 0 : index
    %13 = vector.load %arg5[%c0_7, %c0_8] : memref<500x30xbf16, #tpu.memory_space<vmem>>, vector<500x30xbf16>
    %cst_9 = arith.constant dense<0.000000e+00> : vector<256x30xf32>
    %14 = tpu.matmul %12, %13, %cst_9 {dimension_numbers = #tpu.dot_dimension_numbers<[1], [0], [0], [1], [0, 0, 1, 1], [], []>} : vector<256x500xbf16>, vector<500x30xbf16>, vector<256x30xf32> -> vector<256x30xf32>
    %c0_10 = arith.constant 0 : index
    %c0_11 = arith.constant 0 : index
    %15 = vector.load %arg6[%c0_10, %c0_11] : memref<1x30xf32, #tpu.memory_space<vmem>>, vector<1x30xf32>
    %16 = vector.broadcast %15 : vector<1x30xf32> to vector<256x30xf32>
    %17 = arith.addf %14, %16 : vector<256x30xf32>
    %18 = vector.extract_strided_slice %17 {offsets = [0, 0], sizes = [256, 15], strides = [1, 1]} : vector<256x30xf32> to vector<256x15xf32>
    %19 = vector.extract_strided_slice %17 {offsets = [0, 15], sizes = [256, 15], strides = [1, 1]} : vector<256x30xf32> to vector<256x15xf32>
    %c0_12 = arith.constant 0 : index
    %c0_13 = arith.constant 0 : index
    %20 = vector.load %arg2[%c0_12, %c0_13] : memref<256x15xf32, #tpu.memory_space<vmem>>, vector<256x15xf32>
    %cst_14 = arith.constant 5.000000e-01 : f32
    %21 = vector.broadcast %cst_14 : f32 to vector<256x15xf32>
    %22 = arith.mulf %21, %19 : vector<256x15xf32>
    %23 = math.exp %22 : vector<256x15xf32>
    %24 = arith.mulf %20, %23 : vector<256x15xf32>
    %25 = arith.addf %18, %24 : vector<256x15xf32>
    %26 = arith.truncf %25 : vector<256x15xf32> to vector<256x15xbf16>
    %c0_15 = arith.constant 0 : index
    %c0_16 = arith.constant 0 : index
    %27 = vector.load %arg7[%c0_15, %c0_16] : memref<15x500xbf16, #tpu.memory_space<vmem>>, vector<15x500xbf16>
    %cst_17 = arith.constant dense<0.000000e+00> : vector<256x500xf32>
    %28 = tpu.matmul %26, %27, %cst_17 {dimension_numbers = #tpu.dot_dimension_numbers<[1], [0], [0], [1], [0, 0, 1, 1], [], []>} : vector<256x15xbf16>, vector<15x500xbf16>, vector<256x500xf32> -> vector<256x500xf32>
    %c0_18 = arith.constant 0 : index
    %c0_19 = arith.constant 0 : index
    %29 = vector.load %arg8[%c0_18, %c0_19] : memref<1x500xf32, #tpu.memory_space<vmem>>, vector<1x500xf32>
    %30 = vector.broadcast %29 : vector<1x500xf32> to vector<256x500xf32>
    %31 = arith.addf %28, %30 : vector<256x500xf32>
    %cst_20 = arith.constant 0.000000e+00 : f32
    %32 = vector.broadcast %cst_20 : f32 to vector<256x500xf32>
    %33 = arith.cmpf ogt, %31, %32 : vector<256x500xf32>
    %cst_21 = arith.constant 0.00999999977 : f32
    %34 = vector.broadcast %cst_21 : f32 to vector<256x500xf32>
    %35 = arith.mulf %34, %31 : vector<256x500xf32>
    %36 = arith.select %33, %31, %35 : vector<256x500xi1>, vector<256x500xf32>
    %37 = arith.truncf %36 : vector<256x500xf32> to vector<256x500xbf16>
    %c0_22 = arith.constant 0 : index
    %c0_23 = arith.constant 0 : index
    %38 = vector.load %arg9[%c0_22, %c0_23] : memref<500x784xbf16, #tpu.memory_space<vmem>>, vector<500x784xbf16>
    %cst_24 = arith.constant dense<0.000000e+00> : vector<256x784xf32>
    %39 = tpu.matmul %37, %38, %cst_24 {dimension_numbers = #tpu.dot_dimension_numbers<[1], [0], [0], [1], [0, 0, 1, 1], [], []>} : vector<256x500xbf16>, vector<500x784xbf16>, vector<256x784xf32> -> vector<256x784xf32>
    %c0_25 = arith.constant 0 : index
    %c0_26 = arith.constant 0 : index
    %40 = vector.load %arg10[%c0_25, %c0_26] : memref<1x784xf32, #tpu.memory_space<vmem>>, vector<1x784xf32>
    %41 = vector.broadcast %40 : vector<1x784xf32> to vector<256x784xf32>
    %42 = arith.addf %39, %41 : vector<256x784xf32>
    %cst_27 = arith.constant 5.000000e-01 : f32
    %43 = vector.broadcast %cst_27 : f32 to vector<256x784xf32>
    %44 = arith.mulf %43, %42 : vector<256x784xf32>
    %45 = math.tanh %44 : vector<256x784xf32>
    %cst_28 = arith.constant 1.000000e+00 : f32
    %46 = vector.broadcast %cst_28 : f32 to vector<256x784xf32>
    %47 = arith.addf %45, %46 : vector<256x784xf32>
    %cst_29 = arith.constant 5.000000e-01 : f32
    %48 = vector.broadcast %cst_29 : f32 to vector<256x784xf32>
    %49 = arith.mulf %48, %47 : vector<256x784xf32>
    %50 = tpu.concatenate %17, %25 in 1 : vector<256x30xf32>, vector<256x15xf32> -> vector<256x45xf32>
    %c0_30 = arith.constant 0 : index
    %c0_31 = arith.constant 0 : index
    %51 = vector.load %arg11[%c0_30, %c0_31] : memref<256x45xf32, #tpu.memory_space<vmem>>, vector<256x45xf32>
    tpu.vector_store %arg11[%c0_30, %c0_31], %50 {strides = array<i32>} : memref<256x45xf32, #tpu.memory_space<vmem>>, vector<256x45xf32>,
    %c0_32 = arith.constant 0 : index
    %c0_33 = arith.constant 0 : index
    %52 = vector.load %arg12[%c0_32, %c0_33] : memref<256x784xf32, #tpu.memory_space<vmem>>, vector<256x784xf32>
    tpu.vector_store %arg12[%c0_32, %c0_33], %49 {strides = array<i32>} : memref<256x784xf32, #tpu.memory_space<vmem>>, vector<256x784xf32>,
    return
  }
  func.func @transform_0(%arg0: i32) -> (i32, i32) {
    %c0_i32 = arith.constant 0 : i32
    %c0_i32_0 = arith.constant 0 : i32
    return %arg0, %c0_i32 : i32, i32
  }
  func.func @transform_1(%arg0: i32) -> (i32, i32) {
    %c0_i32 = arith.constant 0 : i32
    %c0_i32_0 = arith.constant 0 : i32
    return %arg0, %c0_i32 : i32, i32
  }
  func.func @transform_2(%arg0: i32) -> (i32, i32) {
    %c0_i32 = arith.constant 0 : i32
    %c0_i32_0 = arith.constant 0 : i32
    %c0_i32_1 = arith.constant 0 : i32
    return %c0_i32, %c0_i32_0 : i32, i32
  }
  func.func @transform_3(%arg0: i32) -> (i32, i32) {
    %c0_i32 = arith.constant 0 : i32
    %c0_i32_0 = arith.constant 0 : i32
    %c0_i32_1 = arith.constant 0 : i32
    return %c0_i32, %c0_i32_0 : i32, i32
  }
  func.func @transform_4(%arg0: i32) -> (i32, i32) {
    %c0_i32 = arith.constant 0 : i32
    %c0_i32_0 = arith.constant 0 : i32
    %c0_i32_1 = arith.constant 0 : i32
    return %c0_i32, %c0_i32_0 : i32, i32
  }
  func.func @transform_5(%arg0: i32) -> (i32, i32) {
    %c0_i32 = arith.constant 0 : i32
    %c0_i32_0 = arith.constant 0 : i32
    %c0_i32_1 = arith.constant 0 : i32
    return %c0_i32, %c0_i32_0 : i32, i32
  }
  func.func @transform_6(%arg0: i32) -> (i32, i32) {
    %c0_i32 = arith.constant 0 : i32
    %c0_i32_0 = arith.constant 0 : i32
    %c0_i32_1 = arith.constant 0 : i32
    return %c0_i32, %c0_i32_0 : i32, i32
  }
  func.func @transform_7(%arg0: i32) -> (i32, i32) {
    %c0_i32 = arith.constant 0 : i32
    %c0_i32_0 = arith.constant 0 : i32
    %c0_i32_1 = arith.constant 0 : i32
    return %c0_i32, %c0_i32_0 : i32, i32
  }
  func.func @transform_8(%arg0: i32) -> (i32, i32) {
    %c0_i32 = arith.constant 0 : i32
    %c0_i32_0 = arith.constant 0 : i32
    %c0_i32_1 = arith.constant 0 : i32
    return %c0_i32, %c0_i32_0 : i32, i32
  }
  func.func @transform_9(%arg0: i32) -> (i32, i32) {
    %c0_i32 = arith.constant 0 : i32
    %c0_i32_0 = arith.constant 0 : i32
    %c0_i32_1 = arith.constant 0 : i32
    return %c0_i32, %c0_i32_0 : i32, i32
  }
  func.func @transform_10(%arg0: i32) -> (i32, i32) {
    %c0_i32 = arith.constant 0 : i32
    %c0_i32_0 = arith.constant 0 : i32
    return %arg0, %c0_i32 : i32, i32
  }
  func.func @transform_11(%arg0: i32) -> (i32, i32) {
    %c0_i32 = arith.constant 0 : i32
    %c0_i32_0 = arith.constant 0 : i32
    return %arg0, %c0_i32 : i32, i32
  }
}

</mosaic_0001>

<llo_original>
// kernel: _lambda_.1
$region0: #{_lambda_.1}
  #allocation0 [shape = 'u32[]', space=smem, size = 0x4, offset = 0x4, fixed_abs, tag = 'smem constant byte address 0x4 - core index']
  #allocation1 [shape = 'u32[144,128]{1,0:T(1,128)}', space=vmem, size = 0x12000, scoped, tag = 'internal scratch']
  %s0 = inlined_call_operand.vmem [shape: f32[512,784], index: 0, kind: input, shape index: {}]
  %s1 = inlined_call_operand.vmem [shape: f32[512,15], index: 1, kind: input, shape index: {}]
  %s2 = inlined_call_operand.vmem [shape: bf16[784,500], index: 2, kind: input, shape index: {}]
  %s3 = inlined_call_operand.vmem [shape: f32[1,500], index: 3, kind: input, shape index: {}]
  %s4 = inlined_call_operand.vmem [shape: bf16[500,30], index: 4, kind: input, shape index: {}]
  %s5 = inlined_call_operand.vmem [shape: f32[1,30], index: 5, kind: input, shape index: {}]
  %s6 = inlined_call_operand.vmem [shape: bf16[15,500], index: 6, kind: input, shape index: {}]
  %s7 = inlined_call_operand.vmem [shape: f32[1,500], index: 7, kind: input, shape index: {}]
  %s8 = inlined_call_operand.vmem [shape: bf16[500,784], index: 8, kind: input, shape index: {}]
  %s9 = inlined_call_operand.vmem [shape: f32[1,784], index: 9, kind: input, shape index: {}]
  %s10 = inlined_call_operand.vmem [shape: f32[512,45], index: 10, kind: output, shape index: {0}]
  %s11 = inlined_call_operand.vmem [shape: f32[512,784], index: 11, kind: output, shape index: {1}]
  %12 = xla_tuple %s10, %s11
  %s13 = sld [smem:[#allocation0]]
  $region81: #{_lambda_.1} parent=0
    _
  %s15 = ssub.s32 1, %s13
  %s16 = scalar_select 0, %s15, %s13
  loop: start=0, step=1, limit=4
  $region2: #{_lambda_.1} parent=0 // loop_pre_header
    _
  $region3: #{_lambda_.1} parent=0 // loop_header
    %s18 = sphi 0, %s22
    %p19 = scmp.ge.s32.totalorder %s18, 4
    %s28 = sphi 0, %s30
    %s31 = sphi 0, %s28
    %s32 = sphi 0, %s31
    %s48 = sphi 0, %s32
    %s54 = sphi 0, %s56
    %s57 = sphi 0, %s54
    %s58 = sphi 0, %s57
    %s74 = sphi 0, %s58
    %s78 = sphi 0, %s78
    %s80 = sphi 0, %s78
    %s81 = sphi 0, %s80
    %s95 = sphi 0, %s81
    %s99 = sphi 0, %s99
    %s101 = sphi 0, %s99
    %s102 = sphi 0, %s101
    %s116 = sphi 0, %s102
    %s120 = sphi 0, %s120
    %s122 = sphi 0, %s120
    %s123 = sphi 0, %s122
    %s137 = sphi 0, %s123
    %s141 = sphi 0, %s141
    %s143 = sphi 0, %s141
    %s144 = sphi 0, %s143
    %s158 = sphi 0, %s144
    %s162 = sphi 0, %s162
    %s164 = sphi 0, %s162
    %s165 = sphi 0, %s164
    %s179 = sphi 0, %s165
    %s183 = sphi 0, %s183
    %s185 = sphi 0, %s183
    %s186 = sphi 0, %s185
    %s200 = sphi 0, %s186
    %s204 = sphi 0, %s204
    %s206 = sphi 0, %s204
    %s207 = sphi 0, %s206
    %s221 = sphi 0, %s207
    %s225 = sphi 0, %s225
    %s227 = sphi 0, %s225
    %s228 = sphi 0, %s227
    %s242 = sphi 0, %s228
    %s248 = sphi 0, %s250
    %s251 = sphi 0, %s248
    %s252 = sphi 0, %s251
    %s268 = sphi 0, %s252
    %s274 = sphi 0, %s276
    %s277 = sphi 0, %s274
    %s278 = sphi 0, %s277
    %s294 = sphi 0, %s278
  $region4: #{_lambda_.1} parent=0 // loop_header_branch
    %21 = sbr.rel (%p19) target = $region8
  $region5: #{_lambda_.1} parent=0 // loop_body
    %s23 = ssub.s32 %s18, 1
    %s24 = ssub.s32 %s18, 2
    %s25 = sadd.s32 %s18, 1
    %s26 = ssub.s32 %s18, %s25
    %p27 = scmp.eq.s32.totalorder %s26, 0
    %s29 = sadd.s32 %s28, 1
    %s30 = scalar_select %p27, %s28, %s29
    %p33 = pneg %p27
    %p34 = scmp.eq.s32.totalorder %s18, 1
    %p35 = por %p33, %p34
    %p36 = scmp.ne.s32.totalorder %s28, %s31
    %p37 = scmp.eq.s32.totalorder %s18, 0
    %p38 = por %p36, %p37
    %p39 = scmp.ne.s32.totalorder %s28, %s31
    %p40 = scmp.eq.s32.totalorder %s23, 1
    %p41 = por %p39, %p40
    %p42 = scmp.ne.s32.totalorder %s31, %s32
    %p43 = scmp.eq.s32.totalorder %s23, 0
    %p44 = por %p42, %p43
    %p45 = scmp.ne.s32.totalorder %s31, %s32
    %p46 = scmp.eq.s32.totalorder %s24, 1
    %p47 = por %p45, %p46
    %p49 = scmp.ne.s32.totalorder %s32, %s48
    %p50 = scmp.eq.s32.totalorder %s24, 0
    %p51 = por %p49, %p50
    %s52 = ssub.s32 %s18, %s25
    %p53 = scmp.eq.s32.totalorder %s52, 0
    %s55 = sadd.s32 %s54, 1
    %s56 = scalar_select %p53, %s54, %s55
    %p59 = pneg %p53
    %p60 = scmp.eq.s32.totalorder %s18, 1
    %p61 = por %p59, %p60
    %p62 = scmp.ne.s32.totalorder %s54, %s57
    %p63 = scmp.eq.s32.totalorder %s18, 0
    %p64 = por %p62, %p63
    %p65 = scmp.ne.s32.totalorder %s54, %s57
    %p66 = scmp.eq.s32.totalorder %s23, 1
    %p67 = por %p65, %p66
    %p68 = scmp.ne.s32.totalorder %s57, %s58
    %p69 = scmp.eq.s32.totalorder %s23, 0
    %p70 = por %p68, %p69
    %p71 = scmp.ne.s32.totalorder %s57, %s58
    %p72 = scmp.eq.s32.totalorder %s24, 1
    %p73 = por %p71, %p72
    %p75 = scmp.ne.s32.totalorder %s58, %s74
    %p76 = scmp.eq.s32.totalorder %s24, 0
    %p77 = por %p75, %p76
    %s79 = sadd.s32 %s78, 1
    %p82 = scmp.eq.s32.totalorder %s18, 1
    %p83 = scmp.ne.s32.totalorder %s78, %s80
    %p84 = scmp.eq.s32.totalorder %s18, 0
    %p85 = por %p83, %p84
    %p86 = scmp.ne.s32.totalorder %s78, %s80
    %p87 = scmp.eq.s32.totalorder %s23, 1
    %p88 = por %p86, %p87
    %p89 = scmp.ne.s32.totalorder %s80, %s81
    %p90 = scmp.eq.s32.totalorder %s23, 0
    %p91 = por %p89, %p90
    %p92 = scmp.ne.s32.totalorder %s80, %s81
    %p93 = scmp.eq.s32.totalorder %s24, 1
    %p94 = por %p92, %p93
    %p96 = scmp.ne.s32.totalorder %s81, %s95
    %p97 = scmp.eq.s32.totalorder %s24, 0
    %p98 = por %p96, %p97
    %s100 = sadd.s32 %s99, 1
    %p103 = scmp.eq.s32.totalorder %s18, 1
    %p104 = scmp.ne.s32.totalorder %s99, %s101
    %p105 = scmp.eq.s32.totalorder %s18, 0
    %p106 = por %p104, %p105
    %p107 = scmp.ne.s32.totalorder %s99, %s101
    %p108 = scmp.eq.s32.totalorder %s23, 1
    %p109 = por %p107, %p108
    %p110 = scmp.ne.s32.totalorder %s101, %s102
    %p111 = scmp.eq.s32.totalorder %s23, 0
    %p112 = por %p110, %p111
    %p113 = scmp.ne.s32.totalorder %s101, %s102
    %p114 = scmp.eq.s32.totalorder %s24, 1
    %p115 = por %p113, %p114
    %p117 = scmp.ne.s32.totalorder %s102, %s116
    %p118 = scmp.eq.s32.totalorder %s24, 0
    %p119 = por %p117, %p118
    %s121 = sadd.s32 %s120, 1
    %p124 = scmp.eq.s32.totalorder %s18, 1
    %p125 = scmp.ne.s32.totalorder %s120, %s122
    %p126 = scmp.eq.s32.totalorder %s18, 0
    %p127 = por %p125, %p126
    %p128 = scmp.ne.s32.totalorder %s120, %s122
    %p129 = scmp.eq.s32.totalorder %s23, 1
    %p130 = por %p128, %p129
    %p131 = scmp.ne.s32.totalorder %s122, %s123
    %p132 = scmp.eq.s32.totalorder %s23, 0
    %p133 = por %p131, %p132
    %p134 = scmp.ne.s32.totalorder %s122, %s123
    %p135 = scmp.eq.s32.totalorder %s24, 1
    %p136 = por %p134, %p135
    %p138 = scmp.ne.s32.totalorder %s123, %s137
    %p139 = scmp.eq.s32.totalorder %s24, 0
    %p140 = por %p138, %p139
    %s142 = sadd.s32 %s141, 1
    %p145 = scmp.eq.s32.totalorder %s18, 1
    %p146 = scmp.ne.s32.totalorder %s141, %s143
    %p147 = scmp.eq.s32.totalorder %s18, 0
    %p148 = por %p146, %p147
    %p149 = scmp.ne.s32.totalorder %s141, %s143
    %p150 = scmp.eq.s32.totalorder %s23, 1
    %p151 = por %p149, %p150
    %p152 = scmp.ne.s32.totalorder %s143, %s144
    %p153 = scmp.eq.s32.totalorder %s23, 0
    %p154 = por %p152, %p153
    %p155 = scmp.ne.s32.totalorder %s143, %s144
    %p156 = scmp.eq.s32.totalorder %s24, 1
    %p157 = por %p155, %p156
    %p159 = scmp.ne.s32.totalorder %s144, %s158
    %p160 = scmp.eq.s32.totalorder %s24, 0
    %p161 = por %p159, %p160
    %s163 = sadd.s32 %s162, 1
    %p166 = scmp.eq.s32.totalorder %s18, 1
    %p167 = scmp.ne.s32.totalorder %s162, %s164
    %p168 = scmp.eq.s32.totalorder %s18, 0
    %p169 = por %p167, %p168
    %p170 = scmp.ne.s32.totalorder %s162, %s164
    %p171 = scmp.eq.s32.totalorder %s23, 1
    %p172 = por %p170, %p171
    %p173 = scmp.ne.s32.totalorder %s164, %s165
    %p174 = scmp.eq.s32.totalorder %s23, 0
    %p175 = por %p173, %p174
    %p176 = scmp.ne.s32.totalorder %s164, %s165
    %p177 = scmp.eq.s32.totalorder %s24, 1
    %p178 = por %p176, %p177
    %p180 = scmp.ne.s32.totalorder %s165, %s179
    %p181 = scmp.eq.s32.totalorder %s24, 0
    %p182 = por %p180, %p181
    %s184 = sadd.s32 %s183, 1
    %p187 = scmp.eq.s32.totalorder %s18, 1
    %p188 = scmp.ne.s32.totalorder %s183, %s185
    %p189 = scmp.eq.s32.totalorder %s18, 0
    %p190 = por %p188, %p189
    %p191 = scmp.ne.s32.totalorder %s183, %s185
    %p192 = scmp.eq.s32.totalorder %s23, 1
    %p193 = por %p191, %p192
    %p194 = scmp.ne.s32.totalorder %s185, %s186
    %p195 = scmp.eq.s32.totalorder %s23, 0
    %p196 = por %p194, %p195
    %p197 = scmp.ne.s32.totalorder %s185, %s186
    %p198 = scmp.eq.s32.totalorder %s24, 1
    %p199 = por %p197, %p198
    %p201 = scmp.ne.s32.totalorder %s186, %s200
    %p202 = scmp.eq.s32.totalorder %s24, 0
    %p203 = por %p201, %p202
    %s205 = sadd.s32 %s204, 1
    %p208 = scmp.eq.s32.totalorder %s18, 1
    %p209 = scmp.ne.s32.totalorder %s204, %s206
    %p210 = scmp.eq.s32.totalorder %s18, 0
    %p211 = por %p209, %p210
    %p212 = scmp.ne.s32.totalorder %s204, %s206
    %p213 = scmp.eq.s32.totalorder %s23, 1
    %p214 = por %p212, %p213
    %p215 = scmp.ne.s32.totalorder %s206, %s207
    %p216 = scmp.eq.s32.totalorder %s23, 0
    %p217 = por %p215, %p216
    %p218 = scmp.ne.s32.totalorder %s206, %s207
    %p219 = scmp.eq.s32.totalorder %s24, 1
    %p220 = por %p218, %p219
    %p222 = scmp.ne.s32.totalorder %s207, %s221
    %p223 = scmp.eq.s32.totalorder %s24, 0
    %p224 = por %p222, %p223
    %s226 = sadd.s32 %s225, 1
    %p229 = scmp.eq.s32.totalorder %s18, 1
    %p230 = scmp.ne.s32.totalorder %s225, %s227
    %p231 = scmp.eq.s32.totalorder %s18, 0
    %p232 = por %p230, %p231
    %p233 = scmp.ne.s32.totalorder %s225, %s227
    %p234 = scmp.eq.s32.totalorder %s23, 1
    %p235 = por %p233, %p234
    %p236 = scmp.ne.s32.totalorder %s227, %s228
    %p237 = scmp.eq.s32.totalorder %s23, 0
    %p238 = por %p236, %p237
    %p239 = scmp.ne.s32.totalorder %s227, %s228
    %p240 = scmp.eq.s32.totalorder %s24, 1
    %p241 = por %p239, %p240
    %p243 = scmp.ne.s32.totalorder %s228, %s242
    %p244 = scmp.eq.s32.totalorder %s24, 0
    %p245 = por %p243, %p244
    %s246 = ssub.s32 %s18, %s25
    %p247 = scmp.eq.s32.totalorder %s246, 0
    %s249 = sadd.s32 %s248, 1
    %s250 = scalar_select %p247, %s248, %s249
    %p253 = pneg %p247
    %p254 = scmp.eq.s32.totalorder %s18, 1
    %p255 = por %p253, %p254
    %p256 = scmp.ne.s32.totalorder %s248, %s251
    %p257 = scmp.eq.s32.totalorder %s18, 0
    %p258 = por %p256, %p257
    %p259 = scmp.ne.s32.totalorder %s248, %s251
    %p260 = scmp.eq.s32.totalorder %s23, 1
    %p261 = por %p259, %p260
    %p262 = scmp.ne.s32.totalorder %s251, %s252
    %p263 = scmp.eq.s32.totalorder %s23, 0
    %p264 = por %p262, %p263
    %p265 = scmp.ne.s32.totalorder %s251, %s252
    %p266 = scmp.eq.s32.totalorder %s24, 1
    %p267 = por %p265, %p266
    %p269 = scmp.ne.s32.totalorder %s252, %s268
    %p270 = scmp.eq.s32.totalorder %s24, 0
    %p271 = por %p269, %p270
    %s272 = ssub.s32 %s18, %s25
    %p273 = scmp.eq.s32.totalorder %s272, 0
    %s275 = sadd.s32 %s274, 1
    %s276 = scalar_select %p273, %s274, %s275
    %p279 = pneg %p273
    %p280 = scmp.eq.s32.totalorder %s18, 1
    %p281 = por %p279, %p280
    %p282 = scmp.ne.s32.totalorder %s274, %s277
    %p283 = scmp.eq.s32.totalorder %s18, 0
    %p284 = por %p282, %p283
    %p285 = scmp.ne.s32.totalorder %s274, %s277
    %p286 = scmp.eq.s32.totalorder %s23, 1
    %p287 = por %p285, %p286
    %p288 = scmp.ne.s32.totalorder %s277, %s278
    %p289 = scmp.eq.s32.totalorder %s23, 0
    %p290 = por %p288, %p289
    %p291 = scmp.ne.s32.totalorder %s277, %s278
    %p292 = scmp.eq.s32.totalorder %s24, 1
    %p293 = por %p291, %p292
    %p295 = scmp.ne.s32.totalorder %s278, %s294
    %p296 = scmp.eq.s32.totalorder %s24, 0
    %p297 = por %p295, %p296
    %p298 = scmp.le.s32.totalorder 1, %s18
    %p299 = scmp.lt.s32.totalorder %s18, 3
    %p300 = pnand %p298, %p299
    %p301 = pneg %p300
    // Predicated region
    $region9: #{_lambda_.1} parent=5 // pred_check
      _
    $region10: #{_lambda_.1} parent=5 // pred_check_branch
      %303 = sbr.rel (%p300) target = $region12
    $region11: #{_lambda_.1} parent=5 // pred_region
      %s304 = ssub.s32 %s18, 1
      // Predicated region
      $region13: #{_lambda_.1} parent=11 // pred_check
        %p305 = pneg %p91
      $region14: #{_lambda_.1} parent=11 // pred_check_branch
        %307 = sbr.rel (%p305) target = $region16
      $region15: #{_lambda_.1} parent=11 // pred_region
        _
      $region16: #{_lambda_.1} parent=11 // pred_fallthru
        _
      // Predicated region
      $region17: #{_lambda_.1} parent=11 // pred_check
        %p308 = pneg %p112
      $region18: #{_lambda_.1} parent=11 // pred_check_branch
        %310 = sbr.rel (%p308) target = $region20
      $region19: #{_lambda_.1} parent=11 // pred_region
        _
      $region20: #{_lambda_.1} parent=11 // pred_fallthru
        _
      // Predicated region
      $region21: #{_lambda_.1} parent=11 // pred_check
        %p311 = pneg %p133
      $region22: #{_lambda_.1} parent=11 // pred_check_branch
        %313 = sbr.rel (%p311) target = $region24
      $region23: #{_lambda_.1} parent=11 // pred_region
        _
      $region24: #{_lambda_.1} parent=11 // pred_fallthru
        _
      // Predicated region
      $region25: #{_lambda_.1} parent=11 // pred_check
        %p314 = pneg %p154
      $region26: #{_lambda_.1} parent=11 // pred_check_branch
        %316 = sbr.rel (%p314) target = $region28
      $region27: #{_lambda_.1} parent=11 // pred_region
        _
      $region28: #{_lambda_.1} parent=11 // pred_fallthru
        _
      // Predicated region
      $region29: #{_lambda_.1} parent=11 // pred_check
        %p317 = pneg %p175
      $region30: #{_lambda_.1} parent=11 // pred_check_branch
        %319 = sbr.rel (%p317) target = $region32
      $region31: #{_lambda_.1} parent=11 // pred_region
        _
      $region32: #{_lambda_.1} parent=11 // pred_fallthru
        _
      // Predicated region
      $region33: #{_lambda_.1} parent=11 // pred_check
        %p320 = pneg %p196
      $region34: #{_lambda_.1} parent=11 // pred_check_branch
        %322 = sbr.rel (%p320) target = $region36
      $region35: #{_lambda_.1} parent=11 // pred_region
        _
      $region36: #{_lambda_.1} parent=11 // pred_fallthru
        _
      // Predicated region
      $region37: #{_lambda_.1} parent=11 // pred_check
        %p323 = pneg %p217
      $region38: #{_lambda_.1} parent=11 // pred_check_branch
        %325 = sbr.rel (%p323) target = $region40
      $region39: #{_lambda_.1} parent=11 // pred_region
        _
      $region40: #{_lambda_.1} parent=11 // pred_fallthru
        _
      // Predicated region
      $region41: #{_lambda_.1} parent=11 // pred_check
        %p326 = pneg %p238
      $region42: #{_lambda_.1} parent=11 // pred_check_branch
        %328 = sbr.rel (%p326) target = $region44
      $region43: #{_lambda_.1} parent=11 // pred_region
        _
      $region44: #{_lambda_.1} parent=11 // pred_fallthru
        _
    $region12: #{_lambda_.1} parent=5 // pred_fallthru
      _
    %p329 = scmp.lt.s32.totalorder %s18, 2
    // Predicated region
    $region45: #{_lambda_.1} parent=5 // pred_check
      %p330 = pneg %p329
    $region46: #{_lambda_.1} parent=5 // pred_check_branch
      %332 = sbr.rel (%p330) target = $region48
    $region47: #{_lambda_.1} parent=5 // pred_region
      // Predicated region
      $region49: #{_lambda_.1} parent=47 // pred_check
        %p333 = pneg %p38
      $region50: #{_lambda_.1} parent=47 // pred_check_branch
        %335 = sbr.rel (%p333) target = $region52
      $region51: #{_lambda_.1} parent=47 // pred_region
        %s336 = smul.u32 32, %s18
        %p337 = scmp.lt.s32.totalorder %s336, 63
        %s338 = scalar_select %p337, %s336, 63
        %s339 = smul.addr %s338, 7
        %s340 = smul.addr %s339, 8
        %s341 = scalar_lea.vmem %s0, %s340
        %s342 = smul.u32 32, %s18
      $region52: #{_lambda_.1} parent=47 // pred_fallthru
        _
      // Predicated region
      $region53: #{_lambda_.1} parent=47 // pred_check
        %p343 = pneg %p64
      $region54: #{_lambda_.1} parent=47 // pred_check_branch
        %345 = sbr.rel (%p343) target = $region56
      $region55: #{_lambda_.1} parent=47 // pred_region
        %s346 = smul.u32 32, %s18
        %p347 = scmp.lt.s32.totalorder %s346, 63
        %s348 = scalar_select %p347, %s346, 63
        %s349 = smul.addr %s348, 8
        %s350 = scalar_lea.vmem %s1, %s349
        %s351 = smul.u32 32, %s18
      $region56: #{_lambda_.1} parent=47 // pred_fallthru
        _
    $region48: #{_lambda_.1} parent=5 // pred_fallthru
      _
    %p352 = scmp.le.s32.totalorder 1, %s18
    %p353 = scmp.lt.s32.totalorder %s18, 3
    %p354 = pnand %p352, %p353
    %p355 = pneg %p354
    // Predicated region
    $region57: #{_lambda_.1} parent=5 // pred_check
      _
    $region58: #{_lambda_.1} parent=5 // pred_check_branch
      %357 = sbr.rel (%p354) target = $region60
    $region59: #{_lambda_.1} parent=5 // pred_region
      %s358 = ssub.s32 %s18, 1
      %s359 = smul.u32 32, %s23
      %p360 = scmp.lt.s32.totalorder %s359, 63
      %s361 = scalar_select %p360, %s359, 63
      %s362 = smul.addr %s361, 7
      %s363 = smul.addr %s362, 8
      %s364 = scalar_lea.vmem %s0, %s363
      %p365 = pneg %p44
      %p366 = pneg %p41
      %s367 = smul.u32 32, %s23
      %p368 = scmp.lt.s32.totalorder %s367, 63
      %s369 = scalar_select %p368, %s367, 63
      %s370 = smul.addr %s369, 8
      %s371 = scalar_lea.vmem %s1, %s370
      %p372 = pneg %p70
      %p373 = pneg %p67
      %p374 = pneg %p91
      %p375 = pneg %p88
      %p376 = pneg %p112
      %p377 = pneg %p109
      %p378 = pneg %p133
      %p379 = pneg %p130
      %p380 = pneg %p154
      %p381 = pneg %p151
      %p382 = pneg %p175
      %p383 = pneg %p172
      %p384 = pneg %p196
      %p385 = pneg %p193
      %p386 = pneg %p217
      %p387 = pneg %p214
      %p388 = pneg %p238
      %p389 = pneg %p235
      %p390 = pneg %p264
      %p391 = pneg %p261
      %s392 = smul.u32 32, %s23
      %p393 = scmp.lt.s32.totalorder %s392, 63
      %s394 = scalar_select %p393, %s392, 63
      %s395 = smul.addr %s394, 8
      %s396 = scalar_lea.vmem %s10, %s395
      %p397 = pneg %p290
      %p398 = pneg %p287
      %s399 = smul.u32 32, %s23
      %p400 = scmp.lt.s32.totalorder %s399, 63
      %s401 = scalar_select %p400, %s399, 63
      %s402 = smul.addr %s401, 7
      %s403 = smul.addr %s402, 8
      %s404 = scalar_lea.vmem %s11, %s403
      %s405 = smul.u32 32, %s23
      %p406 = scmp.lt.s32.totalorder %s405, 63
      %s407 = scalar_select %p406, %s405, 63
      %s408 = smul.addr %s407, 7
      %s409 = smul.addr %s408, 8
      %s410 = scalar_lea.vmem %s0, %s409
      %s411 = smul.u32 32, %s23
      %s412 = smul.u32 32, %s23
      %p413 = scmp.lt.s32.totalorder %s412, 63
      %s414 = scalar_select %p413, %s412, 63
      %s415 = smul.addr %s414, 8
      %s416 = scalar_lea.vmem %s1, %s415
      %s417 = smul.u32 32, %s23
      %s418 = smul.u32 32, %s23
      %p419 = scmp.lt.s32.totalorder %s418, 63
      %s420 = scalar_select %p419, %s418, 63
      %s421 = smul.addr %s420, 8
      %s422 = scalar_lea.vmem %s10, %s421
      %s423 = smul.u32 32, %s23
      %s424 = smul.u32 32, %s23
      %p425 = scmp.lt.s32.totalorder %s424, 63
      %s426 = scalar_select %p425, %s424, 63
      %s427 = smul.addr %s426, 7
      %s428 = smul.addr %s427, 8
      %s429 = scalar_lea.vmem %s11, %s428
      %s430 = smul.u32 32, %s23
      %v432 = vld [vmem:[%s410] sm:$0xff]
      %v433 = vld [vmem:[%s410 + $0x8] sm:$0xff]
      %v434 = vld [vmem:[%s410 + $0x10] sm:$0xff]
      %v435 = vld [vmem:[%s410 + $0x18] sm:$0xff]
      %v436 = vld [vmem:[%s410 + $0x20] sm:$0xff]
      %v437 = vld [vmem:[%s410 + $0x28] sm:$0xff]
      %v438 = vld [vmem:[%s410 + $0x30] sm:$0xff]
      %v439 = vld [vmem:[%s410 + $0x38] sm:$0xff]
      %v440 = vld [vmem:[%s410 + $0x40] sm:$0xff]
      %v441 = vld [vmem:[%s410 + $0x48] sm:$0xff]
      %v442 = vld [vmem:[%s410 + $0x50] sm:$0xff]
      %v443 = vld [vmem:[%s410 + $0x58] sm:$0xff]
      %v444 = vld [vmem:[%s410 + $0x60] sm:$0xff]
      %v445 = vld [vmem:[%s410 + $0x68] sm:$0xff]
      %v446 = vld [vmem:[%s410 + $0x70] sm:$0xff]
      %v447 = vld [vmem:[%s410 + $0x78] sm:$0xff]
      %v448 = vld [vmem:[%s410 + $0x80] sm:$0xff]
      %v449 = vld [vmem:[%s410 + $0x88] sm:$0xff]
      %v450 = vld [vmem:[%s410 + $0x90] sm:$0xff]
      %v451 = vld [vmem:[%s410 + $0x98] sm:$0xff]
      %v452 = vld [vmem:[%s410 + $0xa0] sm:$0xff]
      %v453 = vld [vmem:[%s410 + $0xa8] sm:$0xff]
      %v454 = vld [vmem:[%s410 + $0xb0] sm:$0xff]
      %v455 = vld [vmem:[%s410 + $0xb8] sm:$0xff]
      %v456 = vld [vmem:[%s410 + $0xc0] sm:$0xff]
      %v457 = vld [vmem:[%s410 + $0xc8] sm:$0xff]
      %v458 = vld [vmem:[%s410 + $0xd0] sm:$0xff]
      %v459 = vld [vmem:[%s410 + $0xd8] sm:$0xff]
      %v460 = vld [vmem:[%s410 + $0xe0] sm:$0xff]
      %v461 = vld [vmem:[%s410 + $0xe8] sm:$0xff]
      %v462 = vld [vmem:[%s410 + $0xf0] sm:$0xff]
      %v463 = vld [vmem:[%s410 + $0xf8] sm:$0xff]
      %v464 = vld [vmem:[%s410 + $0x100] sm:$0xff]
      %v465 = vld [vmem:[%s410 + $0x108] sm:$0xff]
      %v466 = vld [vmem:[%s410 + $0x110] sm:$0xff]
      %v467 = vld [vmem:[%s410 + $0x118] sm:$0xff]
      %v468 = vld [vmem:[%s410 + $0x120] sm:$0xff]
      %v469 = vld [vmem:[%s410 + $0x128] sm:$0xff]
      %v470 = vld [vmem:[%s410 + $0x130] sm:$0xff]
      %v471 = vld [vmem:[%s410 + $0x138] sm:$0xff]
      %v472 = vld [vmem:[%s410 + $0x140] sm:$0xff]
      %v473 = vld [vmem:[%s410 + $0x148] sm:$0xff]
      %v474 = vld [vmem:[%s410 + $0x150] sm:$0xff]
      %v475 = vld [vmem:[%s410 + $0x158] sm:$0xff]
      %v476 = vld [vmem:[%s410 + $0x160] sm:$0xff]
      %v477 = vld [vmem:[%s410 + $0x168] sm:$0xff]
      %v478 = vld [vmem:[%s410 + $0x170] sm:$0xff]
      %v479 = vld [vmem:[%s410 + $0x178] sm:$0xff]
      %v480 = vld [vmem:[%s410 + $0x180] sm:$0xff]
      %v481 = vld [vmem:[%s410 + $0x188] sm:$0xff]
      %v482 = vld [vmem:[%s410 + $0x190] sm:$0xff]
      %v483 = vld [vmem:[%s410 + $0x198] sm:$0xff]
      %v484 = vld [vmem:[%s410 + $0x1a0] sm:$0xff]
      %v485 = vld [vmem:[%s410 + $0x1a8] sm:$0xff]
      %v486 = vld [vmem:[%s410 + $0x1b0] sm:$0xff]
      %v487 = vld [vmem:[%s410 + $0x1b8] sm:$0xff]
      %v488 = vld [vmem:[%s410 + $0x1c0] sm:$0xff]
      %v489 = vld [vmem:[%s410 + $0x1c8] sm:$0xff]
      %v490 = vld [vmem:[%s410 + $0x1d0] sm:$0xff]
      %v491 = vld [vmem:[%s410 + $0x1d8] sm:$0xff]
      %v492 = vld [vmem:[%s410 + $0x1e0] sm:$0xff]
      %v493 = vld [vmem:[%s410 + $0x1e8] sm:$0xff]
      %v494 = vld [vmem:[%s410 + $0x1f0] sm:$0xff]
      %v495 = vld [vmem:[%s410 + $0x1f8] sm:$0xff]
      %v496 = vld [vmem:[%s410 + $0x200] sm:$0xff]
      %v497 = vld [vmem:[%s410 + $0x208] sm:$0xff]
      %v498 = vld [vmem:[%s410 + $0x210] sm:$0xff]
      %v499 = vld [vmem:[%s410 + $0x218] sm:$0xff]
      %v500 = vld [vmem:[%s410 + $0x220] sm:$0xff]
      %v501 = vld [vmem:[%s410 + $0x228] sm:$0xff]
      %v502 = vld [vmem:[%s410 + $0x230] sm:$0xff]
      %v503 = vld [vmem:[%s410 + $0x238] sm:$0xff]
      %v504 = vld [vmem:[%s410 + $0x240] sm:$0xff]
      %v505 = vld [vmem:[%s410 + $0x248] sm:$0xff]
      %v506 = vld [vmem:[%s410 + $0x250] sm:$0xff]
      %v507 = vld [vmem:[%s410 + $0x258] sm:$0xff]
      %v508 = vld [vmem:[%s410 + $0x260] sm:$0xff]
      %v509 = vld [vmem:[%s410 + $0x268] sm:$0xff]
      %v510 = vld [vmem:[%s410 + $0x270] sm:$0xff]
      %v511 = vld [vmem:[%s410 + $0x278] sm:$0xff]
      %v512 = vld [vmem:[%s410 + $0x280] sm:$0xff]
      %v513 = vld [vmem:[%s410 + $0x288] sm:$0xff]
      %v514 = vld [vmem:[%s410 + $0x290] sm:$0xff]
      %v515 = vld [vmem:[%s410 + $0x298] sm:$0xff]
      %v516 = vld [vmem:[%s410 + $0x2a0] sm:$0xff]
      %v517 = vld [vmem:[%s410 + $0x2a8] sm:$0xff]
      %v518 = vld [vmem:[%s410 + $0x2b0] sm:$0xff]
      %v519 = vld [vmem:[%s410 + $0x2b8] sm:$0xff]
      %v520 = vld [vmem:[%s410 + $0x2c0] sm:$0xff]
      %v521 = vld [vmem:[%s410 + $0x2c8] sm:$0xff]
      %v522 = vld [vmem:[%s410 + $0x2d0] sm:$0xff]
      %v523 = vld [vmem:[%s410 + $0x2d8] sm:$0xff]
      %v524 = vld [vmem:[%s410 + $0x2e0] sm:$0xff]
      %v525 = vld [vmem:[%s410 + $0x2e8] sm:$0xff]
      %v526 = vld [vmem:[%s410 + $0x2f0] sm:$0xff]
      %v527 = vld [vmem:[%s410 + $0x2f8] sm:$0xff]
      %v528 = vld [vmem:[%s410 + $0x300] sm:$0xff]
      %v529 = vld [vmem:[%s410 + $0x308] sm:$0xff]
      %v530 = vld [vmem:[%s410 + $0x310] sm:$0xff]
      %v531 = vld [vmem:[%s410 + $0x318] sm:$0xff]
      %v532 = vld [vmem:[%s410 + $0x320] sm:$0xff]
      %v533 = vld [vmem:[%s410 + $0x328] sm:$0xff]
      %v534 = vld [vmem:[%s410 + $0x330] sm:$0xff]
      %v535 = vld [vmem:[%s410 + $0x338] sm:$0xff]
      %v536 = vld [vmem:[%s410 + $0x340] sm:$0xff]
      %v537 = vld [vmem:[%s410 + $0x348] sm:$0xff]
      %v538 = vld [vmem:[%s410 + $0x350] sm:$0xff]
      %v539 = vld [vmem:[%s410 + $0x358] sm:$0xff]
      %v540 = vld [vmem:[%s410 + $0x360] sm:$0xff]
      %v541 = vld [vmem:[%s410 + $0x368] sm:$0xff]
      %v542 = vld [vmem:[%s410 + $0x370] sm:$0xff]
      %v543 = vld [vmem:[%s410 + $0x378] sm:$0xff]
      %v544 = vld [vmem:[%s410 + $0x380] sm:$0xff]
      %v545 = vld [vmem:[%s410 + $0x388] sm:$0xff]
      %v546 = vld [vmem:[%s410 + $0x390] sm:$0xff]
      %v547 = vld [vmem:[%s410 + $0x398] sm:$0xff]
      %v548 = vld [vmem:[%s410 + $0x3a0] sm:$0xff]
      %v549 = vld [vmem:[%s410 + $0x3a8] sm:$0xff]
      %v550 = vld [vmem:[%s410 + $0x3b0] sm:$0xff]
      %v551 = vld [vmem:[%s410 + $0x3b8] sm:$0xff]
      %v552 = vld [vmem:[%s410 + $0x3c0] sm:$0xff]
      %v553 = vld [vmem:[%s410 + $0x3c8] sm:$0xff]
      %v554 = vld [vmem:[%s410 + $0x3d0] sm:$0xff]
      %v555 = vld [vmem:[%s410 + $0x3d8] sm:$0xff]
      %v556 = vld [vmem:[%s410 + $0x3e0] sm:$0xff]
      %v557 = vld [vmem:[%s410 + $0x3e8] sm:$0xff]
      %v558 = vld [vmem:[%s410 + $0x3f0] sm:$0xff]
      %v559 = vld [vmem:[%s410 + $0x3f8] sm:$0xff]
      %v560 = vld [vmem:[%s410 + $0x400] sm:$0xff]
      %v561 = vld [vmem:[%s410 + $0x408] sm:$0xff]
      %v562 = vld [vmem:[%s410 + $0x410] sm:$0xff]
      %v563 = vld [vmem:[%s410 + $0x418] sm:$0xff]
      %v564 = vld [vmem:[%s410 + $0x420] sm:$0xff]
      %v565 = vld [vmem:[%s410 + $0x428] sm:$0xff]
      %v566 = vld [vmem:[%s410 + $0x430] sm:$0xff]
      %v567 = vld [vmem:[%s410 + $0x438] sm:$0xff]
      %v568 = vld [vmem:[%s410 + $0x440] sm:$0xff]
      %v569 = vld [vmem:[%s410 + $0x448] sm:$0xff]
      %v570 = vld [vmem:[%s410 + $0x450] sm:$0xff]
      %v571 = vld [vmem:[%s410 + $0x458] sm:$0xff]
      %v572 = vld [vmem:[%s410 + $0x460] sm:$0xff]
      %v573 = vld [vmem:[%s410 + $0x468] sm:$0xff]
      %v574 = vld [vmem:[%s410 + $0x470] sm:$0xff]
      %v575 = vld [vmem:[%s410 + $0x478] sm:$0xff]
      %v576 = vld [vmem:[%s410 + $0x480] sm:$0xff]
      %v577 = vld [vmem:[%s410 + $0x488] sm:$0xff]
      %v578 = vld [vmem:[%s410 + $0x490] sm:$0xff]
      %v579 = vld [vmem:[%s410 + $0x498] sm:$0xff]
      %v580 = vld [vmem:[%s410 + $0x4a0] sm:$0xff]
      %v581 = vld [vmem:[%s410 + $0x4a8] sm:$0xff]
      %v582 = vld [vmem:[%s410 + $0x4b0] sm:$0xff]
      %v583 = vld [vmem:[%s410 + $0x4b8] sm:$0xff]
      %v584 = vld [vmem:[%s410 + $0x4c0] sm:$0xff]
      %v585 = vld [vmem:[%s410 + $0x4c8] sm:$0xff]
      %v586 = vld [vmem:[%s410 + $0x4d0] sm:$0xff]
      %v587 = vld [vmem:[%s410 + $0x4d8] sm:$0xff]
      %v588 = vld [vmem:[%s410 + $0x4e0] sm:$0xff]
      %v589 = vld [vmem:[%s410 + $0x4e8] sm:$0xff]
      %v590 = vld [vmem:[%s410 + $0x4f0] sm:$0xff]
      %v591 = vld [vmem:[%s410 + $0x4f8] sm:$0xff]
      %v592 = vld [vmem:[%s410 + $0x500] sm:$0xff]
      %v593 = vld [vmem:[%s410 + $0x508] sm:$0xff]
      %v594 = vld [vmem:[%s410 + $0x510] sm:$0xff]
      %v595 = vld [vmem:[%s410 + $0x518] sm:$0xff]
      %v596 = vld [vmem:[%s410 + $0x520] sm:$0xff]
      %v597 = vld [vmem:[%s410 + $0x528] sm:$0xff]
      %v598 = vld [vmem:[%s410 + $0x530] sm:$0xff]
      %v599 = vld [vmem:[%s410 + $0x538] sm:$0xff]
      %v600 = vld [vmem:[%s410 + $0x540] sm:$0xff]
      %v601 = vld [vmem:[%s410 + $0x548] sm:$0xff]
      %v602 = vld [vmem:[%s410 + $0x550] sm:$0xff]
      %v603 = vld [vmem:[%s410 + $0x558] sm:$0xff]
      %v604 = vld [vmem:[%s410 + $0x560] sm:$0xff]
      %v605 = vld [vmem:[%s410 + $0x568] sm:$0xff]
      %v606 = vld [vmem:[%s410 + $0x570] sm:$0xff]
      %v607 = vld [vmem:[%s410 + $0x578] sm:$0xff]
      %v608 = vld [vmem:[%s410 + $0x580] sm:$0xff]
      %v609 = vld [vmem:[%s410 + $0x588] sm:$0xff]
      %v610 = vld [vmem:[%s410 + $0x590] sm:$0xff]
      %v611 = vld [vmem:[%s410 + $0x598] sm:$0xff]
      %v612 = vld [vmem:[%s410 + $0x5a0] sm:$0xff]
      %v613 = vld [vmem:[%s410 + $0x5a8] sm:$0xff]
      %v614 = vld [vmem:[%s410 + $0x5b0] sm:$0xff]
      %v615 = vld [vmem:[%s410 + $0x5b8] sm:$0xff]
      %v616 = vld [vmem:[%s410 + $0x5c0] sm:$0xff]
      %v617 = vld [vmem:[%s410 + $0x5c8] sm:$0xff]
      %v618 = vld [vmem:[%s410 + $0x5d0] sm:$0xff]
      %v619 = vld [vmem:[%s410 + $0x5d8] sm:$0xff]
      %v620 = vld [vmem:[%s410 + $0x5e0] sm:$0xff]
      %v621 = vld [vmem:[%s410 + $0x5e8] sm:$0xff]
      %v622 = vld [vmem:[%s410 + $0x5f0] sm:$0xff]
      %v623 = vld [vmem:[%s410 + $0x5f8] sm:$0xff]
      %v624 = vld [vmem:[%s410 + $0x600] sm:$0xff]
      %v625 = vld [vmem:[%s410 + $0x608] sm:$0xff]
      %v626 = vld [vmem:[%s410 + $0x610] sm:$0xff]
      %v627 = vld [vmem:[%s410 + $0x618] sm:$0xff]
      %v628 = vld [vmem:[%s410 + $0x620] sm:$0xff]
      %v629 = vld [vmem:[%s410 + $0x628] sm:$0xff]
      %v630 = vld [vmem:[%s410 + $0x630] sm:$0xff]
      %v631 = vld [vmem:[%s410 + $0x638] sm:$0xff]
      %v632 = vld [vmem:[%s410 + $0x640] sm:$0xff]
      %v633 = vld [vmem:[%s410 + $0x648] sm:$0xff]
      %v634 = vld [vmem:[%s410 + $0x650] sm:$0xff]
      %v635 = vld [vmem:[%s410 + $0x658] sm:$0xff]
      %v636 = vld [vmem:[%s410 + $0x660] sm:$0xff]
      %v637 = vld [vmem:[%s410 + $0x668] sm:$0xff]
      %v638 = vld [vmem:[%s410 + $0x670] sm:$0xff]
      %v639 = vld [vmem:[%s410 + $0x678] sm:$0xff]
      %v640 = vld [vmem:[%s410 + $0x680] sm:$0xff]
      %v641 = vld [vmem:[%s410 + $0x688] sm:$0xff]
      %v642 = vld [vmem:[%s410 + $0x690] sm:$0xff]
      %v643 = vld [vmem:[%s410 + $0x698] sm:$0xff]
      %v644 = vld [vmem:[%s410 + $0x6a0] sm:$0xff]
      %v645 = vld [vmem:[%s410 + $0x6a8] sm:$0xff]
      %v646 = vld [vmem:[%s410 + $0x6b0] sm:$0xff]
      %v647 = vld [vmem:[%s410 + $0x6b8] sm:$0xff]
      %v648 = vld [vmem:[%s410 + $0x6c0] sm:$0xff]
      %v649 = vld [vmem:[%s410 + $0x6c8] sm:$0xff]
      %v650 = vld [vmem:[%s410 + $0x6d0] sm:$0xff]
      %v651 = vld [vmem:[%s410 + $0x6d8] sm:$0xff]
      %v652 = vld [vmem:[%s410 + $0x6e0] sm:$0xff]
      %v653 = vld [vmem:[%s410 + $0x6e8] sm:$0xff]
      %v654 = vld [vmem:[%s410 + $0x6f0] sm:$0xff]
      %v655 = vld [vmem:[%s410 + $0x6f8] sm:$0xff]
      %v656 = vpack.c.bf16 %v439, %v432
      %v657 = vpack.c.bf16 %v440, %v433
      %v658 = vpack.c.bf16 %v441, %v434
      %v659 = vpack.c.bf16 %v442, %v435
      %v660 = vpack.c.bf16 %v443, %v436
      %v661 = vpack.c.bf16 %v444, %v437
      %v662 = vpack.c.bf16 %v445, %v438
      %v663 = vpack.c.bf16 %v453, %v446
      %v664 = vpack.c.bf16 %v454, %v447
      %v665 = vpack.c.bf16 %v455, %v448
      %v666 = vpack.c.bf16 %v456, %v449
      %v667 = vpack.c.bf16 %v457, %v450
      %v668 = vpack.c.bf16 %v458, %v451
      %v669 = vpack.c.bf16 %v459, %v452
      %v670 = vpack.c.bf16 %v467, %v460
      %v671 = vpack.c.bf16 %v468, %v461
      %v672 = vpack.c.bf16 %v469, %v462
      %v673 = vpack.c.bf16 %v470, %v463
      %v674 = vpack.c.bf16 %v471, %v464
      %v675 = vpack.c.bf16 %v472, %v465
      %v676 = vpack.c.bf16 %v473, %v466
      %v677 = vpack.c.bf16 %v481, %v474
      %v678 = vpack.c.bf16 %v482, %v475
      %v679 = vpack.c.bf16 %v483, %v476
      %v680 = vpack.c.bf16 %v484, %v477
      %v681 = vpack.c.bf16 %v485, %v478
      %v682 = vpack.c.bf16 %v486, %v479
      %v683 = vpack.c.bf16 %v487, %v480
      %v684 = vpack.c.bf16 %v495, %v488
      %v685 = vpack.c.bf16 %v496, %v489
      %v686 = vpack.c.bf16 %v497, %v490
      %v687 = vpack.c.bf16 %v498, %v491
      %v688 = vpack.c.bf16 %v499, %v492
      %v689 = vpack.c.bf16 %v500, %v493
      %v690 = vpack.c.bf16 %v501, %v494
      %v691 = vpack.c.bf16 %v509, %v502
      %v692 = vpack.c.bf16 %v510, %v503
      %v693 = vpack.c.bf16 %v511, %v504
      %v694 = vpack.c.bf16 %v512, %v505
      %v695 = vpack.c.bf16 %v513, %v506
      %v696 = vpack.c.bf16 %v514, %v507
      %v697 = vpack.c.bf16 %v515, %v508
      %v698 = vpack.c.bf16 %v523, %v516
      %v699 = vpack.c.bf16 %v524, %v517
      %v700 = vpack.c.bf16 %v525, %v518
      %v701 = vpack.c.bf16 %v526, %v519
      %v702 = vpack.c.bf16 %v527, %v520
      %v703 = vpack.c.bf16 %v528, %v521
      %v704 = vpack.c.bf16 %v529, %v522
      %v705 = vpack.c.bf16 %v537, %v530
      %v706 = vpack.c.bf16 %v538, %v531
      %v707 = vpack.c.bf16 %v539, %v532
      %v708 = vpack.c.bf16 %v540, %v533
      %v709 = vpack.c.bf16 %v541, %v534
      %v710 = vpack.c.bf16 %v542, %v535
      %v711 = vpack.c.bf16 %v543, %v536
      %v712 = vpack.c.bf16 %v551, %v544
      %v713 = vpack.c.bf16 %v552, %v545
      %v714 = vpack.c.bf16 %v553, %v546
      %v715 = vpack.c.bf16 %v554, %v547
      %v716 = vpack.c.bf16 %v555, %v548
      %v717 = vpack.c.bf16 %v556, %v549
      %v718 = vpack.c.bf16 %v557, %v550
      %v719 = vpack.c.bf16 %v565, %v558
      %v720 = vpack.c.bf16 %v566, %v559
      %v721 = vpack.c.bf16 %v567, %v560
      %v722 = vpack.c.bf16 %v568, %v561
      %v723 = vpack.c.bf16 %v569, %v562
      %v724 = vpack.c.bf16 %v570, %v563
      %v725 = vpack.c.bf16 %v571, %v564
      %v726 = vpack.c.bf16 %v579, %v572
      %v727 = vpack.c.bf16 %v580, %v573
      %v728 = vpack.c.bf16 %v581, %v574
      %v729 = vpack.c.bf16 %v582, %v575
      %v730 = vpack.c.bf16 %v583, %v576
      %v731 = vpack.c.bf16 %v584, %v577
      %v732 = vpack.c.bf16 %v585, %v578
      %v733 = vpack.c.bf16 %v593, %v586
      %v734 = vpack.c.bf16 %v594, %v587
      %v735 = vpack.c.bf16 %v595, %v588
      %v736 = vpack.c.bf16 %v596, %v589
      %v737 = vpack.c.bf16 %v597, %v590
      %v738 = vpack.c.bf16 %v598, %v591
      %v739 = vpack.c.bf16 %v599, %v592
      %v740 = vpack.c.bf16 %v607, %v600
      %v741 = vpack.c.bf16 %v608, %v601
      %v742 = vpack.c.bf16 %v609, %v602
      %v743 = vpack.c.bf16 %v610, %v603
      %v744 = vpack.c.bf16 %v611, %v604
      %v745 = vpack.c.bf16 %v612, %v605
      %v746 = vpack.c.bf16 %v613, %v606
      %v747 = vpack.c.bf16 %v621, %v614
      %v748 = vpack.c.bf16 %v622, %v615
      %v749 = vpack.c.bf16 %v623, %v616
      %v750 = vpack.c.bf16 %v624, %v617
      %v751 = vpack.c.bf16 %v625, %v618
      %v752 = vpack.c.bf16 %v626, %v619
      %v753 = vpack.c.bf16 %v627, %v620
      %v754 = vpack.c.bf16 %v635, %v628
      %v755 = vpack.c.bf16 %v636, %v629
      %v756 = vpack.c.bf16 %v637, %v630
      %v757 = vpack.c.bf16 %v638, %v631
      %v758 = vpack.c.bf16 %v639, %v632
      %v759 = vpack.c.bf16 %v640, %v633
      %v760 = vpack.c.bf16 %v641, %v634
      %v761 = vpack.c.bf16 %v649, %v642
      %v762 = vpack.c.bf16 %v650, %v643
      %v763 = vpack.c.bf16 %v651, %v644
      %v764 = vpack.c.bf16 %v652, %v645
      %v765 = vpack.c.bf16 %v653, %v646
      %v766 = vpack.c.bf16 %v654, %v647
      %v767 = vpack.c.bf16 %v655, %v648
      %v768 = vld [vmem:[%s2] sm:$0xff]
      %v769 = vld [vmem:[%s2 + $0x8] sm:$0xff]
      %v770 = vld [vmem:[%s2 + $0x10] sm:$0xff]
      %v771 = vld [vmem:[%s2 + $0x18] sm:$0xff]
      %v772 = vld [vmem:[%s2 + $0x20] sm:$0xff]
      %v773 = vld [vmem:[%s2 + $0x28] sm:$0xff]
      %v774 = vld [vmem:[%s2 + $0x30] sm:$0xff]
      %v775 = vld [vmem:[%s2 + $0x38] sm:$0xff]
      %v776 = vld [vmem:[%s2 + $0x40] sm:$0xff]
      %v777 = vld [vmem:[%s2 + $0x48] sm:$0xff]
      %v778 = vld [vmem:[%s2 + $0x50] sm:$0xff]
      %v779 = vld [vmem:[%s2 + $0x58] sm:$0xff]
      %v780 = vld [vmem:[%s2 + $0x60] sm:$0xff]
      %v781 = vld [vmem:[%s2 + $0x68] sm:$0xff]
      %v782 = vld [vmem:[%s2 + $0x70] sm:$0xff]
      %v783 = vld [vmem:[%s2 + $0x78] sm:$0xff]
      %v784 = vld [vmem:[%s2 + $0x80] sm:$0xff]
      %v785 = vld [vmem:[%s2 + $0x88] sm:$0xff]
      %v786 = vld [vmem:[%s2 + $0x90] sm:$0xff]
      %v787 = vld [vmem:[%s2 + $0x98] sm:$0xff]
      %v788 = vld [vmem:[%s2 + $0xa0] sm:$0xff]
      %v789 = vld [vmem:[%s2 + $0xa8] sm:$0xff]
      %v790 = vld [vmem:[%s2 + $0xb0] sm:$0xff]
      %v791 = vld [vmem:[%s2 + $0xb8] sm:$0xff]
      %v792 = vld [vmem:[%s2 + $0xc0] sm:$0xff]
      %v793 = vld [vmem:[%s2 + $0xc8] sm:$0xff]
      %v794 = vld [vmem:[%s2 + $0xd0] sm:$0xff]
      %v795 = vld [vmem:[%s2 + $0xd8] sm:$0xff]
      %v796 = vld [vmem:[%s2 + $0xe0] sm:$0xff]
      %v797 = vld [vmem:[%s2 + $0xe8] sm:$0xff]
      %v798 = vld [vmem:[%s2 + $0xf0] sm:$0xff]
      %v799 = vld [vmem:[%s2 + $0xf8] sm:$0xff]
      %v800 = vld [vmem:[%s2 + $0x100] sm:$0xff]
      %v801 = vld [vmem:[%s2 + $0x108] sm:$0xff]
      %v802 = vld [vmem:[%s2 + $0x110] sm:$0xff]
      %v803 = vld [vmem:[%s2 + $0x118] sm:$0xff]
      %v804 = vld [vmem:[%s2 + $0x120] sm:$0xff]
      %v805 = vld [vmem:[%s2 + $0x128] sm:$0xff]
      %v806 = vld [vmem:[%s2 + $0x130] sm:$0xff]
      %v807 = vld [vmem:[%s2 + $0x138] sm:$0xff]
      %v808 = vld [vmem:[%s2 + $0x140] sm:$0xff]
      %v809 = vld [vmem:[%s2 + $0x148] sm:$0xff]
      %v810 = vld [vmem:[%s2 + $0x150] sm:$0xff]
      %v811 = vld [vmem:[%s2 + $0x158] sm:$0xff]
      %v812 = vld [vmem:[%s2 + $0x160] sm:$0xff]
      %v813 = vld [vmem:[%s2 + $0x168] sm:$0xff]
      %v814 = vld [vmem:[%s2 + $0x170] sm:$0xff]
      %v815 = vld [vmem:[%s2 + $0x178] sm:$0xff]
      %v816 = vld [vmem:[%s2 + $0x180] sm:$0xff]
      %v817 = vld [vmem:[%s2 + $0x188] sm:$0xff]
      %v818 = vld [vmem:[%s2 + $0x190] sm:$0xff]
      %v819 = vld [vmem:[%s2 + $0x198] sm:$0xff]
      %v820 = vld [vmem:[%s2 + $0x1a0] sm:$0xff]
      %v821 = vld [vmem:[%s2 + $0x1a8] sm:$0xff]
      %v822 = vld [vmem:[%s2 + $0x1b0] sm:$0xff]
      %v823 = vld [vmem:[%s2 + $0x1b8] sm:$0xff]
      %v824 = vld [vmem:[%s2 + $0x1c0] sm:$0xff]
      %v825 = vld [vmem:[%s2 + $0x1c8] sm:$0xff]
      %v826 = vld [vmem:[%s2 + $0x1d0] sm:$0xff]
      %v827 = vld [vmem:[%s2 + $0x1d8] sm:$0xff]
      %v828 = vld [vmem:[%s2 + $0x1e0] sm:$0xff]
      %v829 = vld [vmem:[%s2 + $0x1e8] sm:$0xff]
      %v830 = vld [vmem:[%s2 + $0x1f0] sm:$0xff]
      %v831 = vld [vmem:[%s2 + $0x1f8] sm:$0xff]
      %v832 = vld [vmem:[%s2 + $0x200] sm:$0xff]
      %v833 = vld [vmem:[%s2 + $0x208] sm:$0xff]
      %v834 = vld [vmem:[%s2 + $0x210] sm:$0xff]
      %v835 = vld [vmem:[%s2 + $0x218] sm:$0xff]
      %v836 = vld [vmem:[%s2 + $0x220] sm:$0xff]
      %v837 = vld [vmem:[%s2 + $0x228] sm:$0xff]
      %v838 = vld [vmem:[%s2 + $0x230] sm:$0xff]
      %v839 = vld [vmem:[%s2 + $0x238] sm:$0xff]
      %v840 = vld [vmem:[%s2 + $0x240] sm:$0xff]
      %v841 = vld [vmem:[%s2 + $0x248] sm:$0xff]
      %v842 = vld [vmem:[%s2 + $0x250] sm:$0xff]
      %v843 = vld [vmem:[%s2 + $0x258] sm:$0xff]
      %v844 = vld [vmem:[%s2 + $0x260] sm:$0xff]
      %v845 = vld [vmem:[%s2 + $0x268] sm:$0xff]
      %v846 = vld [vmem:[%s2 + $0x270] sm:$0xff]
      %v847 = vld [vmem:[%s2 + $0x278] sm:$0xff]
      %v848 = vld [vmem:[%s2 + $0x280] sm:$0xff]
      %v849 = vld [vmem:[%s2 + $0x288] sm:$0xff]
      %v850 = vld [vmem:[%s2 + $0x290] sm:$0xff]
      %v851 = vld [vmem:[%s2 + $0x298] sm:$0xff]
      %v852 = vld [vmem:[%s2 + $0x2a0] sm:$0xff]
      %v853 = vld [vmem:[%s2 + $0x2a8] sm:$0xff]
      %v854 = vld [vmem:[%s2 + $0x2b0] sm:$0xff]
      %v855 = vld [vmem:[%s2 + $0x2b8] sm:$0xff]
      %v856 = vld [vmem:[%s2 + $0x2c0] sm:$0xff]
      %v857 = vld [vmem:[%s2 + $0x2c8] sm:$0xff]
      %v858 = vld [vmem:[%s2 + $0x2d0] sm:$0xff]
      %v859 = vld [vmem:[%s2 + $0x2d8] sm:$0xff]
      %v860 = vld [vmem:[%s2 + $0x2e0] sm:$0xff]
      %v861 = vld [vmem:[%s2 + $0x2e8] sm:$0xff]
      %v862 = vld [vmem:[%s2 + $0x2f0] sm:$0xff]
      %v863 = vld [vmem:[%s2 + $0x2f8] sm:$0xff]
      %v864 = vld [vmem:[%s2 + $0x300] sm:$0xff]
      %v865 = vld [vmem:[%s2 + $0x308] sm:$0xff]
      %v866 = vld [vmem:[%s2 + $0x310] sm:$0xff]
      %v867 = vld [vmem:[%s2 + $0x318] sm:$0xff]
      %v868 = vld [vmem:[%s2 + $0x320] sm:$0xff]
      %v869 = vld [vmem:[%s2 + $0x328] sm:$0xff]
      %v870 = vld [vmem:[%s2 + $0x330] sm:$0xff]
      %v871 = vld [vmem:[%s2 + $0x338] sm:$0xff]
      %v872 = vld [vmem:[%s2 + $0x340] sm:$0xff]
      %v873 = vld [vmem:[%s2 + $0x348] sm:$0xff]
      %v874 = vld [vmem:[%s2 + $0x350] sm:$0xff]
      %v875 = vld [vmem:[%s2 + $0x358] sm:$0xff]
      %v876 = vld [vmem:[%s2 + $0x360] sm:$0xff]
      %v877 = vld [vmem:[%s2 + $0x368] sm:$0xff]
      %v878 = vld [vmem:[%s2 + $0x370] sm:$0xff]
      %v879 = vld [vmem:[%s2 + $0x378] sm:$0xff]
      %v880 = vld [vmem:[%s2 + $0x380] sm:$0xff]
      %v881 = vld [vmem:[%s2 + $0x388] sm:$0xff]
      %v882 = vld [vmem:[%s2 + $0x390] sm:$0xff]
      %v883 = vld [vmem:[%s2 + $0x398] sm:$0xff]
      %v884 = vld [vmem:[%s2 + $0x3a0] sm:$0xff]
      %v885 = vld [vmem:[%s2 + $0x3a8] sm:$0xff]
      %v886 = vld [vmem:[%s2 + $0x3b0] sm:$0xff]
      %v887 = vld [vmem:[%s2 + $0x3b8] sm:$0xff]
      %v888 = vld [vmem:[%s2 + $0x3c0] sm:$0xff]
      %v889 = vld [vmem:[%s2 + $0x3c8] sm:$0xff]
      %v890 = vld [vmem:[%s2 + $0x3d0] sm:$0xff]
      %v891 = vld [vmem:[%s2 + $0x3d8] sm:$0xff]
      %v892 = vld [vmem:[%s2 + $0x3e0] sm:$0xff]
      %v893 = vld [vmem:[%s2 + $0x3e8] sm:$0xff]
      %v894 = vld [vmem:[%s2 + $0x3f0] sm:$0xff]
      %v895 = vld [vmem:[%s2 + $0x3f8] sm:$0xff]
      %v896 = vld [vmem:[%s2 + $0x400] sm:$0xff]
      %v897 = vld [vmem:[%s2 + $0x408] sm:$0xff]
      %v898 = vld [vmem:[%s2 + $0x410] sm:$0xff]
      %v899 = vld [vmem:[%s2 + $0x418] sm:$0xff]
      %v900 = vld [vmem:[%s2 + $0x420] sm:$0xff]
      %v901 = vld [vmem:[%s2 + $0x428] sm:$0xff]
      %v902 = vld [vmem:[%s2 + $0x430] sm:$0xff]
      %v903 = vld [vmem:[%s2 + $0x438] sm:$0xff]
      %v904 = vld [vmem:[%s2 + $0x440] sm:$0xff]
      %v905 = vld [vmem:[%s2 + $0x448] sm:$0xff]
      %v906 = vld [vmem:[%s2 + $0x450] sm:$0xff]
      %v907 = vld [vmem:[%s2 + $0x458] sm:$0xff]
      %v908 = vld [vmem:[%s2 + $0x460] sm:$0xff]
      %v909 = vld [vmem:[%s2 + $0x468] sm:$0xff]
      %v910 = vld [vmem:[%s2 + $0x470] sm:$0xff]
      %v911 = vld [vmem:[%s2 + $0x478] sm:$0xff]
      %v912 = vld [vmem:[%s2 + $0x480] sm:$0xff]
      %v913 = vld [vmem:[%s2 + $0x488] sm:$0xff]
      %v914 = vld [vmem:[%s2 + $0x490] sm:$0xff]
      %v915 = vld [vmem:[%s2 + $0x498] sm:$0xff]
      %v916 = vld [vmem:[%s2 + $0x4a0] sm:$0xff]
      %v917 = vld [vmem:[%s2 + $0x4a8] sm:$0xff]
      %v918 = vld [vmem:[%s2 + $0x4b0] sm:$0xff]
      %v919 = vld [vmem:[%s2 + $0x4b8] sm:$0xff]
      %v920 = vld [vmem:[%s2 + $0x4c0] sm:$0xff]
      %v921 = vld [vmem:[%s2 + $0x4c8] sm:$0xff]
      %v922 = vld [vmem:[%s2 + $0x4d0] sm:$0xff]
      %v923 = vld [vmem:[%s2 + $0x4d8] sm:$0xff]
      %v924 = vld [vmem:[%s2 + $0x4e0] sm:$0xff]
      %v925 = vld [vmem:[%s2 + $0x4e8] sm:$0xff]
      %v926 = vld [vmem:[%s2 + $0x4f0] sm:$0xff]
      %v927 = vld [vmem:[%s2 + $0x4f8] sm:$0xff]
      %v928 = vld [vmem:[%s2 + $0x500] sm:$0xff]
      %v929 = vld [vmem:[%s2 + $0x508] sm:$0xff]
      %v930 = vld [vmem:[%s2 + $0x510] sm:$0xff]
      %v931 = vld [vmem:[%s2 + $0x518] sm:$0xff]
      %v932 = vld [vmem:[%s2 + $0x520] sm:$0xff]
      %v933 = vld [vmem:[%s2 + $0x528] sm:$0xff]
      %v934 = vld [vmem:[%s2 + $0x530] sm:$0xff]
      %v935 = vld [vmem:[%s2 + $0x538] sm:$0xff]
      %v936 = vld [vmem:[%s2 + $0x540] sm:$0xff]
      %v937 = vld [vmem:[%s2 + $0x548] sm:$0xff]
      %v938 = vld [vmem:[%s2 + $0x550] sm:$0xff]
      %v939 = vld [vmem:[%s2 + $0x558] sm:$0xff]
      %v940 = vld [vmem:[%s2 + $0x560] sm:$0xff]
      %v941 = vld [vmem:[%s2 + $0x568] sm:$0xff]
      %v942 = vld [vmem:[%s2 + $0x570] sm:$0xff]
      %v943 = vld [vmem:[%s2 + $0x578] sm:$0xff]
      %v944 = vld [vmem:[%s2 + $0x580] sm:$0xff]
      %v945 = vld [vmem:[%s2 + $0x588] sm:$0xff]
      %v946 = vld [vmem:[%s2 + $0x590] sm:$0xff]
      %v947 = vld [vmem:[%s2 + $0x598] sm:$0xff]
      %v948 = vld [vmem:[%s2 + $0x5a0] sm:$0xff]
      %v949 = vld [vmem:[%s2 + $0x5a8] sm:$0xff]
      %v950 = vld [vmem:[%s2 + $0x5b0] sm:$0xff]
      %v951 = vld [vmem:[%s2 + $0x5b8] sm:$0xff]
      %v952 = vld [vmem:[%s2 + $0x5c0] sm:$0xff]
      %v953 = vld [vmem:[%s2 + $0x5c8] sm:$0xff]
      %v954 = vld [vmem:[%s2 + $0x5d0] sm:$0xff]
      %v955 = vld [vmem:[%s2 + $0x5d8] sm:$0xff]
      %v956 = vld [vmem:[%s2 + $0x5e0] sm:$0xff]
      %v957 = vld [vmem:[%s2 + $0x5e8] sm:$0xff]
      %v958 = vld [vmem:[%s2 + $0x5f0] sm:$0xff]
      %v959 = vld [vmem:[%s2 + $0x5f8] sm:$0xff]
      %v960 = vld [vmem:[%s2 + $0x600] sm:$0xff]
      %v961 = vld [vmem:[%s2 + $0x608] sm:$0xff]
      %v962 = vld [vmem:[%s2 + $0x610] sm:$0xff]
      %v963 = vld [vmem:[%s2 + $0x618] sm:$0xff]
      %v964 = vld [vmem:[%s3] sm:$0xf]
      %v966 = vlaneseq
      %v967 = vshrl.u32 %v966, 7
      %v968 = vsub.s32 0, %v967
      %v969 = vrot.slane %v964, %v968
      %v970 = vlaneseq
      %v971 = vshrl.u32 %v970, 7
      %v972 = vsub.s32 1, %v971
      %v973 = vrot.slane %v964, %v972
      %v974 = vlaneseq
      %v975 = vshrl.u32 %v974, 7
      %v976 = vsub.s32 2, %v975
      %v977 = vrot.slane %v964, %v976
      %v978 = vlaneseq
      %v979 = vshrl.u32 %v978, 7
      %v980 = vsub.s32 3, %v979
      %v981 = vrot.slane %v964, %v980
      %v1182 = vunpack.c.l.b16 %v768
      %v1183 = vunpack.c.h.b16 %v768
      %v1184 = vunpack.c.l.b16 %v769
      %v1185 = vunpack.c.h.b16 %v769
      %v1186 = vunpack.c.l.b16 %v770
      %v1187 = vunpack.c.h.b16 %v770
      %v1188 = vunpack.c.l.b16 %v771
      %v1189 = vunpack.c.h.b16 %v771
      %v1190 = vunpack.c.l.b16 %v772
      %v1191 = vunpack.c.h.b16 %v772
      %v1192 = vunpack.c.l.b16 %v773
      %v1193 = vunpack.c.h.b16 %v773
      %v1194 = vunpack.c.l.b16 %v774
      %v1195 = vunpack.c.h.b16 %v774
      %v1196 = vunpack.c.l.b16 %v775
      %v1197 = vunpack.c.h.b16 %v775
      %v1198 = vunpack.c.l.b16 %v776
      %v1199 = vunpack.c.h.b16 %v776
      %v1200 = vunpack.c.l.b16 %v777
      %v1201 = vunpack.c.h.b16 %v777
      %v1202 = vunpack.c.l.b16 %v778
      %v1203 = vunpack.c.h.b16 %v778
      %v1204 = vunpack.c.l.b16 %v779
      %v1205 = vunpack.c.h.b16 %v779
      %v1206 = vunpack.c.l.b16 %v780
      %v1207 = vunpack.c.h.b16 %v780
      %v1208 = vunpack.c.l.b16 %v781
      %v1209 = vunpack.c.h.b16 %v781
      %v1210 = vunpack.c.l.b16 %v782
      %v1211 = vunpack.c.h.b16 %v782
      %v1212 = vunpack.c.l.b16 %v783
      %v1213 = vunpack.c.h.b16 %v783
      %v1214 = vunpack.c.l.b16 %v784
      %v1215 = vunpack.c.h.b16 %v784
      %v1216 = vunpack.c.l.b16 %v785
      %v1217 = vunpack.c.h.b16 %v785
      %v1218 = vunpack.c.l.b16 %v786
      %v1219 = vunpack.c.h.b16 %v786
      %v1220 = vunpack.c.l.b16 %v787
      %v1221 = vunpack.c.h.b16 %v787
      %v1222 = vunpack.c.l.b16 %v788
      %v1223 = vunpack.c.h.b16 %v788
      %v1224 = vunpack.c.l.b16 %v789
      %v1225 = vunpack.c.h.b16 %v789
      %v1226 = vunpack.c.l.b16 %v790
      %v1227 = vunpack.c.h.b16 %v790
      %v1228 = vunpack.c.l.b16 %v791
      %v1229 = vunpack.c.h.b16 %v791
      %v1230 = vunpack.c.l.b16 %v792
      %v1231 = vunpack.c.h.b16 %v792
      %v1232 = vunpack.c.l.b16 %v793
      %v1233 = vunpack.c.h.b16 %v793
      %v1234 = vunpack.c.l.b16 %v794
      %v1235 = vunpack.c.h.b16 %v794
      %v1236 = vunpack.c.l.b16 %v795
      %v1237 = vunpack.c.h.b16 %v795
      %v1238 = vunpack.c.l.b16 %v796
      %v1239 = vunpack.c.h.b16 %v796
      %v1240 = vunpack.c.l.b16 %v797
      %v1241 = vunpack.c.h.b16 %v797
      %v1242 = vunpack.c.l.b16 %v798
      %v1243 = vunpack.c.h.b16 %v798
      %v1244 = vunpack.c.l.b16 %v799
      %v1245 = vunpack.c.h.b16 %v799
      %v1246 = vunpack.c.l.b16 %v800
      %v1247 = vunpack.c.h.b16 %v800
      %v1248 = vunpack.c.l.b16 %v801
      %v1249 = vunpack.c.h.b16 %v801
      %v1250 = vunpack.c.l.b16 %v802
      %v1251 = vunpack.c.h.b16 %v802
      %v1252 = vunpack.c.l.b16 %v803
      %v1253 = vunpack.c.h.b16 %v803
      %v1254 = vunpack.c.l.b16 %v804
      %v1255 = vunpack.c.h.b16 %v804
      %v1256 = vunpack.c.l.b16 %v805
      %v1257 = vunpack.c.h.b16 %v805
      %v1258 = vunpack.c.l.b16 %v806
      %v1259 = vunpack.c.h.b16 %v806
      %v1260 = vunpack.c.l.b16 %v807
      %v1261 = vunpack.c.h.b16 %v807
      %v1262 = vunpack.c.l.b16 %v808
      %v1263 = vunpack.c.h.b16 %v808
      %v1264 = vunpack.c.l.b16 %v809
      %v1265 = vunpack.c.h.b16 %v809
      %v1266 = vunpack.c.l.b16 %v810
      %v1267 = vunpack.c.h.b16 %v810
      %v1268 = vunpack.c.l.b16 %v811
      %v1269 = vunpack.c.h.b16 %v811
      %v1270 = vunpack.c.l.b16 %v812
      %v1271 = vunpack.c.h.b16 %v812
      %v1272 = vunpack.c.l.b16 %v813
      %v1273 = vunpack.c.h.b16 %v813
      %v1274 = vunpack.c.l.b16 %v814
      %v1275 = vunpack.c.h.b16 %v814
      %v1276 = vunpack.c.l.b16 %v815
      %v1277 = vunpack.c.h.b16 %v815
      %v1278 = vunpack.c.l.b16 %v816
      %v1279 = vunpack.c.h.b16 %v816
      %v1280 = vunpack.c.l.b16 %v817
      %v1281 = vunpack.c.h.b16 %v817
      %v1282 = vunpack.c.l.b16 %v818
      %v1283 = vunpack.c.h.b16 %v818
      %v1284 = vunpack.c.l.b16 %v819
      %v1285 = vunpack.c.h.b16 %v819
      %v1286 = vunpack.c.l.b16 %v820
      %v1287 = vunpack.c.h.b16 %v820
      %v1288 = vunpack.c.l.b16 %v821
      %v1289 = vunpack.c.h.b16 %v821
      %v1290 = vunpack.c.l.b16 %v822
      %v1291 = vunpack.c.h.b16 %v822
      %v1292 = vunpack.c.l.b16 %v823
      %v1293 = vunpack.c.h.b16 %v823
      %v1294 = vunpack.c.l.b16 %v824
      %v1295 = vunpack.c.h.b16 %v824
      %v1296 = vunpack.c.l.b16 %v825
      %v1297 = vunpack.c.h.b16 %v825
      %v1298 = vunpack.c.l.b16 %v826
      %v1299 = vunpack.c.h.b16 %v826
      %v1300 = vunpack.c.l.b16 %v827
      %v1301 = vunpack.c.h.b16 %v827
      %v1302 = vunpack.c.l.b16 %v828
      %v1303 = vunpack.c.h.b16 %v828
      %v1304 = vunpack.c.l.b16 %v829
      %v1305 = vunpack.c.h.b16 %v829
      %v1306 = vunpack.c.l.b16 %v830
      %v1307 = vunpack.c.h.b16 %v830
      %v1308 = vunpack.c.l.b16 %v831
      %v1309 = vunpack.c.h.b16 %v831
      %v1310 = vunpack.c.l.b16 %v832
      %v1311 = vunpack.c.h.b16 %v832
      %v1312 = vunpack.c.l.b16 %v833
      %v1313 = vunpack.c.h.b16 %v833
      %v1314 = vunpack.c.l.b16 %v834
      %v1315 = vunpack.c.h.b16 %v834
      %v1316 = vunpack.c.l.b16 %v835
      %v1317 = vunpack.c.h.b16 %v835
      %v1318 = vunpack.c.l.b16 %v836
      %v1319 = vunpack.c.h.b16 %v836
      %v1320 = vunpack.c.l.b16 %v837
      %v1321 = vunpack.c.h.b16 %v837
      %v1322 = vunpack.c.l.b16 %v838
      %v1323 = vunpack.c.h.b16 %v838
      %v1324 = vunpack.c.l.b16 %v839
      %v1325 = vunpack.c.h.b16 %v839
      %v1326 = vunpack.c.l.b16 %v840
      %v1327 = vunpack.c.h.b16 %v840
      %v1328 = vunpack.c.l.b16 %v841
      %v1329 = vunpack.c.h.b16 %v841
      %v1330 = vunpack.c.l.b16 %v842
      %v1331 = vunpack.c.h.b16 %v842
      %v1332 = vunpack.c.l.b16 %v843
      %v1333 = vunpack.c.h.b16 %v843
      %v1334 = vunpack.c.l.b16 %v844
      %v1335 = vunpack.c.h.b16 %v844
      %v1336 = vunpack.c.l.b16 %v845
      %v1337 = vunpack.c.h.b16 %v845
      %v1338 = vunpack.c.l.b16 %v846
      %v1339 = vunpack.c.h.b16 %v846
      %v1340 = vunpack.c.l.b16 %v847
      %v1341 = vunpack.c.h.b16 %v847
      %v1342 = vunpack.c.l.b16 %v848
      %v1343 = vunpack.c.h.b16 %v848
      %v1344 = vunpack.c.l.b16 %v849
      %v1345 = vunpack.c.h.b16 %v849
      %v1346 = vunpack.c.l.b16 %v850
      %v1347 = vunpack.c.h.b16 %v850
      %v1348 = vunpack.c.l.b16 %v851
      %v1349 = vunpack.c.h.b16 %v851
      %v1350 = vunpack.c.l.b16 %v852
      %v1351 = vunpack.c.h.b16 %v852
      %v1352 = vunpack.c.l.b16 %v853
      %v1353 = vunpack.c.h.b16 %v853
      %v1354 = vunpack.c.l.b16 %v854
      %v1355 = vunpack.c.h.b16 %v854
      %v1356 = vunpack.c.l.b16 %v855
      %v1357 = vunpack.c.h.b16 %v855
      %v1358 = vunpack.c.l.b16 %v856
      %v1359 = vunpack.c.h.b16 %v856
      %v1360 = vunpack.c.l.b16 %v857
      %v1361 = vunpack.c.h.b16 %v857
      %v1362 = vunpack.c.l.b16 %v858
      %v1363 = vunpack.c.h.b16 %v858
      %v1364 = vunpack.c.l.b16 %v859
      %v1365 = vunpack.c.h.b16 %v859
      %v1366 = vunpack.c.l.b16 %v860
      %v1367 = vunpack.c.h.b16 %v860
      %v1368 = vunpack.c.l.b16 %v861
      %v1369 = vunpack.c.h.b16 %v861
      %v1370 = vunpack.c.l.b16 %v862
      %v1371 = vunpack.c.h.b16 %v862
      %v1372 = vunpack.c.l.b16 %v863
      %v1373 = vunpack.c.h.b16 %v863
      %v1374 = vunpack.c.l.b16 %v864
      %v1375 = vunpack.c.h.b16 %v864
      %v1376 = vunpack.c.l.b16 %v865
      %v1377 = vunpack.c.h.b16 %v865
      %v1378 = vunpack.c.l.b16 %v866
      %v1379 = vunpack.c.h.b16 %v866
      %v1380 = vunpack.c.l.b16 %v867
      %v1381 = vunpack.c.h.b16 %v867
      %v1382 = vunpack.c.l.b16 %v868
      %v1383 = vunpack.c.h.b16 %v868
      %v1384 = vunpack.c.l.b16 %v869
      %v1385 = vunpack.c.h.b16 %v869
      %v1386 = vunpack.c.l.b16 %v870
      %v1387 = vunpack.c.h.b16 %v870
      %v1388 = vunpack.c.l.b16 %v871
      %v1389 = vunpack.c.h.b16 %v871
      %v1390 = vunpack.c.l.b16 %v872
      %v1391 = vunpack.c.h.b16 %v872
      %v1392 = vunpack.c.l.b16 %v873
      %v1393 = vunpack.c.h.b16 %v873
      %v1394 = vunpack.c.l.b16 %v874
      %v1395 = vunpack.c.h.b16 %v874
      %v1396 = vunpack.c.l.b16 %v875
      %v1397 = vunpack.c.h.b16 %v875
      %v1398 = vunpack.c.l.b16 %v876
      %v1399 = vunpack.c.h.b16 %v876
      %v1400 = vunpack.c.l.b16 %v877
      %v1401 = vunpack.c.h.b16 %v877
      %v1402 = vunpack.c.l.b16 %v878
      %v1403 = vunpack.c.h.b16 %v878
      %v1404 = vunpack.c.l.b16 %v879
      %v1405 = vunpack.c.h.b16 %v879
      %v1406 = vunpack.c.l.b16 %v880
      %v1407 = vunpack.c.h.b16 %v880
      %v1408 = vunpack.c.l.b16 %v881
      %v1409 = vunpack.c.h.b16 %v881
      %v1410 = vunpack.c.l.b16 %v882
      %v1411 = vunpack.c.h.b16 %v882
      %v1412 = vunpack.c.l.b16 %v883
      %v1413 = vunpack.c.h.b16 %v883
      %v1414 = vunpack.c.l.b16 %v884
      %v1415 = vunpack.c.h.b16 %v884
      %v1416 = vunpack.c.l.b16 %v885
      %v1417 = vunpack.c.h.b16 %v885
      %v1418 = vunpack.c.l.b16 %v886
      %v1419 = vunpack.c.h.b16 %v886
      %v1420 = vunpack.c.l.b16 %v887
      %v1421 = vunpack.c.h.b16 %v887
      %v1422 = vunpack.c.l.b16 %v888
      %v1423 = vunpack.c.h.b16 %v888
      %v1424 = vunpack.c.l.b16 %v889
      %v1425 = vunpack.c.h.b16 %v889
      %v1426 = vunpack.c.l.b16 %v890
      %v1427 = vunpack.c.h.b16 %v890
      %v1428 = vunpack.c.l.b16 %v891
      %v1429 = vunpack.c.h.b16 %v891
      %v1430 = vunpack.c.l.b16 %v892
      %v1431 = vunpack.c.h.b16 %v892
      %v1432 = vunpack.c.l.b16 %v893
      %v1433 = vunpack.c.h.b16 %v893
      %v1434 = vunpack.c.l.b16 %v894
      %v1435 = vunpack.c.h.b16 %v894
      %v1436 = vunpack.c.l.b16 %v895
      %v1437 = vunpack.c.h.b16 %v895
      %v1438 = vunpack.c.l.b16 %v896
      %v1439 = vunpack.c.h.b16 %v896
      %v1440 = vunpack.c.l.b16 %v897
      %v1441 = vunpack.c.h.b16 %v897
      %v1442 = vunpack.c.l.b16 %v898
      %v1443 = vunpack.c.h.b16 %v898
      %v1444 = vunpack.c.l.b16 %v899
      %v1445 = vunpack.c.h.b16 %v899
      %v1446 = vunpack.c.l.b16 %v900
      %v1447 = vunpack.c.h.b16 %v900
      %v1448 = vunpack.c.l.b16 %v901
      %v1449 = vunpack.c.h.b16 %v901
      %v1450 = vunpack.c.l.b16 %v902
      %v1451 = vunpack.c.h.b16 %v902
      %v1452 = vunpack.c.l.b16 %v903
      %v1453 = vunpack.c.h.b16 %v903
      %v1454 = vunpack.c.l.b16 %v904
      %v1455 = vunpack.c.h.b16 %v904
      %v1456 = vunpack.c.l.b16 %v905
      %v1457 = vunpack.c.h.b16 %v905
      %v1458 = vunpack.c.l.b16 %v906
      %v1459 = vunpack.c.h.b16 %v906
      %v1460 = vunpack.c.l.b16 %v907
      %v1461 = vunpack.c.h.b16 %v907
      %v1462 = vunpack.c.l.b16 %v908
      %v1463 = vunpack.c.h.b16 %v908
      %v1464 = vunpack.c.l.b16 %v909
      %v1465 = vunpack.c.h.b16 %v909
      %v1466 = vunpack.c.l.b16 %v910
      %v1467 = vunpack.c.h.b16 %v910
      %v1468 = vunpack.c.l.b16 %v911
      %v1469 = vunpack.c.h.b16 %v911
      %v1470 = vunpack.c.l.b16 %v912
      %v1471 = vunpack.c.h.b16 %v912
      %v1472 = vunpack.c.l.b16 %v913
      %v1473 = vunpack.c.h.b16 %v913
      %v1474 = vunpack.c.l.b16 %v914
      %v1475 = vunpack.c.h.b16 %v914
      %v1476 = vunpack.c.l.b16 %v915
      %v1477 = vunpack.c.h.b16 %v915
      %v1478 = vunpack.c.l.b16 %v916
      %v1479 = vunpack.c.h.b16 %v916
      %v1480 = vunpack.c.l.b16 %v917
      %v1481 = vunpack.c.h.b16 %v917
      %v1482 = vunpack.c.l.b16 %v918
      %v1483 = vunpack.c.h.b16 %v918
      %v1484 = vunpack.c.l.b16 %v919
      %v1485 = vunpack.c.h.b16 %v919
      %v1486 = vunpack.c.l.b16 %v920
      %v1487 = vunpack.c.h.b16 %v920
      %v1488 = vunpack.c.l.b16 %v921
      %v1489 = vunpack.c.h.b16 %v921
      %v1490 = vunpack.c.l.b16 %v922
      %v1491 = vunpack.c.h.b16 %v922
      %v1492 = vunpack.c.l.b16 %v923
      %v1493 = vunpack.c.h.b16 %v923
      %v1494 = vunpack.c.l.b16 %v924
      %v1495 = vunpack.c.h.b16 %v924
      %v1496 = vunpack.c.l.b16 %v925
      %v1497 = vunpack.c.h.b16 %v925
      %v1498 = vunpack.c.l.b16 %v926
      %v1499 = vunpack.c.h.b16 %v926
      %v1500 = vunpack.c.l.b16 %v927
      %v1501 = vunpack.c.h.b16 %v927
      %v1502 = vunpack.c.l.b16 %v928
      %v1503 = vunpack.c.h.b16 %v928
      %v1504 = vunpack.c.l.b16 %v929
      %v1505 = vunpack.c.h.b16 %v929
      %v1506 = vunpack.c.l.b16 %v930
      %v1507 = vunpack.c.h.b16 %v930
      %v1508 = vunpack.c.l.b16 %v931
      %v1509 = vunpack.c.h.b16 %v931
      %v1510 = vunpack.c.l.b16 %v932
      %v1511 = vunpack.c.h.b16 %v932
      %v1512 = vunpack.c.l.b16 %v933
      %v1513 = vunpack.c.h.b16 %v933
      %v1514 = vunpack.c.l.b16 %v934
      %v1515 = vunpack.c.h.b16 %v934
      %v1516 = vunpack.c.l.b16 %v935
      %v1517 = vunpack.c.h.b16 %v935
      %v1518 = vunpack.c.l.b16 %v936
      %v1519 = vunpack.c.h.b16 %v936
      %v1520 = vunpack.c.l.b16 %v937
      %v1521 = vunpack.c.h.b16 %v937
      %v1522 = vunpack.c.l.b16 %v938
      %v1523 = vunpack.c.h.b16 %v938
      %v1524 = vunpack.c.l.b16 %v939
      %v1525 = vunpack.c.h.b16 %v939
      %v1526 = vunpack.c.l.b16 %v940
      %v1527 = vunpack.c.h.b16 %v940
      %v1528 = vunpack.c.l.b16 %v941
      %v1529 = vunpack.c.h.b16 %v941
      %v1530 = vunpack.c.l.b16 %v942
      %v1531 = vunpack.c.h.b16 %v942
      %v1532 = vunpack.c.l.b16 %v943
      %v1533 = vunpack.c.h.b16 %v943
      %v1534 = vunpack.c.l.b16 %v944
      %v1535 = vunpack.c.h.b16 %v944
      %v1536 = vunpack.c.l.b16 %v945
      %v1537 = vunpack.c.h.b16 %v945
      %v1538 = vunpack.c.l.b16 %v946
      %v1539 = vunpack.c.h.b16 %v946
      %v1540 = vunpack.c.l.b16 %v947
      %v1541 = vunpack.c.h.b16 %v947
      %v1542 = vunpack.c.l.b16 %v948
      %v1543 = vunpack.c.h.b16 %v948
      %v1544 = vunpack.c.l.b16 %v949
      %v1545 = vunpack.c.h.b16 %v949
      %v1546 = vunpack.c.l.b16 %v950
      %v1547 = vunpack.c.h.b16 %v950
      %v1548 = vunpack.c.l.b16 %v951
      %v1549 = vunpack.c.h.b16 %v951
      %v1550 = vunpack.c.l.b16 %v952
      %v1551 = vunpack.c.h.b16 %v952
      %v1552 = vunpack.c.l.b16 %v953
      %v1553 = vunpack.c.h.b16 %v953
      %v1554 = vunpack.c.l.b16 %v954
      %v1555 = vunpack.c.h.b16 %v954
      %v1556 = vunpack.c.l.b16 %v955
      %v1557 = vunpack.c.h.b16 %v955
      %v1558 = vunpack.c.l.b16 %v956
      %v1559 = vunpack.c.h.b16 %v956
      %v1560 = vunpack.c.l.b16 %v957
      %v1561 = vunpack.c.h.b16 %v957
      %v1562 = vunpack.c.l.b16 %v958
      %v1563 = vunpack.c.h.b16 %v958
      %v1564 = vunpack.c.l.b16 %v959
      %v1565 = vunpack.c.h.b16 %v959
      %v1566 = vunpack.c.l.b16 %v960
      %v1567 = vunpack.c.h.b16 %v960
      %v1568 = vunpack.c.l.b16 %v961
      %v1569 = vunpack.c.h.b16 %v961
      %v1570 = vunpack.c.l.b16 %v962
      %v1571 = vunpack.c.h.b16 %v962
      %v1572 = vunpack.c.l.b16 %v963
      %v1573 = vunpack.c.h.b16 %v963
      %v1574 = vpack.c.b16 %v1186, %v1182
      %v1575 = vpack.c.b16 %v1187, %v1183
      %v1576 = vpack.c.b16 %v1188, %v1184
      %v1577 = vpack.c.b16 %v1189, %v1185
      %v1578 = vpack.c.b16 %v1194, %v1190
      %v1579 = vpack.c.b16 %v1195, %v1191
      %v1580 = vpack.c.b16 %v1196, %v1192
      %v1581 = vpack.c.b16 %v1197, %v1193
      %v1582 = vpack.c.b16 %v1202, %v1198
      %v1583 = vpack.c.b16 %v1203, %v1199
      %v1584 = vpack.c.b16 %v1204, %v1200
      %v1585 = vpack.c.b16 %v1205, %v1201
      %v1586 = vpack.c.b16 %v1210, %v1206
      %v1587 = vpack.c.b16 %v1211, %v1207
      %v1588 = vpack.c.b16 %v1212, %v1208
      %v1589 = vpack.c.b16 %v1213, %v1209
      %v1590 = vpack.c.b16 %v1218, %v1214
      %v1591 = vpack.c.b16 %v1219, %v1215
      %v1592 = vpack.c.b16 %v1220, %v1216
      %v1593 = vpack.c.b16 %v1221, %v1217
      %v1594 = vpack.c.b16 %v1226, %v1222
      %v1595 = vpack.c.b16 %v1227, %v1223
      %v1596 = vpack.c.b16 %v1228, %v1224
      %v1597 = vpack.c.b16 %v1229, %v1225
      %v1598 = vpack.c.b16 %v1234, %v1230
      %v1599 = vpack.c.b16 %v1235, %v1231
      %v1600 = vpack.c.b16 %v1236, %v1232
      %v1601 = vpack.c.b16 %v1237, %v1233
      %v1602 = vpack.c.b16 %v1242, %v1238
      %v1603 = vpack.c.b16 %v1243, %v1239
      %v1604 = vpack.c.b16 %v1244, %v1240
      %v1605 = vpack.c.b16 %v1245, %v1241
      %v1606 = vpack.c.b16 %v1250, %v1246
      %v1607 = vpack.c.b16 %v1251, %v1247
      %v1608 = vpack.c.b16 %v1252, %v1248
      %v1609 = vpack.c.b16 %v1253, %v1249
      %v1610 = vpack.c.b16 %v1258, %v1254
      %v1611 = vpack.c.b16 %v1259, %v1255
      %v1612 = vpack.c.b16 %v1260, %v1256
      %v1613 = vpack.c.b16 %v1261, %v1257
      %v1614 = vpack.c.b16 %v1266, %v1262
      %v1615 = vpack.c.b16 %v1267, %v1263
      %v1616 = vpack.c.b16 %v1268, %v1264
      %v1617 = vpack.c.b16 %v1269, %v1265
      %v1618 = vpack.c.b16 %v1274, %v1270
      %v1619 = vpack.c.b16 %v1275, %v1271
      %v1620 = vpack.c.b16 %v1276, %v1272
      %v1621 = vpack.c.b16 %v1277, %v1273
      %v1622 = vpack.c.b16 %v1282, %v1278
      %v1623 = vpack.c.b16 %v1283, %v1279
      %v1624 = vpack.c.b16 %v1284, %v1280
      %v1625 = vpack.c.b16 %v1285, %v1281
      %v1626 = vpack.c.b16 %v1290, %v1286
      %v1627 = vpack.c.b16 %v1291, %v1287
      %v1628 = vpack.c.b16 %v1292, %v1288
      %v1629 = vpack.c.b16 %v1293, %v1289
      %v1630 = vpack.c.b16 %v1298, %v1294
      %v1631 = vpack.c.b16 %v1299, %v1295
      %v1632 = vpack.c.b16 %v1300, %v1296
      %v1633 = vpack.c.b16 %v1301, %v1297
      %v1634 = vpack.c.b16 %v1306, %v1302
      %v1635 = vpack.c.b16 %v1307, %v1303
      %v1636 = vpack.c.b16 %v1308, %v1304
      %v1637 = vpack.c.b16 %v1309, %v1305
      %v1638 = vpack.c.b16 %v1314, %v1310
      %v1639 = vpack.c.b16 %v1315, %v1311
      %v1640 = vpack.c.b16 %v1316, %v1312
      %v1641 = vpack.c.b16 %v1317, %v1313
      %v1642 = vpack.c.b16 %v1322, %v1318
      %v1643 = vpack.c.b16 %v1323, %v1319
      %v1644 = vpack.c.b16 %v1324, %v1320
      %v1645 = vpack.c.b16 %v1325, %v1321
      %v1646 = vpack.c.b16 %v1330, %v1326
      %v1647 = vpack.c.b16 %v1331, %v1327
      %v1648 = vpack.c.b16 %v1332, %v1328
      %v1649 = vpack.c.b16 %v1333, %v1329
      %v1650 = vpack.c.b16 %v1338, %v1334
      %v1651 = vpack.c.b16 %v1339, %v1335
      %v1652 = vpack.c.b16 %v1340, %v1336
      %v1653 = vpack.c.b16 %v1341, %v1337
      %v1654 = vpack.c.b16 %v1346, %v1342
      %v1655 = vpack.c.b16 %v1347, %v1343
      %v1656 = vpack.c.b16 %v1348, %v1344
      %v1657 = vpack.c.b16 %v1349, %v1345
      %v1658 = vpack.c.b16 %v1354, %v1350
      %v1659 = vpack.c.b16 %v1355, %v1351
      %v1660 = vpack.c.b16 %v1356, %v1352
      %v1661 = vpack.c.b16 %v1357, %v1353
      %v1662 = vpack.c.b16 %v1362, %v1358
      %v1663 = vpack.c.b16 %v1363, %v1359
      %v1664 = vpack.c.b16 %v1364, %v1360
      %v1665 = vpack.c.b16 %v1365, %v1361
      %v1666 = vpack.c.b16 %v1370, %v1366
      %v1667 = vpack.c.b16 %v1371, %v1367
      %v1668 = vpack.c.b16 %v1372, %v1368
      %v1669 = vpack.c.b16 %v1373, %v1369
      %v1670 = vpack.c.b16 %v1378, %v1374
      %v1671 = vpack.c.b16 %v1379, %v1375
      %v1672 = vpack.c.b16 %v1380, %v1376
      %v1673 = vpack.c.b16 %v1381, %v1377
      %v1674 = vpack.c.b16 %v1386, %v1382
      %v1675 = vpack.c.b16 %v1387, %v1383
      %v1676 = vpack.c.b16 %v1388, %v1384
      %v1677 = vpack.c.b16 %v1389, %v1385
      %v1678 = vpack.c.b16 %v1394, %v1390
      %v1679 = vpack.c.b16 %v1395, %v1391
      %v1680 = vpack.c.b16 %v1396, %v1392
      %v1681 = vpack.c.b16 %v1397, %v1393
      %v1682 = vpack.c.b16 %v1402, %v1398
      %v1683 = vpack.c.b16 %v1403, %v1399
      %v1684 = vpack.c.b16 %v1404, %v1400
      %v1685 = vpack.c.b16 %v1405, %v1401
      %v1686 = vpack.c.b16 %v1410, %v1406
      %v1687 = vpack.c.b16 %v1411, %v1407
      %v1688 = vpack.c.b16 %v1412, %v1408
      %v1689 = vpack.c.b16 %v1413, %v1409
      %v1690 = vpack.c.b16 %v1418, %v1414
      %v1691 = vpack.c.b16 %v1419, %v1415
      %v1692 = vpack.c.b16 %v1420, %v1416
      %v1693 = vpack.c.b16 %v1421, %v1417
      %v1694 = vpack.c.b16 %v1426, %v1422
      %v1695 = vpack.c.b16 %v1427, %v1423
      %v1696 = vpack.c.b16 %v1428, %v1424
      %v1697 = vpack.c.b16 %v1429, %v1425
      %v1698 = vpack.c.b16 %v1434, %v1430
      %v1699 = vpack.c.b16 %v1435, %v1431
      %v1700 = vpack.c.b16 %v1436, %v1432
      %v1701 = vpack.c.b16 %v1437, %v1433
      %v1702 = vpack.c.b16 %v1442, %v1438
      %v1703 = vpack.c.b16 %v1443, %v1439
      %v1704 = vpack.c.b16 %v1444, %v1440
      %v1705 = vpack.c.b16 %v1445, %v1441
      %v1706 = vpack.c.b16 %v1450, %v1446
      %v1707 = vpack.c.b16 %v1451, %v1447
      %v1708 = vpack.c.b16 %v1452, %v1448
      %v1709 = vpack.c.b16 %v1453, %v1449
      %v1710 = vpack.c.b16 %v1458, %v1454
      %v1711 = vpack.c.b16 %v1459, %v1455
      %v1712 = vpack.c.b16 %v1460, %v1456
      %v1713 = vpack.c.b16 %v1461, %v1457
      %v1714 = vpack.c.b16 %v1466, %v1462
      %v1715 = vpack.c.b16 %v1467, %v1463
      %v1716 = vpack.c.b16 %v1468, %v1464
      %v1717 = vpack.c.b16 %v1469, %v1465
      %v1718 = vpack.c.b16 %v1474, %v1470
      %v1719 = vpack.c.b16 %v1475, %v1471
      %v1720 = vpack.c.b16 %v1476, %v1472
      %v1721 = vpack.c.b16 %v1477, %v1473
      %v1722 = vpack.c.b16 %v1482, %v1478
      %v1723 = vpack.c.b16 %v1483, %v1479
      %v1724 = vpack.c.b16 %v1484, %v1480
      %v1725 = vpack.c.b16 %v1485, %v1481
      %v1726 = vpack.c.b16 %v1490, %v1486
      %v1727 = vpack.c.b16 %v1491, %v1487
      %v1728 = vpack.c.b16 %v1492, %v1488
      %v1729 = vpack.c.b16 %v1493, %v1489
      %v1730 = vpack.c.b16 %v1498, %v1494
      %v1731 = vpack.c.b16 %v1499, %v1495
      %v1732 = vpack.c.b16 %v1500, %v1496
      %v1733 = vpack.c.b16 %v1501, %v1497
      %v1734 = vpack.c.b16 %v1506, %v1502
      %v1735 = vpack.c.b16 %v1507, %v1503
      %v1736 = vpack.c.b16 %v1508, %v1504
      %v1737 = vpack.c.b16 %v1509, %v1505
      %v1738 = vpack.c.b16 %v1514, %v1510
      %v1739 = vpack.c.b16 %v1515, %v1511
      %v1740 = vpack.c.b16 %v1516, %v1512
      %v1741 = vpack.c.b16 %v1517, %v1513
      %v1742 = vpack.c.b16 %v1522, %v1518
      %v1743 = vpack.c.b16 %v1523, %v1519
      %v1744 = vpack.c.b16 %v1524, %v1520
      %v1745 = vpack.c.b16 %v1525, %v1521
      %v1746 = vpack.c.b16 %v1530, %v1526
      %v1747 = vpack.c.b16 %v1531, %v1527
      %v1748 = vpack.c.b16 %v1532, %v1528
      %v1749 = vpack.c.b16 %v1533, %v1529
      %v1750 = vpack.c.b16 %v1538, %v1534
      %v1751 = vpack.c.b16 %v1539, %v1535
      %v1752 = vpack.c.b16 %v1540, %v1536
      %v1753 = vpack.c.b16 %v1541, %v1537
      %v1754 = vpack.c.b16 %v1546, %v1542
      %v1755 = vpack.c.b16 %v1547, %v1543
      %v1756 = vpack.c.b16 %v1548, %v1544
      %v1757 = vpack.c.b16 %v1549, %v1545
      %v1758 = vpack.c.b16 %v1554, %v1550
      %v1759 = vpack.c.b16 %v1555, %v1551
      %v1760 = vpack.c.b16 %v1556, %v1552
      %v1761 = vpack.c.b16 %v1557, %v1553
      %v1762 = vpack.c.b16 %v1562, %v1558
      %v1763 = vpack.c.b16 %v1563, %v1559
      %v1764 = vpack.c.b16 %v1564, %v1560
      %v1765 = vpack.c.b16 %v1565, %v1561
      %v1766 = vpack.c.b16 %v1570, %v1566
      %v1767 = vpack.c.b16 %v1571, %v1567
      %v1768 = vpack.c.b16 %v1572, %v1568
      %v1769 = vpack.c.b16 %v1573, %v1569
      %vm1966 = vcmask 130048
      %v1968 = vsel %vm1966, %v662, 0
      %v1971 = vsel %vm1966, %v669, 0
      %v1974 = vsel %vm1966, %v676, 0
      %v1977 = vsel %vm1966, %v683, 0
      %v1980 = vsel %vm1966, %v690, 0
      %v1983 = vsel %vm1966, %v697, 0
      %v1986 = vsel %vm1966, %v704, 0
      %v1989 = vsel %vm1966, %v711, 0
      %v1992 = vsel %vm1966, %v718, 0
      %v1995 = vsel %vm1966, %v725, 0
      %v1998 = vsel %vm1966, %v732, 0
      %v2001 = vsel %vm1966, %v739, 0
      %v2004 = vsel %vm1966, %v746, 0
      %v2007 = vsel %vm1966, %v753, 0
      %v2010 = vsel %vm1966, %v760, 0
      %v2013 = vsel %vm1966, %v767, 0
      %2015 = vmatprep.subr.bf16.mxu0 %v1603
      %2016 = vmatpush1.bf16.msra.mxu0 %v1602
      %2017 = vmatprep.subr.bf16.mxu0 %v1599
      %2018 = vmatpush1.bf16.msra.mxu0 %v1598
      %2019 = vmatprep.subr.bf16.mxu0 %v1595
      %2020 = vmatpush1.bf16.msra.mxu0 %v1594
      %2021 = vmatprep.subr.bf16.mxu0 %v1591
      %2022 = vmatpush1.bf16.msra.mxu0 %v1590
      %2023 = vmatprep.subr.bf16.mxu0 %v1587
      %2024 = vmatpush1.bf16.msra.mxu0 %v1586
      %2025 = vmatprep.subr.bf16.mxu0 %v1583
      %2026 = vmatpush1.bf16.msra.mxu0 %v1582
      %2027 = vmatprep.subr.bf16.mxu0 %v1579
      %2028 = vmatpush1.bf16.msra.mxu0 %v1578
      %2029 = vmatprep.subr.bf16.mxu0 %v1575
      %2030 = vmatpush1.bf16.msra.mxu0 %v1574
      %2031 = vmatprep.subr.bf16.mxu0 %v1635
      %2032 = vmatpush2.bf16.msra.mxu0 %v1634
      %2033 = vmatprep.subr.bf16.mxu0 %v1631
      %2034 = vmatpush2.bf16.msra.mxu0 %v1630
      %2035 = vmatprep.subr.bf16.mxu0 %v1627
      %2036 = vmatpush2.bf16.msra.mxu0 %v1626
      %2037 = vmatprep.subr.bf16.mxu0 %v1623
      %2038 = vmatpush2.bf16.msra.mxu0 %v1622
      %2039 = vmatprep.subr.bf16.mxu0 %v1619
      %2040 = vmatpush2.bf16.msra.mxu0 %v1618
      %2041 = vmatprep.subr.bf16.mxu0 %v1615
      %2042 = vmatpush2.bf16.msra.mxu0 %v1614
      %2043 = vmatprep.subr.bf16.mxu0 %v1611
      %2044 = vmatpush2.bf16.msra.mxu0 %v1610
      %2045 = vmatprep.subr.bf16.mxu0 %v1607
      %2046 = vmatpush2.bf16.msra.mxu0 %v1606
      %2047 = vmatprep.mubr.bf16.mxu0 %v657
      %2048 = vmatmul.mubr.bf16.gmra.mxu0 %v656
      %v2049 = vpop.f32.mrf.mxu0
      %v2050 = vadd.f32 %v969, %v2049
      %v2051 = vpop.f32.mrf.mxu0
      %v2052 = vadd.f32 %v973, %v2051
      %v2053 = vpop.f32.mrf.mxu0
      %v2054 = vadd.f32 %v969, %v2053
      %v2055 = vpop.f32.mrf.mxu0
      %v2056 = vadd.f32 %v973, %v2055
      %2057 = vmatprep.mubr.bf16.mxu0 %v664
      %2058 = vmatmul.mubr.bf16.gmra.mxu0 %v663
      %v2059 = vpop.f32.mrf.mxu0
      %v2060 = vadd.f32 %v969, %v2059
      %v2061 = vpop.f32.mrf.mxu0
      %v2062 = vadd.f32 %v973, %v2061
      %v2063 = vpop.f32.mrf.mxu0
      %v2064 = vadd.f32 %v969, %v2063
      %v2065 = vpop.f32.mrf.mxu0
      %v2066 = vadd.f32 %v973, %v2065
      %2067 = vmatprep.mubr.bf16.mxu0 %v671
      %2068 = vmatmul.mubr.bf16.gmra.mxu0 %v670
      %v2069 = vpop.f32.mrf.mxu0
      %v2070 = vadd.f32 %v969, %v2069
      %v2071 = vpop.f32.mrf.mxu0
      %v2072 = vadd.f32 %v973, %v2071
      %v2073 = vpop.f32.mrf.mxu0
      %v2074 = vadd.f32 %v969, %v2073
      %v2075 = vpop.f32.mrf.mxu0
      %v2076 = vadd.f32 %v973, %v2075
      %2077 = vmatprep.mubr.bf16.mxu0 %v678
      %2078 = vmatmul.mubr.bf16.gmra.mxu0 %v677
      %v2079 = vpop.f32.mrf.mxu0
      %v2080 = vadd.f32 %v969, %v2079
      %v2081 = vpop.f32.mrf.mxu0
      %v2082 = vadd.f32 %v973, %v2081
      %v2083 = vpop.f32.mrf.mxu0
      %v2084 = vadd.f32 %v969, %v2083
      %v2085 = vpop.f32.mrf.mxu0
      %v2086 = vadd.f32 %v973, %v2085
      %2087 = vmatprep.mubr.bf16.mxu0 %v685
      %2088 = vmatmul.mubr.bf16.gmra.mxu0 %v684
      %v2089 = vpop.f32.mrf.mxu0
      %v2090 = vadd.f32 %v969, %v2089
      %v2091 = vpop.f32.mrf.mxu0
      %v2092 = vadd.f32 %v973, %v2091
      %v2093 = vpop.f32.mrf.mxu0
      %v2094 = vadd.f32 %v969, %v2093
      %v2095 = vpop.f32.mrf.mxu0
      %v2096 = vadd.f32 %v973, %v2095
      %2097 = vmatprep.mubr.bf16.mxu0 %v692
      %2098 = vmatmul.mubr.bf16.gmra.mxu0 %v691
      %v2099 = vpop.f32.mrf.mxu0
      %v2100 = vadd.f32 %v969, %v2099
      %v2101 = vpop.f32.mrf.mxu0
      %v2102 = vadd.f32 %v973, %v2101
      %v2103 = vpop.f32.mrf.mxu0
      %v2104 = vadd.f32 %v969, %v2103
      %v2105 = vpop.f32.mrf.mxu0
      %v2106 = vadd.f32 %v973, %v2105
      %2107 = vmatprep.mubr.bf16.mxu0 %v699
      %2108 = vmatmul.mubr.bf16.gmra.mxu0 %v698
      %v2109 = vpop.f32.mrf.mxu0
      %v2110 = vadd.f32 %v969, %v2109
      %v2111 = vpop.f32.mrf.mxu0
      %v2112 = vadd.f32 %v973, %v2111
      %v2113 = vpop.f32.mrf.mxu0
      %v2114 = vadd.f32 %v969, %v2113
      %v2115 = vpop.f32.mrf.mxu0
      %v2116 = vadd.f32 %v973, %v2115
      %2117 = vmatprep.mubr.bf16.mxu0 %v706
      %2118 = vmatmul.mubr.bf16.gmra.mxu0 %v705
      %v2119 = vpop.f32.mrf.mxu0
      %v2120 = vadd.f32 %v969, %v2119
      %v2121 = vpop.f32.mrf.mxu0
      %v2122 = vadd.f32 %v973, %v2121
      %v2123 = vpop.f32.mrf.mxu0
      %v2124 = vadd.f32 %v969, %v2123
      %v2125 = vpop.f32.mrf.mxu0
      %v2126 = vadd.f32 %v973, %v2125
      %2127 = vmatprep.mubr.bf16.mxu0 %v713
      %2128 = vmatmul.mubr.bf16.gmra.mxu0 %v712
      %v2129 = vpop.f32.mrf.mxu0
      %v2130 = vadd.f32 %v969, %v2129
      %v2131 = vpop.f32.mrf.mxu0
      %v2132 = vadd.f32 %v973, %v2131
      %v2133 = vpop.f32.mrf.mxu0
      %v2134 = vadd.f32 %v969, %v2133
      %v2135 = vpop.f32.mrf.mxu0
      %v2136 = vadd.f32 %v973, %v2135
      %2137 = vmatprep.mubr.bf16.mxu0 %v720
      %2138 = vmatmul.mubr.bf16.gmra.mxu0 %v719
      %v2139 = vpop.f32.mrf.mxu0
      %v2140 = vadd.f32 %v969, %v2139
      %v2141 = vpop.f32.mrf.mxu0
      %v2142 = vadd.f32 %v973, %v2141
      %v2143 = vpop.f32.mrf.mxu0
      %v2144 = vadd.f32 %v969, %v2143
      %v2145 = vpop.f32.mrf.mxu0
      %v2146 = vadd.f32 %v973, %v2145
      %2147 = vmatprep.mubr.bf16.mxu0 %v727
      %2148 = vmatmul.mubr.bf16.gmra.mxu0 %v726
      %v2149 = vpop.f32.mrf.mxu0
      %v2150 = vadd.f32 %v969, %v2149
      %v2151 = vpop.f32.mrf.mxu0
      %v2152 = vadd.f32 %v973, %v2151
      %v2153 = vpop.f32.mrf.mxu0
      %v2154 = vadd.f32 %v969, %v2153
      %v2155 = vpop.f32.mrf.mxu0
      %v2156 = vadd.f32 %v973, %v2155
      %2157 = vmatprep.mubr.bf16.mxu0 %v734
      %2158 = vmatmul.mubr.bf16.gmra.mxu0 %v733
      %v2159 = vpop.f32.mrf.mxu0
      %v2160 = vadd.f32 %v969, %v2159
      %v2161 = vpop.f32.mrf.mxu0
      %v2162 = vadd.f32 %v973, %v2161
      %v2163 = vpop.f32.mrf.mxu0
      %v2164 = vadd.f32 %v969, %v2163
      %v2165 = vpop.f32.mrf.mxu0
      %v2166 = vadd.f32 %v973, %v2165
      %2167 = vmatprep.mubr.bf16.mxu0 %v741
      %2168 = vmatmul.mubr.bf16.gmra.mxu0 %v740
      %v2169 = vpop.f32.mrf.mxu0
      %v2170 = vadd.f32 %v969, %v2169
      %v2171 = vpop.f32.mrf.mxu0
      %v2172 = vadd.f32 %v973, %v2171
      %v2173 = vpop.f32.mrf.mxu0
      %v2174 = vadd.f32 %v969, %v2173
      %v2175 = vpop.f32.mrf.mxu0
      %v2176 = vadd.f32 %v973, %v2175
      %2177 = vmatprep.mubr.bf16.mxu0 %v748
      %2178 = vmatmul.mubr.bf16.gmra.mxu0 %v747
      %v2179 = vpop.f32.mrf.mxu0
      %v2180 = vadd.f32 %v969, %v2179
      %v2181 = vpop.f32.mrf.mxu0
      %v2182 = vadd.f32 %v973, %v2181
      %v2183 = vpop.f32.mrf.mxu0
      %v2184 = vadd.f32 %v969, %v2183
      %v2185 = vpop.f32.mrf.mxu0
      %v2186 = vadd.f32 %v973, %v2185
      %2187 = vmatprep.mubr.bf16.mxu0 %v755
      %2188 = vmatmul.mubr.bf16.gmra.mxu0 %v754
      %v2189 = vpop.f32.mrf.mxu0
      %v2190 = vadd.f32 %v969, %v2189
      %v2191 = vpop.f32.mrf.mxu0
      %v2192 = vadd.f32 %v973, %v2191
      %v2193 = vpop.f32.mrf.mxu0
      %v2194 = vadd.f32 %v969, %v2193
      %v2195 = vpop.f32.mrf.mxu0
      %v2196 = vadd.f32 %v973, %v2195
      %2197 = vmatprep.mubr.bf16.mxu0 %v762
      %2198 = vmatmul.mubr.bf16.gmra.mxu0 %v761
      %v2199 = vpop.f32.mrf.mxu0
      %v2200 = vadd.f32 %v969, %v2199
      %v2201 = vpop.f32.mrf.mxu0
      %v2202 = vadd.f32 %v973, %v2201
      %v2203 = vpop.f32.mrf.mxu0
      %v2204 = vadd.f32 %v969, %v2203
      %v2205 = vpop.f32.mrf.mxu0
      %v2206 = vadd.f32 %v973, %v2205
      %2207 = vdwg.mxu0
      %2208 = vmatprep.subr.bf16.mxu0 %v1667
      %2209 = vmatpush1.bf16.msra.mxu0 %v1666
      %2210 = vmatprep.subr.bf16.mxu0 %v1663
      %2211 = vmatpush1.bf16.msra.mxu0 %v1662
      %2212 = vmatprep.subr.bf16.mxu0 %v1659
      %2213 = vmatpush1.bf16.msra.mxu0 %v1658
      %2214 = vmatprep.subr.bf16.mxu0 %v1655
      %2215 = vmatpush1.bf16.msra.mxu0 %v1654
      %2216 = vmatprep.subr.bf16.mxu0 %v1651
      %2217 = vmatpush1.bf16.msra.mxu0 %v1650
      %2218 = vmatprep.subr.bf16.mxu0 %v1647
      %2219 = vmatpush1.bf16.msra.mxu0 %v1646
      %2220 = vmatprep.subr.bf16.mxu0 %v1643
      %2221 = vmatpush1.bf16.msra.mxu0 %v1642
      %2222 = vmatprep.subr.bf16.mxu0 %v1639
      %2223 = vmatpush1.bf16.msra.mxu0 %v1638
      %2224 = vmatprep.subr.bf16.mxu0 %v1699
      %2225 = vmatpush2.bf16.msra.mxu0 %v1698
      %2226 = vmatprep.subr.bf16.mxu0 %v1695
      %2227 = vmatpush2.bf16.msra.mxu0 %v1694
      %2228 = vmatprep.subr.bf16.mxu0 %v1691
      %2229 = vmatpush2.bf16.msra.mxu0 %v1690
      %2230 = vmatprep.subr.bf16.mxu0 %v1687
      %2231 = vmatpush2.bf16.msra.mxu0 %v1686
      %2232 = vmatprep.subr.bf16.mxu0 %v1683
      %2233 = vmatpush2.bf16.msra.mxu0 %v1682
      %2234 = vmatprep.subr.bf16.mxu0 %v1679
      %2235 = vmatpush2.bf16.msra.mxu0 %v1678
      %2236 = vmatprep.subr.bf16.mxu0 %v1675
      %2237 = vmatpush2.bf16.msra.mxu0 %v1674
      %2238 = vmatprep.subr.bf16.mxu0 %v1671
      %2239 = vmatpush2.bf16.msra.mxu0 %v1670
      %2240 = vmatprep.mubr.bf16.mxu0 %v659
      %2241 = vmatmul.mubr.bf16.gmra.mxu0 %v658
      %v2242 = vpop.f32.mrf.mxu0
      %v2243 = vadd.f32 %v2050, %v2242
      %v2244 = vpop.f32.mrf.mxu0
      %v2245 = vadd.f32 %v2052, %v2244
      %v2246 = vpop.f32.mrf.mxu0
      %v2247 = vadd.f32 %v2054, %v2246
      %v2248 = vpop.f32.mrf.mxu0
      %v2249 = vadd.f32 %v2056, %v2248
      %2250 = vmatprep.mubr.bf16.mxu0 %v666
      %2251 = vmatmul.mubr.bf16.gmra.mxu0 %v665
      %v2252 = vpop.f32.mrf.mxu0
      %v2253 = vadd.f32 %v2060, %v2252
      %v2254 = vpop.f32.mrf.mxu0
      %v2255 = vadd.f32 %v2062, %v2254
      %v2256 = vpop.f32.mrf.mxu0
      %v2257 = vadd.f32 %v2064, %v2256
      %v2258 = vpop.f32.mrf.mxu0
      %v2259 = vadd.f32 %v2066, %v2258
      %2260 = vmatprep.mubr.bf16.mxu0 %v673
      %2261 = vmatmul.mubr.bf16.gmra.mxu0 %v672
      %v2262 = vpop.f32.mrf.mxu0
      %v2263 = vadd.f32 %v2070, %v2262
      %v2264 = vpop.f32.mrf.mxu0
      %v2265 = vadd.f32 %v2072, %v2264
      %v2266 = vpop.f32.mrf.mxu0
      %v2267 = vadd.f32 %v2074, %v2266
      %v2268 = vpop.f32.mrf.mxu0
      %v2269 = vadd.f32 %v2076, %v2268
      %2270 = vmatprep.mubr.bf16.mxu0 %v680
      %2271 = vmatmul.mubr.bf16.gmra.mxu0 %v679
      %v2272 = vpop.f32.mrf.mxu0
      %v2273 = vadd.f32 %v2080, %v2272
      %v2274 = vpop.f32.mrf.mxu0
      %v2275 = vadd.f32 %v2082, %v2274
      %v2276 = vpop.f32.mrf.mxu0
      %v2277 = vadd.f32 %v2084, %v2276
      %v2278 = vpop.f32.mrf.mxu0
      %v2279 = vadd.f32 %v2086, %v2278
      %2280 = vmatprep.mubr.bf16.mxu0 %v687
      %2281 = vmatmul.mubr.bf16.gmra.mxu0 %v686
      %v2282 = vpop.f32.mrf.mxu0
      %v2283 = vadd.f32 %v2090, %v2282
      %v2284 = vpop.f32.mrf.mxu0
      %v2285 = vadd.f32 %v2092, %v2284
      %v2286 = vpop.f32.mrf.mxu0
      %v2287 = vadd.f32 %v2094, %v2286
      %v2288 = vpop.f32.mrf.mxu0
      %v2289 = vadd.f32 %v2096, %v2288
      %2290 = vmatprep.mubr.bf16.mxu0 %v694
      %2291 = vmatmul.mubr.bf16.gmra.mxu0 %v693
      %v2292 = vpop.f32.mrf.mxu0
      %v2293 = vadd.f32 %v2100, %v2292
      %v2294 = vpop.f32.mrf.mxu0
      %v2295 = vadd.f32 %v2102, %v2294
      %v2296 = vpop.f32.mrf.mxu0
      %v2297 = vadd.f32 %v2104, %v2296
      %v2298 = vpop.f32.mrf.mxu0
      %v2299 = vadd.f32 %v2106, %v2298
      %2300 = vmatprep.mubr.bf16.mxu0 %v701
      %2301 = vmatmul.mubr.bf16.gmra.mxu0 %v700
      %v2302 = vpop.f32.mrf.mxu0
      %v2303 = vadd.f32 %v2110, %v2302
      %v2304 = vpop.f32.mrf.mxu0
      %v2305 = vadd.f32 %v2112, %v2304
      %v2306 = vpop.f32.mrf.mxu0
      %v2307 = vadd.f32 %v2114, %v2306
      %v2308 = vpop.f32.mrf.mxu0
      %v2309 = vadd.f32 %v2116, %v2308
      %2310 = vmatprep.mubr.bf16.mxu0 %v708
      %2311 = vmatmul.mubr.bf16.gmra.mxu0 %v707
      %v2312 = vpop.f32.mrf.mxu0
      %v2313 = vadd.f32 %v2120, %v2312
      %v2314 = vpop.f32.mrf.mxu0
      %v2315 = vadd.f32 %v2122, %v2314
      %v2316 = vpop.f32.mrf.mxu0
      %v2317 = vadd.f32 %v2124, %v2316
      %v2318 = vpop.f32.mrf.mxu0
      %v2319 = vadd.f32 %v2126, %v2318
      %2320 = vmatprep.mubr.bf16.mxu0 %v715
      %2321 = vmatmul.mubr.bf16.gmra.mxu0 %v714
      %v2322 = vpop.f32.mrf.mxu0
      %v2323 = vadd.f32 %v2130, %v2322
      %v2324 = vpop.f32.mrf.mxu0
      %v2325 = vadd.f32 %v2132, %v2324
      %v2326 = vpop.f32.mrf.mxu0
      %v2327 = vadd.f32 %v2134, %v2326
      %v2328 = vpop.f32.mrf.mxu0
      %v2329 = vadd.f32 %v2136, %v2328
      %2330 = vmatprep.mubr.bf16.mxu0 %v722
      %2331 = vmatmul.mubr.bf16.gmra.mxu0 %v721
      %v2332 = vpop.f32.mrf.mxu0
      %v2333 = vadd.f32 %v2140, %v2332
      %v2334 = vpop.f32.mrf.mxu0
      %v2335 = vadd.f32 %v2142, %v2334
      %v2336 = vpop.f32.mrf.mxu0
      %v2337 = vadd.f32 %v2144, %v2336
      %v2338 = vpop.f32.mrf.mxu0
      %v2339 = vadd.f32 %v2146, %v2338
      %2340 = vmatprep.mubr.bf16.mxu0 %v729
      %2341 = vmatmul.mubr.bf16.gmra.mxu0 %v728
      %v2342 = vpop.f32.mrf.mxu0
      %v2343 = vadd.f32 %v2150, %v2342
      %v2344 = vpop.f32.mrf.mxu0
      %v2345 = vadd.f32 %v2152, %v2344
      %v2346 = vpop.f32.mrf.mxu0
      %v2347 = vadd.f32 %v2154, %v2346
      %v2348 = vpop.f32.mrf.mxu0
      %v2349 = vadd.f32 %v2156, %v2348
      %2350 = vmatprep.mubr.bf16.mxu0 %v736
      %2351 = vmatmul.mubr.bf16.gmra.mxu0 %v735
      %v2352 = vpop.f32.mrf.mxu0
      %v2353 = vadd.f32 %v2160, %v2352
      %v2354 = vpop.f32.mrf.mxu0
      %v2355 = vadd.f32 %v2162, %v2354
      %v2356 = vpop.f32.mrf.mxu0
      %v2357 = vadd.f32 %v2164, %v2356
      %v2358 = vpop.f32.mrf.mxu0
      %v2359 = vadd.f32 %v2166, %v2358
      %2360 = vmatprep.mubr.bf16.mxu0 %v743
      %2361 = vmatmul.mubr.bf16.gmra.mxu0 %v742
      %v2362 = vpop.f32.mrf.mxu0
      %v2363 = vadd.f32 %v2170, %v2362
      %v2364 = vpop.f32.mrf.mxu0
      %v2365 = vadd.f32 %v2172, %v2364
      %v2366 = vpop.f32.mrf.mxu0
      %v2367 = vadd.f32 %v2174, %v2366
      %v2368 = vpop.f32.mrf.mxu0
      %v2369 = vadd.f32 %v2176, %v2368
      %2370 = vmatprep.mubr.bf16.mxu0 %v750
      %2371 = vmatmul.mubr.bf16.gmra.mxu0 %v749
      %v2372 = vpop.f32.mrf.mxu0
      %v2373 = vadd.f32 %v2180, %v2372
      %v2374 = vpop.f32.mrf.mxu0
      %v2375 = vadd.f32 %v2182, %v2374
      %v2376 = vpop.f32.mrf.mxu0
      %v2377 = vadd.f32 %v2184, %v2376
      %v2378 = vpop.f32.mrf.mxu0
      %v2379 = vadd.f32 %v2186, %v2378
      %2380 = vmatprep.mubr.bf16.mxu0 %v757
      %2381 = vmatmul.mubr.bf16.gmra.mxu0 %v756
      %v2382 = vpop.f32.mrf.mxu0
      %v2383 = vadd.f32 %v2190, %v2382
      %v2384 = vpop.f32.mrf.mxu0
      %v2385 = vadd.f32 %v2192, %v2384
      %v2386 = vpop.f32.mrf.mxu0
      %v2387 = vadd.f32 %v2194, %v2386
      %v2388 = vpop.f32.mrf.mxu0
      %v2389 = vadd.f32 %v2196, %v2388
      %2390 = vmatprep.mubr.bf16.mxu0 %v764
      %2391 = vmatmul.mubr.bf16.gmra.mxu0 %v763
      %v2392 = vpop.f32.mrf.mxu0
      %v2393 = vadd.f32 %v2200, %v2392
      %v2394 = vpop.f32.mrf.mxu0
      %v2395 = vadd.f32 %v2202, %v2394
      %v2396 = vpop.f32.mrf.mxu0
      %v2397 = vadd.f32 %v2204, %v2396
      %v2398 = vpop.f32.mrf.mxu0
      %v2399 = vadd.f32 %v2206, %v2398
      %2400 = vdwg.mxu0
      %2401 = vmatprep.subr.bf16.mxu0 %v1731
      %2402 = vmatpush1.bf16.msra.mxu0 %v1730
      %2403 = vmatprep.subr.bf16.mxu0 %v1727
      %2404 = vmatpush1.bf16.msra.mxu0 %v1726
      %2405 = vmatprep.subr.bf16.mxu0 %v1723
      %2406 = vmatpush1.bf16.msra.mxu0 %v1722
      %2407 = vmatprep.subr.bf16.mxu0 %v1719
      %2408 = vmatpush1.bf16.msra.mxu0 %v1718
      %2409 = vmatprep.subr.bf16.mxu0 %v1715
      %2410 = vmatpush1.bf16.msra.mxu0 %v1714
      %2411 = vmatprep.subr.bf16.mxu0 %v1711
      %2412 = vmatpush1.bf16.msra.mxu0 %v1710
      %2413 = vmatprep.subr.bf16.mxu0 %v1707
      %2414 = vmatpush1.bf16.msra.mxu0 %v1706
      %2415 = vmatprep.subr.bf16.mxu0 %v1703
      %2416 = vmatpush1.bf16.msra.mxu0 %v1702
      %2417 = vmatprep.subr.bf16.mxu0 %v1763
      %2418 = vmatpush2.bf16.msra.mxu0 %v1762
      %2419 = vmatprep.subr.bf16.mxu0 %v1759
      %2420 = vmatpush2.bf16.msra.mxu0 %v1758
      %2421 = vmatprep.subr.bf16.mxu0 %v1755
      %2422 = vmatpush2.bf16.msra.mxu0 %v1754
      %2423 = vmatprep.subr.bf16.mxu0 %v1751
      %2424 = vmatpush2.bf16.msra.mxu0 %v1750
      %2425 = vmatprep.subr.bf16.mxu0 %v1747
      %2426 = vmatpush2.bf16.msra.mxu0 %v1746
      %2427 = vmatprep.subr.bf16.mxu0 %v1743
      %2428 = vmatpush2.bf16.msra.mxu0 %v1742
      %2429 = vmatprep.subr.bf16.mxu0 %v1739
      %2430 = vmatpush2.bf16.msra.mxu0 %v1738
      %2431 = vmatprep.subr.bf16.mxu0 %v1735
      %2432 = vmatpush2.bf16.msra.mxu0 %v1734
      %2433 = vmatprep.mubr.bf16.mxu0 %v661
      %2434 = vmatmul.mubr.bf16.gmra.mxu0 %v660
      %v2435 = vpop.f32.mrf.mxu0
      %v2436 = vadd.f32 %v2243, %v2435
      %v2437 = vpop.f32.mrf.mxu0
      %v2438 = vadd.f32 %v2245, %v2437
      %v2439 = vpop.f32.mrf.mxu0
      %v2440 = vadd.f32 %v2247, %v2439
      %v2441 = vpop.f32.mrf.mxu0
      %v2442 = vadd.f32 %v2249, %v2441
      %2443 = vmatprep.mubr.bf16.mxu0 %v668
      %2444 = vmatmul.mubr.bf16.gmra.mxu0 %v667
      %v2445 = vpop.f32.mrf.mxu0
      %v2446 = vadd.f32 %v2253, %v2445
      %v2447 = vpop.f32.mrf.mxu0
      %v2448 = vadd.f32 %v2255, %v2447
      %v2449 = vpop.f32.mrf.mxu0
      %v2450 = vadd.f32 %v2257, %v2449
      %v2451 = vpop.f32.mrf.mxu0
      %v2452 = vadd.f32 %v2259, %v2451
      %2453 = vmatprep.mubr.bf16.mxu0 %v675
      %2454 = vmatmul.mubr.bf16.gmra.mxu0 %v674
      %v2455 = vpop.f32.mrf.mxu0
      %v2456 = vadd.f32 %v2263, %v2455
      %v2457 = vpop.f32.mrf.mxu0
      %v2458 = vadd.f32 %v2265, %v2457
      %v2459 = vpop.f32.mrf.mxu0
      %v2460 = vadd.f32 %v2267, %v2459
      %v2461 = vpop.f32.mrf.mxu0
      %v2462 = vadd.f32 %v2269, %v2461
      %2463 = vmatprep.mubr.bf16.mxu0 %v682
      %2464 = vmatmul.mubr.bf16.gmra.mxu0 %v681
      %v2465 = vpop.f32.mrf.mxu0
      %v2466 = vadd.f32 %v2273, %v2465
      %v2467 = vpop.f32.mrf.mxu0
      %v2468 = vadd.f32 %v2275, %v2467
      %v2469 = vpop.f32.mrf.mxu0
      %v2470 = vadd.f32 %v2277, %v2469
      %v2471 = vpop.f32.mrf.mxu0
      %v2472 = vadd.f32 %v2279, %v2471
      %2473 = vmatprep.mubr.bf16.mxu0 %v689
      %2474 = vmatmul.mubr.bf16.gmra.mxu0 %v688
      %v2475 = vpop.f32.mrf.mxu0
      %v2476 = vadd.f32 %v2283, %v2475
      %v2477 = vpop.f32.mrf.mxu0
      %v2478 = vadd.f32 %v2285, %v2477
      %v2479 = vpop.f32.mrf.mxu0
      %v2480 = vadd.f32 %v2287, %v2479
      %v2481 = vpop.f32.mrf.mxu0
      %v2482 = vadd.f32 %v2289, %v2481
      %2483 = vmatprep.mubr.bf16.mxu0 %v696
      %2484 = vmatmul.mubr.bf16.gmra.mxu0 %v695
      %v2485 = vpop.f32.mrf.mxu0
      %v2486 = vadd.f32 %v2293, %v2485
      %v2487 = vpop.f32.mrf.mxu0
      %v2488 = vadd.f32 %v2295, %v2487
      %v2489 = vpop.f32.mrf.mxu0
      %v2490 = vadd.f32 %v2297, %v2489
      %v2491 = vpop.f32.mrf.mxu0
      %v2492 = vadd.f32 %v2299, %v2491
      %2493 = vmatprep.mubr.bf16.mxu0 %v703
      %2494 = vmatmul.mubr.bf16.gmra.mxu0 %v702
      %v2495 = vpop.f32.mrf.mxu0
      %v2496 = vadd.f32 %v2303, %v2495
      %v2497 = vpop.f32.mrf.mxu0
      %v2498 = vadd.f32 %v2305, %v2497
      %v2499 = vpop.f32.mrf.mxu0
      %v2500 = vadd.f32 %v2307, %v2499
      %v2501 = vpop.f32.mrf.mxu0
      %v2502 = vadd.f32 %v2309, %v2501
      %2503 = vmatprep.mubr.bf16.mxu0 %v710
      %2504 = vmatmul.mubr.bf16.gmra.mxu0 %v709
      %v2505 = vpop.f32.mrf.mxu0
      %v2506 = vadd.f32 %v2313, %v2505
      %v2507 = vpop.f32.mrf.mxu0
      %v2508 = vadd.f32 %v2315, %v2507
      %v2509 = vpop.f32.mrf.mxu0
      %v2510 = vadd.f32 %v2317, %v2509
      %v2511 = vpop.f32.mrf.mxu0
      %v2512 = vadd.f32 %v2319, %v2511
      %2513 = vmatprep.mubr.bf16.mxu0 %v717
      %2514 = vmatmul.mubr.bf16.gmra.mxu0 %v716
      %v2515 = vpop.f32.mrf.mxu0
      %v2516 = vadd.f32 %v2323, %v2515
      %v2517 = vpop.f32.mrf.mxu0
      %v2518 = vadd.f32 %v2325, %v2517
      %v2519 = vpop.f32.mrf.mxu0
      %v2520 = vadd.f32 %v2327, %v2519
      %v2521 = vpop.f32.mrf.mxu0
      %v2522 = vadd.f32 %v2329, %v2521
      %2523 = vmatprep.mubr.bf16.mxu0 %v724
      %2524 = vmatmul.mubr.bf16.gmra.mxu0 %v723
      %v2525 = vpop.f32.mrf.mxu0
      %v2526 = vadd.f32 %v2333, %v2525
      %v2527 = vpop.f32.mrf.mxu0
      %v2528 = vadd.f32 %v2335, %v2527
      %v2529 = vpop.f32.mrf.mxu0
      %v2530 = vadd.f32 %v2337, %v2529
      %v2531 = vpop.f32.mrf.mxu0
      %v2532 = vadd.f32 %v2339, %v2531
      %2533 = vmatprep.mubr.bf16.mxu0 %v731
      %2534 = vmatmul.mubr.bf16.gmra.mxu0 %v730
      %v2535 = vpop.f32.mrf.mxu0
      %v2536 = vadd.f32 %v2343, %v2535
      %v2537 = vpop.f32.mrf.mxu0
      %v2538 = vadd.f32 %v2345, %v2537
      %v2539 = vpop.f32.mrf.mxu0
      %v2540 = vadd.f32 %v2347, %v2539
      %v2541 = vpop.f32.mrf.mxu0
      %v2542 = vadd.f32 %v2349, %v2541
      %2543 = vmatprep.mubr.bf16.mxu0 %v738
      %2544 = vmatmul.mubr.bf16.gmra.mxu0 %v737
      %v2545 = vpop.f32.mrf.mxu0
      %v2546 = vadd.f32 %v2353, %v2545
      %v2547 = vpop.f32.mrf.mxu0
      %v2548 = vadd.f32 %v2355, %v2547
      %v2549 = vpop.f32.mrf.mxu0
      %v2550 = vadd.f32 %v2357, %v2549
      %v2551 = vpop.f32.mrf.mxu0
      %v2552 = vadd.f32 %v2359, %v2551
      %2553 = vmatprep.mubr.bf16.mxu0 %v745
      %2554 = vmatmul.mubr.bf16.gmra.mxu0 %v744
      %v2555 = vpop.f32.mrf.mxu0
      %v2556 = vadd.f32 %v2363, %v2555
      %v2557 = vpop.f32.mrf.mxu0
      %v2558 = vadd.f32 %v2365, %v2557
      %v2559 = vpop.f32.mrf.mxu0
      %v2560 = vadd.f32 %v2367, %v2559
      %v2561 = vpop.f32.mrf.mxu0
      %v2562 = vadd.f32 %v2369, %v2561
      %2563 = vmatprep.mubr.bf16.mxu0 %v752
      %2564 = vmatmul.mubr.bf16.gmra.mxu0 %v751
      %v2565 = vpop.f32.mrf.mxu0
      %v2566 = vadd.f32 %v2373, %v2565
      %v2567 = vpop.f32.mrf.mxu0
      %v2568 = vadd.f32 %v2375, %v2567
      %v2569 = vpop.f32.mrf.mxu0
      %v2570 = vadd.f32 %v2377, %v2569
      %v2571 = vpop.f32.mrf.mxu0
      %v2572 = vadd.f32 %v2379, %v2571
      %2573 = vmatprep.mubr.bf16.mxu0 %v759
      %2574 = vmatmul.mubr.bf16.gmra.mxu0 %v758
      %v2575 = vpop.f32.mrf.mxu0
      %v2576 = vadd.f32 %v2383, %v2575
      %v2577 = vpop.f32.mrf.mxu0
      %v2578 = vadd.f32 %v2385, %v2577
      %v2579 = vpop.f32.mrf.mxu0
      %v2580 = vadd.f32 %v2387, %v2579
      %v2581 = vpop.f32.mrf.mxu0
      %v2582 = vadd.f32 %v2389, %v2581
      %2583 = vmatprep.mubr.bf16.mxu0 %v766
      %2584 = vmatmul.mubr.bf16.gmra.mxu0 %v765
      %v2585 = vpop.f32.mrf.mxu0
      %v2586 = vadd.f32 %v2393, %v2585
      %v2587 = vpop.f32.mrf.mxu0
      %v2588 = vadd.f32 %v2395, %v2587
      %v2589 = vpop.f32.mrf.mxu0
      %v2590 = vadd.f32 %v2397, %v2589
      %v2591 = vpop.f32.mrf.mxu0
      %v2592 = vadd.f32 %v2399, %v2591
      %2593 = vdwg.mxu0
      %2594 = vmatprep.subr.bf16.mxu0 0
      %2595 = vmatpush1.bf16.msra.mxu0 0
      %2596 = vmatprep.subr.bf16.mxu0 0
      %2597 = vmatpush1.bf16.msra.mxu0 0
      %2598 = vmatprep.subr.bf16.mxu0 0
      %2599 = vmatpush1.bf16.msra.mxu0 0
      %2600 = vmatprep.subr.bf16.mxu0 0
      %2601 = vmatpush1.bf16.msra.mxu0 0
      %2602 = vmatprep.subr.bf16.mxu0 0
      %2603 = vmatpush1.bf16.msra.mxu0 0
      %2604 = vmatprep.subr.bf16.mxu0 0
      %2605 = vmatpush1.bf16.msra.mxu0 0
      %2606 = vmatprep.subr.bf16.mxu0 0
      %2607 = vmatpush1.bf16.msra.mxu0 0
      %2608 = vmatprep.subr.bf16.mxu0 %v1767
      %2609 = vmatpush1.bf16.msra.mxu0 %v1766
      %2610 = vmatprep.subr.bf16.mxu0 0
      %2611 = vmatpush2.bf16.msra.mxu0 0
      %2612 = vmatprep.subr.bf16.mxu0 0
      %2613 = vmatpush2.bf16.msra.mxu0 0
      %2614 = vmatprep.subr.bf16.mxu0 0
      %2615 = vmatpush2.bf16.msra.mxu0 0
      %2616 = vmatprep.subr.bf16.mxu0 0
      %2617 = vmatpush2.bf16.msra.mxu0 0
      %2618 = vmatprep.subr.bf16.mxu0 0
      %2619 = vmatpush2.bf16.msra.mxu0 0
      %2620 = vmatprep.subr.bf16.mxu0 0
      %2621 = vmatpush2.bf16.msra.mxu0 0
      %2622 = vmatprep.subr.bf16.mxu0 0
      %2623 = vmatpush2.bf16.msra.mxu0 0
      %2624 = vmatprep.subr.bf16.mxu0 0
      %2625 = vmatpush2.bf16.msra.mxu0 0
      %2626 = vmatprep.mubr.bf16.mxu0 0
      %2627 = vmatmul.mubr.bf16.gmra.mxu0 %v1968
      %v2628 = vpop.f32.mrf.mxu0
      %v2629 = vadd.f32 %v2436, %v2628
      %v2630 = vpop.f32.mrf.mxu0
      %v2631 = vadd.f32 %v2438, %v2630
      %v2632 = vpop.f32.mrf.mxu0
      %v2633 = vadd.f32 %v2440, %v2632
      %v2634 = vpop.f32.mrf.mxu0
      %v2635 = vadd.f32 %v2442, %v2634
      %2636 = vmatprep.mubr.bf16.mxu0 0
      %2637 = vmatmul.mubr.bf16.gmra.mxu0 %v1971
      %v2638 = vpop.f32.mrf.mxu0
      %v2639 = vadd.f32 %v2446, %v2638
      %v2640 = vpop.f32.mrf.mxu0
      %v2641 = vadd.f32 %v2448, %v2640
      %v2642 = vpop.f32.mrf.mxu0
      %v2643 = vadd.f32 %v2450, %v2642
      %v2644 = vpop.f32.mrf.mxu0
      %v2645 = vadd.f32 %v2452, %v2644
      %2646 = vmatprep.mubr.bf16.mxu0 0
      %2647 = vmatmul.mubr.bf16.gmra.mxu0 %v1974
      %v2648 = vpop.f32.mrf.mxu0
      %v2649 = vadd.f32 %v2456, %v2648
      %v2650 = vpop.f32.mrf.mxu0
      %v2651 = vadd.f32 %v2458, %v2650
      %v2652 = vpop.f32.mrf.mxu0
      %v2653 = vadd.f32 %v2460, %v2652
      %v2654 = vpop.f32.mrf.mxu0
      %v2655 = vadd.f32 %v2462, %v2654
      %2656 = vmatprep.mubr.bf16.mxu0 0
      %2657 = vmatmul.mubr.bf16.gmra.mxu0 %v1977
      %v2658 = vpop.f32.mrf.mxu0
      %v2659 = vadd.f32 %v2466, %v2658
      %v2660 = vpop.f32.mrf.mxu0
      %v2661 = vadd.f32 %v2468, %v2660
      %v2662 = vpop.f32.mrf.mxu0
      %v2663 = vadd.f32 %v2470, %v2662
      %v2664 = vpop.f32.mrf.mxu0
      %v2665 = vadd.f32 %v2472, %v2664
      %2666 = vmatprep.mubr.bf16.mxu0 0
      %2667 = vmatmul.mubr.bf16.gmra.mxu0 %v1980
      %v2668 = vpop.f32.mrf.mxu0
      %v2669 = vadd.f32 %v2476, %v2668
      %v2670 = vpop.f32.mrf.mxu0
      %v2671 = vadd.f32 %v2478, %v2670
      %v2672 = vpop.f32.mrf.mxu0
      %v2673 = vadd.f32 %v2480, %v2672
      %v2674 = vpop.f32.mrf.mxu0
      %v2675 = vadd.f32 %v2482, %v2674
      %2676 = vmatprep.mubr.bf16.mxu0 0
      %2677 = vmatmul.mubr.bf16.gmra.mxu0 %v1983
      %v2678 = vpop.f32.mrf.mxu0
      %v2679 = vadd.f32 %v2486, %v2678
      %v2680 = vpop.f32.mrf.mxu0
      %v2681 = vadd.f32 %v2488, %v2680
      %v2682 = vpop.f32.mrf.mxu0
      %v2683 = vadd.f32 %v2490, %v2682
      %v2684 = vpop.f32.mrf.mxu0
      %v2685 = vadd.f32 %v2492, %v2684
      %2686 = vmatprep.mubr.bf16.mxu0 0
      %2687 = vmatmul.mubr.bf16.gmra.mxu0 %v1986
      %v2688 = vpop.f32.mrf.mxu0
      %v2689 = vadd.f32 %v2496, %v2688
      %v2690 = vpop.f32.mrf.mxu0
      %v2691 = vadd.f32 %v2498, %v2690
      %v2692 = vpop.f32.mrf.mxu0
      %v2693 = vadd.f32 %v2500, %v2692
      %v2694 = vpop.f32.mrf.mxu0
      %v2695 = vadd.f32 %v2502, %v2694
      %2696 = vmatprep.mubr.bf16.mxu0 0
      %2697 = vmatmul.mubr.bf16.gmra.mxu0 %v1989
      %v2698 = vpop.f32.mrf.mxu0
      %v2699 = vadd.f32 %v2506, %v2698
      %v2700 = vpop.f32.mrf.mxu0
      %v2701 = vadd.f32 %v2508, %v2700
      %v2702 = vpop.f32.mrf.mxu0
      %v2703 = vadd.f32 %v2510, %v2702
      %v2704 = vpop.f32.mrf.mxu0
      %v2705 = vadd.f32 %v2512, %v2704
      %2706 = vmatprep.mubr.bf16.mxu0 0
      %2707 = vmatmul.mubr.bf16.gmra.mxu0 %v1992
      %v2708 = vpop.f32.mrf.mxu0
      %v2709 = vadd.f32 %v2516, %v2708
      %v2710 = vpop.f32.mrf.mxu0
      %v2711 = vadd.f32 %v2518, %v2710
      %v2712 = vpop.f32.mrf.mxu0
      %v2713 = vadd.f32 %v2520, %v2712
      %v2714 = vpop.f32.mrf.mxu0
      %v2715 = vadd.f32 %v2522, %v2714
      %2716 = vmatprep.mubr.bf16.mxu0 0
      %2717 = vmatmul.mubr.bf16.gmra.mxu0 %v1995
      %v2718 = vpop.f32.mrf.mxu0
      %v2719 = vadd.f32 %v2526, %v2718
      %v2720 = vpop.f32.mrf.mxu0
      %v2721 = vadd.f32 %v2528, %v2720
      %v2722 = vpop.f32.mrf.mxu0
      %v2723 = vadd.f32 %v2530, %v2722
      %v2724 = vpop.f32.mrf.mxu0
      %v2725 = vadd.f32 %v2532, %v2724
      %2726 = vmatprep.mubr.bf16.mxu0 0
      %2727 = vmatmul.mubr.bf16.gmra.mxu0 %v1998
      %v2728 = vpop.f32.mrf.mxu0
      %v2729 = vadd.f32 %v2536, %v2728
      %v2730 = vpop.f32.mrf.mxu0
      %v2731 = vadd.f32 %v2538, %v2730
      %v2732 = vpop.f32.mrf.mxu0
      %v2733 = vadd.f32 %v2540, %v2732
      %v2734 = vpop.f32.mrf.mxu0
      %v2735 = vadd.f32 %v2542, %v2734
      %2736 = vmatprep.mubr.bf16.mxu0 0
      %2737 = vmatmul.mubr.bf16.gmra.mxu0 %v2001
      %v2738 = vpop.f32.mrf.mxu0
      %v2739 = vadd.f32 %v2546, %v2738
      %v2740 = vpop.f32.mrf.mxu0
      %v2741 = vadd.f32 %v2548, %v2740
      %v2742 = vpop.f32.mrf.mxu0
      %v2743 = vadd.f32 %v2550, %v2742
      %v2744 = vpop.f32.mrf.mxu0
      %v2745 = vadd.f32 %v2552, %v2744
      %2746 = vmatprep.mubr.bf16.mxu0 0
      %2747 = vmatmul.mubr.bf16.gmra.mxu0 %v2004
      %v2748 = vpop.f32.mrf.mxu0
      %v2749 = vadd.f32 %v2556, %v2748
      %v2750 = vpop.f32.mrf.mxu0
      %v2751 = vadd.f32 %v2558, %v2750
      %v2752 = vpop.f32.mrf.mxu0
      %v2753 = vadd.f32 %v2560, %v2752
      %v2754 = vpop.f32.mrf.mxu0
      %v2755 = vadd.f32 %v2562, %v2754
      %2756 = vmatprep.mubr.bf16.mxu0 0
      %2757 = vmatmul.mubr.bf16.gmra.mxu0 %v2007
      %v2758 = vpop.f32.mrf.mxu0
      %v2759 = vadd.f32 %v2566, %v2758
      %v2760 = vpop.f32.mrf.mxu0
      %v2761 = vadd.f32 %v2568, %v2760
      %v2762 = vpop.f32.mrf.mxu0
      %v2763 = vadd.f32 %v2570, %v2762
      %v2764 = vpop.f32.mrf.mxu0
      %v2765 = vadd.f32 %v2572, %v2764
      %2766 = vmatprep.mubr.bf16.mxu0 0
      %2767 = vmatmul.mubr.bf16.gmra.mxu0 %v2010
      %v2768 = vpop.f32.mrf.mxu0
      %v2769 = vadd.f32 %v2576, %v2768
      %v2770 = vpop.f32.mrf.mxu0
      %v2771 = vadd.f32 %v2578, %v2770
      %v2772 = vpop.f32.mrf.mxu0
      %v2773 = vadd.f32 %v2580, %v2772
      %v2774 = vpop.f32.mrf.mxu0
      %v2775 = vadd.f32 %v2582, %v2774
      %2776 = vmatprep.mubr.bf16.mxu0 0
      %2777 = vmatmul.mubr.bf16.gmra.mxu0 %v2013
      %v2778 = vpop.f32.mrf.mxu0
      %v2779 = vadd.f32 %v2586, %v2778
      %v2780 = vpop.f32.mrf.mxu0
      %v2781 = vadd.f32 %v2588, %v2780
      %v2782 = vpop.f32.mrf.mxu0
      %v2783 = vadd.f32 %v2590, %v2782
      %v2784 = vpop.f32.mrf.mxu0
      %v2785 = vadd.f32 %v2592, %v2784
      %2786 = vdwg.mxu0
      %2787 = vmatprep.subr.bf16.mxu0 %v1605
      %2788 = vmatpush1.bf16.msra.mxu0 %v1604
      %2789 = vmatprep.subr.bf16.mxu0 %v1601
      %2790 = vmatpush1.bf16.msra.mxu0 %v1600
      %2791 = vmatprep.subr.bf16.mxu0 %v1597
      %2792 = vmatpush1.bf16.msra.mxu0 %v1596
      %2793 = vmatprep.subr.bf16.mxu0 %v1593
      %2794 = vmatpush1.bf16.msra.mxu0 %v1592
      %2795 = vmatprep.subr.bf16.mxu0 %v1589
      %2796 = vmatpush1.bf16.msra.mxu0 %v1588
      %2797 = vmatprep.subr.bf16.mxu0 %v1585
      %2798 = vmatpush1.bf16.msra.mxu0 %v1584
      %2799 = vmatprep.subr.bf16.mxu0 %v1581
      %2800 = vmatpush1.bf16.msra.mxu0 %v1580
      %2801 = vmatprep.subr.bf16.mxu0 %v1577
      %2802 = vmatpush1.bf16.msra.mxu0 %v1576
      %2803 = vmatprep.subr.bf16.mxu0 %v1637
      %2804 = vmatpush2.bf16.msra.mxu0 %v1636
      %2805 = vmatprep.subr.bf16.mxu0 %v1633
      %2806 = vmatpush2.bf16.msra.mxu0 %v1632
      %2807 = vmatprep.subr.bf16.mxu0 %v1629
      %2808 = vmatpush2.bf16.msra.mxu0 %v1628
      %2809 = vmatprep.subr.bf16.mxu0 %v1625
      %2810 = vmatpush2.bf16.msra.mxu0 %v1624
      %2811 = vmatprep.subr.bf16.mxu0 %v1621
      %2812 = vmatpush2.bf16.msra.mxu0 %v1620
      %2813 = vmatprep.subr.bf16.mxu0 %v1617
      %2814 = vmatpush2.bf16.msra.mxu0 %v1616
      %2815 = vmatprep.subr.bf16.mxu0 %v1613
      %2816 = vmatpush2.bf16.msra.mxu0 %v1612
      %2817 = vmatprep.subr.bf16.mxu0 %v1609
      %2818 = vmatpush2.bf16.msra.mxu0 %v1608
      %2819 = vmatprep.mubr.bf16.mxu0 %v657
      %2820 = vmatmul.mubr.bf16.gmra.mxu0 %v656
      %v2821 = vpop.f32.mrf.mxu0
      %v2822 = vadd.f32 %v977, %v2821
      %v2823 = vpop.f32.mrf.mxu0
      %v2824 = vadd.f32 %v981, %v2823
      %v2825 = vpop.f32.mrf.mxu0
      %v2826 = vadd.f32 %v977, %v2825
      %v2827 = vpop.f32.mrf.mxu0
      %v2828 = vadd.f32 %v981, %v2827
      %2829 = vmatprep.mubr.bf16.mxu0 %v664
      %2830 = vmatmul.mubr.bf16.gmra.mxu0 %v663
      %v2831 = vpop.f32.mrf.mxu0
      %v2832 = vadd.f32 %v977, %v2831
      %v2833 = vpop.f32.mrf.mxu0
      %v2834 = vadd.f32 %v981, %v2833
      %v2835 = vpop.f32.mrf.mxu0
      %v2836 = vadd.f32 %v977, %v2835
      %v2837 = vpop.f32.mrf.mxu0
      %v2838 = vadd.f32 %v981, %v2837
      %2839 = vmatprep.mubr.bf16.mxu0 %v671
      %2840 = vmatmul.mubr.bf16.gmra.mxu0 %v670
      %v2841 = vpop.f32.mrf.mxu0
      %v2842 = vadd.f32 %v977, %v2841
      %v2843 = vpop.f32.mrf.mxu0
      %v2844 = vadd.f32 %v981, %v2843
      %v2845 = vpop.f32.mrf.mxu0
      %v2846 = vadd.f32 %v977, %v2845
      %v2847 = vpop.f32.mrf.mxu0
      %v2848 = vadd.f32 %v981, %v2847
      %2849 = vmatprep.mubr.bf16.mxu0 %v678
      %2850 = vmatmul.mubr.bf16.gmra.mxu0 %v677
      %v2851 = vpop.f32.mrf.mxu0
      %v2852 = vadd.f32 %v977, %v2851
      %v2853 = vpop.f32.mrf.mxu0
      %v2854 = vadd.f32 %v981, %v2853
      %v2855 = vpop.f32.mrf.mxu0
      %v2856 = vadd.f32 %v977, %v2855
      %v2857 = vpop.f32.mrf.mxu0
      %v2858 = vadd.f32 %v981, %v2857
      %2859 = vmatprep.mubr.bf16.mxu0 %v685
      %2860 = vmatmul.mubr.bf16.gmra.mxu0 %v684
      %v2861 = vpop.f32.mrf.mxu0
      %v2862 = vadd.f32 %v977, %v2861
      %v2863 = vpop.f32.mrf.mxu0
      %v2864 = vadd.f32 %v981, %v2863
      %v2865 = vpop.f32.mrf.mxu0
      %v2866 = vadd.f32 %v977, %v2865
      %v2867 = vpop.f32.mrf.mxu0
      %v2868 = vadd.f32 %v981, %v2867
      %2869 = vmatprep.mubr.bf16.mxu0 %v692
      %2870 = vmatmul.mubr.bf16.gmra.mxu0 %v691
      %v2871 = vpop.f32.mrf.mxu0
      %v2872 = vadd.f32 %v977, %v2871
      %v2873 = vpop.f32.mrf.mxu0
      %v2874 = vadd.f32 %v981, %v2873
      %v2875 = vpop.f32.mrf.mxu0
      %v2876 = vadd.f32 %v977, %v2875
      %v2877 = vpop.f32.mrf.mxu0
      %v2878 = vadd.f32 %v981, %v2877
      %2879 = vmatprep.mubr.bf16.mxu0 %v699
      %2880 = vmatmul.mubr.bf16.gmra.mxu0 %v698
      %v2881 = vpop.f32.mrf.mxu0
      %v2882 = vadd.f32 %v977, %v2881
      %v2883 = vpop.f32.mrf.mxu0
      %v2884 = vadd.f32 %v981, %v2883
      %v2885 = vpop.f32.mrf.mxu0
      %v2886 = vadd.f32 %v977, %v2885
      %v2887 = vpop.f32.mrf.mxu0
      %v2888 = vadd.f32 %v981, %v2887
      %2889 = vmatprep.mubr.bf16.mxu0 %v706
      %2890 = vmatmul.mubr.bf16.gmra.mxu0 %v705
      %v2891 = vpop.f32.mrf.mxu0
      %v2892 = vadd.f32 %v977, %v2891
      %v2893 = vpop.f32.mrf.mxu0
      %v2894 = vadd.f32 %v981, %v2893
      %v2895 = vpop.f32.mrf.mxu0
      %v2896 = vadd.f32 %v977, %v2895
      %v2897 = vpop.f32.mrf.mxu0
      %v2898 = vadd.f32 %v981, %v2897
      %2899 = vmatprep.mubr.bf16.mxu0 %v713
      %2900 = vmatmul.mubr.bf16.gmra.mxu0 %v712
      %v2901 = vpop.f32.mrf.mxu0
      %v2902 = vadd.f32 %v977, %v2901
      %v2903 = vpop.f32.mrf.mxu0
      %v2904 = vadd.f32 %v981, %v2903
      %v2905 = vpop.f32.mrf.mxu0
      %v2906 = vadd.f32 %v977, %v2905
      %v2907 = vpop.f32.mrf.mxu0
      %v2908 = vadd.f32 %v981, %v2907
      %2909 = vmatprep.mubr.bf16.mxu0 %v720
      %2910 = vmatmul.mubr.bf16.gmra.mxu0 %v719
      %v2911 = vpop.f32.mrf.mxu0
      %v2912 = vadd.f32 %v977, %v2911
      %v2913 = vpop.f32.mrf.mxu0
      %v2914 = vadd.f32 %v981, %v2913
      %v2915 = vpop.f32.mrf.mxu0
      %v2916 = vadd.f32 %v977, %v2915
      %v2917 = vpop.f32.mrf.mxu0
      %v2918 = vadd.f32 %v981, %v2917
      %2919 = vmatprep.mubr.bf16.mxu0 %v727
      %2920 = vmatmul.mubr.bf16.gmra.mxu0 %v726
      %v2921 = vpop.f32.mrf.mxu0
      %v2922 = vadd.f32 %v977, %v2921
      %v2923 = vpop.f32.mrf.mxu0
      %v2924 = vadd.f32 %v981, %v2923
      %v2925 = vpop.f32.mrf.mxu0
      %v2926 = vadd.f32 %v977, %v2925
      %v2927 = vpop.f32.mrf.mxu0
      %v2928 = vadd.f32 %v981, %v2927
      %2929 = vmatprep.mubr.bf16.mxu0 %v734
      %2930 = vmatmul.mubr.bf16.gmra.mxu0 %v733
      %v2931 = vpop.f32.mrf.mxu0
      %v2932 = vadd.f32 %v977, %v2931
      %v2933 = vpop.f32.mrf.mxu0
      %v2934 = vadd.f32 %v981, %v2933
      %v2935 = vpop.f32.mrf.mxu0
      %v2936 = vadd.f32 %v977, %v2935
      %v2937 = vpop.f32.mrf.mxu0
      %v2938 = vadd.f32 %v981, %v2937
      %2939 = vmatprep.mubr.bf16.mxu0 %v741
      %2940 = vmatmul.mubr.bf16.gmra.mxu0 %v740
      %v2941 = vpop.f32.mrf.mxu0
      %v2942 = vadd.f32 %v977, %v2941
      %v2943 = vpop.f32.mrf.mxu0
      %v2944 = vadd.f32 %v981, %v2943
      %v2945 = vpop.f32.mrf.mxu0
      %v2946 = vadd.f32 %v977, %v2945
      %v2947 = vpop.f32.mrf.mxu0
      %v2948 = vadd.f32 %v981, %v2947
      %2949 = vmatprep.mubr.bf16.mxu0 %v748
      %2950 = vmatmul.mubr.bf16.gmra.mxu0 %v747
      %v2951 = vpop.f32.mrf.mxu0
      %v2952 = vadd.f32 %v977, %v2951
      %v2953 = vpop.f32.mrf.mxu0
      %v2954 = vadd.f32 %v981, %v2953
      %v2955 = vpop.f32.mrf.mxu0
      %v2956 = vadd.f32 %v977, %v2955
      %v2957 = vpop.f32.mrf.mxu0
      %v2958 = vadd.f32 %v981, %v2957
      %2959 = vmatprep.mubr.bf16.mxu0 %v755
      %2960 = vmatmul.mubr.bf16.gmra.mxu0 %v754
      %v2961 = vpop.f32.mrf.mxu0
      %v2962 = vadd.f32 %v977, %v2961
      %v2963 = vpop.f32.mrf.mxu0
      %v2964 = vadd.f32 %v981, %v2963
      %v2965 = vpop.f32.mrf.mxu0
      %v2966 = vadd.f32 %v977, %v2965
      %v2967 = vpop.f32.mrf.mxu0
      %v2968 = vadd.f32 %v981, %v2967
      %2969 = vmatprep.mubr.bf16.mxu0 %v762
      %2970 = vmatmul.mubr.bf16.gmra.mxu0 %v761
      %v2971 = vpop.f32.mrf.mxu0
      %v2972 = vadd.f32 %v977, %v2971
      %v2973 = vpop.f32.mrf.mxu0
      %v2974 = vadd.f32 %v981, %v2973
      %v2975 = vpop.f32.mrf.mxu0
      %v2976 = vadd.f32 %v977, %v2975
      %v2977 = vpop.f32.mrf.mxu0
      %v2978 = vadd.f32 %v981, %v2977
      %2979 = vdwg.mxu0
      %2980 = vmatprep.subr.bf16.mxu0 %v1669
      %2981 = vmatpush1.bf16.msra.mxu0 %v1668
      %2982 = vmatprep.subr.bf16.mxu0 %v1665
      %2983 = vmatpush1.bf16.msra.mxu0 %v1664
      %2984 = vmatprep.subr.bf16.mxu0 %v1661
      %2985 = vmatpush1.bf16.msra.mxu0 %v1660
      %2986 = vmatprep.subr.bf16.mxu0 %v1657
      %2987 = vmatpush1.bf16.msra.mxu0 %v1656
      %2988 = vmatprep.subr.bf16.mxu0 %v1653
      %2989 = vmatpush1.bf16.msra.mxu0 %v1652
      %2990 = vmatprep.subr.bf16.mxu0 %v1649
      %2991 = vmatpush1.bf16.msra.mxu0 %v1648
      %2992 = vmatprep.subr.bf16.mxu0 %v1645
      %2993 = vmatpush1.bf16.msra.mxu0 %v1644
      %2994 = vmatprep.subr.bf16.mxu0 %v1641
      %2995 = vmatpush1.bf16.msra.mxu0 %v1640
      %2996 = vmatprep.subr.bf16.mxu0 %v1701
      %2997 = vmatpush2.bf16.msra.mxu0 %v1700
      %2998 = vmatprep.subr.bf16.mxu0 %v1697
      %2999 = vmatpush2.bf16.msra.mxu0 %v1696
      %3000 = vmatprep.subr.bf16.mxu0 %v1693
      %3001 = vmatpush2.bf16.msra.mxu0 %v1692
      %3002 = vmatprep.subr.bf16.mxu0 %v1689
      %3003 = vmatpush2.bf16.msra.mxu0 %v1688
      %3004 = vmatprep.subr.bf16.mxu0 %v1685
      %3005 = vmatpush2.bf16.msra.mxu0 %v1684
      %3006 = vmatprep.subr.bf16.mxu0 %v1681
      %3007 = vmatpush2.bf16.msra.mxu0 %v1680
      %3008 = vmatprep.subr.bf16.mxu0 %v1677
      %3009 = vmatpush2.bf16.msra.mxu0 %v1676
      %3010 = vmatprep.subr.bf16.mxu0 %v1673
      %3011 = vmatpush2.bf16.msra.mxu0 %v1672
      %3012 = vmatprep.mubr.bf16.mxu0 %v659
      %3013 = vmatmul.mubr.bf16.gmra.mxu0 %v658
      %v3014 = vpop.f32.mrf.mxu0
      %v3015 = vadd.f32 %v2822, %v3014
      %v3016 = vpop.f32.mrf.mxu0
      %v3017 = vadd.f32 %v2824, %v3016
      %v3018 = vpop.f32.mrf.mxu0
      %v3019 = vadd.f32 %v2826, %v3018
      %v3020 = vpop.f32.mrf.mxu0
      %v3021 = vadd.f32 %v2828, %v3020
      %3022 = vmatprep.mubr.bf16.mxu0 %v666
      %3023 = vmatmul.mubr.bf16.gmra.mxu0 %v665
      %v3024 = vpop.f32.mrf.mxu0
      %v3025 = vadd.f32 %v2832, %v3024
      %v3026 = vpop.f32.mrf.mxu0
      %v3027 = vadd.f32 %v2834, %v3026
      %v3028 = vpop.f32.mrf.mxu0
      %v3029 = vadd.f32 %v2836, %v3028
      %v3030 = vpop.f32.mrf.mxu0
      %v3031 = vadd.f32 %v2838, %v3030
      %3032 = vmatprep.mubr.bf16.mxu0 %v673
      %3033 = vmatmul.mubr.bf16.gmra.mxu0 %v672
      %v3034 = vpop.f32.mrf.mxu0
      %v3035 = vadd.f32 %v2842, %v3034
      %v3036 = vpop.f32.mrf.mxu0
      %v3037 = vadd.f32 %v2844, %v3036
      %v3038 = vpop.f32.mrf.mxu0
      %v3039 = vadd.f32 %v2846, %v3038
      %v3040 = vpop.f32.mrf.mxu0
      %v3041 = vadd.f32 %v2848, %v3040
      %3042 = vmatprep.mubr.bf16.mxu0 %v680
      %3043 = vmatmul.mubr.bf16.gmra.mxu0 %v679
      %v3044 = vpop.f32.mrf.mxu0
      %v3045 = vadd.f32 %v2852, %v3044
      %v3046 = vpop.f32.mrf.mxu0
      %v3047 = vadd.f32 %v2854, %v3046
      %v3048 = vpop.f32.mrf.mxu0
      %v3049 = vadd.f32 %v2856, %v3048
      %v3050 = vpop.f32.mrf.mxu0
      %v3051 = vadd.f32 %v2858, %v3050
      %3052 = vmatprep.mubr.bf16.mxu0 %v687
      %3053 = vmatmul.mubr.bf16.gmra.mxu0 %v686
      %v3054 = vpop.f32.mrf.mxu0
      %v3055 = vadd.f32 %v2862, %v3054
      %v3056 = vpop.f32.mrf.mxu0
      %v3057 = vadd.f32 %v2864, %v3056
      %v3058 = vpop.f32.mrf.mxu0
      %v3059 = vadd.f32 %v2866, %v3058
      %v3060 = vpop.f32.mrf.mxu0
      %v3061 = vadd.f32 %v2868, %v3060
      %3062 = vmatprep.mubr.bf16.mxu0 %v694
      %3063 = vmatmul.mubr.bf16.gmra.mxu0 %v693
      %v3064 = vpop.f32.mrf.mxu0
      %v3065 = vadd.f32 %v2872, %v3064
      %v3066 = vpop.f32.mrf.mxu0
      %v3067 = vadd.f32 %v2874, %v3066
      %v3068 = vpop.f32.mrf.mxu0
      %v3069 = vadd.f32 %v2876, %v3068
      %v3070 = vpop.f32.mrf.mxu0
      %v3071 = vadd.f32 %v2878, %v3070
      %3072 = vmatprep.mubr.bf16.mxu0 %v701
      %3073 = vmatmul.mubr.bf16.gmra.mxu0 %v700
      %v3074 = vpop.f32.mrf.mxu0
      %v3075 = vadd.f32 %v2882, %v3074
      %v3076 = vpop.f32.mrf.mxu0
      %v3077 = vadd.f32 %v2884, %v3076
      %v3078 = vpop.f32.mrf.mxu0
      %v3079 = vadd.f32 %v2886, %v3078
      %v3080 = vpop.f32.mrf.mxu0
      %v3081 = vadd.f32 %v2888, %v3080
      %3082 = vmatprep.mubr.bf16.mxu0 %v708
      %3083 = vmatmul.mubr.bf16.gmra.mxu0 %v707
      %v3084 = vpop.f32.mrf.mxu0
      %v3085 = vadd.f32 %v2892, %v3084
      %v3086 = vpop.f32.mrf.mxu0
      %v3087 = vadd.f32 %v2894, %v3086
      %v3088 = vpop.f32.mrf.mxu0
      %v3089 = vadd.f32 %v2896, %v3088
      %v3090 = vpop.f32.mrf.mxu0
      %v3091 = vadd.f32 %v2898, %v3090
      %3092 = vmatprep.mubr.bf16.mxu0 %v715
      %3093 = vmatmul.mubr.bf16.gmra.mxu0 %v714
      %v3094 = vpop.f32.mrf.mxu0
      %v3095 = vadd.f32 %v2902, %v3094
      %v3096 = vpop.f32.mrf.mxu0
      %v3097 = vadd.f32 %v2904, %v3096
      %v3098 = vpop.f32.mrf.mxu0
      %v3099 = vadd.f32 %v2906, %v3098
      %v3100 = vpop.f32.mrf.mxu0
      %v3101 = vadd.f32 %v2908, %v3100
      %3102 = vmatprep.mubr.bf16.mxu0 %v722
      %3103 = vmatmul.mubr.bf16.gmra.mxu0 %v721
      %v3104 = vpop.f32.mrf.mxu0
      %v3105 = vadd.f32 %v2912, %v3104
      %v3106 = vpop.f32.mrf.mxu0
      %v3107 = vadd.f32 %v2914, %v3106
      %v3108 = vpop.f32.mrf.mxu0
      %v3109 = vadd.f32 %v2916, %v3108
      %v3110 = vpop.f32.mrf.mxu0
      %v3111 = vadd.f32 %v2918, %v3110
      %3112 = vmatprep.mubr.bf16.mxu0 %v729
      %3113 = vmatmul.mubr.bf16.gmra.mxu0 %v728
      %v3114 = vpop.f32.mrf.mxu0
      %v3115 = vadd.f32 %v2922, %v3114
      %v3116 = vpop.f32.mrf.mxu0
      %v3117 = vadd.f32 %v2924, %v3116
      %v3118 = vpop.f32.mrf.mxu0
      %v3119 = vadd.f32 %v2926, %v3118
      %v3120 = vpop.f32.mrf.mxu0
      %v3121 = vadd.f32 %v2928, %v3120
      %3122 = vmatprep.mubr.bf16.mxu0 %v736
      %3123 = vmatmul.mubr.bf16.gmra.mxu0 %v735
      %v3124 = vpop.f32.mrf.mxu0
      %v3125 = vadd.f32 %v2932, %v3124
      %v3126 = vpop.f32.mrf.mxu0
      %v3127 = vadd.f32 %v2934, %v3126
      %v3128 = vpop.f32.mrf.mxu0
      %v3129 = vadd.f32 %v2936, %v3128
      %v3130 = vpop.f32.mrf.mxu0
      %v3131 = vadd.f32 %v2938, %v3130
      %3132 = vmatprep.mubr.bf16.mxu0 %v743
      %3133 = vmatmul.mubr.bf16.gmra.mxu0 %v742
      %v3134 = vpop.f32.mrf.mxu0
      %v3135 = vadd.f32 %v2942, %v3134
      %v3136 = vpop.f32.mrf.mxu0
      %v3137 = vadd.f32 %v2944, %v3136
      %v3138 = vpop.f32.mrf.mxu0
      %v3139 = vadd.f32 %v2946, %v3138
      %v3140 = vpop.f32.mrf.mxu0
      %v3141 = vadd.f32 %v2948, %v3140
      %3142 = vmatprep.mubr.bf16.mxu0 %v750
      %3143 = vmatmul.mubr.bf16.gmra.mxu0 %v749
      %v3144 = vpop.f32.mrf.mxu0
      %v3145 = vadd.f32 %v2952, %v3144
      %v3146 = vpop.f32.mrf.mxu0
      %v3147 = vadd.f32 %v2954, %v3146
      %v3148 = vpop.f32.mrf.mxu0
      %v3149 = vadd.f32 %v2956, %v3148
      %v3150 = vpop.f32.mrf.mxu0
      %v3151 = vadd.f32 %v2958, %v3150
      %3152 = vmatprep.mubr.bf16.mxu0 %v757
      %3153 = vmatmul.mubr.bf16.gmra.mxu0 %v756
      %v3154 = vpop.f32.mrf.mxu0
      %v3155 = vadd.f32 %v2962, %v3154
      %v3156 = vpop.f32.mrf.mxu0
      %v3157 = vadd.f32 %v2964, %v3156
      %v3158 = vpop.f32.mrf.mxu0
      %v3159 = vadd.f32 %v2966, %v3158
      %v3160 = vpop.f32.mrf.mxu0
      %v3161 = vadd.f32 %v2968, %v3160
      %3162 = vmatprep.mubr.bf16.mxu0 %v764
      %3163 = vmatmul.mubr.bf16.gmra.mxu0 %v763
      %v3164 = vpop.f32.mrf.mxu0
      %v3165 = vadd.f32 %v2972, %v3164
      %v3166 = vpop.f32.mrf.mxu0
      %v3167 = vadd.f32 %v2974, %v3166
      %v3168 = vpop.f32.mrf.mxu0
      %v3169 = vadd.f32 %v2976, %v3168
      %v3170 = vpop.f32.mrf.mxu0
      %v3171 = vadd.f32 %v2978, %v3170
      %3172 = vdwg.mxu0
      %3173 = vmatprep.subr.bf16.mxu0 %v1733
      %3174 = vmatpush1.bf16.msra.mxu0 %v1732
      %3175 = vmatprep.subr.bf16.mxu0 %v1729
      %3176 = vmatpush1.bf16.msra.mxu0 %v1728
      %3177 = vmatprep.subr.bf16.mxu0 %v1725
      %3178 = vmatpush1.bf16.msra.mxu0 %v1724
      %3179 = vmatprep.subr.bf16.mxu0 %v1721
      %3180 = vmatpush1.bf16.msra.mxu0 %v1720
      %3181 = vmatprep.subr.bf16.mxu0 %v1717
      %3182 = vmatpush1.bf16.msra.mxu0 %v1716
      %3183 = vmatprep.subr.bf16.mxu0 %v1713
      %3184 = vmatpush1.bf16.msra.mxu0 %v1712
      %3185 = vmatprep.subr.bf16.mxu0 %v1709
      %3186 = vmatpush1.bf16.msra.mxu0 %v1708
      %3187 = vmatprep.subr.bf16.mxu0 %v1705
      %3188 = vmatpush1.bf16.msra.mxu0 %v1704
      %3189 = vmatprep.subr.bf16.mxu0 %v1765
      %3190 = vmatpush2.bf16.msra.mxu0 %v1764
      %3191 = vmatprep.subr.bf16.mxu0 %v1761
      %3192 = vmatpush2.bf16.msra.mxu0 %v1760
      %3193 = vmatprep.subr.bf16.mxu0 %v1757
      %3194 = vmatpush2.bf16.msra.mxu0 %v1756
      %3195 = vmatprep.subr.bf16.mxu0 %v1753
      %3196 = vmatpush2.bf16.msra.mxu0 %v1752
      %3197 = vmatprep.subr.bf16.mxu0 %v1749
      %3198 = vmatpush2.bf16.msra.mxu0 %v1748
      %3199 = vmatprep.subr.bf16.mxu0 %v1745
      %3200 = vmatpush2.bf16.msra.mxu0 %v1744
      %3201 = vmatprep.subr.bf16.mxu0 %v1741
      %3202 = vmatpush2.bf16.msra.mxu0 %v1740
      %3203 = vmatprep.subr.bf16.mxu0 %v1737
      %3204 = vmatpush2.bf16.msra.mxu0 %v1736
      %3205 = vmatprep.mubr.bf16.mxu0 %v661
      %3206 = vmatmul.mubr.bf16.gmra.mxu0 %v660
      %v3207 = vpop.f32.mrf.mxu0
      %v3208 = vadd.f32 %v3015, %v3207
      %v3209 = vpop.f32.mrf.mxu0
      %v3210 = vadd.f32 %v3017, %v3209
      %v3211 = vpop.f32.mrf.mxu0
      %v3212 = vadd.f32 %v3019, %v3211
      %v3213 = vpop.f32.mrf.mxu0
      %v3214 = vadd.f32 %v3021, %v3213
      %3215 = vmatprep.mubr.bf16.mxu0 %v668
      %3216 = vmatmul.mubr.bf16.gmra.mxu0 %v667
      %v3217 = vpop.f32.mrf.mxu0
      %v3218 = vadd.f32 %v3025, %v3217
      %v3219 = vpop.f32.mrf.mxu0
      %v3220 = vadd.f32 %v3027, %v3219
      %v3221 = vpop.f32.mrf.mxu0
      %v3222 = vadd.f32 %v3029, %v3221
      %v3223 = vpop.f32.mrf.mxu0
      %v3224 = vadd.f32 %v3031, %v3223
      %3225 = vmatprep.mubr.bf16.mxu0 %v675
      %3226 = vmatmul.mubr.bf16.gmra.mxu0 %v674
      %v3227 = vpop.f32.mrf.mxu0
      %v3228 = vadd.f32 %v3035, %v3227
      %v3229 = vpop.f32.mrf.mxu0
      %v3230 = vadd.f32 %v3037, %v3229
      %v3231 = vpop.f32.mrf.mxu0
      %v3232 = vadd.f32 %v3039, %v3231
      %v3233 = vpop.f32.mrf.mxu0
      %v3234 = vadd.f32 %v3041, %v3233
      %3235 = vmatprep.mubr.bf16.mxu0 %v682
      %3236 = vmatmul.mubr.bf16.gmra.mxu0 %v681
      %v3237 = vpop.f32.mrf.mxu0
      %v3238 = vadd.f32 %v3045, %v3237
      %v3239 = vpop.f32.mrf.mxu0
      %v3240 = vadd.f32 %v3047, %v3239
      %v3241 = vpop.f32.mrf.mxu0
      %v3242 = vadd.f32 %v3049, %v3241
      %v3243 = vpop.f32.mrf.mxu0
      %v3244 = vadd.f32 %v3051, %v3243
      %3245 = vmatprep.mubr.bf16.mxu0 %v689
      %3246 = vmatmul.mubr.bf16.gmra.mxu0 %v688
      %v3247 = vpop.f32.mrf.mxu0
      %v3248 = vadd.f32 %v3055, %v3247
      %v3249 = vpop.f32.mrf.mxu0
      %v3250 = vadd.f32 %v3057, %v3249
      %v3251 = vpop.f32.mrf.mxu0
      %v3252 = vadd.f32 %v3059, %v3251
      %v3253 = vpop.f32.mrf.mxu0
      %v3254 = vadd.f32 %v3061, %v3253
      %3255 = vmatprep.mubr.bf16.mxu0 %v696
      %3256 = vmatmul.mubr.bf16.gmra.mxu0 %v695
      %v3257 = vpop.f32.mrf.mxu0
      %v3258 = vadd.f32 %v3065, %v3257
      %v3259 = vpop.f32.mrf.mxu0
      %v3260 = vadd.f32 %v3067, %v3259
      %v3261 = vpop.f32.mrf.mxu0
      %v3262 = vadd.f32 %v3069, %v3261
      %v3263 = vpop.f32.mrf.mxu0
      %v3264 = vadd.f32 %v3071, %v3263
      %3265 = vmatprep.mubr.bf16.mxu0 %v703
      %3266 = vmatmul.mubr.bf16.gmra.mxu0 %v702
      %v3267 = vpop.f32.mrf.mxu0
      %v3268 = vadd.f32 %v3075, %v3267
      %v3269 = vpop.f32.mrf.mxu0
      %v3270 = vadd.f32 %v3077, %v3269
      %v3271 = vpop.f32.mrf.mxu0
      %v3272 = vadd.f32 %v3079, %v3271
      %v3273 = vpop.f32.mrf.mxu0
      %v3274 = vadd.f32 %v3081, %v3273
      %3275 = vmatprep.mubr.bf16.mxu0 %v710
      %3276 = vmatmul.mubr.bf16.gmra.mxu0 %v709
      %v3277 = vpop.f32.mrf.mxu0
      %v3278 = vadd.f32 %v3085, %v3277
      %v3279 = vpop.f32.mrf.mxu0
      %v3280 = vadd.f32 %v3087, %v3279
      %v3281 = vpop.f32.mrf.mxu0
      %v3282 = vadd.f32 %v3089, %v3281
      %v3283 = vpop.f32.mrf.mxu0
      %v3284 = vadd.f32 %v3091, %v3283
      %3285 = vmatprep.mubr.bf16.mxu0 %v717
      %3286 = vmatmul.mubr.bf16.gmra.mxu0 %v716
      %v3287 = vpop.f32.mrf.mxu0
      %v3288 = vadd.f32 %v3095, %v3287
      %v3289 = vpop.f32.mrf.mxu0
      %v3290 = vadd.f32 %v3097, %v3289
      %v3291 = vpop.f32.mrf.mxu0
      %v3292 = vadd.f32 %v3099, %v3291
      %v3293 = vpop.f32.mrf.mxu0
      %v3294 = vadd.f32 %v3101, %v3293
      %3295 = vmatprep.mubr.bf16.mxu0 %v724
      %3296 = vmatmul.mubr.bf16.gmra.mxu0 %v723
      %v3297 = vpop.f32.mrf.mxu0
      %v3298 = vadd.f32 %v3105, %v3297
      %v3299 = vpop.f32.mrf.mxu0
      %v3300 = vadd.f32 %v3107, %v3299
      %v3301 = vpop.f32.mrf.mxu0
      %v3302 = vadd.f32 %v3109, %v3301
      %v3303 = vpop.f32.mrf.mxu0
      %v3304 = vadd.f32 %v3111, %v3303
      %3305 = vmatprep.mubr.bf16.mxu0 %v731
      %3306 = vmatmul.mubr.bf16.gmra.mxu0 %v730
      %v3307 = vpop.f32.mrf.mxu0
      %v3308 = vadd.f32 %v3115, %v3307
      %v3309 = vpop.f32.mrf.mxu0
      %v3310 = vadd.f32 %v3117, %v3309
      %v3311 = vpop.f32.mrf.mxu0
      %v3312 = vadd.f32 %v3119, %v3311
      %v3313 = vpop.f32.mrf.mxu0
      %v3314 = vadd.f32 %v3121, %v3313
      %3315 = vmatprep.mubr.bf16.mxu0 %v738
      %3316 = vmatmul.mubr.bf16.gmra.mxu0 %v737
      %v3317 = vpop.f32.mrf.mxu0
      %v3318 = vadd.f32 %v3125, %v3317
      %v3319 = vpop.f32.mrf.mxu0
      %v3320 = vadd.f32 %v3127, %v3319
      %v3321 = vpop.f32.mrf.mxu0
      %v3322 = vadd.f32 %v3129, %v3321
      %v3323 = vpop.f32.mrf.mxu0
      %v3324 = vadd.f32 %v3131, %v3323
      %3325 = vmatprep.mubr.bf16.mxu0 %v745
      %3326 = vmatmul.mubr.bf16.gmra.mxu0 %v744
      %v3327 = vpop.f32.mrf.mxu0
      %v3328 = vadd.f32 %v3135, %v3327
      %v3329 = vpop.f32.mrf.mxu0
      %v3330 = vadd.f32 %v3137, %v3329
      %v3331 = vpop.f32.mrf.mxu0
      %v3332 = vadd.f32 %v3139, %v3331
      %v3333 = vpop.f32.mrf.mxu0
      %v3334 = vadd.f32 %v3141, %v3333
      %3335 = vmatprep.mubr.bf16.mxu0 %v752
      %3336 = vmatmul.mubr.bf16.gmra.mxu0 %v751
      %v3337 = vpop.f32.mrf.mxu0
      %v3338 = vadd.f32 %v3145, %v3337
      %v3339 = vpop.f32.mrf.mxu0
      %v3340 = vadd.f32 %v3147, %v3339
      %v3341 = vpop.f32.mrf.mxu0
      %v3342 = vadd.f32 %v3149, %v3341
      %v3343 = vpop.f32.mrf.mxu0
      %v3344 = vadd.f32 %v3151, %v3343
      %3345 = vmatprep.mubr.bf16.mxu0 %v759
      %3346 = vmatmul.mubr.bf16.gmra.mxu0 %v758
      %v3347 = vpop.f32.mrf.mxu0
      %v3348 = vadd.f32 %v3155, %v3347
      %v3349 = vpop.f32.mrf.mxu0
      %v3350 = vadd.f32 %v3157, %v3349
      %v3351 = vpop.f32.mrf.mxu0
      %v3352 = vadd.f32 %v3159, %v3351
      %v3353 = vpop.f32.mrf.mxu0
      %v3354 = vadd.f32 %v3161, %v3353
      %3355 = vmatprep.mubr.bf16.mxu0 %v766
      %3356 = vmatmul.mubr.bf16.gmra.mxu0 %v765
      %v3357 = vpop.f32.mrf.mxu0
      %v3358 = vadd.f32 %v3165, %v3357
      %v3359 = vpop.f32.mrf.mxu0
      %v3360 = vadd.f32 %v3167, %v3359
      %v3361 = vpop.f32.mrf.mxu0
      %v3362 = vadd.f32 %v3169, %v3361
      %v3363 = vpop.f32.mrf.mxu0
      %v3364 = vadd.f32 %v3171, %v3363
      %3365 = vdwg.mxu0
      %3366 = vmatprep.subr.bf16.mxu0 0
      %3367 = vmatpush1.bf16.msra.mxu0 0
      %3368 = vmatprep.subr.bf16.mxu0 0
      %3369 = vmatpush1.bf16.msra.mxu0 0
      %3370 = vmatprep.subr.bf16.mxu0 0
      %3371 = vmatpush1.bf16.msra.mxu0 0
      %3372 = vmatprep.subr.bf16.mxu0 0
      %3373 = vmatpush1.bf16.msra.mxu0 0
      %3374 = vmatprep.subr.bf16.mxu0 0
      %3375 = vmatpush1.bf16.msra.mxu0 0
      %3376 = vmatprep.subr.bf16.mxu0 0
      %3377 = vmatpush1.bf16.msra.mxu0 0
      %3378 = vmatprep.subr.bf16.mxu0 0
      %3379 = vmatpush1.bf16.msra.mxu0 0
      %3380 = vmatprep.subr.bf16.mxu0 %v1769
      %3381 = vmatpush1.bf16.msra.mxu0 %v1768
      %3382 = vmatprep.subr.bf16.mxu0 0
      %3383 = vmatpush2.bf16.msra.mxu0 0
      %3384 = vmatprep.subr.bf16.mxu0 0
      %3385 = vmatpush2.bf16.msra.mxu0 0
      %3386 = vmatprep.subr.bf16.mxu0 0
      %3387 = vmatpush2.bf16.msra.mxu0 0
      %3388 = vmatprep.subr.bf16.mxu0 0
      %3389 = vmatpush2.bf16.msra.mxu0 0
      %3390 = vmatprep.subr.bf16.mxu0 0
      %3391 = vmatpush2.bf16.msra.mxu0 0
      %3392 = vmatprep.subr.bf16.mxu0 0
      %3393 = vmatpush2.bf16.msra.mxu0 0
      %3394 = vmatprep.subr.bf16.mxu0 0
      %3395 = vmatpush2.bf16.msra.mxu0 0
      %3396 = vmatprep.subr.bf16.mxu0 0
      %3397 = vmatpush2.bf16.msra.mxu0 0
      %3398 = vmatprep.mubr.bf16.mxu0 0
      %3399 = vmatmul.mubr.bf16.gmra.mxu0 %v1968
      %v3400 = vpop.f32.mrf.mxu0
      %v3401 = vadd.f32 %v3208, %v3400
      %v3402 = vpop.f32.mrf.mxu0
      %v3403 = vadd.f32 %v3210, %v3402
      %v3404 = vpop.f32.mrf.mxu0
      %v3405 = vadd.f32 %v3212, %v3404
      %v3406 = vpop.f32.mrf.mxu0
      %v3407 = vadd.f32 %v3214, %v3406
      %3408 = vmatprep.mubr.bf16.mxu0 0
      %3409 = vmatmul.mubr.bf16.gmra.mxu0 %v1971
      %v3410 = vpop.f32.mrf.mxu0
      %v3411 = vadd.f32 %v3218, %v3410
      %v3412 = vpop.f32.mrf.mxu0
      %v3413 = vadd.f32 %v3220, %v3412
      %v3414 = vpop.f32.mrf.mxu0
      %v3415 = vadd.f32 %v3222, %v3414
      %v3416 = vpop.f32.mrf.mxu0
      %v3417 = vadd.f32 %v3224, %v3416
      %3418 = vmatprep.mubr.bf16.mxu0 0
      %3419 = vmatmul.mubr.bf16.gmra.mxu0 %v1974
      %v3420 = vpop.f32.mrf.mxu0
      %v3421 = vadd.f32 %v3228, %v3420
      %v3422 = vpop.f32.mrf.mxu0
      %v3423 = vadd.f32 %v3230, %v3422
      %v3424 = vpop.f32.mrf.mxu0
      %v3425 = vadd.f32 %v3232, %v3424
      %v3426 = vpop.f32.mrf.mxu0
      %v3427 = vadd.f32 %v3234, %v3426
      %3428 = vmatprep.mubr.bf16.mxu0 0
      %3429 = vmatmul.mubr.bf16.gmra.mxu0 %v1977
      %v3430 = vpop.f32.mrf.mxu0
      %v3431 = vadd.f32 %v3238, %v3430
      %v3432 = vpop.f32.mrf.mxu0
      %v3433 = vadd.f32 %v3240, %v3432
      %v3434 = vpop.f32.mrf.mxu0
      %v3435 = vadd.f32 %v3242, %v3434
      %v3436 = vpop.f32.mrf.mxu0
      %v3437 = vadd.f32 %v3244, %v3436
      %3438 = vmatprep.mubr.bf16.mxu0 0
      %3439 = vmatmul.mubr.bf16.gmra.mxu0 %v1980
      %v3440 = vpop.f32.mrf.mxu0
      %v3441 = vadd.f32 %v3248, %v3440
      %v3442 = vpop.f32.mrf.mxu0
      %v3443 = vadd.f32 %v3250, %v3442
      %v3444 = vpop.f32.mrf.mxu0
      %v3445 = vadd.f32 %v3252, %v3444
      %v3446 = vpop.f32.mrf.mxu0
      %v3447 = vadd.f32 %v3254, %v3446
      %3448 = vmatprep.mubr.bf16.mxu0 0
      %3449 = vmatmul.mubr.bf16.gmra.mxu0 %v1983
      %v3450 = vpop.f32.mrf.mxu0
      %v3451 = vadd.f32 %v3258, %v3450
      %v3452 = vpop.f32.mrf.mxu0
      %v3453 = vadd.f32 %v3260, %v3452
      %v3454 = vpop.f32.mrf.mxu0
      %v3455 = vadd.f32 %v3262, %v3454
      %v3456 = vpop.f32.mrf.mxu0
      %v3457 = vadd.f32 %v3264, %v3456
      %3458 = vmatprep.mubr.bf16.mxu0 0
      %3459 = vmatmul.mubr.bf16.gmra.mxu0 %v1986
      %v3460 = vpop.f32.mrf.mxu0
      %v3461 = vadd.f32 %v3268, %v3460
      %v3462 = vpop.f32.mrf.mxu0
      %v3463 = vadd.f32 %v3270, %v3462
      %v3464 = vpop.f32.mrf.mxu0
      %v3465 = vadd.f32 %v3272, %v3464
      %v3466 = vpop.f32.mrf.mxu0
      %v3467 = vadd.f32 %v3274, %v3466
      %3468 = vmatprep.mubr.bf16.mxu0 0
      %3469 = vmatmul.mubr.bf16.gmra.mxu0 %v1989
      %v3470 = vpop.f32.mrf.mxu0
      %v3471 = vadd.f32 %v3278, %v3470
      %v3472 = vpop.f32.mrf.mxu0
      %v3473 = vadd.f32 %v3280, %v3472
      %v3474 = vpop.f32.mrf.mxu0
      %v3475 = vadd.f32 %v3282, %v3474
      %v3476 = vpop.f32.mrf.mxu0
      %v3477 = vadd.f32 %v3284, %v3476
      %3478 = vmatprep.mubr.bf16.mxu0 0
      %3479 = vmatmul.mubr.bf16.gmra.mxu0 %v1992
      %v3480 = vpop.f32.mrf.mxu0
      %v3481 = vadd.f32 %v3288, %v3480
      %v3482 = vpop.f32.mrf.mxu0
      %v3483 = vadd.f32 %v3290, %v3482
      %v3484 = vpop.f32.mrf.mxu0
      %v3485 = vadd.f32 %v3292, %v3484
      %v3486 = vpop.f32.mrf.mxu0
      %v3487 = vadd.f32 %v3294, %v3486
      %3488 = vmatprep.mubr.bf16.mxu0 0
      %3489 = vmatmul.mubr.bf16.gmra.mxu0 %v1995
      %v3490 = vpop.f32.mrf.mxu0
      %v3491 = vadd.f32 %v3298, %v3490
      %v3492 = vpop.f32.mrf.mxu0
      %v3493 = vadd.f32 %v3300, %v3492
      %v3494 = vpop.f32.mrf.mxu0
      %v3495 = vadd.f32 %v3302, %v3494
      %v3496 = vpop.f32.mrf.mxu0
      %v3497 = vadd.f32 %v3304, %v3496
      %3498 = vmatprep.mubr.bf16.mxu0 0
      %3499 = vmatmul.mubr.bf16.gmra.mxu0 %v1998
      %v3500 = vpop.f32.mrf.mxu0
      %v3501 = vadd.f32 %v3308, %v3500
      %v3502 = vpop.f32.mrf.mxu0
      %v3503 = vadd.f32 %v3310, %v3502
      %v3504 = vpop.f32.mrf.mxu0
      %v3505 = vadd.f32 %v3312, %v3504
      %v3506 = vpop.f32.mrf.mxu0
      %v3507 = vadd.f32 %v3314, %v3506
      %3508 = vmatprep.mubr.bf16.mxu0 0
      %3509 = vmatmul.mubr.bf16.gmra.mxu0 %v2001
      %v3510 = vpop.f32.mrf.mxu0
      %v3511 = vadd.f32 %v3318, %v3510
      %v3512 = vpop.f32.mrf.mxu0
      %v3513 = vadd.f32 %v3320, %v3512
      %v3514 = vpop.f32.mrf.mxu0
      %v3515 = vadd.f32 %v3322, %v3514
      %v3516 = vpop.f32.mrf.mxu0
      %v3517 = vadd.f32 %v3324, %v3516
      %3518 = vmatprep.mubr.bf16.mxu0 0
      %3519 = vmatmul.mubr.bf16.gmra.mxu0 %v2004
      %v3520 = vpop.f32.mrf.mxu0
      %v3521 = vadd.f32 %v3328, %v3520
      %v3522 = vpop.f32.mrf.mxu0
      %v3523 = vadd.f32 %v3330, %v3522
      %v3524 = vpop.f32.mrf.mxu0
      %v3525 = vadd.f32 %v3332, %v3524
      %v3526 = vpop.f32.mrf.mxu0
      %v3527 = vadd.f32 %v3334, %v3526
      %3528 = vmatprep.mubr.bf16.mxu0 0
      %3529 = vmatmul.mubr.bf16.gmra.mxu0 %v2007
      %v3530 = vpop.f32.mrf.mxu0
      %v3531 = vadd.f32 %v3338, %v3530
      %v3532 = vpop.f32.mrf.mxu0
      %v3533 = vadd.f32 %v3340, %v3532
      %v3534 = vpop.f32.mrf.mxu0
      %v3535 = vadd.f32 %v3342, %v3534
      %v3536 = vpop.f32.mrf.mxu0
      %v3537 = vadd.f32 %v3344, %v3536
      %3538 = vmatprep.mubr.bf16.mxu0 0
      %3539 = vmatmul.mubr.bf16.gmra.mxu0 %v2010
      %v3540 = vpop.f32.mrf.mxu0
      %v3541 = vadd.f32 %v3348, %v3540
      %v3542 = vpop.f32.mrf.mxu0
      %v3543 = vadd.f32 %v3350, %v3542
      %v3544 = vpop.f32.mrf.mxu0
      %v3545 = vadd.f32 %v3352, %v3544
      %v3546 = vpop.f32.mrf.mxu0
      %v3547 = vadd.f32 %v3354, %v3546
      %3548 = vmatprep.mubr.bf16.mxu0 0
      %3549 = vmatmul.mubr.bf16.gmra.mxu0 %v2013
      %v3550 = vpop.f32.mrf.mxu0
      %v3551 = vadd.f32 %v3358, %v3550
      %v3552 = vpop.f32.mrf.mxu0
      %v3553 = vadd.f32 %v3360, %v3552
      %v3554 = vpop.f32.mrf.mxu0
      %v3555 = vadd.f32 %v3362, %v3554
      %v3556 = vpop.f32.mrf.mxu0
      %v3557 = vadd.f32 %v3364, %v3556
      %3558 = vdwg.mxu0
      %vm3559 = vcmp.gt.f32.partialorder %v2629, 0.0
      %vm3560 = vcmp.gt.f32.partialorder %v2631, 0.0
      %vm3561 = vcmp.gt.f32.partialorder %v3401, 0.0
      %vm3562 = vcmp.gt.f32.partialorder %v3403, 0.0
      %vm3563 = vcmp.gt.f32.partialorder %v2633, 0.0
      %vm3564 = vcmp.gt.f32.partialorder %v2635, 0.0
      %vm3565 = vcmp.gt.f32.partialorder %v3405, 0.0
      %vm3566 = vcmp.gt.f32.partialorder %v3407, 0.0
      %vm3567 = vcmp.gt.f32.partialorder %v2639, 0.0
      %vm3568 = vcmp.gt.f32.partialorder %v2641, 0.0
      %vm3569 = vcmp.gt.f32.partialorder %v3411, 0.0
      %vm3570 = vcmp.gt.f32.partialorder %v3413, 0.0
      %vm3571 = vcmp.gt.f32.partialorder %v2643, 0.0
      %vm3572 = vcmp.gt.f32.partialorder %v2645, 0.0
      %vm3573 = vcmp.gt.f32.partialorder %v3415, 0.0
      %vm3574 = vcmp.gt.f32.partialorder %v3417, 0.0
      %vm3575 = vcmp.gt.f32.partialorder %v2649, 0.0
      %vm3576 = vcmp.gt.f32.partialorder %v2651, 0.0
      %vm3577 = vcmp.gt.f32.partialorder %v3421, 0.0
      %vm3578 = vcmp.gt.f32.partialorder %v3423, 0.0
      %vm3579 = vcmp.gt.f32.partialorder %v2653, 0.0
      %vm3580 = vcmp.gt.f32.partialorder %v2655, 0.0
      %vm3581 = vcmp.gt.f32.partialorder %v3425, 0.0
      %vm3582 = vcmp.gt.f32.partialorder %v3427, 0.0
      %vm3583 = vcmp.gt.f32.partialorder %v2659, 0.0
      %vm3584 = vcmp.gt.f32.partialorder %v2661, 0.0
      %vm3585 = vcmp.gt.f32.partialorder %v3431, 0.0
      %vm3586 = vcmp.gt.f32.partialorder %v3433, 0.0
      %vm3587 = vcmp.gt.f32.partialorder %v2663, 0.0
      %vm3588 = vcmp.gt.f32.partialorder %v2665, 0.0
      %vm3589 = vcmp.gt.f32.partialorder %v3435, 0.0
      %vm3590 = vcmp.gt.f32.partialorder %v3437, 0.0
      %vm3591 = vcmp.gt.f32.partialorder %v2669, 0.0
      %vm3592 = vcmp.gt.f32.partialorder %v2671, 0.0
      %vm3593 = vcmp.gt.f32.partialorder %v3441, 0.0
      %vm3594 = vcmp.gt.f32.partialorder %v3443, 0.0
      %vm3595 = vcmp.gt.f32.partialorder %v2673, 0.0
      %vm3596 = vcmp.gt.f32.partialorder %v2675, 0.0
      %vm3597 = vcmp.gt.f32.partialorder %v3445, 0.0
      %vm3598 = vcmp.gt.f32.partialorder %v3447, 0.0
      %vm3599 = vcmp.gt.f32.partialorder %v2679, 0.0
      %vm3600 = vcmp.gt.f32.partialorder %v2681, 0.0
      %vm3601 = vcmp.gt.f32.partialorder %v3451, 0.0
      %vm3602 = vcmp.gt.f32.partialorder %v3453, 0.0
      %vm3603 = vcmp.gt.f32.partialorder %v2683, 0.0
      %vm3604 = vcmp.gt.f32.partialorder %v2685, 0.0
      %vm3605 = vcmp.gt.f32.partialorder %v3455, 0.0
      %vm3606 = vcmp.gt.f32.partialorder %v3457, 0.0
      %vm3607 = vcmp.gt.f32.partialorder %v2689, 0.0
      %vm3608 = vcmp.gt.f32.partialorder %v2691, 0.0
      %vm3609 = vcmp.gt.f32.partialorder %v3461, 0.0
      %vm3610 = vcmp.gt.f32.partialorder %v3463, 0.0
      %vm3611 = vcmp.gt.f32.partialorder %v2693, 0.0
      %vm3612 = vcmp.gt.f32.partialorder %v2695, 0.0
      %vm3613 = vcmp.gt.f32.partialorder %v3465, 0.0
      %vm3614 = vcmp.gt.f32.partialorder %v3467, 0.0
      %vm3615 = vcmp.gt.f32.partialorder %v2699, 0.0
      %vm3616 = vcmp.gt.f32.partialorder %v2701, 0.0
      %vm3617 = vcmp.gt.f32.partialorder %v3471, 0.0
      %vm3618 = vcmp.gt.f32.partialorder %v3473, 0.0
      %vm3619 = vcmp.gt.f32.partialorder %v2703, 0.0
      %vm3620 = vcmp.gt.f32.partialorder %v2705, 0.0
      %vm3621 = vcmp.gt.f32.partialorder %v3475, 0.0
      %vm3622 = vcmp.gt.f32.partialorder %v3477, 0.0
      %vm3623 = vcmp.gt.f32.partialorder %v2709, 0.0
      %vm3624 = vcmp.gt.f32.partialorder %v2711, 0.0
      %vm3625 = vcmp.gt.f32.partialorder %v3481, 0.0
      %vm3626 = vcmp.gt.f32.partialorder %v3483, 0.0
      %vm3627 = vcmp.gt.f32.partialorder %v2713, 0.0
      %vm3628 = vcmp.gt.f32.partialorder %v2715, 0.0
      %vm3629 = vcmp.gt.f32.partialorder %v3485, 0.0
      %vm3630 = vcmp.gt.f32.partialorder %v3487, 0.0
      %vm3631 = vcmp.gt.f32.partialorder %v2719, 0.0
      %vm3632 = vcmp.gt.f32.partialorder %v2721, 0.0
      %vm3633 = vcmp.gt.f32.partialorder %v3491, 0.0
      %vm3634 = vcmp.gt.f32.partialorder %v3493, 0.0
      %vm3635 = vcmp.gt.f32.partialorder %v2723, 0.0
      %vm3636 = vcmp.gt.f32.partialorder %v2725, 0.0
      %vm3637 = vcmp.gt.f32.partialorder %v3495, 0.0
      %vm3638 = vcmp.gt.f32.partialorder %v3497, 0.0
      %vm3639 = vcmp.gt.f32.partialorder %v2729, 0.0
      %vm3640 = vcmp.gt.f32.partialorder %v2731, 0.0
      %vm3641 = vcmp.gt.f32.partialorder %v3501, 0.0
      %vm3642 = vcmp.gt.f32.partialorder %v3503, 0.0
      %vm3643 = vcmp.gt.f32.partialorder %v2733, 0.0
      %vm3644 = vcmp.gt.f32.partialorder %v2735, 0.0
      %vm3645 = vcmp.gt.f32.partialorder %v3505, 0.0
      %vm3646 = vcmp.gt.f32.partialorder %v3507, 0.0
      %vm3647 = vcmp.gt.f32.partialorder %v2739, 0.0
      %vm3648 = vcmp.gt.f32.partialorder %v2741, 0.0
      %vm3649 = vcmp.gt.f32.partialorder %v3511, 0.0
      %vm3650 = vcmp.gt.f32.partialorder %v3513, 0.0
      %vm3651 = vcmp.gt.f32.partialorder %v2743, 0.0
      %vm3652 = vcmp.gt.f32.partialorder %v2745, 0.0
      %vm3653 = vcmp.gt.f32.partialorder %v3515, 0.0
      %vm3654 = vcmp.gt.f32.partialorder %v3517, 0.0
      %vm3655 = vcmp.gt.f32.partialorder %v2749, 0.0
      %vm3656 = vcmp.gt.f32.partialorder %v2751, 0.0
      %vm3657 = vcmp.gt.f32.partialorder %v3521, 0.0
      %vm3658 = vcmp.gt.f32.partialorder %v3523, 0.0
      %vm3659 = vcmp.gt.f32.partialorder %v2753, 0.0
      %vm3660 = vcmp.gt.f32.partialorder %v2755, 0.0
      %vm3661 = vcmp.gt.f32.partialorder %v3525, 0.0
      %vm3662 = vcmp.gt.f32.partialorder %v3527, 0.0
      %vm3663 = vcmp.gt.f32.partialorder %v2759, 0.0
      %vm3664 = vcmp.gt.f32.partialorder %v2761, 0.0
      %vm3665 = vcmp.gt.f32.partialorder %v3531, 0.0
      %vm3666 = vcmp.gt.f32.partialorder %v3533, 0.0
      %vm3667 = vcmp.gt.f32.partialorder %v2763, 0.0
      %vm3668 = vcmp.gt.f32.partialorder %v2765, 0.0
      %vm3669 = vcmp.gt.f32.partialorder %v3535, 0.0
      %vm3670 = vcmp.gt.f32.partialorder %v3537, 0.0
      %vm3671 = vcmp.gt.f32.partialorder %v2769, 0.0
      %vm3672 = vcmp.gt.f32.partialorder %v2771, 0.0
      %vm3673 = vcmp.gt.f32.partialorder %v3541, 0.0
      %vm3674 = vcmp.gt.f32.partialorder %v3543, 0.0
      %vm3675 = vcmp.gt.f32.partialorder %v2773, 0.0
      %vm3676 = vcmp.gt.f32.partialorder %v2775, 0.0
      %vm3677 = vcmp.gt.f32.partialorder %v3545, 0.0
      %vm3678 = vcmp.gt.f32.partialorder %v3547, 0.0
      %vm3679 = vcmp.gt.f32.partialorder %v2779, 0.0
      %vm3680 = vcmp.gt.f32.partialorder %v2781, 0.0
      %vm3681 = vcmp.gt.f32.partialorder %v3551, 0.0
      %vm3682 = vcmp.gt.f32.partialorder %v3553, 0.0
      %vm3683 = vcmp.gt.f32.partialorder %v2783, 0.0
      %vm3684 = vcmp.gt.f32.partialorder %v2785, 0.0
      %vm3685 = vcmp.gt.f32.partialorder %v3555, 0.0
      %vm3686 = vcmp.gt.f32.partialorder %v3557, 0.0
      %v3687 = vmul.f32 %v2629, 0.0001
      %v3688 = vmul.f32 %v2631, 0.0001
      %v3689 = vmul.f32 %v3401, 0.0001
      %v3690 = vmul.f32 %v3403, 0.0001
      %v3691 = vmul.f32 %v2633, 0.0001
      %v3692 = vmul.f32 %v2635, 0.0001
      %v3693 = vmul.f32 %v3405, 0.0001
      %v3694 = vmul.f32 %v3407, 0.0001
      %v3695 = vmul.f32 %v2639, 0.0001
      %v3696 = vmul.f32 %v2641, 0.0001
      %v3697 = vmul.f32 %v3411, 0.0001
      %v3698 = vmul.f32 %v3413, 0.0001
      %v3699 = vmul.f32 %v2643, 0.0001
      %v3700 = vmul.f32 %v2645, 0.0001
      %v3701 = vmul.f32 %v3415, 0.0001
      %v3702 = vmul.f32 %v3417, 0.0001
      %v3703 = vmul.f32 %v2649, 0.0001
      %v3704 = vmul.f32 %v2651, 0.0001
      %v3705 = vmul.f32 %v3421, 0.0001
      %v3706 = vmul.f32 %v3423, 0.0001
      %v3707 = vmul.f32 %v2653, 0.0001
      %v3708 = vmul.f32 %v2655, 0.0001
      %v3709 = vmul.f32 %v3425, 0.0001
      %v3710 = vmul.f32 %v3427, 0.0001
      %v3711 = vmul.f32 %v2659, 0.0001
      %v3712 = vmul.f32 %v2661, 0.0001
      %v3713 = vmul.f32 %v3431, 0.0001
      %v3714 = vmul.f32 %v3433, 0.0001
      %v3715 = vmul.f32 %v2663, 0.0001
      %v3716 = vmul.f32 %v2665, 0.0001
      %v3717 = vmul.f32 %v3435, 0.0001
      %v3718 = vmul.f32 %v3437, 0.0001
      %v3719 = vmul.f32 %v2669, 0.0001
      %v3720 = vmul.f32 %v2671, 0.0001
      %v3721 = vmul.f32 %v3441, 0.0001
      %v3722 = vmul.f32 %v3443, 0.0001
      %v3723 = vmul.f32 %v2673, 0.0001
      %v3724 = vmul.f32 %v2675, 0.0001
      %v3725 = vmul.f32 %v3445, 0.0001
      %v3726 = vmul.f32 %v3447, 0.0001
      %v3727 = vmul.f32 %v2679, 0.0001
      %v3728 = vmul.f32 %v2681, 0.0001
      %v3729 = vmul.f32 %v3451, 0.0001
      %v3730 = vmul.f32 %v3453, 0.0001
      %v3731 = vmul.f32 %v2683, 0.0001
      %v3732 = vmul.f32 %v2685, 0.0001
      %v3733 = vmul.f32 %v3455, 0.0001
      %v3734 = vmul.f32 %v3457, 0.0001
      %v3735 = vmul.f32 %v2689, 0.0001
      %v3736 = vmul.f32 %v2691, 0.0001
      %v3737 = vmul.f32 %v3461, 0.0001
      %v3738 = vmul.f32 %v3463, 0.0001
      %v3739 = vmul.f32 %v2693, 0.0001
      %v3740 = vmul.f32 %v2695, 0.0001
      %v3741 = vmul.f32 %v3465, 0.0001
      %v3742 = vmul.f32 %v3467, 0.0001
      %v3743 = vmul.f32 %v2699, 0.0001
      %v3744 = vmul.f32 %v2701, 0.0001
      %v3745 = vmul.f32 %v3471, 0.0001
      %v3746 = vmul.f32 %v3473, 0.0001
      %v3747 = vmul.f32 %v2703, 0.0001
      %v3748 = vmul.f32 %v2705, 0.0001
      %v3749 = vmul.f32 %v3475, 0.0001
      %v3750 = vmul.f32 %v3477, 0.0001
      %v3751 = vmul.f32 %v2709, 0.0001
      %v3752 = vmul.f32 %v2711, 0.0001
      %v3753 = vmul.f32 %v3481, 0.0001
      %v3754 = vmul.f32 %v3483, 0.0001
      %v3755 = vmul.f32 %v2713, 0.0001
      %v3756 = vmul.f32 %v2715, 0.0001
      %v3757 = vmul.f32 %v3485, 0.0001
      %v3758 = vmul.f32 %v3487, 0.0001
      %v3759 = vmul.f32 %v2719, 0.0001
      %v3760 = vmul.f32 %v2721, 0.0001
      %v3761 = vmul.f32 %v3491, 0.0001
      %v3762 = vmul.f32 %v3493, 0.0001
      %v3763 = vmul.f32 %v2723, 0.0001
      %v3764 = vmul.f32 %v2725, 0.0001
      %v3765 = vmul.f32 %v3495, 0.0001
      %v3766 = vmul.f32 %v3497, 0.0001
      %v3767 = vmul.f32 %v2729, 0.0001
      %v3768 = vmul.f32 %v2731, 0.0001
      %v3769 = vmul.f32 %v3501, 0.0001
      %v3770 = vmul.f32 %v3503, 0.0001
      %v3771 = vmul.f32 %v2733, 0.0001
      %v3772 = vmul.f32 %v2735, 0.0001
      %v3773 = vmul.f32 %v3505, 0.0001
      %v3774 = vmul.f32 %v3507, 0.0001
      %v3775 = vmul.f32 %v2739, 0.0001
      %v3776 = vmul.f32 %v2741, 0.0001
      %v3777 = vmul.f32 %v3511, 0.0001
      %v3778 = vmul.f32 %v3513, 0.0001
      %v3779 = vmul.f32 %v2743, 0.0001
      %v3780 = vmul.f32 %v2745, 0.0001
      %v3781 = vmul.f32 %v3515, 0.0001
      %v3782 = vmul.f32 %v3517, 0.0001
      %v3783 = vmul.f32 %v2749, 0.0001
      %v3784 = vmul.f32 %v2751, 0.0001
      %v3785 = vmul.f32 %v3521, 0.0001
      %v3786 = vmul.f32 %v3523, 0.0001
      %v3787 = vmul.f32 %v2753, 0.0001
      %v3788 = vmul.f32 %v2755, 0.0001
      %v3789 = vmul.f32 %v3525, 0.0001
      %v3790 = vmul.f32 %v3527, 0.0001
      %v3791 = vmul.f32 %v2759, 0.0001
      %v3792 = vmul.f32 %v2761, 0.0001
      %v3793 = vmul.f32 %v3531, 0.0001
      %v3794 = vmul.f32 %v3533, 0.0001
      %v3795 = vmul.f32 %v2763, 0.0001
      %v3796 = vmul.f32 %v2765, 0.0001
      %v3797 = vmul.f32 %v3535, 0.0001
      %v3798 = vmul.f32 %v3537, 0.0001
      %v3799 = vmul.f32 %v2769, 0.0001
      %v3800 = vmul.f32 %v2771, 0.0001
      %v3801 = vmul.f32 %v3541, 0.0001
      %v3802 = vmul.f32 %v3543, 0.0001
      %v3803 = vmul.f32 %v2773, 0.0001
      %v3804 = vmul.f32 %v2775, 0.0001
      %v3805 = vmul.f32 %v3545, 0.0001
      %v3806 = vmul.f32 %v3547, 0.0001
      %v3807 = vmul.f32 %v2779, 0.0001
      %v3808 = vmul.f32 %v2781, 0.0001
      %v3809 = vmul.f32 %v3551, 0.0001
      %v3810 = vmul.f32 %v3553, 0.0001
      %v3811 = vmul.f32 %v2783, 0.0001
      %v3812 = vmul.f32 %v2785, 0.0001
      %v3813 = vmul.f32 %v3555, 0.0001
      %v3814 = vmul.f32 %v3557, 0.0001
      %v3815 = vsel %vm3559, %v2629, %v3687
      %v3816 = vsel %vm3560, %v2631, %v3688
      %v3817 = vsel %vm3561, %v3401, %v3689
      %v3818 = vsel %vm3562, %v3403, %v3690
      %v3819 = vsel %vm3563, %v2633, %v3691
      %v3820 = vsel %vm3564, %v2635, %v3692
      %v3821 = vsel %vm3565, %v3405, %v3693
      %v3822 = vsel %vm3566, %v3407, %v3694
      %v3823 = vsel %vm3567, %v2639, %v3695
      %v3824 = vsel %vm3568, %v2641, %v3696
      %v3825 = vsel %vm3569, %v3411, %v3697
      %v3826 = vsel %vm3570, %v3413, %v3698
      %v3827 = vsel %vm3571, %v2643, %v3699
      %v3828 = vsel %vm3572, %v2645, %v3700
      %v3829 = vsel %vm3573, %v3415, %v3701
      %v3830 = vsel %vm3574, %v3417, %v3702
      %v3831 = vsel %vm3575, %v2649, %v3703
      %v3832 = vsel %vm3576, %v2651, %v3704
      %v3833 = vsel %vm3577, %v3421, %v3705
      %v3834 = vsel %vm3578, %v3423, %v3706
      %v3835 = vsel %vm3579, %v2653, %v3707
      %v3836 = vsel %vm3580, %v2655, %v3708
      %v3837 = vsel %vm3581, %v3425, %v3709
      %v3838 = vsel %vm3582, %v3427, %v3710
      %v3839 = vsel %vm3583, %v2659, %v3711
      %v3840 = vsel %vm3584, %v2661, %v3712
      %v3841 = vsel %vm3585, %v3431, %v3713
      %v3842 = vsel %vm3586, %v3433, %v3714
      %v3843 = vsel %vm3587, %v2663, %v3715
      %v3844 = vsel %vm3588, %v2665, %v3716
      %v3845 = vsel %vm3589, %v3435, %v3717
      %v3846 = vsel %vm3590, %v3437, %v3718
      %v3847 = vsel %vm3591, %v2669, %v3719
      %v3848 = vsel %vm3592, %v2671, %v3720
      %v3849 = vsel %vm3593, %v3441, %v3721
      %v3850 = vsel %vm3594, %v3443, %v3722
      %v3851 = vsel %vm3595, %v2673, %v3723
      %v3852 = vsel %vm3596, %v2675, %v3724
      %v3853 = vsel %vm3597, %v3445, %v3725
      %v3854 = vsel %vm3598, %v3447, %v3726
      %v3855 = vsel %vm3599, %v2679, %v3727
      %v3856 = vsel %vm3600, %v2681, %v3728
      %v3857 = vsel %vm3601, %v3451, %v3729
      %v3858 = vsel %vm3602, %v3453, %v3730
      %v3859 = vsel %vm3603, %v2683, %v3731
      %v3860 = vsel %vm3604, %v2685, %v3732
      %v3861 = vsel %vm3605, %v3455, %v3733
      %v3862 = vsel %vm3606, %v3457, %v3734
      %v3863 = vsel %vm3607, %v2689, %v3735
      %v3864 = vsel %vm3608, %v2691, %v3736
      %v3865 = vsel %vm3609, %v3461, %v3737
      %v3866 = vsel %vm3610, %v3463, %v3738
      %v3867 = vsel %vm3611, %v2693, %v3739
      %v3868 = vsel %vm3612, %v2695, %v3740
      %v3869 = vsel %vm3613, %v3465, %v3741
      %v3870 = vsel %vm3614, %v3467, %v3742
      %v3871 = vsel %vm3615, %v2699, %v3743
      %v3872 = vsel %vm3616, %v2701, %v3744
      %v3873 = vsel %vm3617, %v3471, %v3745
      %v3874 = vsel %vm3618, %v3473, %v3746
      %v3875 = vsel %vm3619, %v2703, %v3747
      %v3876 = vsel %vm3620, %v2705, %v3748
      %v3877 = vsel %vm3621, %v3475, %v3749
      %v3878 = vsel %vm3622, %v3477, %v3750
      %v3879 = vsel %vm3623, %v2709, %v3751
      %v3880 = vsel %vm3624, %v2711, %v3752
      %v3881 = vsel %vm3625, %v3481, %v3753
      %v3882 = vsel %vm3626, %v3483, %v3754
      %v3883 = vsel %vm3627, %v2713, %v3755
      %v3884 = vsel %vm3628, %v2715, %v3756
      %v3885 = vsel %vm3629, %v3485, %v3757
      %v3886 = vsel %vm3630, %v3487, %v3758
      %v3887 = vsel %vm3631, %v2719, %v3759
      %v3888 = vsel %vm3632, %v2721, %v3760
      %v3889 = vsel %vm3633, %v3491, %v3761
      %v3890 = vsel %vm3634, %v3493, %v3762
      %v3891 = vsel %vm3635, %v2723, %v3763
      %v3892 = vsel %vm3636, %v2725, %v3764
      %v3893 = vsel %vm3637, %v3495, %v3765
      %v3894 = vsel %vm3638, %v3497, %v3766
      %v3895 = vsel %vm3639, %v2729, %v3767
      %v3896 = vsel %vm3640, %v2731, %v3768
      %v3897 = vsel %vm3641, %v3501, %v3769
      %v3898 = vsel %vm3642, %v3503, %v3770
      %v3899 = vsel %vm3643, %v2733, %v3771
      %v3900 = vsel %vm3644, %v2735, %v3772
      %v3901 = vsel %vm3645, %v3505, %v3773
      %v3902 = vsel %vm3646, %v3507, %v3774
      %v3903 = vsel %vm3647, %v2739, %v3775
      %v3904 = vsel %vm3648, %v2741, %v3776
      %v3905 = vsel %vm3649, %v3511, %v3777
      %v3906 = vsel %vm3650, %v3513, %v3778
      %v3907 = vsel %vm3651, %v2743, %v3779
      %v3908 = vsel %vm3652, %v2745, %v3780
      %v3909 = vsel %vm3653, %v3515, %v3781
      %v3910 = vsel %vm3654, %v3517, %v3782
      %v3911 = vsel %vm3655, %v2749, %v3783
      %v3912 = vsel %vm3656, %v2751, %v3784
      %v3913 = vsel %vm3657, %v3521, %v3785
      %v3914 = vsel %vm3658, %v3523, %v3786
      %v3915 = vsel %vm3659, %v2753, %v3787
      %v3916 = vsel %vm3660, %v2755, %v3788
      %v3917 = vsel %vm3661, %v3525, %v3789
      %v3918 = vsel %vm3662, %v3527, %v3790
      %v3919 = vsel %vm3663, %v2759, %v3791
      %v3920 = vsel %vm3664, %v2761, %v3792
      %v3921 = vsel %vm3665, %v3531, %v3793
      %v3922 = vsel %vm3666, %v3533, %v3794
      %v3923 = vsel %vm3667, %v2763, %v3795
      %v3924 = vsel %vm3668, %v2765, %v3796
      %v3925 = vsel %vm3669, %v3535, %v3797
      %v3926 = vsel %vm3670, %v3537, %v3798
      %v3927 = vsel %vm3671, %v2769, %v3799
      %v3928 = vsel %vm3672, %v2771, %v3800
      %v3929 = vsel %vm3673, %v3541, %v3801
      %v3930 = vsel %vm3674, %v3543, %v3802
      %v3931 = vsel %vm3675, %v2773, %v3803
      %v3932 = vsel %vm3676, %v2775, %v3804
      %v3933 = vsel %vm3677, %v3545, %v3805
      %v3934 = vsel %vm3678, %v3547, %v3806
      %v3935 = vsel %vm3679, %v2779, %v3807
      %v3936 = vsel %vm3680, %v2781, %v3808
      %v3937 = vsel %vm3681, %v3551, %v3809
      %v3938 = vsel %vm3682, %v3553, %v3810
      %v3939 = vsel %vm3683, %v2783, %v3811
      %v3940 = vsel %vm3684, %v2785, %v3812
      %v3941 = vsel %vm3685, %v3555, %v3813
      %v3942 = vsel %vm3686, %v3557, %v3814
      %v3943 = vpack.c.bf16 %v3819, %v3815
      %v3944 = vpack.c.bf16 %v3820, %v3816
      %v3945 = vpack.c.bf16 %v3821, %v3817
      %v3946 = vpack.c.bf16 %v3822, %v3818
      %v3947 = vpack.c.bf16 %v3827, %v3823
      %v3948 = vpack.c.bf16 %v3828, %v3824
      %v3949 = vpack.c.bf16 %v3829, %v3825
      %v3950 = vpack.c.bf16 %v3830, %v3826
      %v3951 = vpack.c.bf16 %v3835, %v3831
      %v3952 = vpack.c.bf16 %v3836, %v3832
      %v3953 = vpack.c.bf16 %v3837, %v3833
      %v3954 = vpack.c.bf16 %v3838, %v3834
      %v3955 = vpack.c.bf16 %v3843, %v3839
      %v3956 = vpack.c.bf16 %v3844, %v3840
      %v3957 = vpack.c.bf16 %v3845, %v3841
      %v3958 = vpack.c.bf16 %v3846, %v3842
      %v3959 = vpack.c.bf16 %v3851, %v3847
      %v3960 = vpack.c.bf16 %v3852, %v3848
      %v3961 = vpack.c.bf16 %v3853, %v3849
      %v3962 = vpack.c.bf16 %v3854, %v3850
      %v3963 = vpack.c.bf16 %v3859, %v3855
      %v3964 = vpack.c.bf16 %v3860, %v3856
      %v3965 = vpack.c.bf16 %v3861, %v3857
      %v3966 = vpack.c.bf16 %v3862, %v3858
      %v3967 = vpack.c.bf16 %v3867, %v3863
      %v3968 = vpack.c.bf16 %v3868, %v3864
      %v3969 = vpack.c.bf16 %v3869, %v3865
      %v3970 = vpack.c.bf16 %v3870, %v3866
      %v3971 = vpack.c.bf16 %v3875, %v3871
      %v3972 = vpack.c.bf16 %v3876, %v3872
      %v3973 = vpack.c.bf16 %v3877, %v3873
      %v3974 = vpack.c.bf16 %v3878, %v3874
      %v3975 = vpack.c.bf16 %v3883, %v3879
      %v3976 = vpack.c.bf16 %v3884, %v3880
      %v3977 = vpack.c.bf16 %v3885, %v3881
      %v3978 = vpack.c.bf16 %v3886, %v3882
      %v3979 = vpack.c.bf16 %v3891, %v3887
      %v3980 = vpack.c.bf16 %v3892, %v3888
      %v3981 = vpack.c.bf16 %v3893, %v3889
      %v3982 = vpack.c.bf16 %v3894, %v3890
      %v3983 = vpack.c.bf16 %v3899, %v3895
      %v3984 = vpack.c.bf16 %v3900, %v3896
      %v3985 = vpack.c.bf16 %v3901, %v3897
      %v3986 = vpack.c.bf16 %v3902, %v3898
      %v3987 = vpack.c.bf16 %v3907, %v3903
      %v3988 = vpack.c.bf16 %v3908, %v3904
      %v3989 = vpack.c.bf16 %v3909, %v3905
      %v3990 = vpack.c.bf16 %v3910, %v3906
      %v3991 = vpack.c.bf16 %v3915, %v3911
      %v3992 = vpack.c.bf16 %v3916, %v3912
      %v3993 = vpack.c.bf16 %v3917, %v3913
      %v3994 = vpack.c.bf16 %v3918, %v3914
      %v3995 = vpack.c.bf16 %v3923, %v3919
      %v3996 = vpack.c.bf16 %v3924, %v3920
      %v3997 = vpack.c.bf16 %v3925, %v3921
      %v3998 = vpack.c.bf16 %v3926, %v3922
      %v3999 = vpack.c.bf16 %v3931, %v3927
      %v4000 = vpack.c.bf16 %v3932, %v3928
      %v4001 = vpack.c.bf16 %v3933, %v3929
      %v4002 = vpack.c.bf16 %v3934, %v3930
      %v4003 = vpack.c.bf16 %v3939, %v3935
      %v4004 = vpack.c.bf16 %v3940, %v3936
      %v4005 = vpack.c.bf16 %v3941, %v3937
      %v4006 = vpack.c.bf16 %v3942, %v3938
      %v4007 = vld [vmem:[%s4] sm:$0xf]
      %v4008 = vld [vmem:[%s4 + $0x4] sm:$0xf]
      %v4009 = vld [vmem:[%s4 + $0x8] sm:$0xf]
      %v4010 = vld [vmem:[%s4 + $0xc] sm:$0xf]
      %v4011 = vld [vmem:[%s4 + $0x10] sm:$0xf]
      %v4012 = vld [vmem:[%s4 + $0x14] sm:$0xf]
      %v4013 = vld [vmem:[%s4 + $0x18] sm:$0xf]
      %v4014 = vld [vmem:[%s4 + $0x1c] sm:$0xf]
      %v4015 = vld [vmem:[%s4 + $0x20] sm:$0xf]
      %v4016 = vld [vmem:[%s4 + $0x24] sm:$0xf]
      %v4017 = vld [vmem:[%s4 + $0x28] sm:$0xf]
      %v4018 = vld [vmem:[%s4 + $0x2c] sm:$0xf]
      %v4019 = vld [vmem:[%s4 + $0x30] sm:$0xf]
      %v4020 = vld [vmem:[%s4 + $0x34] sm:$0xf]
      %v4021 = vld [vmem:[%s4 + $0x38] sm:$0xf]
      %v4022 = vld [vmem:[%s4 + $0x3c] sm:$0xf]
      %v4023 = vld [vmem:[%s4 + $0x40] sm:$0xf]
      %v4024 = vld [vmem:[%s4 + $0x44] sm:$0xf]
      %v4025 = vld [vmem:[%s4 + $0x48] sm:$0xf]
      %v4026 = vld [vmem:[%s4 + $0x4c] sm:$0xf]
      %v4027 = vld [vmem:[%s4 + $0x50] sm:$0xf]
      %v4028 = vld [vmem:[%s4 + $0x54] sm:$0xf]
      %v4029 = vld [vmem:[%s4 + $0x58] sm:$0xf]
      %v4030 = vld [vmem:[%s4 + $0x5c] sm:$0xf]
      %v4031 = vld [vmem:[%s4 + $0x60] sm:$0xf]
      %v4032 = vld [vmem:[%s4 + $0x64] sm:$0xf]
      %v4033 = vld [vmem:[%s4 + $0x68] sm:$0xf]
      %v4034 = vld [vmem:[%s4 + $0x6c] sm:$0xf]
      %v4035 = vld [vmem:[%s4 + $0x70] sm:$0xf]
      %v4036 = vld [vmem:[%s4 + $0x74] sm:$0xf]
      %v4037 = vld [vmem:[%s4 + $0x78] sm:$0xf]
      %v4038 = vld [vmem:[%s4 + $0x7c] sm:$0xf]
      %v4039 = vld [vmem:[%s4 + $0x80] sm:$0xf]
      %v4040 = vld [vmem:[%s4 + $0x84] sm:$0xf]
      %v4041 = vld [vmem:[%s4 + $0x88] sm:$0xf]
      %v4042 = vld [vmem:[%s4 + $0x8c] sm:$0xf]
      %v4043 = vld [vmem:[%s4 + $0x90] sm:$0xf]
      %v4044 = vld [vmem:[%s4 + $0x94] sm:$0xf]
      %v4045 = vld [vmem:[%s4 + $0x98] sm:$0xf]
      %v4046 = vld [vmem:[%s4 + $0x9c] sm:$0xf]
      %v4047 = vld [vmem:[%s4 + $0xa0] sm:$0xf]
      %v4048 = vld [vmem:[%s4 + $0xa4] sm:$0xf]
      %v4049 = vld [vmem:[%s4 + $0xa8] sm:$0xf]
      %v4050 = vld [vmem:[%s4 + $0xac] sm:$0xf]
      %v4051 = vld [vmem:[%s4 + $0xb0] sm:$0xf]
      %v4052 = vld [vmem:[%s4 + $0xb4] sm:$0xf]
      %v4053 = vld [vmem:[%s4 + $0xb8] sm:$0xf]
      %v4054 = vld [vmem:[%s4 + $0xbc] sm:$0xf]
      %v4055 = vld [vmem:[%s4 + $0xc0] sm:$0xf]
      %v4056 = vld [vmem:[%s4 + $0xc4] sm:$0xf]
      %v4057 = vld [vmem:[%s4 + $0xc8] sm:$0xf]
      %v4058 = vld [vmem:[%s4 + $0xcc] sm:$0xf]
      %v4059 = vld [vmem:[%s4 + $0xd0] sm:$0xf]
      %v4060 = vld [vmem:[%s4 + $0xd4] sm:$0xf]
      %v4061 = vld [vmem:[%s4 + $0xd8] sm:$0xf]
      %v4062 = vld [vmem:[%s4 + $0xdc] sm:$0xf]
      %v4063 = vld [vmem:[%s4 + $0xe0] sm:$0xf]
      %v4064 = vld [vmem:[%s4 + $0xe4] sm:$0xf]
      %v4065 = vld [vmem:[%s4 + $0xe8] sm:$0xf]
      %v4066 = vld [vmem:[%s4 + $0xec] sm:$0xf]
      %v4067 = vld [vmem:[%s4 + $0xf0] sm:$0xf]
      %v4068 = vld [vmem:[%s4 + $0xf4] sm:$0xf]
      %v4069 = vld [vmem:[%s4 + $0xf8] sm:$0x3]
      %v4070 = vld [vmem:[%s5] sm:$0x1]
      %v4072 = vlaneseq
      %v4073 = vshrl.u32 %v4072, 7
      %v4074 = vsub.s32 0, %v4073
      %v4075 = vrot.slane %v4070, %v4074
      %v4140 = vunpack.c.l.b16 %v4007
      %v4141 = vunpack.c.l.b16 %v4008
      %v4142 = vunpack.c.l.b16 %v4009
      %v4143 = vunpack.c.l.b16 %v4010
      %v4144 = vunpack.c.l.b16 %v4011
      %v4145 = vunpack.c.l.b16 %v4012
      %v4146 = vunpack.c.l.b16 %v4013
      %v4147 = vunpack.c.l.b16 %v4014
      %v4148 = vunpack.c.l.b16 %v4015
      %v4149 = vunpack.c.l.b16 %v4016
      %v4150 = vunpack.c.l.b16 %v4017
      %v4151 = vunpack.c.l.b16 %v4018
      %v4152 = vunpack.c.l.b16 %v4019
      %v4153 = vunpack.c.l.b16 %v4020
      %v4154 = vunpack.c.l.b16 %v4021
      %v4155 = vunpack.c.l.b16 %v4022
      %v4156 = vunpack.c.l.b16 %v4023
      %v4157 = vunpack.c.l.b16 %v4024
      %v4158 = vunpack.c.l.b16 %v4025
      %v4159 = vunpack.c.l.b16 %v4026
      %v4160 = vunpack.c.l.b16 %v4027
      %v4161 = vunpack.c.l.b16 %v4028
      %v4162 = vunpack.c.l.b16 %v4029
      %v4163 = vunpack.c.l.b16 %v4030
      %v4164 = vunpack.c.l.b16 %v4031
      %v4165 = vunpack.c.l.b16 %v4032
      %v4166 = vunpack.c.l.b16 %v4033
      %v4167 = vunpack.c.l.b16 %v4034
      %v4168 = vunpack.c.l.b16 %v4035
      %v4169 = vunpack.c.l.b16 %v4036
      %v4170 = vunpack.c.l.b16 %v4037
      %v4171 = vunpack.c.l.b16 %v4038
      %v4172 = vunpack.c.l.b16 %v4039
      %v4173 = vunpack.c.l.b16 %v4040
      %v4174 = vunpack.c.l.b16 %v4041
      %v4175 = vunpack.c.l.b16 %v4042
      %v4176 = vunpack.c.l.b16 %v4043
      %v4177 = vunpack.c.l.b16 %v4044
      %v4178 = vunpack.c.l.b16 %v4045
      %v4179 = vunpack.c.l.b16 %v4046
      %v4180 = vunpack.c.l.b16 %v4047
      %v4181 = vunpack.c.l.b16 %v4048
      %v4182 = vunpack.c.l.b16 %v4049
      %v4183 = vunpack.c.l.b16 %v4050
      %v4184 = vunpack.c.l.b16 %v4051
      %v4185 = vunpack.c.l.b16 %v4052
      %v4186 = vunpack.c.l.b16 %v4053
      %v4187 = vunpack.c.l.b16 %v4054
      %v4188 = vunpack.c.l.b16 %v4055
      %v4189 = vunpack.c.l.b16 %v4056
      %v4190 = vunpack.c.l.b16 %v4057
      %v4191 = vunpack.c.l.b16 %v4058
      %v4192 = vunpack.c.l.b16 %v4059
      %v4193 = vunpack.c.l.b16 %v4060
      %v4194 = vunpack.c.l.b16 %v4061
      %v4195 = vunpack.c.l.b16 %v4062
      %v4196 = vunpack.c.l.b16 %v4063
      %v4197 = vunpack.c.l.b16 %v4064
      %v4198 = vunpack.c.l.b16 %v4065
      %v4199 = vunpack.c.l.b16 %v4066
      %v4200 = vunpack.c.l.b16 %v4067
      %v4201 = vunpack.c.l.b16 %v4068
      %v4202 = vunpack.c.l.b16 %v4069
      %v4203 = vpack.c.b16 %v4141, %v4140
      %v4204 = vpack.c.b16 %v4143, %v4142
      %v4205 = vpack.c.b16 %v4145, %v4144
      %v4206 = vpack.c.b16 %v4147, %v4146
      %v4207 = vpack.c.b16 %v4149, %v4148
      %v4208 = vpack.c.b16 %v4151, %v4150
      %v4209 = vpack.c.b16 %v4153, %v4152
      %v4210 = vpack.c.b16 %v4155, %v4154
      %v4211 = vpack.c.b16 %v4157, %v4156
      %v4212 = vpack.c.b16 %v4159, %v4158
      %v4213 = vpack.c.b16 %v4161, %v4160
      %v4214 = vpack.c.b16 %v4163, %v4162
      %v4215 = vpack.c.b16 %v4165, %v4164
      %v4216 = vpack.c.b16 %v4167, %v4166
      %v4217 = vpack.c.b16 %v4169, %v4168
      %v4218 = vpack.c.b16 %v4171, %v4170
      %v4219 = vpack.c.b16 %v4173, %v4172
      %v4220 = vpack.c.b16 %v4175, %v4174
      %v4221 = vpack.c.b16 %v4177, %v4176
      %v4222 = vpack.c.b16 %v4179, %v4178
      %v4223 = vpack.c.b16 %v4181, %v4180
      %v4224 = vpack.c.b16 %v4183, %v4182
      %v4225 = vpack.c.b16 %v4185, %v4184
      %v4226 = vpack.c.b16 %v4187, %v4186
      %v4227 = vpack.c.b16 %v4189, %v4188
      %v4228 = vpack.c.b16 %v4191, %v4190
      %v4229 = vpack.c.b16 %v4193, %v4192
      %v4230 = vpack.c.b16 %v4195, %v4194
      %v4231 = vpack.c.b16 %v4197, %v4196
      %v4232 = vpack.c.b16 %v4199, %v4198
      %v4233 = vpack.c.b16 %v4201, %v4200
      %v4234 = vpack.c.b16 %v4202, %v4202
      %vm4266 = vcmask 949248
      %v4268 = vsel %vm4266, %v3946, 0
      %v4271 = vsel %vm4266, %v3950, 0
      %v4274 = vsel %vm4266, %v3954, 0
      %v4277 = vsel %vm4266, %v3958, 0
      %v4280 = vsel %vm4266, %v3962, 0
      %v4283 = vsel %vm4266, %v3966, 0
      %v4286 = vsel %vm4266, %v3970, 0
      %v4289 = vsel %vm4266, %v3974, 0
      %v4292 = vsel %vm4266, %v3978, 0
      %v4295 = vsel %vm4266, %v3982, 0
      %v4298 = vsel %vm4266, %v3986, 0
      %v4301 = vsel %vm4266, %v3990, 0
      %v4304 = vsel %vm4266, %v3994, 0
      %v4307 = vsel %vm4266, %v3998, 0
      %v4310 = vsel %vm4266, %v4002, 0
      %v4313 = vsel %vm4266, %v4006, 0
      %vm4315 = vcmask 1041408
      %v4317 = vsel %vm4315, %v4234, 0
      %4319 = vmatprep.subr.bf16.mxu0 0
      %4320 = vmatpush1.bf16.msra.mxu0 %v4210
      %4321 = vmatprep.subr.bf16.mxu0 0
      %4322 = vmatpush1.bf16.msra.mxu0 %v4209
      %4323 = vmatprep.subr.bf16.mxu0 0
      %4324 = vmatpush1.bf16.msra.mxu0 %v4208
      %4325 = vmatprep.subr.bf16.mxu0 0
      %4326 = vmatpush1.bf16.msra.mxu0 %v4207
      %4327 = vmatprep.subr.bf16.mxu0 0
      %4328 = vmatpush1.bf16.msra.mxu0 %v4206
      %4329 = vmatprep.subr.bf16.mxu0 0
      %4330 = vmatpush1.bf16.msra.mxu0 %v4205
      %4331 = vmatprep.subr.bf16.mxu0 0
      %4332 = vmatpush1.bf16.msra.mxu0 %v4204
      %4333 = vmatprep.subr.bf16.mxu0 0
      %4334 = vmatpush1.bf16.msra.mxu0 %v4203
      %4335 = vmatprep.subr.bf16.mxu0 0
      %4336 = vmatpush2.bf16.msra.mxu0 %v4218
      %4337 = vmatprep.subr.bf16.mxu0 0
      %4338 = vmatpush2.bf16.msra.mxu0 %v4217
      %4339 = vmatprep.subr.bf16.mxu0 0
      %4340 = vmatpush2.bf16.msra.mxu0 %v4216
      %4341 = vmatprep.subr.bf16.mxu0 0
      %4342 = vmatpush2.bf16.msra.mxu0 %v4215
      %4343 = vmatprep.subr.bf16.mxu0 0
      %4344 = vmatpush2.bf16.msra.mxu0 %v4214
      %4345 = vmatprep.subr.bf16.mxu0 0
      %4346 = vmatpush2.bf16.msra.mxu0 %v4213
      %4347 = vmatprep.subr.bf16.mxu0 0
      %4348 = vmatpush2.bf16.msra.mxu0 %v4212
      %4349 = vmatprep.subr.bf16.mxu0 0
      %4350 = vmatpush2.bf16.msra.mxu0 %v4211
      %4351 = vmatprep.mubr.bf16.mxu0 %v3944
      %4352 = vmatmul.mubr.bf16.gmra.mxu0 %v3943
      %v4353 = vpop.f32.mrf.mxu0
      %v4354 = vadd.f32 %v4075, %v4353
      %v4355 = vpop.f32.mrf.mxu0
      %v4356 = vpop.f32.mrf.mxu0
      %v4357 = vadd.f32 %v4075, %v4356
      %v4358 = vpop.f32.mrf.mxu0
      %4359 = vmatprep.mubr.bf16.mxu0 %v3948
      %4360 = vmatmul.mubr.bf16.gmra.mxu0 %v3947
      %v4361 = vpop.f32.mrf.mxu0
      %v4362 = vadd.f32 %v4075, %v4361
      %v4363 = vpop.f32.mrf.mxu0
      %v4364 = vpop.f32.mrf.mxu0
      %v4365 = vadd.f32 %v4075, %v4364
      %v4366 = vpop.f32.mrf.mxu0
      %4367 = vmatprep.mubr.bf16.mxu0 %v3952
      %4368 = vmatmul.mubr.bf16.gmra.mxu0 %v3951
      %v4369 = vpop.f32.mrf.mxu0
      %v4370 = vadd.f32 %v4075, %v4369
      %v4371 = vpop.f32.mrf.mxu0
      %v4372 = vpop.f32.mrf.mxu0
      %v4373 = vadd.f32 %v4075, %v4372
      %v4374 = vpop.f32.mrf.mxu0
      %4375 = vmatprep.mubr.bf16.mxu0 %v3956
      %4376 = vmatmul.mubr.bf16.gmra.mxu0 %v3955
      %v4377 = vpop.f32.mrf.mxu0
      %v4378 = vadd.f32 %v4075, %v4377
      %v4379 = vpop.f32.mrf.mxu0
      %v4380 = vpop.f32.mrf.mxu0
      %v4381 = vadd.f32 %v4075, %v4380
      %v4382 = vpop.f32.mrf.mxu0
      %4383 = vmatprep.mubr.bf16.mxu0 %v3960
      %4384 = vmatmul.mubr.bf16.gmra.mxu0 %v3959
      %v4385 = vpop.f32.mrf.mxu0
      %v4386 = vadd.f32 %v4075, %v4385
      %v4387 = vpop.f32.mrf.mxu0
      %v4388 = vpop.f32.mrf.mxu0
      %v4389 = vadd.f32 %v4075, %v4388
      %v4390 = vpop.f32.mrf.mxu0
      %4391 = vmatprep.mubr.bf16.mxu0 %v3964
      %4392 = vmatmul.mubr.bf16.gmra.mxu0 %v3963
      %v4393 = vpop.f32.mrf.mxu0
      %v4394 = vadd.f32 %v4075, %v4393
      %v4395 = vpop.f32.mrf.mxu0
      %v4396 = vpop.f32.mrf.mxu0
      %v4397 = vadd.f32 %v4075, %v4396
      %v4398 = vpop.f32.mrf.mxu0
      %4399 = vmatprep.mubr.bf16.mxu0 %v3968
      %4400 = vmatmul.mubr.bf16.gmra.mxu0 %v3967
      %v4401 = vpop.f32.mrf.mxu0
      %v4402 = vadd.f32 %v4075, %v4401
      %v4403 = vpop.f32.mrf.mxu0
      %v4404 = vpop.f32.mrf.mxu0
      %v4405 = vadd.f32 %v4075, %v4404
      %v4406 = vpop.f32.mrf.mxu0
      %4407 = vmatprep.mubr.bf16.mxu0 %v3972
      %4408 = vmatmul.mubr.bf16.gmra.mxu0 %v3971
      %v4409 = vpop.f32.mrf.mxu0
      %v4410 = vadd.f32 %v4075, %v4409
      %v4411 = vpop.f32.mrf.mxu0
      %v4412 = vpop.f32.mrf.mxu0
      %v4413 = vadd.f32 %v4075, %v4412
      %v4414 = vpop.f32.mrf.mxu0
      %4415 = vmatprep.mubr.bf16.mxu0 %v3976
      %4416 = vmatmul.mubr.bf16.gmra.mxu0 %v3975
      %v4417 = vpop.f32.mrf.mxu0
      %v4418 = vadd.f32 %v4075, %v4417
      %v4419 = vpop.f32.mrf.mxu0
      %v4420 = vpop.f32.mrf.mxu0
      %v4421 = vadd.f32 %v4075, %v4420
      %v4422 = vpop.f32.mrf.mxu0
      %4423 = vmatprep.mubr.bf16.mxu0 %v3980
      %4424 = vmatmul.mubr.bf16.gmra.mxu0 %v3979
      %v4425 = vpop.f32.mrf.mxu0
      %v4426 = vadd.f32 %v4075, %v4425
      %v4427 = vpop.f32.mrf.mxu0
      %v4428 = vpop.f32.mrf.mxu0
      %v4429 = vadd.f32 %v4075, %v4428
      %v4430 = vpop.f32.mrf.mxu0
      %4431 = vmatprep.mubr.bf16.mxu0 %v3984
      %4432 = vmatmul.mubr.bf16.gmra.mxu0 %v3983
      %v4433 = vpop.f32.mrf.mxu0
      %v4434 = vadd.f32 %v4075, %v4433
      %v4435 = vpop.f32.mrf.mxu0
      %v4436 = vpop.f32.mrf.mxu0
      %v4437 = vadd.f32 %v4075, %v4436
      %v4438 = vpop.f32.mrf.mxu0
      %4439 = vmatprep.mubr.bf16.mxu0 %v3988
      %4440 = vmatmul.mubr.bf16.gmra.mxu0 %v3987
      %v4441 = vpop.f32.mrf.mxu0
      %v4442 = vadd.f32 %v4075, %v4441
      %v4443 = vpop.f32.mrf.mxu0
      %v4444 = vpop.f32.mrf.mxu0
      %v4445 = vadd.f32 %v4075, %v4444
      %v4446 = vpop.f32.mrf.mxu0
      %4447 = vmatprep.mubr.bf16.mxu0 %v3992
      %4448 = vmatmul.mubr.bf16.gmra.mxu0 %v3991
      %v4449 = vpop.f32.mrf.mxu0
      %v4450 = vadd.f32 %v4075, %v4449
      %v4451 = vpop.f32.mrf.mxu0
      %v4452 = vpop.f32.mrf.mxu0
      %v4453 = vadd.f32 %v4075, %v4452
      %v4454 = vpop.f32.mrf.mxu0
      %4455 = vmatprep.mubr.bf16.mxu0 %v3996
      %4456 = vmatmul.mubr.bf16.gmra.mxu0 %v3995
      %v4457 = vpop.f32.mrf.mxu0
      %v4458 = vadd.f32 %v4075, %v4457
      %v4459 = vpop.f32.mrf.mxu0
      %v4460 = vpop.f32.mrf.mxu0
      %v4461 = vadd.f32 %v4075, %v4460
      %v4462 = vpop.f32.mrf.mxu0
      %4463 = vmatprep.mubr.bf16.mxu0 %v4000
      %4464 = vmatmul.mubr.bf16.gmra.mxu0 %v3999
      %v4465 = vpop.f32.mrf.mxu0
      %v4466 = vadd.f32 %v4075, %v4465
      %v4467 = vpop.f32.mrf.mxu0
      %v4468 = vpop.f32.mrf.mxu0
      %v4469 = vadd.f32 %v4075, %v4468
      %v4470 = vpop.f32.mrf.mxu0
      %4471 = vmatprep.mubr.bf16.mxu0 %v4004
      %4472 = vmatmul.mubr.bf16.gmra.mxu0 %v4003
      %v4473 = vpop.f32.mrf.mxu0
      %v4474 = vadd.f32 %v4075, %v4473
      %v4475 = vpop.f32.mrf.mxu0
      %v4476 = vpop.f32.mrf.mxu0
      %v4477 = vadd.f32 %v4075, %v4476
      %v4478 = vpop.f32.mrf.mxu0
      %4479 = vdwg.mxu0
      %4480 = vmatprep.subr.bf16.mxu0 0
      %4481 = vmatpush1.bf16.msra.mxu0 %v4226
      %4482 = vmatprep.subr.bf16.mxu0 0
      %4483 = vmatpush1.bf16.msra.mxu0 %v4225
      %4484 = vmatprep.subr.bf16.mxu0 0
      %4485 = vmatpush1.bf16.msra.mxu0 %v4224
      %4486 = vmatprep.subr.bf16.mxu0 0
      %4487 = vmatpush1.bf16.msra.mxu0 %v4223
      %4488 = vmatprep.subr.bf16.mxu0 0
      %4489 = vmatpush1.bf16.msra.mxu0 %v4222
      %4490 = vmatprep.subr.bf16.mxu0 0
      %4491 = vmatpush1.bf16.msra.mxu0 %v4221
      %4492 = vmatprep.subr.bf16.mxu0 0
      %4493 = vmatpush1.bf16.msra.mxu0 %v4220
      %4494 = vmatprep.subr.bf16.mxu0 0
      %4495 = vmatpush1.bf16.msra.mxu0 %v4219
      %4496 = vmatprep.subr.bf16.mxu0 0
      %4497 = vmatpush2.bf16.msra.mxu0 %v4317
      %4498 = vmatprep.subr.bf16.mxu0 0
      %4499 = vmatpush2.bf16.msra.mxu0 %v4233
      %4500 = vmatprep.subr.bf16.mxu0 0
      %4501 = vmatpush2.bf16.msra.mxu0 %v4232
      %4502 = vmatprep.subr.bf16.mxu0 0
      %4503 = vmatpush2.bf16.msra.mxu0 %v4231
      %4504 = vmatprep.subr.bf16.mxu0 0
      %4505 = vmatpush2.bf16.msra.mxu0 %v4230
      %4506 = vmatprep.subr.bf16.mxu0 0
      %4507 = vmatpush2.bf16.msra.mxu0 %v4229
      %4508 = vmatprep.subr.bf16.mxu0 0
      %4509 = vmatpush2.bf16.msra.mxu0 %v4228
      %4510 = vmatprep.subr.bf16.mxu0 0
      %4511 = vmatpush2.bf16.msra.mxu0 %v4227
      %4512 = vmatprep.mubr.bf16.mxu0 %v4268
      %4513 = vmatmul.mubr.bf16.gmra.mxu0 %v3945
      %v4514 = vpop.f32.mrf.mxu0
      %v4515 = vadd.f32 %v4354, %v4514
      %v4516 = vpop.f32.mrf.mxu0
      %v4517 = vpop.f32.mrf.mxu0
      %v4518 = vadd.f32 %v4357, %v4517
      %v4519 = vpop.f32.mrf.mxu0
      %4520 = vmatprep.mubr.bf16.mxu0 %v4271
      %4521 = vmatmul.mubr.bf16.gmra.mxu0 %v3949
      %v4522 = vpop.f32.mrf.mxu0
      %v4523 = vadd.f32 %v4362, %v4522
      %v4524 = vpop.f32.mrf.mxu0
      %v4525 = vpop.f32.mrf.mxu0
      %v4526 = vadd.f32 %v4365, %v4525
      %v4527 = vpop.f32.mrf.mxu0
      %4528 = vmatprep.mubr.bf16.mxu0 %v4274
      %4529 = vmatmul.mubr.bf16.gmra.mxu0 %v3953
      %v4530 = vpop.f32.mrf.mxu0
      %v4531 = vadd.f32 %v4370, %v4530
      %v4532 = vpop.f32.mrf.mxu0
      %v4533 = vpop.f32.mrf.mxu0
      %v4534 = vadd.f32 %v4373, %v4533
      %v4535 = vpop.f32.mrf.mxu0
      %4536 = vmatprep.mubr.bf16.mxu0 %v4277
      %4537 = vmatmul.mubr.bf16.gmra.mxu0 %v3957
      %v4538 = vpop.f32.mrf.mxu0
      %v4539 = vadd.f32 %v4378, %v4538
      %v4540 = vpop.f32.mrf.mxu0
      %v4541 = vpop.f32.mrf.mxu0
      %v4542 = vadd.f32 %v4381, %v4541
      %v4543 = vpop.f32.mrf.mxu0
      %4544 = vmatprep.mubr.bf16.mxu0 %v4280
      %4545 = vmatmul.mubr.bf16.gmra.mxu0 %v3961
      %v4546 = vpop.f32.mrf.mxu0
      %v4547 = vadd.f32 %v4386, %v4546
      %v4548 = vpop.f32.mrf.mxu0
      %v4549 = vpop.f32.mrf.mxu0
      %v4550 = vadd.f32 %v4389, %v4549
      %v4551 = vpop.f32.mrf.mxu0
      %4552 = vmatprep.mubr.bf16.mxu0 %v4283
      %4553 = vmatmul.mubr.bf16.gmra.mxu0 %v3965
      %v4554 = vpop.f32.mrf.mxu0
      %v4555 = vadd.f32 %v4394, %v4554
      %v4556 = vpop.f32.mrf.mxu0
      %v4557 = vpop.f32.mrf.mxu0
      %v4558 = vadd.f32 %v4397, %v4557
      %v4559 = vpop.f32.mrf.mxu0
      %4560 = vmatprep.mubr.bf16.mxu0 %v4286
      %4561 = vmatmul.mubr.bf16.gmra.mxu0 %v3969
      %v4562 = vpop.f32.mrf.mxu0
      %v4563 = vadd.f32 %v4402, %v4562
      %v4564 = vpop.f32.mrf.mxu0
      %v4565 = vpop.f32.mrf.mxu0
      %v4566 = vadd.f32 %v4405, %v4565
      %v4567 = vpop.f32.mrf.mxu0
      %4568 = vmatprep.mubr.bf16.mxu0 %v4289
      %4569 = vmatmul.mubr.bf16.gmra.mxu0 %v3973
      %v4570 = vpop.f32.mrf.mxu0
      %v4571 = vadd.f32 %v4410, %v4570
      %v4572 = vpop.f32.mrf.mxu0
      %v4573 = vpop.f32.mrf.mxu0
      %v4574 = vadd.f32 %v4413, %v4573
      %v4575 = vpop.f32.mrf.mxu0
      %4576 = vmatprep.mubr.bf16.mxu0 %v4292
      %4577 = vmatmul.mubr.bf16.gmra.mxu0 %v3977
      %v4578 = vpop.f32.mrf.mxu0
      %v4579 = vadd.f32 %v4418, %v4578
      %v4580 = vpop.f32.mrf.mxu0
      %v4581 = vpop.f32.mrf.mxu0
      %v4582 = vadd.f32 %v4421, %v4581
      %v4583 = vpop.f32.mrf.mxu0
      %4584 = vmatprep.mubr.bf16.mxu0 %v4295
      %4585 = vmatmul.mubr.bf16.gmra.mxu0 %v3981
      %v4586 = vpop.f32.mrf.mxu0
      %v4587 = vadd.f32 %v4426, %v4586
      %v4588 = vpop.f32.mrf.mxu0
      %v4589 = vpop.f32.mrf.mxu0
      %v4590 = vadd.f32 %v4429, %v4589
      %v4591 = vpop.f32.mrf.mxu0
      %4592 = vmatprep.mubr.bf16.mxu0 %v4298
      %4593 = vmatmul.mubr.bf16.gmra.mxu0 %v3985
      %v4594 = vpop.f32.mrf.mxu0
      %v4595 = vadd.f32 %v4434, %v4594
      %v4596 = vpop.f32.mrf.mxu0
      %v4597 = vpop.f32.mrf.mxu0
      %v4598 = vadd.f32 %v4437, %v4597
      %v4599 = vpop.f32.mrf.mxu0
      %4600 = vmatprep.mubr.bf16.mxu0 %v4301
      %4601 = vmatmul.mubr.bf16.gmra.mxu0 %v3989
      %v4602 = vpop.f32.mrf.mxu0
      %v4603 = vadd.f32 %v4442, %v4602
      %v4604 = vpop.f32.mrf.mxu0
      %v4605 = vpop.f32.mrf.mxu0
      %v4606 = vadd.f32 %v4445, %v4605
      %v4607 = vpop.f32.mrf.mxu0
      %4608 = vmatprep.mubr.bf16.mxu0 %v4304
      %4609 = vmatmul.mubr.bf16.gmra.mxu0 %v3993
      %v4610 = vpop.f32.mrf.mxu0
      %v4611 = vadd.f32 %v4450, %v4610
      %v4612 = vpop.f32.mrf.mxu0
      %v4613 = vpop.f32.mrf.mxu0
      %v4614 = vadd.f32 %v4453, %v4613
      %v4615 = vpop.f32.mrf.mxu0
      %4616 = vmatprep.mubr.bf16.mxu0 %v4307
      %4617 = vmatmul.mubr.bf16.gmra.mxu0 %v3997
      %v4618 = vpop.f32.mrf.mxu0
      %v4619 = vadd.f32 %v4458, %v4618
      %v4620 = vpop.f32.mrf.mxu0
      %v4621 = vpop.f32.mrf.mxu0
      %v4622 = vadd.f32 %v4461, %v4621
      %v4623 = vpop.f32.mrf.mxu0
      %4624 = vmatprep.mubr.bf16.mxu0 %v4310
      %4625 = vmatmul.mubr.bf16.gmra.mxu0 %v4001
      %v4626 = vpop.f32.mrf.mxu0
      %v4627 = vadd.f32 %v4466, %v4626
      %v4628 = vpop.f32.mrf.mxu0
      %v4629 = vpop.f32.mrf.mxu0
      %v4630 = vadd.f32 %v4469, %v4629
      %v4631 = vpop.f32.mrf.mxu0
      %4632 = vmatprep.mubr.bf16.mxu0 %v4313
      %4633 = vmatmul.mubr.bf16.gmra.mxu0 %v4005
      %v4634 = vpop.f32.mrf.mxu0
      %v4635 = vadd.f32 %v4474, %v4634
      %v4636 = vpop.f32.mrf.mxu0
      %v4637 = vpop.f32.mrf.mxu0
      %v4638 = vadd.f32 %v4477, %v4637
      %v4639 = vpop.f32.mrf.mxu0
      %4640 = vdwg.mxu0
      %v4641 = vld [vmem:[%s416] sm:$0xff]
      %v4642 = vld [vmem:[%s416 + $0x8] sm:$0xff]
      %v4643 = vld [vmem:[%s416 + $0x10] sm:$0xff]
      %v4644 = vld [vmem:[%s416 + $0x18] sm:$0xff]
      %v4645 = vld [vmem:[%s416 + $0x20] sm:$0xff]
      %v4646 = vld [vmem:[%s416 + $0x28] sm:$0xff]
      %v4647 = vld [vmem:[%s416 + $0x30] sm:$0xff]
      %v4648 = vld [vmem:[%s416 + $0x38] sm:$0xff]
      %v4649 = vld [vmem:[%s416 + $0x40] sm:$0xff]
      %v4650 = vld [vmem:[%s416 + $0x48] sm:$0xff]
      %v4651 = vld [vmem:[%s416 + $0x50] sm:$0xff]
      %v4652 = vld [vmem:[%s416 + $0x58] sm:$0xff]
      %v4653 = vld [vmem:[%s416 + $0x60] sm:$0xff]
      %v4654 = vld [vmem:[%s416 + $0x68] sm:$0xff]
      %v4655 = vld [vmem:[%s416 + $0x70] sm:$0xff]
      %v4656 = vld [vmem:[%s416 + $0x78] sm:$0xff]
      %v4657 = vld [vmem:[%s416 + $0x80] sm:$0xff]
      %v4658 = vld [vmem:[%s416 + $0x88] sm:$0xff]
      %v4659 = vld [vmem:[%s416 + $0x90] sm:$0xff]
      %v4660 = vld [vmem:[%s416 + $0x98] sm:$0xff]
      %v4661 = vld [vmem:[%s416 + $0xa0] sm:$0xff]
      %v4662 = vld [vmem:[%s416 + $0xa8] sm:$0xff]
      %v4663 = vld [vmem:[%s416 + $0xb0] sm:$0xff]
      %v4664 = vld [vmem:[%s416 + $0xb8] sm:$0xff]
      %v4665 = vld [vmem:[%s416 + $0xc0] sm:$0xff]
      %v4666 = vld [vmem:[%s416 + $0xc8] sm:$0xff]
      %v4667 = vld [vmem:[%s416 + $0xd0] sm:$0xff]
      %v4668 = vld [vmem:[%s416 + $0xd8] sm:$0xff]
      %v4669 = vld [vmem:[%s416 + $0xe0] sm:$0xff]
      %v4670 = vld [vmem:[%s416 + $0xe8] sm:$0xff]
      %v4671 = vld [vmem:[%s416 + $0xf0] sm:$0xff]
      %v4672 = vld [vmem:[%s416 + $0xf8] sm:$0xff]
      %v4673 = vmul.f32 %v4515, 0.5
      %v4674 = vmul.f32 %v4518, 0.5
      %v4675 = vmul.f32 %v4523, 0.5
      %v4676 = vmul.f32 %v4526, 0.5
      %v4677 = vmul.f32 %v4531, 0.5
      %v4678 = vmul.f32 %v4534, 0.5
      %v4679 = vmul.f32 %v4539, 0.5
      %v4680 = vmul.f32 %v4542, 0.5
      %v4681 = vmul.f32 %v4547, 0.5
      %v4682 = vmul.f32 %v4550, 0.5
      %v4683 = vmul.f32 %v4555, 0.5
      %v4684 = vmul.f32 %v4558, 0.5
      %v4685 = vmul.f32 %v4563, 0.5
      %v4686 = vmul.f32 %v4566, 0.5
      %v4687 = vmul.f32 %v4571, 0.5
      %v4688 = vmul.f32 %v4574, 0.5
      %v4689 = vmul.f32 %v4579, 0.5
      %v4690 = vmul.f32 %v4582, 0.5
      %v4691 = vmul.f32 %v4587, 0.5
      %v4692 = vmul.f32 %v4590, 0.5
      %v4693 = vmul.f32 %v4595, 0.5
      %v4694 = vmul.f32 %v4598, 0.5
      %v4695 = vmul.f32 %v4603, 0.5
      %v4696 = vmul.f32 %v4606, 0.5
      %v4697 = vmul.f32 %v4611, 0.5
      %v4698 = vmul.f32 %v4614, 0.5
      %v4699 = vmul.f32 %v4619, 0.5
      %v4700 = vmul.f32 %v4622, 0.5
      %v4701 = vmul.f32 %v4627, 0.5
      %v4702 = vmul.f32 %v4630, 0.5
      %v4703 = vmul.f32 %v4635, 0.5
      %v4704 = vmul.f32 %v4638, 0.5
      %v4705 = vmul.f32 %v4673, 1.442695
      %v4706 = vpow.pop %v4705
      %v4707 = vmul.f32 %v4674, 1.442695
      %v4708 = vpow.pop %v4707
      %v4709 = vmul.f32 %v4675, 1.442695
      %v4710 = vpow.pop %v4709
      %v4711 = vmul.f32 %v4676, 1.442695
      %v4712 = vpow.pop %v4711
      %v4713 = vmul.f32 %v4677, 1.442695
      %v4714 = vpow.pop %v4713
      %v4715 = vmul.f32 %v4678, 1.442695
      %v4716 = vpow.pop %v4715
      %v4717 = vmul.f32 %v4679, 1.442695
      %v4718 = vpow.pop %v4717
      %v4719 = vmul.f32 %v4680, 1.442695
      %v4720 = vpow.pop %v4719
      %v4721 = vmul.f32 %v4681, 1.442695
      %v4722 = vpow.pop %v4721
      %v4723 = vmul.f32 %v4682, 1.442695
      %v4724 = vpow.pop %v4723
      %v4725 = vmul.f32 %v4683, 1.442695
      %v4726 = vpow.pop %v4725
      %v4727 = vmul.f32 %v4684, 1.442695
      %v4728 = vpow.pop %v4727
      %v4729 = vmul.f32 %v4685, 1.442695
      %v4730 = vpow.pop %v4729
      %v4731 = vmul.f32 %v4686, 1.442695
      %v4732 = vpow.pop %v4731
      %v4733 = vmul.f32 %v4687, 1.442695
      %v4734 = vpow.pop %v4733
      %v4735 = vmul.f32 %v4688, 1.442695
      %v4736 = vpow.pop %v4735
      %v4737 = vmul.f32 %v4689, 1.442695
      %v4738 = vpow.pop %v4737
      %v4739 = vmul.f32 %v4690, 1.442695
      %v4740 = vpow.pop %v4739
      %v4741 = vmul.f32 %v4691, 1.442695
      %v4742 = vpow.pop %v4741
      %v4743 = vmul.f32 %v4692, 1.442695
      %v4744 = vpow.pop %v4743
      %v4745 = vmul.f32 %v4693, 1.442695
      %v4746 = vpow.pop %v4745
      %v4747 = vmul.f32 %v4694, 1.442695
      %v4748 = vpow.pop %v4747
      %v4749 = vmul.f32 %v4695, 1.442695
      %v4750 = vpow.pop %v4749
      %v4751 = vmul.f32 %v4696, 1.442695
      %v4752 = vpow.pop %v4751
      %v4753 = vmul.f32 %v4697, 1.442695
      %v4754 = vpow.pop %v4753
      %v4755 = vmul.f32 %v4698, 1.442695
      %v4756 = vpow.pop %v4755
      %v4757 = vmul.f32 %v4699, 1.442695
      %v4758 = vpow.pop %v4757
      %v4759 = vmul.f32 %v4700, 1.442695
      %v4760 = vpow.pop %v4759
      %v4761 = vmul.f32 %v4701, 1.442695
      %v4762 = vpow.pop %v4761
      %v4763 = vmul.f32 %v4702, 1.442695
      %v4764 = vpow.pop %v4763
      %v4765 = vmul.f32 %v4703, 1.442695
      %v4766 = vpow.pop %v4765
      %v4767 = vmul.f32 %v4704, 1.442695
      %v4768 = vpow.pop %v4767
      %4801 = vrot.lane.b32.xlu0 %v4706, 113
      %v4802 = vpop.permute.xlu0 %4801
      %4803 = vrot.lane.b32.xlu0 %v4708, 113
      %v4804 = vpop.permute.xlu0 %4803
      %4805 = vrot.lane.b32.xlu0 %v4710, 113
      %v4806 = vpop.permute.xlu0 %4805
      %4807 = vrot.lane.b32.xlu0 %v4712, 113
      %v4808 = vpop.permute.xlu0 %4807
      %4809 = vrot.lane.b32.xlu0 %v4714, 113
      %v4810 = vpop.permute.xlu0 %4809
      %4811 = vrot.lane.b32.xlu0 %v4716, 113
      %v4812 = vpop.permute.xlu0 %4811
      %4813 = vrot.lane.b32.xlu0 %v4718, 113
      %v4814 = vpop.permute.xlu0 %4813
      %4815 = vrot.lane.b32.xlu0 %v4720, 113
      %v4816 = vpop.permute.xlu0 %4815
      %4817 = vrot.lane.b32.xlu0 %v4722, 113
      %v4818 = vpop.permute.xlu0 %4817
      %4819 = vrot.lane.b32.xlu0 %v4724, 113
      %v4820 = vpop.permute.xlu0 %4819
      %4821 = vrot.lane.b32.xlu0 %v4726, 113
      %v4822 = vpop.permute.xlu0 %4821
      %4823 = vrot.lane.b32.xlu0 %v4728, 113
      %v4824 = vpop.permute.xlu0 %4823
      %4825 = vrot.lane.b32.xlu0 %v4730, 113
      %v4826 = vpop.permute.xlu0 %4825
      %4827 = vrot.lane.b32.xlu0 %v4732, 113
      %v4828 = vpop.permute.xlu0 %4827
      %4829 = vrot.lane.b32.xlu0 %v4734, 113
      %v4830 = vpop.permute.xlu0 %4829
      %4831 = vrot.lane.b32.xlu0 %v4736, 113
      %v4832 = vpop.permute.xlu0 %4831
      %4833 = vrot.lane.b32.xlu0 %v4738, 113
      %v4834 = vpop.permute.xlu0 %4833
      %4835 = vrot.lane.b32.xlu0 %v4740, 113
      %v4836 = vpop.permute.xlu0 %4835
      %4837 = vrot.lane.b32.xlu0 %v4742, 113
      %v4838 = vpop.permute.xlu0 %4837
      %4839 = vrot.lane.b32.xlu0 %v4744, 113
      %v4840 = vpop.permute.xlu0 %4839
      %4841 = vrot.lane.b32.xlu0 %v4746, 113
      %v4842 = vpop.permute.xlu0 %4841
      %4843 = vrot.lane.b32.xlu0 %v4748, 113
      %v4844 = vpop.permute.xlu0 %4843
      %4845 = vrot.lane.b32.xlu0 %v4750, 113
      %v4846 = vpop.permute.xlu0 %4845
      %4847 = vrot.lane.b32.xlu0 %v4752, 113
      %v4848 = vpop.permute.xlu0 %4847
      %4849 = vrot.lane.b32.xlu0 %v4754, 113
      %v4850 = vpop.permute.xlu0 %4849
      %4851 = vrot.lane.b32.xlu0 %v4756, 113
      %v4852 = vpop.permute.xlu0 %4851
      %4853 = vrot.lane.b32.xlu0 %v4758, 113
      %v4854 = vpop.permute.xlu0 %4853
      %4855 = vrot.lane.b32.xlu0 %v4760, 113
      %v4856 = vpop.permute.xlu0 %4855
      %4857 = vrot.lane.b32.xlu0 %v4762, 113
      %v4858 = vpop.permute.xlu0 %4857
      %4859 = vrot.lane.b32.xlu0 %v4764, 113
      %v4860 = vpop.permute.xlu0 %4859
      %4861 = vrot.lane.b32.xlu0 %v4766, 113
      %v4862 = vpop.permute.xlu0 %4861
      %4863 = vrot.lane.b32.xlu0 %v4768, 113
      %v4864 = vpop.permute.xlu0 %4863
      %v4897 = vmul.f32 %v4641, %v4802
      %v4898 = vmul.f32 %v4642, %v4804
      %v4899 = vmul.f32 %v4643, %v4806
      %v4900 = vmul.f32 %v4644, %v4808
      %v4901 = vmul.f32 %v4645, %v4810
      %v4902 = vmul.f32 %v4646, %v4812
      %v4903 = vmul.f32 %v4647, %v4814
      %v4904 = vmul.f32 %v4648, %v4816
      %v4905 = vmul.f32 %v4649, %v4818
      %v4906 = vmul.f32 %v4650, %v4820
      %v4907 = vmul.f32 %v4651, %v4822
      %v4908 = vmul.f32 %v4652, %v4824
      %v4909 = vmul.f32 %v4653, %v4826
      %v4910 = vmul.f32 %v4654, %v4828
      %v4911 = vmul.f32 %v4655, %v4830
      %v4912 = vmul.f32 %v4656, %v4832
      %v4913 = vmul.f32 %v4657, %v4834
      %v4914 = vmul.f32 %v4658, %v4836
      %v4915 = vmul.f32 %v4659, %v4838
      %v4916 = vmul.f32 %v4660, %v4840
      %v4917 = vmul.f32 %v4661, %v4842
      %v4918 = vmul.f32 %v4662, %v4844
      %v4919 = vmul.f32 %v4663, %v4846
      %v4920 = vmul.f32 %v4664, %v4848
      %v4921 = vmul.f32 %v4665, %v4850
      %v4922 = vmul.f32 %v4666, %v4852
      %v4923 = vmul.f32 %v4667, %v4854
      %v4924 = vmul.f32 %v4668, %v4856
      %v4925 = vmul.f32 %v4669, %v4858
      %v4926 = vmul.f32 %v4670, %v4860
      %v4927 = vmul.f32 %v4671, %v4862
      %v4928 = vmul.f32 %v4672, %v4864
      %v4929 = vadd.f32 %v4515, %v4897
      %v4930 = vadd.f32 %v4518, %v4898
      %v4931 = vadd.f32 %v4523, %v4899
      %v4932 = vadd.f32 %v4526, %v4900
      %v4933 = vadd.f32 %v4531, %v4901
      %v4934 = vadd.f32 %v4534, %v4902
      %v4935 = vadd.f32 %v4539, %v4903
      %v4936 = vadd.f32 %v4542, %v4904
      %v4937 = vadd.f32 %v4547, %v4905
      %v4938 = vadd.f32 %v4550, %v4906
      %v4939 = vadd.f32 %v4555, %v4907
      %v4940 = vadd.f32 %v4558, %v4908
      %v4941 = vadd.f32 %v4563, %v4909
      %v4942 = vadd.f32 %v4566, %v4910
      %v4943 = vadd.f32 %v4571, %v4911
      %v4944 = vadd.f32 %v4574, %v4912
      %v4945 = vadd.f32 %v4579, %v4913
      %v4946 = vadd.f32 %v4582, %v4914
      %v4947 = vadd.f32 %v4587, %v4915
      %v4948 = vadd.f32 %v4590, %v4916
      %v4949 = vadd.f32 %v4595, %v4917
      %v4950 = vadd.f32 %v4598, %v4918
      %v4951 = vadd.f32 %v4603, %v4919
      %v4952 = vadd.f32 %v4606, %v4920
      %v4953 = vadd.f32 %v4611, %v4921
      %v4954 = vadd.f32 %v4614, %v4922
      %v4955 = vadd.f32 %v4619, %v4923
      %v4956 = vadd.f32 %v4622, %v4924
      %v4957 = vadd.f32 %v4627, %v4925
      %v4958 = vadd.f32 %v4630, %v4926
      %v4959 = vadd.f32 %v4635, %v4927
      %v4960 = vadd.f32 %v4638, %v4928
      %v4961 = vpack.c.bf16 %v4930, %v4929
      %v4962 = vpack.c.bf16 %v4932, %v4931
      %v4963 = vpack.c.bf16 %v4934, %v4933
      %v4964 = vpack.c.bf16 %v4936, %v4935
      %v4965 = vpack.c.bf16 %v4938, %v4937
      %v4966 = vpack.c.bf16 %v4940, %v4939
      %v4967 = vpack.c.bf16 %v4942, %v4941
      %v4968 = vpack.c.bf16 %v4944, %v4943
      %v4969 = vpack.c.bf16 %v4946, %v4945
      %v4970 = vpack.c.bf16 %v4948, %v4947
      %v4971 = vpack.c.bf16 %v4950, %v4949
      %v4972 = vpack.c.bf16 %v4952, %v4951
      %v4973 = vpack.c.bf16 %v4954, %v4953
      %v4974 = vpack.c.bf16 %v4956, %v4955
      %v4975 = vpack.c.bf16 %v4958, %v4957
      %v4976 = vpack.c.bf16 %v4960, %v4959
      %v4977 = vld [vmem:[%s6] sm:$0xff]
      %v4978 = vld [vmem:[%s6 + $0x8] sm:$0xff]
      %v4979 = vld [vmem:[%s6 + $0x10] sm:$0xff]
      %v4980 = vld [vmem:[%s6 + $0x18] sm:$0xff]
      %v4981 = vld [vmem:[%s7] sm:$0xf]
      %v4983 = vlaneseq
      %v4984 = vshrl.u32 %v4983, 7
      %v4985 = vsub.s32 0, %v4984
      %v4986 = vrot.slane %v4981, %v4985
      %v4987 = vlaneseq
      %v4988 = vshrl.u32 %v4987, 7
      %v4989 = vsub.s32 1, %v4988
      %v4990 = vrot.slane %v4981, %v4989
      %v4991 = vlaneseq
      %v4992 = vshrl.u32 %v4991, 7
      %v4993 = vsub.s32 2, %v4992
      %v4994 = vrot.slane %v4981, %v4993
      %v4995 = vlaneseq
      %v4996 = vshrl.u32 %v4995, 7
      %v4997 = vsub.s32 3, %v4996
      %v4998 = vrot.slane %v4981, %v4997
      %v5007 = vunpack.c.l.b16 %v4977
      %v5008 = vunpack.c.h.b16 %v4977
      %v5009 = vunpack.c.l.b16 %v4978
      %v5010 = vunpack.c.h.b16 %v4978
      %v5011 = vunpack.c.l.b16 %v4979
      %v5012 = vunpack.c.h.b16 %v4979
      %v5013 = vunpack.c.l.b16 %v4980
      %v5014 = vunpack.c.h.b16 %v4980
      %v5015 = vpack.c.b16 %v5011, %v5007
      %v5016 = vpack.c.b16 %v5012, %v5008
      %v5017 = vpack.c.b16 %v5013, %v5009
      %v5018 = vpack.c.b16 %v5014, %v5010
      %vm5019 = vcmask 121856
      %v5021 = vsel %vm5019, %v4961, 0
      %v5024 = vsel %vm5019, %v4962, 0
      %v5027 = vsel %vm5019, %v4963, 0
      %v5030 = vsel %vm5019, %v4964, 0
      %v5033 = vsel %vm5019, %v4965, 0
      %v5036 = vsel %vm5019, %v4966, 0
      %v5039 = vsel %vm5019, %v4967, 0
      %v5042 = vsel %vm5019, %v4968, 0
      %v5045 = vsel %vm5019, %v4969, 0
      %v5048 = vsel %vm5019, %v4970, 0
      %v5051 = vsel %vm5019, %v4971, 0
      %v5054 = vsel %vm5019, %v4972, 0
      %v5057 = vsel %vm5019, %v4973, 0
      %v5060 = vsel %vm5019, %v4974, 0
      %v5063 = vsel %vm5019, %v4975, 0
      %v5066 = vsel %vm5019, %v4976, 0
      %vm5068 = vcmask 1046528
      %vm5069 = vcmask 1047552
      %v5070 = vsel %vm5068, 4294967295, 65535
      %v5071 = vsel %vm5069, %v5070, 0
      %v5073 = vand.u32 %v5015, %v5071
      %v5076 = vand.u32 %v5016, %v5071
      %v5079 = vand.u32 %v5017, %v5071
      %v5082 = vand.u32 %v5018, %v5071
      %5084 = vmatprep.subr.bf16.mxu0 0
      %5085 = vmatpush1.bf16.msra.mxu0 0
      %5086 = vmatprep.subr.bf16.mxu0 0
      %5087 = vmatpush1.bf16.msra.mxu0 0
      %5088 = vmatprep.subr.bf16.mxu0 0
      %5089 = vmatpush1.bf16.msra.mxu0 0
      %5090 = vmatprep.subr.bf16.mxu0 0
      %5091 = vmatpush1.bf16.msra.mxu0 0
      %5092 = vmatprep.subr.bf16.mxu0 0
      %5093 = vmatpush1.bf16.msra.mxu0 0
      %5094 = vmatprep.subr.bf16.mxu0 0
      %5095 = vmatpush1.bf16.msra.mxu0 0
      %5096 = vmatprep.subr.bf16.mxu0 0
      %5097 = vmatpush1.bf16.msra.mxu0 0
      %5098 = vmatprep.subr.bf16.mxu0 %v5076
      %5099 = vmatpush1.bf16.msra.mxu0 %v5073
      %5100 = vmatprep.subr.bf16.mxu0 0
      %5101 = vmatpush2.bf16.msra.mxu0 0
      %5102 = vmatprep.subr.bf16.mxu0 0
      %5103 = vmatpush2.bf16.msra.mxu0 0
      %5104 = vmatprep.subr.bf16.mxu0 0
      %5105 = vmatpush2.bf16.msra.mxu0 0
      %5106 = vmatprep.subr.bf16.mxu0 0
      %5107 = vmatpush2.bf16.msra.mxu0 0
      %5108 = vmatprep.subr.bf16.mxu0 0
      %5109 = vmatpush2.bf16.msra.mxu0 0
      %5110 = vmatprep.subr.bf16.mxu0 0
      %5111 = vmatpush2.bf16.msra.mxu0 0
      %5112 = vmatprep.subr.bf16.mxu0 0
      %5113 = vmatpush2.bf16.msra.mxu0 0
      %5114 = vmatprep.subr.bf16.mxu0 0
      %5115 = vmatpush2.bf16.msra.mxu0 0
      %5116 = vmatprep.mubr.bf16.mxu0 0
      %5117 = vmatmul.mubr.bf16.gmra.mxu0 %v5021
      %v5118 = vpop.f32.mrf.mxu0
      %v5119 = vadd.f32 %v4986, %v5118
      %v5120 = vpop.f32.mrf.mxu0
      %v5121 = vadd.f32 %v4990, %v5120
      %v5122 = vpop.f32.mrf.mxu0
      %v5123 = vadd.f32 %v4986, %v5122
      %v5124 = vpop.f32.mrf.mxu0
      %v5125 = vadd.f32 %v4990, %v5124
      %5126 = vmatprep.mubr.bf16.mxu0 0
      %5127 = vmatmul.mubr.bf16.gmra.mxu0 %v5024
      %v5128 = vpop.f32.mrf.mxu0
      %v5129 = vadd.f32 %v4986, %v5128
      %v5130 = vpop.f32.mrf.mxu0
      %v5131 = vadd.f32 %v4990, %v5130
      %v5132 = vpop.f32.mrf.mxu0
      %v5133 = vadd.f32 %v4986, %v5132
      %v5134 = vpop.f32.mrf.mxu0
      %v5135 = vadd.f32 %v4990, %v5134
      %5136 = vmatprep.mubr.bf16.mxu0 0
      %5137 = vmatmul.mubr.bf16.gmra.mxu0 %v5027
      %v5138 = vpop.f32.mrf.mxu0
      %v5139 = vadd.f32 %v4986, %v5138
      %v5140 = vpop.f32.mrf.mxu0
      %v5141 = vadd.f32 %v4990, %v5140
      %v5142 = vpop.f32.mrf.mxu0
      %v5143 = vadd.f32 %v4986, %v5142
      %v5144 = vpop.f32.mrf.mxu0
      %v5145 = vadd.f32 %v4990, %v5144
      %5146 = vmatprep.mubr.bf16.mxu0 0
      %5147 = vmatmul.mubr.bf16.gmra.mxu0 %v5030
      %v5148 = vpop.f32.mrf.mxu0
      %v5149 = vadd.f32 %v4986, %v5148
      %v5150 = vpop.f32.mrf.mxu0
      %v5151 = vadd.f32 %v4990, %v5150
      %v5152 = vpop.f32.mrf.mxu0
      %v5153 = vadd.f32 %v4986, %v5152
      %v5154 = vpop.f32.mrf.mxu0
      %v5155 = vadd.f32 %v4990, %v5154
      %5156 = vmatprep.mubr.bf16.mxu0 0
      %5157 = vmatmul.mubr.bf16.gmra.mxu0 %v5033
      %v5158 = vpop.f32.mrf.mxu0
      %v5159 = vadd.f32 %v4986, %v5158
      %v5160 = vpop.f32.mrf.mxu0
      %v5161 = vadd.f32 %v4990, %v5160
      %v5162 = vpop.f32.mrf.mxu0
      %v5163 = vadd.f32 %v4986, %v5162
      %v5164 = vpop.f32.mrf.mxu0
      %v5165 = vadd.f32 %v4990, %v5164
      %5166 = vmatprep.mubr.bf16.mxu0 0
      %5167 = vmatmul.mubr.bf16.gmra.mxu0 %v5036
      %v5168 = vpop.f32.mrf.mxu0
      %v5169 = vadd.f32 %v4986, %v5168
      %v5170 = vpop.f32.mrf.mxu0
      %v5171 = vadd.f32 %v4990, %v5170
      %v5172 = vpop.f32.mrf.mxu0
      %v5173 = vadd.f32 %v4986, %v5172
      %v5174 = vpop.f32.mrf.mxu0
      %v5175 = vadd.f32 %v4990, %v5174
      %5176 = vmatprep.mubr.bf16.mxu0 0
      %5177 = vmatmul.mubr.bf16.gmra.mxu0 %v5039
      %v5178 = vpop.f32.mrf.mxu0
      %v5179 = vadd.f32 %v4986, %v5178
      %v5180 = vpop.f32.mrf.mxu0
      %v5181 = vadd.f32 %v4990, %v5180
      %v5182 = vpop.f32.mrf.mxu0
      %v5183 = vadd.f32 %v4986, %v5182
      %v5184 = vpop.f32.mrf.mxu0
      %v5185 = vadd.f32 %v4990, %v5184
      %5186 = vmatprep.mubr.bf16.mxu0 0
      %5187 = vmatmul.mubr.bf16.gmra.mxu0 %v5042
      %v5188 = vpop.f32.mrf.mxu0
      %v5189 = vadd.f32 %v4986, %v5188
      %v5190 = vpop.f32.mrf.mxu0
      %v5191 = vadd.f32 %v4990, %v5190
      %v5192 = vpop.f32.mrf.mxu0
      %v5193 = vadd.f32 %v4986, %v5192
      %v5194 = vpop.f32.mrf.mxu0
      %v5195 = vadd.f32 %v4990, %v5194
      %5196 = vmatprep.mubr.bf16.mxu0 0
      %5197 = vmatmul.mubr.bf16.gmra.mxu0 %v5045
      %v5198 = vpop.f32.mrf.mxu0
      %v5199 = vadd.f32 %v4986, %v5198
      %v5200 = vpop.f32.mrf.mxu0
      %v5201 = vadd.f32 %v4990, %v5200
      %v5202 = vpop.f32.mrf.mxu0
      %v5203 = vadd.f32 %v4986, %v5202
      %v5204 = vpop.f32.mrf.mxu0
      %v5205 = vadd.f32 %v4990, %v5204
      %5206 = vmatprep.mubr.bf16.mxu0 0
      %5207 = vmatmul.mubr.bf16.gmra.mxu0 %v5048
      %v5208 = vpop.f32.mrf.mxu0
      %v5209 = vadd.f32 %v4986, %v5208
      %v5210 = vpop.f32.mrf.mxu0
      %v5211 = vadd.f32 %v4990, %v5210
      %v5212 = vpop.f32.mrf.mxu0
      %v5213 = vadd.f32 %v4986, %v5212
      %v5214 = vpop.f32.mrf.mxu0
      %v5215 = vadd.f32 %v4990, %v5214
      %5216 = vmatprep.mubr.bf16.mxu0 0
      %5217 = vmatmul.mubr.bf16.gmra.mxu0 %v5051
      %v5218 = vpop.f32.mrf.mxu0
      %v5219 = vadd.f32 %v4986, %v5218
      %v5220 = vpop.f32.mrf.mxu0
      %v5221 = vadd.f32 %v4990, %v5220
      %v5222 = vpop.f32.mrf.mxu0
      %v5223 = vadd.f32 %v4986, %v5222
      %v5224 = vpop.f32.mrf.mxu0
      %v5225 = vadd.f32 %v4990, %v5224
      %5226 = vmatprep.mubr.bf16.mxu0 0
      %5227 = vmatmul.mubr.bf16.gmra.mxu0 %v5054
      %v5228 = vpop.f32.mrf.mxu0
      %v5229 = vadd.f32 %v4986, %v5228
      %v5230 = vpop.f32.mrf.mxu0
      %v5231 = vadd.f32 %v4990, %v5230
      %v5232 = vpop.f32.mrf.mxu0
      %v5233 = vadd.f32 %v4986, %v5232
      %v5234 = vpop.f32.mrf.mxu0
      %v5235 = vadd.f32 %v4990, %v5234
      %5236 = vmatprep.mubr.bf16.mxu0 0
      %5237 = vmatmul.mubr.bf16.gmra.mxu0 %v5057
      %v5238 = vpop.f32.mrf.mxu0
      %v5239 = vadd.f32 %v4986, %v5238
      %v5240 = vpop.f32.mrf.mxu0
      %v5241 = vadd.f32 %v4990, %v5240
      %v5242 = vpop.f32.mrf.mxu0
      %v5243 = vadd.f32 %v4986, %v5242
      %v5244 = vpop.f32.mrf.mxu0
      %v5245 = vadd.f32 %v4990, %v5244
      %5246 = vmatprep.mubr.bf16.mxu0 0
      %5247 = vmatmul.mubr.bf16.gmra.mxu0 %v5060
      %v5248 = vpop.f32.mrf.mxu0
      %v5249 = vadd.f32 %v4986, %v5248
      %v5250 = vpop.f32.mrf.mxu0
      %v5251 = vadd.f32 %v4990, %v5250
      %v5252 = vpop.f32.mrf.mxu0
      %v5253 = vadd.f32 %v4986, %v5252
      %v5254 = vpop.f32.mrf.mxu0
      %v5255 = vadd.f32 %v4990, %v5254
      %5256 = vmatprep.mubr.bf16.mxu0 0
      %5257 = vmatmul.mubr.bf16.gmra.mxu0 %v5063
      %v5258 = vpop.f32.mrf.mxu0
      %v5259 = vadd.f32 %v4986, %v5258
      %v5260 = vpop.f32.mrf.mxu0
      %v5261 = vadd.f32 %v4990, %v5260
      %v5262 = vpop.f32.mrf.mxu0
      %v5263 = vadd.f32 %v4986, %v5262
      %v5264 = vpop.f32.mrf.mxu0
      %v5265 = vadd.f32 %v4990, %v5264
      %5266 = vmatprep.mubr.bf16.mxu0 0
      %5267 = vmatmul.mubr.bf16.gmra.mxu0 %v5066
      %v5268 = vpop.f32.mrf.mxu0
      %v5269 = vadd.f32 %v4986, %v5268
      %v5270 = vpop.f32.mrf.mxu0
      %v5271 = vadd.f32 %v4990, %v5270
      %v5272 = vpop.f32.mrf.mxu0
      %v5273 = vadd.f32 %v4986, %v5272
      %v5274 = vpop.f32.mrf.mxu0
      %v5275 = vadd.f32 %v4990, %v5274
      %5276 = vdwg.mxu0
      %5277 = vmatprep.subr.bf16.mxu0 0
      %5278 = vmatpush1.bf16.msra.mxu0 0
      %5279 = vmatprep.subr.bf16.mxu0 0
      %5280 = vmatpush1.bf16.msra.mxu0 0
      %5281 = vmatprep.subr.bf16.mxu0 0
      %5282 = vmatpush1.bf16.msra.mxu0 0
      %5283 = vmatprep.subr.bf16.mxu0 0
      %5284 = vmatpush1.bf16.msra.mxu0 0
      %5285 = vmatprep.subr.bf16.mxu0 0
      %5286 = vmatpush1.bf16.msra.mxu0 0
      %5287 = vmatprep.subr.bf16.mxu0 0
      %5288 = vmatpush1.bf16.msra.mxu0 0
      %5289 = vmatprep.subr.bf16.mxu0 0
      %5290 = vmatpush1.bf16.msra.mxu0 0
      %5291 = vmatprep.subr.bf16.mxu0 %v5082
      %5292 = vmatpush1.bf16.msra.mxu0 %v5079
      %5293 = vmatprep.subr.bf16.mxu0 0
      %5294 = vmatpush2.bf16.msra.mxu0 0
      %5295 = vmatprep.subr.bf16.mxu0 0
      %5296 = vmatpush2.bf16.msra.mxu0 0
      %5297 = vmatprep.subr.bf16.mxu0 0
      %5298 = vmatpush2.bf16.msra.mxu0 0
      %5299 = vmatprep.subr.bf16.mxu0 0
      %5300 = vmatpush2.bf16.msra.mxu0 0
      %5301 = vmatprep.subr.bf16.mxu0 0
      %5302 = vmatpush2.bf16.msra.mxu0 0
      %5303 = vmatprep.subr.bf16.mxu0 0
      %5304 = vmatpush2.bf16.msra.mxu0 0
      %5305 = vmatprep.subr.bf16.mxu0 0
      %5306 = vmatpush2.bf16.msra.mxu0 0
      %5307 = vmatprep.subr.bf16.mxu0 0
      %5308 = vmatpush2.bf16.msra.mxu0 0
      %5309 = vmatprep.mubr.bf16.mxu0 0
      %5310 = vmatmul.mubr.bf16.gmra.mxu0 %v5021
      %v5311 = vpop.f32.mrf.mxu0
      %v5312 = vadd.f32 %v4994, %v5311
      %v5313 = vpop.f32.mrf.mxu0
      %v5314 = vadd.f32 %v4998, %v5313
      %v5315 = vpop.f32.mrf.mxu0
      %v5316 = vadd.f32 %v4994, %v5315
      %v5317 = vpop.f32.mrf.mxu0
      %v5318 = vadd.f32 %v4998, %v5317
      %5319 = vmatprep.mubr.bf16.mxu0 0
      %5320 = vmatmul.mubr.bf16.gmra.mxu0 %v5024
      %v5321 = vpop.f32.mrf.mxu0
      %v5322 = vadd.f32 %v4994, %v5321
      %v5323 = vpop.f32.mrf.mxu0
      %v5324 = vadd.f32 %v4998, %v5323
      %v5325 = vpop.f32.mrf.mxu0
      %v5326 = vadd.f32 %v4994, %v5325
      %v5327 = vpop.f32.mrf.mxu0
      %v5328 = vadd.f32 %v4998, %v5327
      %5329 = vmatprep.mubr.bf16.mxu0 0
      %5330 = vmatmul.mubr.bf16.gmra.mxu0 %v5027
      %v5331 = vpop.f32.mrf.mxu0
      %v5332 = vadd.f32 %v4994, %v5331
      %v5333 = vpop.f32.mrf.mxu0
      %v5334 = vadd.f32 %v4998, %v5333
      %v5335 = vpop.f32.mrf.mxu0
      %v5336 = vadd.f32 %v4994, %v5335
      %v5337 = vpop.f32.mrf.mxu0
      %v5338 = vadd.f32 %v4998, %v5337
      %5339 = vmatprep.mubr.bf16.mxu0 0
      %5340 = vmatmul.mubr.bf16.gmra.mxu0 %v5030
      %v5341 = vpop.f32.mrf.mxu0
      %v5342 = vadd.f32 %v4994, %v5341
      %v5343 = vpop.f32.mrf.mxu0
      %v5344 = vadd.f32 %v4998, %v5343
      %v5345 = vpop.f32.mrf.mxu0
      %v5346 = vadd.f32 %v4994, %v5345
      %v5347 = vpop.f32.mrf.mxu0
      %v5348 = vadd.f32 %v4998, %v5347
      %5349 = vmatprep.mubr.bf16.mxu0 0
      %5350 = vmatmul.mubr.bf16.gmra.mxu0 %v5033
      %v5351 = vpop.f32.mrf.mxu0
      %v5352 = vadd.f32 %v4994, %v5351
      %v5353 = vpop.f32.mrf.mxu0
      %v5354 = vadd.f32 %v4998, %v5353
      %v5355 = vpop.f32.mrf.mxu0
      %v5356 = vadd.f32 %v4994, %v5355
      %v5357 = vpop.f32.mrf.mxu0
      %v5358 = vadd.f32 %v4998, %v5357
      %5359 = vmatprep.mubr.bf16.mxu0 0
      %5360 = vmatmul.mubr.bf16.gmra.mxu0 %v5036
      %v5361 = vpop.f32.mrf.mxu0
      %v5362 = vadd.f32 %v4994, %v5361
      %v5363 = vpop.f32.mrf.mxu0
      %v5364 = vadd.f32 %v4998, %v5363
      %v5365 = vpop.f32.mrf.mxu0
      %v5366 = vadd.f32 %v4994, %v5365
      %v5367 = vpop.f32.mrf.mxu0
      %v5368 = vadd.f32 %v4998, %v5367
      %5369 = vmatprep.mubr.bf16.mxu0 0
      %5370 = vmatmul.mubr.bf16.gmra.mxu0 %v5039
      %v5371 = vpop.f32.mrf.mxu0
      %v5372 = vadd.f32 %v4994, %v5371
      %v5373 = vpop.f32.mrf.mxu0
      %v5374 = vadd.f32 %v4998, %v5373
      %v5375 = vpop.f32.mrf.mxu0
      %v5376 = vadd.f32 %v4994, %v5375
      %v5377 = vpop.f32.mrf.mxu0
      %v5378 = vadd.f32 %v4998, %v5377
      %5379 = vmatprep.mubr.bf16.mxu0 0
      %5380 = vmatmul.mubr.bf16.gmra.mxu0 %v5042
      %v5381 = vpop.f32.mrf.mxu0
      %v5382 = vadd.f32 %v4994, %v5381
      %v5383 = vpop.f32.mrf.mxu0
      %v5384 = vadd.f32 %v4998, %v5383
      %v5385 = vpop.f32.mrf.mxu0
      %v5386 = vadd.f32 %v4994, %v5385
      %v5387 = vpop.f32.mrf.mxu0
      %v5388 = vadd.f32 %v4998, %v5387
      %5389 = vmatprep.mubr.bf16.mxu0 0
      %5390 = vmatmul.mubr.bf16.gmra.mxu0 %v5045
      %v5391 = vpop.f32.mrf.mxu0
      %v5392 = vadd.f32 %v4994, %v5391
      %v5393 = vpop.f32.mrf.mxu0
      %v5394 = vadd.f32 %v4998, %v5393
      %v5395 = vpop.f32.mrf.mxu0
      %v5396 = vadd.f32 %v4994, %v5395
      %v5397 = vpop.f32.mrf.mxu0
      %v5398 = vadd.f32 %v4998, %v5397
      %5399 = vmatprep.mubr.bf16.mxu0 0
      %5400 = vmatmul.mubr.bf16.gmra.mxu0 %v5048
      %v5401 = vpop.f32.mrf.mxu0
      %v5402 = vadd.f32 %v4994, %v5401
      %v5403 = vpop.f32.mrf.mxu0
      %v5404 = vadd.f32 %v4998, %v5403
      %v5405 = vpop.f32.mrf.mxu0
      %v5406 = vadd.f32 %v4994, %v5405
      %v5407 = vpop.f32.mrf.mxu0
      %v5408 = vadd.f32 %v4998, %v5407
      %5409 = vmatprep.mubr.bf16.mxu0 0
      %5410 = vmatmul.mubr.bf16.gmra.mxu0 %v5051
      %v5411 = vpop.f32.mrf.mxu0
      %v5412 = vadd.f32 %v4994, %v5411
      %v5413 = vpop.f32.mrf.mxu0
      %v5414 = vadd.f32 %v4998, %v5413
      %v5415 = vpop.f32.mrf.mxu0
      %v5416 = vadd.f32 %v4994, %v5415
      %v5417 = vpop.f32.mrf.mxu0
      %v5418 = vadd.f32 %v4998, %v5417
      %5419 = vmatprep.mubr.bf16.mxu0 0
      %5420 = vmatmul.mubr.bf16.gmra.mxu0 %v5054
      %v5421 = vpop.f32.mrf.mxu0
      %v5422 = vadd.f32 %v4994, %v5421
      %v5423 = vpop.f32.mrf.mxu0
      %v5424 = vadd.f32 %v4998, %v5423
      %v5425 = vpop.f32.mrf.mxu0
      %v5426 = vadd.f32 %v4994, %v5425
      %v5427 = vpop.f32.mrf.mxu0
      %v5428 = vadd.f32 %v4998, %v5427
      %5429 = vmatprep.mubr.bf16.mxu0 0
      %5430 = vmatmul.mubr.bf16.gmra.mxu0 %v5057
      %v5431 = vpop.f32.mrf.mxu0
      %v5432 = vadd.f32 %v4994, %v5431
      %v5433 = vpop.f32.mrf.mxu0
      %v5434 = vadd.f32 %v4998, %v5433
      %v5435 = vpop.f32.mrf.mxu0
      %v5436 = vadd.f32 %v4994, %v5435
      %v5437 = vpop.f32.mrf.mxu0
      %v5438 = vadd.f32 %v4998, %v5437
      %5439 = vmatprep.mubr.bf16.mxu0 0
      %5440 = vmatmul.mubr.bf16.gmra.mxu0 %v5060
      %v5441 = vpop.f32.mrf.mxu0
      %v5442 = vadd.f32 %v4994, %v5441
      %v5443 = vpop.f32.mrf.mxu0
      %v5444 = vadd.f32 %v4998, %v5443
      %v5445 = vpop.f32.mrf.mxu0
      %v5446 = vadd.f32 %v4994, %v5445
      %v5447 = vpop.f32.mrf.mxu0
      %v5448 = vadd.f32 %v4998, %v5447
      %5449 = vmatprep.mubr.bf16.mxu0 0
      %5450 = vmatmul.mubr.bf16.gmra.mxu0 %v5063
      %v5451 = vpop.f32.mrf.mxu0
      %v5452 = vadd.f32 %v4994, %v5451
      %v5453 = vpop.f32.mrf.mxu0
      %v5454 = vadd.f32 %v4998, %v5453
      %v5455 = vpop.f32.mrf.mxu0
      %v5456 = vadd.f32 %v4994, %v5455
      %v5457 = vpop.f32.mrf.mxu0
      %v5458 = vadd.f32 %v4998, %v5457
      %5459 = vmatprep.mubr.bf16.mxu0 0
      %5460 = vmatmul.mubr.bf16.gmra.mxu0 %v5066
      %v5461 = vpop.f32.mrf.mxu0
      %v5462 = vadd.f32 %v4994, %v5461
      %v5463 = vpop.f32.mrf.mxu0
      %v5464 = vadd.f32 %v4998, %v5463
      %v5465 = vpop.f32.mrf.mxu0
      %v5466 = vadd.f32 %v4994, %v5465
      %v5467 = vpop.f32.mrf.mxu0
      %v5468 = vadd.f32 %v4998, %v5467
      %5469 = vdwg.mxu0
      %vm5470 = vcmp.gt.f32.partialorder %v5119, 0.0
      %vm5471 = vcmp.gt.f32.partialorder %v5121, 0.0
      %vm5472 = vcmp.gt.f32.partialorder %v5312, 0.0
      %vm5473 = vcmp.gt.f32.partialorder %v5314, 0.0
      %vm5474 = vcmp.gt.f32.partialorder %v5123, 0.0
      %vm5475 = vcmp.gt.f32.partialorder %v5125, 0.0
      %vm5476 = vcmp.gt.f32.partialorder %v5316, 0.0
      %vm5477 = vcmp.gt.f32.partialorder %v5318, 0.0
      %vm5478 = vcmp.gt.f32.partialorder %v5129, 0.0
      %vm5479 = vcmp.gt.f32.partialorder %v5131, 0.0
      %vm5480 = vcmp.gt.f32.partialorder %v5322, 0.0
      %vm5481 = vcmp.gt.f32.partialorder %v5324, 0.0
      %vm5482 = vcmp.gt.f32.partialorder %v5133, 0.0
      %vm5483 = vcmp.gt.f32.partialorder %v5135, 0.0
      %vm5484 = vcmp.gt.f32.partialorder %v5326, 0.0
      %vm5485 = vcmp.gt.f32.partialorder %v5328, 0.0
      %vm5486 = vcmp.gt.f32.partialorder %v5139, 0.0
      %vm5487 = vcmp.gt.f32.partialorder %v5141, 0.0
      %vm5488 = vcmp.gt.f32.partialorder %v5332, 0.0
      %vm5489 = vcmp.gt.f32.partialorder %v5334, 0.0
      %vm5490 = vcmp.gt.f32.partialorder %v5143, 0.0
      %vm5491 = vcmp.gt.f32.partialorder %v5145, 0.0
      %vm5492 = vcmp.gt.f32.partialorder %v5336, 0.0
      %vm5493 = vcmp.gt.f32.partialorder %v5338, 0.0
      %vm5494 = vcmp.gt.f32.partialorder %v5149, 0.0
      %vm5495 = vcmp.gt.f32.partialorder %v5151, 0.0
      %vm5496 = vcmp.gt.f32.partialorder %v5342, 0.0
      %vm5497 = vcmp.gt.f32.partialorder %v5344, 0.0
      %vm5498 = vcmp.gt.f32.partialorder %v5153, 0.0
      %vm5499 = vcmp.gt.f32.partialorder %v5155, 0.0
      %vm5500 = vcmp.gt.f32.partialorder %v5346, 0.0
      %vm5501 = vcmp.gt.f32.partialorder %v5348, 0.0
      %vm5502 = vcmp.gt.f32.partialorder %v5159, 0.0
      %vm5503 = vcmp.gt.f32.partialorder %v5161, 0.0
      %vm5504 = vcmp.gt.f32.partialorder %v5352, 0.0
      %vm5505 = vcmp.gt.f32.partialorder %v5354, 0.0
      %vm5506 = vcmp.gt.f32.partialorder %v5163, 0.0
      %vm5507 = vcmp.gt.f32.partialorder %v5165, 0.0
      %vm5508 = vcmp.gt.f32.partialorder %v5356, 0.0
      %vm5509 = vcmp.gt.f32.partialorder %v5358, 0.0
      %vm5510 = vcmp.gt.f32.partialorder %v5169, 0.0
      %vm5511 = vcmp.gt.f32.partialorder %v5171, 0.0
      %vm5512 = vcmp.gt.f32.partialorder %v5362, 0.0
      %vm5513 = vcmp.gt.f32.partialorder %v5364, 0.0
      %vm5514 = vcmp.gt.f32.partialorder %v5173, 0.0
      %vm5515 = vcmp.gt.f32.partialorder %v5175, 0.0
      %vm5516 = vcmp.gt.f32.partialorder %v5366, 0.0
      %vm5517 = vcmp.gt.f32.partialorder %v5368, 0.0
      %vm5518 = vcmp.gt.f32.partialorder %v5179, 0.0
      %vm5519 = vcmp.gt.f32.partialorder %v5181, 0.0
      %vm5520 = vcmp.gt.f32.partialorder %v5372, 0.0
      %vm5521 = vcmp.gt.f32.partialorder %v5374, 0.0
      %vm5522 = vcmp.gt.f32.partialorder %v5183, 0.0
      %vm5523 = vcmp.gt.f32.partialorder %v5185, 0.0
      %vm5524 = vcmp.gt.f32.partialorder %v5376, 0.0
      %vm5525 = vcmp.gt.f32.partialorder %v5378, 0.0
      %vm5526 = vcmp.gt.f32.partialorder %v5189, 0.0
      %vm5527 = vcmp.gt.f32.partialorder %v5191, 0.0
      %vm5528 = vcmp.gt.f32.partialorder %v5382, 0.0
      %vm5529 = vcmp.gt.f32.partialorder %v5384, 0.0
      %vm5530 = vcmp.gt.f32.partialorder %v5193, 0.0
      %vm5531 = vcmp.gt.f32.partialorder %v5195, 0.0
      %vm5532 = vcmp.gt.f32.partialorder %v5386, 0.0
      %vm5533 = vcmp.gt.f32.partialorder %v5388, 0.0
      %vm5534 = vcmp.gt.f32.partialorder %v5199, 0.0
      %vm5535 = vcmp.gt.f32.partialorder %v5201, 0.0
      %vm5536 = vcmp.gt.f32.partialorder %v5392, 0.0
      %vm5537 = vcmp.gt.f32.partialorder %v5394, 0.0
      %vm5538 = vcmp.gt.f32.partialorder %v5203, 0.0
      %vm5539 = vcmp.gt.f32.partialorder %v5205, 0.0
      %vm5540 = vcmp.gt.f32.partialorder %v5396, 0.0
      %vm5541 = vcmp.gt.f32.partialorder %v5398, 0.0
      %vm5542 = vcmp.gt.f32.partialorder %v5209, 0.0
      %vm5543 = vcmp.gt.f32.partialorder %v5211, 0.0
      %vm5544 = vcmp.gt.f32.partialorder %v5402, 0.0
      %vm5545 = vcmp.gt.f32.partialorder %v5404, 0.0
      %vm5546 = vcmp.gt.f32.partialorder %v5213, 0.0
      %vm5547 = vcmp.gt.f32.partialorder %v5215, 0.0
      %vm5548 = vcmp.gt.f32.partialorder %v5406, 0.0
      %vm5549 = vcmp.gt.f32.partialorder %v5408, 0.0
      %vm5550 = vcmp.gt.f32.partialorder %v5219, 0.0
      %vm5551 = vcmp.gt.f32.partialorder %v5221, 0.0
      %vm5552 = vcmp.gt.f32.partialorder %v5412, 0.0
      %vm5553 = vcmp.gt.f32.partialorder %v5414, 0.0
      %vm5554 = vcmp.gt.f32.partialorder %v5223, 0.0
      %vm5555 = vcmp.gt.f32.partialorder %v5225, 0.0
      %vm5556 = vcmp.gt.f32.partialorder %v5416, 0.0
      %vm5557 = vcmp.gt.f32.partialorder %v5418, 0.0
      %vm5558 = vcmp.gt.f32.partialorder %v5229, 0.0
      %vm5559 = vcmp.gt.f32.partialorder %v5231, 0.0
      %vm5560 = vcmp.gt.f32.partialorder %v5422, 0.0
      %vm5561 = vcmp.gt.f32.partialorder %v5424, 0.0
      %vm5562 = vcmp.gt.f32.partialorder %v5233, 0.0
      %vm5563 = vcmp.gt.f32.partialorder %v5235, 0.0
      %vm5564 = vcmp.gt.f32.partialorder %v5426, 0.0
      %vm5565 = vcmp.gt.f32.partialorder %v5428, 0.0
      %vm5566 = vcmp.gt.f32.partialorder %v5239, 0.0
      %vm5567 = vcmp.gt.f32.partialorder %v5241, 0.0
      %vm5568 = vcmp.gt.f32.partialorder %v5432, 0.0
      %vm5569 = vcmp.gt.f32.partialorder %v5434, 0.0
      %vm5570 = vcmp.gt.f32.partialorder %v5243, 0.0
      %vm5571 = vcmp.gt.f32.partialorder %v5245, 0.0
      %vm5572 = vcmp.gt.f32.partialorder %v5436, 0.0
      %vm5573 = vcmp.gt.f32.partialorder %v5438, 0.0
      %vm5574 = vcmp.gt.f32.partialorder %v5249, 0.0
      %vm5575 = vcmp.gt.f32.partialorder %v5251, 0.0
      %vm5576 = vcmp.gt.f32.partialorder %v5442, 0.0
      %vm5577 = vcmp.gt.f32.partialorder %v5444, 0.0
      %vm5578 = vcmp.gt.f32.partialorder %v5253, 0.0
      %vm5579 = vcmp.gt.f32.partialorder %v5255, 0.0
      %vm5580 = vcmp.gt.f32.partialorder %v5446, 0.0
      %vm5581 = vcmp.gt.f32.partialorder %v5448, 0.0
      %vm5582 = vcmp.gt.f32.partialorder %v5259, 0.0
      %vm5583 = vcmp.gt.f32.partialorder %v5261, 0.0
      %vm5584 = vcmp.gt.f32.partialorder %v5452, 0.0
      %vm5585 = vcmp.gt.f32.partialorder %v5454, 0.0
      %vm5586 = vcmp.gt.f32.partialorder %v5263, 0.0
      %vm5587 = vcmp.gt.f32.partialorder %v5265, 0.0
      %vm5588 = vcmp.gt.f32.partialorder %v5456, 0.0
      %vm5589 = vcmp.gt.f32.partialorder %v5458, 0.0
      %vm5590 = vcmp.gt.f32.partialorder %v5269, 0.0
      %vm5591 = vcmp.gt.f32.partialorder %v5271, 0.0
      %vm5592 = vcmp.gt.f32.partialorder %v5462, 0.0
      %vm5593 = vcmp.gt.f32.partialorder %v5464, 0.0
      %vm5594 = vcmp.gt.f32.partialorder %v5273, 0.0
      %vm5595 = vcmp.gt.f32.partialorder %v5275, 0.0
      %vm5596 = vcmp.gt.f32.partialorder %v5466, 0.0
      %vm5597 = vcmp.gt.f32.partialorder %v5468, 0.0
      %v5598 = vmul.f32 %v5119, 0.01
      %v5599 = vmul.f32 %v5121, 0.01
      %v5600 = vmul.f32 %v5312, 0.01
      %v5601 = vmul.f32 %v5314, 0.01
      %v5602 = vmul.f32 %v5123, 0.01
      %v5603 = vmul.f32 %v5125, 0.01
      %v5604 = vmul.f32 %v5316, 0.01
      %v5605 = vmul.f32 %v5318, 0.01
      %v5606 = vmul.f32 %v5129, 0.01
      %v5607 = vmul.f32 %v5131, 0.01
      %v5608 = vmul.f32 %v5322, 0.01
      %v5609 = vmul.f32 %v5324, 0.01
      %v5610 = vmul.f32 %v5133, 0.01
      %v5611 = vmul.f32 %v5135, 0.01
      %v5612 = vmul.f32 %v5326, 0.01
      %v5613 = vmul.f32 %v5328, 0.01
      %v5614 = vmul.f32 %v5139, 0.01
      %v5615 = vmul.f32 %v5141, 0.01
      %v5616 = vmul.f32 %v5332, 0.01
      %v5617 = vmul.f32 %v5334, 0.01
      %v5618 = vmul.f32 %v5143, 0.01
      %v5619 = vmul.f32 %v5145, 0.01
      %v5620 = vmul.f32 %v5336, 0.01
      %v5621 = vmul.f32 %v5338, 0.01
      %v5622 = vmul.f32 %v5149, 0.01
      %v5623 = vmul.f32 %v5151, 0.01
      %v5624 = vmul.f32 %v5342, 0.01
      %v5625 = vmul.f32 %v5344, 0.01
      %v5626 = vmul.f32 %v5153, 0.01
      %v5627 = vmul.f32 %v5155, 0.01
      %v5628 = vmul.f32 %v5346, 0.01
      %v5629 = vmul.f32 %v5348, 0.01
      %v5630 = vmul.f32 %v5159, 0.01
      %v5631 = vmul.f32 %v5161, 0.01
      %v5632 = vmul.f32 %v5352, 0.01
      %v5633 = vmul.f32 %v5354, 0.01
      %v5634 = vmul.f32 %v5163, 0.01
      %v5635 = vmul.f32 %v5165, 0.01
      %v5636 = vmul.f32 %v5356, 0.01
      %v5637 = vmul.f32 %v5358, 0.01
      %v5638 = vmul.f32 %v5169, 0.01
      %v5639 = vmul.f32 %v5171, 0.01
      %v5640 = vmul.f32 %v5362, 0.01
      %v5641 = vmul.f32 %v5364, 0.01
      %v5642 = vmul.f32 %v5173, 0.01
      %v5643 = vmul.f32 %v5175, 0.01
      %v5644 = vmul.f32 %v5366, 0.01
      %v5645 = vmul.f32 %v5368, 0.01
      %v5646 = vmul.f32 %v5179, 0.01
      %v5647 = vmul.f32 %v5181, 0.01
      %v5648 = vmul.f32 %v5372, 0.01
      %v5649 = vmul.f32 %v5374, 0.01
      %v5650 = vmul.f32 %v5183, 0.01
      %v5651 = vmul.f32 %v5185, 0.01
      %v5652 = vmul.f32 %v5376, 0.01
      %v5653 = vmul.f32 %v5378, 0.01
      %v5654 = vmul.f32 %v5189, 0.01
      %v5655 = vmul.f32 %v5191, 0.01
      %v5656 = vmul.f32 %v5382, 0.01
      %v5657 = vmul.f32 %v5384, 0.01
      %v5658 = vmul.f32 %v5193, 0.01
      %v5659 = vmul.f32 %v5195, 0.01
      %v5660 = vmul.f32 %v5386, 0.01
      %v5661 = vmul.f32 %v5388, 0.01
      %v5662 = vmul.f32 %v5199, 0.01
      %v5663 = vmul.f32 %v5201, 0.01
      %v5664 = vmul.f32 %v5392, 0.01
      %v5665 = vmul.f32 %v5394, 0.01
      %v5666 = vmul.f32 %v5203, 0.01
      %v5667 = vmul.f32 %v5205, 0.01
      %v5668 = vmul.f32 %v5396, 0.01
      %v5669 = vmul.f32 %v5398, 0.01
      %v5670 = vmul.f32 %v5209, 0.01
      %v5671 = vmul.f32 %v5211, 0.01
      %v5672 = vmul.f32 %v5402, 0.01
      %v5673 = vmul.f32 %v5404, 0.01
      %v5674 = vmul.f32 %v5213, 0.01
      %v5675 = vmul.f32 %v5215, 0.01
      %v5676 = vmul.f32 %v5406, 0.01
      %v5677 = vmul.f32 %v5408, 0.01
      %v5678 = vmul.f32 %v5219, 0.01
      %v5679 = vmul.f32 %v5221, 0.01
      %v5680 = vmul.f32 %v5412, 0.01
      %v5681 = vmul.f32 %v5414, 0.01
      %v5682 = vmul.f32 %v5223, 0.01
      %v5683 = vmul.f32 %v5225, 0.01
      %v5684 = vmul.f32 %v5416, 0.01
      %v5685 = vmul.f32 %v5418, 0.01
      %v5686 = vmul.f32 %v5229, 0.01
      %v5687 = vmul.f32 %v5231, 0.01
      %v5688 = vmul.f32 %v5422, 0.01
      %v5689 = vmul.f32 %v5424, 0.01
      %v5690 = vmul.f32 %v5233, 0.01
      %v5691 = vmul.f32 %v5235, 0.01
      %v5692 = vmul.f32 %v5426, 0.01
      %v5693 = vmul.f32 %v5428, 0.01
      %v5694 = vmul.f32 %v5239, 0.01
      %v5695 = vmul.f32 %v5241, 0.01
      %v5696 = vmul.f32 %v5432, 0.01
      %v5697 = vmul.f32 %v5434, 0.01
      %v5698 = vmul.f32 %v5243, 0.01
      %v5699 = vmul.f32 %v5245, 0.01
      %v5700 = vmul.f32 %v5436, 0.01
      %v5701 = vmul.f32 %v5438, 0.01
      %v5702 = vmul.f32 %v5249, 0.01
      %v5703 = vmul.f32 %v5251, 0.01
      %v5704 = vmul.f32 %v5442, 0.01
      %v5705 = vmul.f32 %v5444, 0.01
      %v5706 = vmul.f32 %v5253, 0.01
      %v5707 = vmul.f32 %v5255, 0.01
      %v5708 = vmul.f32 %v5446, 0.01
      %v5709 = vmul.f32 %v5448, 0.01
      %v5710 = vmul.f32 %v5259, 0.01
      %v5711 = vmul.f32 %v5261, 0.01
      %v5712 = vmul.f32 %v5452, 0.01
      %v5713 = vmul.f32 %v5454, 0.01
      %v5714 = vmul.f32 %v5263, 0.01
      %v5715 = vmul.f32 %v5265, 0.01
      %v5716 = vmul.f32 %v5456, 0.01
      %v5717 = vmul.f32 %v5458, 0.01
      %v5718 = vmul.f32 %v5269, 0.01
      %v5719 = vmul.f32 %v5271, 0.01
      %v5720 = vmul.f32 %v5462, 0.01
      %v5721 = vmul.f32 %v5464, 0.01
      %v5722 = vmul.f32 %v5273, 0.01
      %v5723 = vmul.f32 %v5275, 0.01
      %v5724 = vmul.f32 %v5466, 0.01
      %v5725 = vmul.f32 %v5468, 0.01
      %v5726 = vsel %vm5470, %v5119, %v5598
      %v5727 = vsel %vm5471, %v5121, %v5599
      %v5728 = vsel %vm5472, %v5312, %v5600
      %v5729 = vsel %vm5473, %v5314, %v5601
      %v5730 = vsel %vm5474, %v5123, %v5602
      %v5731 = vsel %vm5475, %v5125, %v5603
      %v5732 = vsel %vm5476, %v5316, %v5604
      %v5733 = vsel %vm5477, %v5318, %v5605
      %v5734 = vsel %vm5478, %v5129, %v5606
      %v5735 = vsel %vm5479, %v5131, %v5607
      %v5736 = vsel %vm5480, %v5322, %v5608
      %v5737 = vsel %vm5481, %v5324, %v5609
      %v5738 = vsel %vm5482, %v5133, %v5610
      %v5739 = vsel %vm5483, %v5135, %v5611
      %v5740 = vsel %vm5484, %v5326, %v5612
      %v5741 = vsel %vm5485, %v5328, %v5613
      %v5742 = vsel %vm5486, %v5139, %v5614
      %v5743 = vsel %vm5487, %v5141, %v5615
      %v5744 = vsel %vm5488, %v5332, %v5616
      %v5745 = vsel %vm5489, %v5334, %v5617
      %v5746 = vsel %vm5490, %v5143, %v5618
      %v5747 = vsel %vm5491, %v5145, %v5619
      %v5748 = vsel %vm5492, %v5336, %v5620
      %v5749 = vsel %vm5493, %v5338, %v5621
      %v5750 = vsel %vm5494, %v5149, %v5622
      %v5751 = vsel %vm5495, %v5151, %v5623
      %v5752 = vsel %vm5496, %v5342, %v5624
      %v5753 = vsel %vm5497, %v5344, %v5625
      %v5754 = vsel %vm5498, %v5153, %v5626
      %v5755 = vsel %vm5499, %v5155, %v5627
      %v5756 = vsel %vm5500, %v5346, %v5628
      %v5757 = vsel %vm5501, %v5348, %v5629
      %v5758 = vsel %vm5502, %v5159, %v5630
      %v5759 = vsel %vm5503, %v5161, %v5631
      %v5760 = vsel %vm5504, %v5352, %v5632
      %v5761 = vsel %vm5505, %v5354, %v5633
      %v5762 = vsel %vm5506, %v5163, %v5634
      %v5763 = vsel %vm5507, %v5165, %v5635
      %v5764 = vsel %vm5508, %v5356, %v5636
      %v5765 = vsel %vm5509, %v5358, %v5637
      %v5766 = vsel %vm5510, %v5169, %v5638
      %v5767 = vsel %vm5511, %v5171, %v5639
      %v5768 = vsel %vm5512, %v5362, %v5640
      %v5769 = vsel %vm5513, %v5364, %v5641
      %v5770 = vsel %vm5514, %v5173, %v5642
      %v5771 = vsel %vm5515, %v5175, %v5643
      %v5772 = vsel %vm5516, %v5366, %v5644
      %v5773 = vsel %vm5517, %v5368, %v5645
      %v5774 = vsel %vm5518, %v5179, %v5646
      %v5775 = vsel %vm5519, %v5181, %v5647
      %v5776 = vsel %vm5520, %v5372, %v5648
      %v5777 = vsel %vm5521, %v5374, %v5649
      %v5778 = vsel %vm5522, %v5183, %v5650
      %v5779 = vsel %vm5523, %v5185, %v5651
      %v5780 = vsel %vm5524, %v5376, %v5652
      %v5781 = vsel %vm5525, %v5378, %v5653
      %v5782 = vsel %vm5526, %v5189, %v5654
      %v5783 = vsel %vm5527, %v5191, %v5655
      %v5784 = vsel %vm5528, %v5382, %v5656
      %v5785 = vsel %vm5529, %v5384, %v5657
      %v5786 = vsel %vm5530, %v5193, %v5658
      %v5787 = vsel %vm5531, %v5195, %v5659
      %v5788 = vsel %vm5532, %v5386, %v5660
      %v5789 = vsel %vm5533, %v5388, %v5661
      %v5790 = vsel %vm5534, %v5199, %v5662
      %v5791 = vsel %vm5535, %v5201, %v5663
      %v5792 = vsel %vm5536, %v5392, %v5664
      %v5793 = vsel %vm5537, %v5394, %v5665
      %v5794 = vsel %vm5538, %v5203, %v5666
      %v5795 = vsel %vm5539, %v5205, %v5667
      %v5796 = vsel %vm5540, %v5396, %v5668
      %v5797 = vsel %vm5541, %v5398, %v5669
      %v5798 = vsel %vm5542, %v5209, %v5670
      %v5799 = vsel %vm5543, %v5211, %v5671
      %v5800 = vsel %vm5544, %v5402, %v5672
      %v5801 = vsel %vm5545, %v5404, %v5673
      %v5802 = vsel %vm5546, %v5213, %v5674
      %v5803 = vsel %vm5547, %v5215, %v5675
      %v5804 = vsel %vm5548, %v5406, %v5676
      %v5805 = vsel %vm5549, %v5408, %v5677
      %v5806 = vsel %vm5550, %v5219, %v5678
      %v5807 = vsel %vm5551, %v5221, %v5679
      %v5808 = vsel %vm5552, %v5412, %v5680
      %v5809 = vsel %vm5553, %v5414, %v5681
      %v5810 = vsel %vm5554, %v5223, %v5682
      %v5811 = vsel %vm5555, %v5225, %v5683
      %v5812 = vsel %vm5556, %v5416, %v5684
      %v5813 = vsel %vm5557, %v5418, %v5685
      %v5814 = vsel %vm5558, %v5229, %v5686
      %v5815 = vsel %vm5559, %v5231, %v5687
      %v5816 = vsel %vm5560, %v5422, %v5688
      %v5817 = vsel %vm5561, %v5424, %v5689
      %v5818 = vsel %vm5562, %v5233, %v5690
      %v5819 = vsel %vm5563, %v5235, %v5691
      %v5820 = vsel %vm5564, %v5426, %v5692
      %v5821 = vsel %vm5565, %v5428, %v5693
      %v5822 = vsel %vm5566, %v5239, %v5694
      %v5823 = vsel %vm5567, %v5241, %v5695
      %v5824 = vsel %vm5568, %v5432, %v5696
      %v5825 = vsel %vm5569, %v5434, %v5697
      %v5826 = vsel %vm5570, %v5243, %v5698
      %v5827 = vsel %vm5571, %v5245, %v5699
      %v5828 = vsel %vm5572, %v5436, %v5700
      %v5829 = vsel %vm5573, %v5438, %v5701
      %v5830 = vsel %vm5574, %v5249, %v5702
      %v5831 = vsel %vm5575, %v5251, %v5703
      %v5832 = vsel %vm5576, %v5442, %v5704
      %v5833 = vsel %vm5577, %v5444, %v5705
      %v5834 = vsel %vm5578, %v5253, %v5706
      %v5835 = vsel %vm5579, %v5255, %v5707
      %v5836 = vsel %vm5580, %v5446, %v5708
      %v5837 = vsel %vm5581, %v5448, %v5709
      %v5838 = vsel %vm5582, %v5259, %v5710
      %v5839 = vsel %vm5583, %v5261, %v5711
      %v5840 = vsel %vm5584, %v5452, %v5712
      %v5841 = vsel %vm5585, %v5454, %v5713
      %v5842 = vsel %vm5586, %v5263, %v5714
      %v5843 = vsel %vm5587, %v5265, %v5715
      %v5844 = vsel %vm5588, %v5456, %v5716
      %v5845 = vsel %vm5589, %v5458, %v5717
      %v5846 = vsel %vm5590, %v5269, %v5718
      %v5847 = vsel %vm5591, %v5271, %v5719
      %v5848 = vsel %vm5592, %v5462, %v5720
      %v5849 = vsel %vm5593, %v5464, %v5721
      %v5850 = vsel %vm5594, %v5273, %v5722
      %v5851 = vsel %vm5595, %v5275, %v5723
      %v5852 = vsel %vm5596, %v5466, %v5724
      %v5853 = vsel %vm5597, %v5468, %v5725
      %v5854 = vpack.c.bf16 %v5730, %v5726
      %v5855 = vpack.c.bf16 %v5731, %v5727
      %v5856 = vpack.c.bf16 %v5732, %v5728
      %v5857 = vpack.c.bf16 %v5733, %v5729
      %v5858 = vpack.c.bf16 %v5738, %v5734
      %v5859 = vpack.c.bf16 %v5739, %v5735
      %v5860 = vpack.c.bf16 %v5740, %v5736
      %v5861 = vpack.c.bf16 %v5741, %v5737
      %v5862 = vpack.c.bf16 %v5746, %v5742
      %v5863 = vpack.c.bf16 %v5747, %v5743
      %v5864 = vpack.c.bf16 %v5748, %v5744
      %v5865 = vpack.c.bf16 %v5749, %v5745
      %v5866 = vpack.c.bf16 %v5754, %v5750
      %v5867 = vpack.c.bf16 %v5755, %v5751
      %v5868 = vpack.c.bf16 %v5756, %v5752
      %v5869 = vpack.c.bf16 %v5757, %v5753
      %v5870 = vpack.c.bf16 %v5762, %v5758
      %v5871 = vpack.c.bf16 %v5763, %v5759
      %v5872 = vpack.c.bf16 %v5764, %v5760
      %v5873 = vpack.c.bf16 %v5765, %v5761
      %v5874 = vpack.c.bf16 %v5770, %v5766
      %v5875 = vpack.c.bf16 %v5771, %v5767
      %v5876 = vpack.c.bf16 %v5772, %v5768
      %v5877 = vpack.c.bf16 %v5773, %v5769
      %v5878 = vpack.c.bf16 %v5778, %v5774
      %v5879 = vpack.c.bf16 %v5779, %v5775
      %v5880 = vpack.c.bf16 %v5780, %v5776
      %v5881 = vpack.c.bf16 %v5781, %v5777
      %v5882 = vpack.c.bf16 %v5786, %v5782
      %v5883 = vpack.c.bf16 %v5787, %v5783
      %v5884 = vpack.c.bf16 %v5788, %v5784
      %v5885 = vpack.c.bf16 %v5789, %v5785
      %v5886 = vpack.c.bf16 %v5794, %v5790
      %v5887 = vpack.c.bf16 %v5795, %v5791
      %v5888 = vpack.c.bf16 %v5796, %v5792
      %v5889 = vpack.c.bf16 %v5797, %v5793
      %v5890 = vpack.c.bf16 %v5802, %v5798
      %v5891 = vpack.c.bf16 %v5803, %v5799
      %v5892 = vpack.c.bf16 %v5804, %v5800
      %v5893 = vpack.c.bf16 %v5805, %v5801
      %v5894 = vpack.c.bf16 %v5810, %v5806
      %v5895 = vpack.c.bf16 %v5811, %v5807
      %v5896 = vpack.c.bf16 %v5812, %v5808
      %v5897 = vpack.c.bf16 %v5813, %v5809
      %v5898 = vpack.c.bf16 %v5818, %v5814
      %v5899 = vpack.c.bf16 %v5819, %v5815
      %v5900 = vpack.c.bf16 %v5820, %v5816
      %v5901 = vpack.c.bf16 %v5821, %v5817
      %v5902 = vpack.c.bf16 %v5826, %v5822
      %v5903 = vpack.c.bf16 %v5827, %v5823
      %v5904 = vpack.c.bf16 %v5828, %v5824
      %v5905 = vpack.c.bf16 %v5829, %v5825
      %v5906 = vpack.c.bf16 %v5834, %v5830
      %v5907 = vpack.c.bf16 %v5835, %v5831
      %v5908 = vpack.c.bf16 %v5836, %v5832
      %v5909 = vpack.c.bf16 %v5837, %v5833
      %v5910 = vpack.c.bf16 %v5842, %v5838
      %v5911 = vpack.c.bf16 %v5843, %v5839
      %v5912 = vpack.c.bf16 %v5844, %v5840
      %v5913 = vpack.c.bf16 %v5845, %v5841
      %v5914 = vpack.c.bf16 %v5850, %v5846
      %v5915 = vpack.c.bf16 %v5851, %v5847
      %v5916 = vpack.c.bf16 %v5852, %v5848
      %v5917 = vpack.c.bf16 %v5853, %v5849
      %v5918 = vld [vmem:[%s8] sm:$0xff]
      %v5919 = vld [vmem:[%s8 + $0x8] sm:$0xff]
      %v5920 = vld [vmem:[%s8 + $0x10] sm:$0xff]
      %v5921 = vld [vmem:[%s8 + $0x18] sm:$0xf]
      %v5922 = vld [vmem:[%s8 + $0x1c] sm:$0xff]
      %v5923 = vld [vmem:[%s8 + $0x24] sm:$0xff]
      %v5924 = vld [vmem:[%s8 + $0x2c] sm:$0xff]
      %v5925 = vld [vmem:[%s8 + $0x34] sm:$0xf]
      %v5926 = vld [vmem:[%s8 + $0x38] sm:$0xff]
      %v5927 = vld [vmem:[%s8 + $0x40] sm:$0xff]
      %v5928 = vld [vmem:[%s8 + $0x48] sm:$0xff]
      %v5929 = vld [vmem:[%s8 + $0x50] sm:$0xf]
      %v5930 = vld [vmem:[%s8 + $0x54] sm:$0xff]
      %v5931 = vld [vmem:[%s8 + $0x5c] sm:$0xff]
      %v5932 = vld [vmem:[%s8 + $0x64] sm:$0xff]
      %v5933 = vld [vmem:[%s8 + $0x6c] sm:$0xf]
      %v5934 = vld [vmem:[%s8 + $0x70] sm:$0xff]
      %v5935 = vld [vmem:[%s8 + $0x78] sm:$0xff]
      %v5936 = vld [vmem:[%s8 + $0x80] sm:$0xff]
      %v5937 = vld [vmem:[%s8 + $0x88] sm:$0xf]
      %v5938 = vld [vmem:[%s8 + $0x8c] sm:$0xff]
      %v5939 = vld [vmem:[%s8 + $0x94] sm:$0xff]
      %v5940 = vld [vmem:[%s8 + $0x9c] sm:$0xff]
      %v5941 = vld [vmem:[%s8 + $0xa4] sm:$0xf]
      %v5942 = vld [vmem:[%s8 + $0xa8] sm:$0xff]
      %v5943 = vld [vmem:[%s8 + $0xb0] sm:$0xff]
      %v5944 = vld [vmem:[%s8 + $0xb8] sm:$0xff]
      %v5945 = vld [vmem:[%s8 + $0xc0] sm:$0xf]
      %v5946 = vld [vmem:[%s8 + $0xc4] sm:$0xff]
      %v5947 = vld [vmem:[%s8 + $0xcc] sm:$0xff]
      %v5948 = vld [vmem:[%s8 + $0xd4] sm:$0xff]
      %v5949 = vld [vmem:[%s8 + $0xdc] sm:$0xf]
      %v5950 = vld [vmem:[%s8 + $0xe0] sm:$0xff]
      %v5951 = vld [vmem:[%s8 + $0xe8] sm:$0xff]
      %v5952 = vld [vmem:[%s8 + $0xf0] sm:$0xff]
      %v5953 = vld [vmem:[%s8 + $0xf8] sm:$0xf]
      %v5954 = vld [vmem:[%s8 + $0xfc] sm:$0xff]
      %v5955 = vld [vmem:[%s8 + $0x104] sm:$0xff]
      %v5956 = vld [vmem:[%s8 + $0x10c] sm:$0xff]
      %v5957 = vld [vmem:[%s8 + $0x114] sm:$0xf]
      %v5958 = vld [vmem:[%s8 + $0x118] sm:$0xff]
      %v5959 = vld [vmem:[%s8 + $0x120] sm:$0xff]
      %v5960 = vld [vmem:[%s8 + $0x128] sm:$0xff]
      %v5961 = vld [vmem:[%s8 + $0x130] sm:$0xf]
      %v5962 = vld [vmem:[%s8 + $0x134] sm:$0xff]
      %v5963 = vld [vmem:[%s8 + $0x13c] sm:$0xff]
      %v5964 = vld [vmem:[%s8 + $0x144] sm:$0xff]
      %v5965 = vld [vmem:[%s8 + $0x14c] sm:$0xf]
      %v5966 = vld [vmem:[%s8 + $0x150] sm:$0xff]
      %v5967 = vld [vmem:[%s8 + $0x158] sm:$0xff]
      %v5968 = vld [vmem:[%s8 + $0x160] sm:$0xff]
      %v5969 = vld [vmem:[%s8 + $0x168] sm:$0xf]
      %v5970 = vld [vmem:[%s8 + $0x16c] sm:$0xff]
      %v5971 = vld [vmem:[%s8 + $0x174] sm:$0xff]
      %v5972 = vld [vmem:[%s8 + $0x17c] sm:$0xff]
      %v5973 = vld [vmem:[%s8 + $0x184] sm:$0xf]
      %v5974 = vld [vmem:[%s8 + $0x188] sm:$0xff]
      %v5975 = vld [vmem:[%s8 + $0x190] sm:$0xff]
      %v5976 = vld [vmem:[%s8 + $0x198] sm:$0xff]
      %v5977 = vld [vmem:[%s8 + $0x1a0] sm:$0xf]
      %v5978 = vld [vmem:[%s8 + $0x1a4] sm:$0xff]
      %v5979 = vld [vmem:[%s8 + $0x1ac] sm:$0xff]
      %v5980 = vld [vmem:[%s8 + $0x1b4] sm:$0xff]
      %v5981 = vld [vmem:[%s8 + $0x1bc] sm:$0xf]
      %v5982 = vld [vmem:[%s8 + $0x1c0] sm:$0xff]
      %v5983 = vld [vmem:[%s8 + $0x1c8] sm:$0xff]
      %v5984 = vld [vmem:[%s8 + $0x1d0] sm:$0xff]
      %v5985 = vld [vmem:[%s8 + $0x1d8] sm:$0xf]
      %v5986 = vld [vmem:[%s8 + $0x1dc] sm:$0xff]
      %v5987 = vld [vmem:[%s8 + $0x1e4] sm:$0xff]
      %v5988 = vld [vmem:[%s8 + $0x1ec] sm:$0xff]
      %v5989 = vld [vmem:[%s8 + $0x1f4] sm:$0xf]
      %v5990 = vld [vmem:[%s8 + $0x1f8] sm:$0xff]
      %v5991 = vld [vmem:[%s8 + $0x200] sm:$0xff]
      %v5992 = vld [vmem:[%s8 + $0x208] sm:$0xff]
      %v5993 = vld [vmem:[%s8 + $0x210] sm:$0xf]
      %v5994 = vld [vmem:[%s8 + $0x214] sm:$0xff]
      %v5995 = vld [vmem:[%s8 + $0x21c] sm:$0xff]
      %v5996 = vld [vmem:[%s8 + $0x224] sm:$0xff]
      %v5997 = vld [vmem:[%s8 + $0x22c] sm:$0xf]
      %v5998 = vld [vmem:[%s8 + $0x230] sm:$0xff]
      %v5999 = vld [vmem:[%s8 + $0x238] sm:$0xff]
      %v6000 = vld [vmem:[%s8 + $0x240] sm:$0xff]
      %v6001 = vld [vmem:[%s8 + $0x248] sm:$0xf]
      %v6002 = vld [vmem:[%s8 + $0x24c] sm:$0xff]
      %v6003 = vld [vmem:[%s8 + $0x254] sm:$0xff]
      %v6004 = vld [vmem:[%s8 + $0x25c] sm:$0xff]
      %v6005 = vld [vmem:[%s8 + $0x264] sm:$0xf]
      %v6006 = vld [vmem:[%s8 + $0x268] sm:$0xff]
      %v6007 = vld [vmem:[%s8 + $0x270] sm:$0xff]
      %v6008 = vld [vmem:[%s8 + $0x278] sm:$0xff]
      %v6009 = vld [vmem:[%s8 + $0x280] sm:$0xf]
      %v6010 = vld [vmem:[%s8 + $0x284] sm:$0xff]
      %v6011 = vld [vmem:[%s8 + $0x28c] sm:$0xff]
      %v6012 = vld [vmem:[%s8 + $0x294] sm:$0xff]
      %v6013 = vld [vmem:[%s8 + $0x29c] sm:$0xf]
      %v6014 = vld [vmem:[%s8 + $0x2a0] sm:$0xff]
      %v6015 = vld [vmem:[%s8 + $0x2a8] sm:$0xff]
      %v6016 = vld [vmem:[%s8 + $0x2b0] sm:$0xff]
      %v6017 = vld [vmem:[%s8 + $0x2b8] sm:$0xf]
      %v6018 = vld [vmem:[%s8 + $0x2bc] sm:$0xff]
      %v6019 = vld [vmem:[%s8 + $0x2c4] sm:$0xff]
      %v6020 = vld [vmem:[%s8 + $0x2cc] sm:$0xff]
      %v6021 = vld [vmem:[%s8 + $0x2d4] sm:$0xf]
      %v6022 = vld [vmem:[%s8 + $0x2d8] sm:$0xff]
      %v6023 = vld [vmem:[%s8 + $0x2e0] sm:$0xff]
      %v6024 = vld [vmem:[%s8 + $0x2e8] sm:$0xff]
      %v6025 = vld [vmem:[%s8 + $0x2f0] sm:$0xf]
      %v6026 = vld [vmem:[%s8 + $0x2f4] sm:$0xff]
      %v6027 = vld [vmem:[%s8 + $0x2fc] sm:$0xff]
      %v6028 = vld [vmem:[%s8 + $0x304] sm:$0xff]
      %v6029 = vld [vmem:[%s8 + $0x30c] sm:$0xf]
      %v6030 = vld [vmem:[%s8 + $0x310] sm:$0xff]
      %v6031 = vld [vmem:[%s8 + $0x318] sm:$0xff]
      %v6032 = vld [vmem:[%s8 + $0x320] sm:$0xff]
      %v6033 = vld [vmem:[%s8 + $0x328] sm:$0xf]
      %v6034 = vld [vmem:[%s8 + $0x32c] sm:$0xff]
      %v6035 = vld [vmem:[%s8 + $0x334] sm:$0xff]
      %v6036 = vld [vmem:[%s8 + $0x33c] sm:$0xff]
      %v6037 = vld [vmem:[%s8 + $0x344] sm:$0xf]
      %v6038 = vld [vmem:[%s8 + $0x348] sm:$0xff]
      %v6039 = vld [vmem:[%s8 + $0x350] sm:$0xff]
      %v6040 = vld [vmem:[%s8 + $0x358] sm:$0xff]
      %v6041 = vld [vmem:[%s8 + $0x360] sm:$0xf]
      %v6042 = vld [vmem:[%s8 + $0x364] sm:$0xff]
      %v6043 = vld [vmem:[%s8 + $0x36c] sm:$0xff]
      %v6044 = vld [vmem:[%s8 + $0x374] sm:$0xff]
      %v6045 = vld [vmem:[%s8 + $0x37c] sm:$0xf]
      %v6046 = vld [vmem:[%s8 + $0x380] sm:$0xff]
      %v6047 = vld [vmem:[%s8 + $0x388] sm:$0xff]
      %v6048 = vld [vmem:[%s8 + $0x390] sm:$0xff]
      %v6049 = vld [vmem:[%s8 + $0x398] sm:$0xf]
      %v6050 = vld [vmem:[%s8 + $0x39c] sm:$0xff]
      %v6051 = vld [vmem:[%s8 + $0x3a4] sm:$0xff]
      %v6052 = vld [vmem:[%s8 + $0x3ac] sm:$0xff]
      %v6053 = vld [vmem:[%s8 + $0x3b4] sm:$0xf]
      %v6054 = vld [vmem:[%s8 + $0x3b8] sm:$0xff]
      %v6055 = vld [vmem:[%s8 + $0x3c0] sm:$0xff]
      %v6056 = vld [vmem:[%s8 + $0x3c8] sm:$0xff]
      %v6057 = vld [vmem:[%s8 + $0x3d0] sm:$0xf]
      %v6058 = vld [vmem:[%s8 + $0x3d4] sm:$0xff]
      %v6059 = vld [vmem:[%s8 + $0x3dc] sm:$0xff]
      %v6060 = vld [vmem:[%s8 + $0x3e4] sm:$0xff]
      %v6061 = vld [vmem:[%s8 + $0x3ec] sm:$0xf]
      %v6062 = vld [vmem:[%s8 + $0x3f0] sm:$0xff]
      %v6063 = vld [vmem:[%s8 + $0x3f8] sm:$0xff]
      %v6064 = vld [vmem:[%s8 + $0x400] sm:$0xff]
      %v6065 = vld [vmem:[%s8 + $0x408] sm:$0xf]
      %v6066 = vld [vmem:[%s8 + $0x40c] sm:$0xff]
      %v6067 = vld [vmem:[%s8 + $0x414] sm:$0xff]
      %v6068 = vld [vmem:[%s8 + $0x41c] sm:$0xff]
      %v6069 = vld [vmem:[%s8 + $0x424] sm:$0xf]
      %v6070 = vld [vmem:[%s8 + $0x428] sm:$0xff]
      %v6071 = vld [vmem:[%s8 + $0x430] sm:$0xff]
      %v6072 = vld [vmem:[%s8 + $0x438] sm:$0xff]
      %v6073 = vld [vmem:[%s8 + $0x440] sm:$0xf]
      %v6074 = vld [vmem:[%s8 + $0x444] sm:$0xff]
      %v6075 = vld [vmem:[%s8 + $0x44c] sm:$0xff]
      %v6076 = vld [vmem:[%s8 + $0x454] sm:$0xff]
      %v6077 = vld [vmem:[%s8 + $0x45c] sm:$0xf]
      %v6078 = vld [vmem:[%s8 + $0x460] sm:$0xff]
      %v6079 = vld [vmem:[%s8 + $0x468] sm:$0xff]
      %v6080 = vld [vmem:[%s8 + $0x470] sm:$0xff]
      %v6081 = vld [vmem:[%s8 + $0x478] sm:$0xf]
      %v6082 = vld [vmem:[%s8 + $0x47c] sm:$0xff]
      %v6083 = vld [vmem:[%s8 + $0x484] sm:$0xff]
      %v6084 = vld [vmem:[%s8 + $0x48c] sm:$0xff]
      %v6085 = vld [vmem:[%s8 + $0x494] sm:$0xf]
      %v6086 = vld [vmem:[%s8 + $0x498] sm:$0xff]
      %v6087 = vld [vmem:[%s8 + $0x4a0] sm:$0xff]
      %v6088 = vld [vmem:[%s8 + $0x4a8] sm:$0xff]
      %v6089 = vld [vmem:[%s8 + $0x4b0] sm:$0xf]
      %v6090 = vld [vmem:[%s8 + $0x4b4] sm:$0xff]
      %v6091 = vld [vmem:[%s8 + $0x4bc] sm:$0xff]
      %v6092 = vld [vmem:[%s8 + $0x4c4] sm:$0xff]
      %v6093 = vld [vmem:[%s8 + $0x4cc] sm:$0xf]
      %v6094 = vld [vmem:[%s8 + $0x4d0] sm:$0xff]
      %v6095 = vld [vmem:[%s8 + $0x4d8] sm:$0xff]
      %v6096 = vld [vmem:[%s8 + $0x4e0] sm:$0xff]
      %v6097 = vld [vmem:[%s8 + $0x4e8] sm:$0xf]
      %v6098 = vld [vmem:[%s8 + $0x4ec] sm:$0xff]
      %v6099 = vld [vmem:[%s8 + $0x4f4] sm:$0xff]
      %v6100 = vld [vmem:[%s8 + $0x4fc] sm:$0xff]
      %v6101 = vld [vmem:[%s8 + $0x504] sm:$0xf]
      %v6102 = vld [vmem:[%s8 + $0x508] sm:$0xff]
      %v6103 = vld [vmem:[%s8 + $0x510] sm:$0xff]
      %v6104 = vld [vmem:[%s8 + $0x518] sm:$0xff]
      %v6105 = vld [vmem:[%s8 + $0x520] sm:$0xf]
      %v6106 = vld [vmem:[%s8 + $0x524] sm:$0xff]
      %v6107 = vld [vmem:[%s8 + $0x52c] sm:$0xff]
      %v6108 = vld [vmem:[%s8 + $0x534] sm:$0xff]
      %v6109 = vld [vmem:[%s8 + $0x53c] sm:$0xf]
      %v6110 = vld [vmem:[%s8 + $0x540] sm:$0xff]
      %v6111 = vld [vmem:[%s8 + $0x548] sm:$0xff]
      %v6112 = vld [vmem:[%s8 + $0x550] sm:$0xff]
      %v6113 = vld [vmem:[%s8 + $0x558] sm:$0xf]
      %v6114 = vld [vmem:[%s8 + $0x55c] sm:$0xff]
      %v6115 = vld [vmem:[%s8 + $0x564] sm:$0xff]
      %v6116 = vld [vmem:[%s8 + $0x56c] sm:$0xff]
      %v6117 = vld [vmem:[%s8 + $0x574] sm:$0xf]
      %v6118 = vld [vmem:[%s8 + $0x578] sm:$0xff]
      %v6119 = vld [vmem:[%s8 + $0x580] sm:$0xff]
      %v6120 = vld [vmem:[%s8 + $0x588] sm:$0xff]
      %v6121 = vld [vmem:[%s8 + $0x590] sm:$0xf]
      %v6122 = vld [vmem:[%s8 + $0x594] sm:$0xff]
      %v6123 = vld [vmem:[%s8 + $0x59c] sm:$0xff]
      %v6124 = vld [vmem:[%s8 + $0x5a4] sm:$0xff]
      %v6125 = vld [vmem:[%s8 + $0x5ac] sm:$0xf]
      %v6126 = vld [vmem:[%s8 + $0x5b0] sm:$0xff]
      %v6127 = vld [vmem:[%s8 + $0x5b8] sm:$0xff]
      %v6128 = vld [vmem:[%s8 + $0x5c0] sm:$0xff]
      %v6129 = vld [vmem:[%s8 + $0x5c8] sm:$0xf]
      %v6130 = vld [vmem:[%s8 + $0x5cc] sm:$0xff]
      %v6131 = vld [vmem:[%s8 + $0x5d4] sm:$0xff]
      %v6132 = vld [vmem:[%s8 + $0x5dc] sm:$0xff]
      %v6133 = vld [vmem:[%s8 + $0x5e4] sm:$0xf]
      %v6134 = vld [vmem:[%s8 + $0x5e8] sm:$0xff]
      %v6135 = vld [vmem:[%s8 + $0x5f0] sm:$0xff]
      %v6136 = vld [vmem:[%s8 + $0x5f8] sm:$0xff]
      %v6137 = vld [vmem:[%s8 + $0x600] sm:$0xf]
      %v6138 = vld [vmem:[%s8 + $0x604] sm:$0xff]
      %v6139 = vld [vmem:[%s8 + $0x60c] sm:$0xff]
      %v6140 = vld [vmem:[%s8 + $0x614] sm:$0xff]
      %v6141 = vld [vmem:[%s8 + $0x61c] sm:$0xf]
      %v6142 = vld [vmem:[%s8 + $0x620] sm:$0xff]
      %v6143 = vld [vmem:[%s8 + $0x628] sm:$0xff]
      %v6144 = vld [vmem:[%s8 + $0x630] sm:$0xff]
      %v6145 = vld [vmem:[%s8 + $0x638] sm:$0xf]
      %v6146 = vld [vmem:[%s8 + $0x63c] sm:$0xff]
      %v6147 = vld [vmem:[%s8 + $0x644] sm:$0xff]
      %v6148 = vld [vmem:[%s8 + $0x64c] sm:$0xff]
      %v6149 = vld [vmem:[%s8 + $0x654] sm:$0xf]
      %v6150 = vld [vmem:[%s8 + $0x658] sm:$0xff]
      %v6151 = vld [vmem:[%s8 + $0x660] sm:$0xff]
      %v6152 = vld [vmem:[%s8 + $0x668] sm:$0xff]
      %v6153 = vld [vmem:[%s8 + $0x670] sm:$0xf]
      %v6154 = vld [vmem:[%s8 + $0x674] sm:$0xff]
      %v6155 = vld [vmem:[%s8 + $0x67c] sm:$0xff]
      %v6156 = vld [vmem:[%s8 + $0x684] sm:$0xff]
      %v6157 = vld [vmem:[%s8 + $0x68c] sm:$0xf]
      %v6158 = vld [vmem:[%s8 + $0x690] sm:$0xff]
      %v6159 = vld [vmem:[%s8 + $0x698] sm:$0xff]
      %v6160 = vld [vmem:[%s8 + $0x6a0] sm:$0xff]
      %v6161 = vld [vmem:[%s8 + $0x6a8] sm:$0xf]
      %v6162 = vld [vmem:[%s8 + $0x6ac] sm:$0xff]
      %v6163 = vld [vmem:[%s8 + $0x6b4] sm:$0xff]
      %v6164 = vld [vmem:[%s8 + $0x6bc] sm:$0xff]
      %v6165 = vld [vmem:[%s8 + $0x6c4] sm:$0xf]
      %v6166 = vld [vmem:[%s8 + $0x6c8] sm:$0x33]
      %v6167 = vld [vmem:[%s8 + $0x6d0] sm:$0x33]
      %v6168 = vld [vmem:[%s8 + $0x6d8] sm:$0x33]
      %v6169 = vld [vmem:[%s8 + $0x6e0] sm:$0x3]
      %v6170 = vld [vmem:[%s9] sm:$0x7f]
      %v6172 = vlaneseq
      %v6173 = vshrl.u32 %v6172, 7
      %v6174 = vsub.s32 0, %v6173
      %v6175 = vrot.slane %v6170, %v6174
      %v6176 = vlaneseq
      %v6177 = vshrl.u32 %v6176, 7
      %v6178 = vsub.s32 1, %v6177
      %v6179 = vrot.slane %v6170, %v6178
      %v6180 = vlaneseq
      %v6181 = vshrl.u32 %v6180, 7
      %v6182 = vsub.s32 2, %v6181
      %v6183 = vrot.slane %v6170, %v6182
      %v6184 = vlaneseq
      %v6185 = vshrl.u32 %v6184, 7
      %v6186 = vsub.s32 3, %v6185
      %v6187 = vrot.slane %v6170, %v6186
      %v6188 = vlaneseq
      %v6189 = vshrl.u32 %v6188, 7
      %v6190 = vsub.s32 4, %v6189
      %v6191 = vrot.slane %v6170, %v6190
      %v6192 = vlaneseq
      %v6193 = vshrl.u32 %v6192, 7
      %v6194 = vsub.s32 5, %v6193
      %v6195 = vrot.slane %v6170, %v6194
      %v6196 = vlaneseq
      %v6197 = vshrl.u32 %v6196, 7
      %v6198 = vsub.s32 6, %v6197
      %v6199 = vrot.slane %v6170, %v6198
      %v6459 = vunpack.c.l.b16 %v5918
      %v6460 = vunpack.c.h.b16 %v5918
      %v6461 = vunpack.c.l.b16 %v5919
      %v6462 = vunpack.c.h.b16 %v5919
      %v6463 = vunpack.c.l.b16 %v5920
      %v6464 = vunpack.c.h.b16 %v5920
      %v6465 = vunpack.c.l.b16 %v5921
      %v6466 = vunpack.c.l.b16 %v5922
      %v6467 = vunpack.c.h.b16 %v5922
      %v6468 = vunpack.c.l.b16 %v5923
      %v6469 = vunpack.c.h.b16 %v5923
      %v6470 = vunpack.c.l.b16 %v5924
      %v6471 = vunpack.c.h.b16 %v5924
      %v6472 = vunpack.c.l.b16 %v5925
      %v6473 = vunpack.c.l.b16 %v5926
      %v6474 = vunpack.c.h.b16 %v5926
      %v6475 = vunpack.c.l.b16 %v5927
      %v6476 = vunpack.c.h.b16 %v5927
      %v6477 = vunpack.c.l.b16 %v5928
      %v6478 = vunpack.c.h.b16 %v5928
      %v6479 = vunpack.c.l.b16 %v5929
      %v6480 = vunpack.c.l.b16 %v5930
      %v6481 = vunpack.c.h.b16 %v5930
      %v6482 = vunpack.c.l.b16 %v5931
      %v6483 = vunpack.c.h.b16 %v5931
      %v6484 = vunpack.c.l.b16 %v5932
      %v6485 = vunpack.c.h.b16 %v5932
      %v6486 = vunpack.c.l.b16 %v5933
      %v6487 = vunpack.c.l.b16 %v5934
      %v6488 = vunpack.c.h.b16 %v5934
      %v6489 = vunpack.c.l.b16 %v5935
      %v6490 = vunpack.c.h.b16 %v5935
      %v6491 = vunpack.c.l.b16 %v5936
      %v6492 = vunpack.c.h.b16 %v5936
      %v6493 = vunpack.c.l.b16 %v5937
      %v6494 = vunpack.c.l.b16 %v5938
      %v6495 = vunpack.c.h.b16 %v5938
      %v6496 = vunpack.c.l.b16 %v5939
      %v6497 = vunpack.c.h.b16 %v5939
      %v6498 = vunpack.c.l.b16 %v5940
      %v6499 = vunpack.c.h.b16 %v5940
      %v6500 = vunpack.c.l.b16 %v5941
      %v6501 = vunpack.c.l.b16 %v5942
      %v6502 = vunpack.c.h.b16 %v5942
      %v6503 = vunpack.c.l.b16 %v5943
      %v6504 = vunpack.c.h.b16 %v5943
      %v6505 = vunpack.c.l.b16 %v5944
      %v6506 = vunpack.c.h.b16 %v5944
      %v6507 = vunpack.c.l.b16 %v5945
      %v6508 = vunpack.c.l.b16 %v5946
      %v6509 = vunpack.c.h.b16 %v5946
      %v6510 = vunpack.c.l.b16 %v5947
      %v6511 = vunpack.c.h.b16 %v5947
      %v6512 = vunpack.c.l.b16 %v5948
      %v6513 = vunpack.c.h.b16 %v5948
      %v6514 = vunpack.c.l.b16 %v5949
      %v6515 = vunpack.c.l.b16 %v5950
      %v6516 = vunpack.c.h.b16 %v5950
      %v6517 = vunpack.c.l.b16 %v5951
      %v6518 = vunpack.c.h.b16 %v5951
      %v6519 = vunpack.c.l.b16 %v5952
      %v6520 = vunpack.c.h.b16 %v5952
      %v6521 = vunpack.c.l.b16 %v5953
      %v6522 = vunpack.c.l.b16 %v5954
      %v6523 = vunpack.c.h.b16 %v5954
      %v6524 = vunpack.c.l.b16 %v5955
      %v6525 = vunpack.c.h.b16 %v5955
      %v6526 = vunpack.c.l.b16 %v5956
      %v6527 = vunpack.c.h.b16 %v5956
      %v6528 = vunpack.c.l.b16 %v5957
      %v6529 = vunpack.c.l.b16 %v5958
      %v6530 = vunpack.c.h.b16 %v5958
      %v6531 = vunpack.c.l.b16 %v5959
      %v6532 = vunpack.c.h.b16 %v5959
      %v6533 = vunpack.c.l.b16 %v5960
      %v6534 = vunpack.c.h.b16 %v5960
      %v6535 = vunpack.c.l.b16 %v5961
      %v6536 = vunpack.c.l.b16 %v5962
      %v6537 = vunpack.c.h.b16 %v5962
      %v6538 = vunpack.c.l.b16 %v5963
      %v6539 = vunpack.c.h.b16 %v5963
      %v6540 = vunpack.c.l.b16 %v5964
      %v6541 = vunpack.c.h.b16 %v5964
      %v6542 = vunpack.c.l.b16 %v5965
      %v6543 = vunpack.c.l.b16 %v5966
      %v6544 = vunpack.c.h.b16 %v5966
      %v6545 = vunpack.c.l.b16 %v5967
      %v6546 = vunpack.c.h.b16 %v5967
      %v6547 = vunpack.c.l.b16 %v5968
      %v6548 = vunpack.c.h.b16 %v5968
      %v6549 = vunpack.c.l.b16 %v5969
      %v6550 = vunpack.c.l.b16 %v5970
      %v6551 = vunpack.c.h.b16 %v5970
      %v6552 = vunpack.c.l.b16 %v5971
      %v6553 = vunpack.c.h.b16 %v5971
      %v6554 = vunpack.c.l.b16 %v5972
      %v6555 = vunpack.c.h.b16 %v5972
      %v6556 = vunpack.c.l.b16 %v5973
      %v6557 = vunpack.c.l.b16 %v5974
      %v6558 = vunpack.c.h.b16 %v5974
      %v6559 = vunpack.c.l.b16 %v5975
      %v6560 = vunpack.c.h.b16 %v5975
      %v6561 = vunpack.c.l.b16 %v5976
      %v6562 = vunpack.c.h.b16 %v5976
      %v6563 = vunpack.c.l.b16 %v5977
      %v6564 = vunpack.c.l.b16 %v5978
      %v6565 = vunpack.c.h.b16 %v5978
      %v6566 = vunpack.c.l.b16 %v5979
      %v6567 = vunpack.c.h.b16 %v5979
      %v6568 = vunpack.c.l.b16 %v5980
      %v6569 = vunpack.c.h.b16 %v5980
      %v6570 = vunpack.c.l.b16 %v5981
      %v6571 = vunpack.c.l.b16 %v5982
      %v6572 = vunpack.c.h.b16 %v5982
      %v6573 = vunpack.c.l.b16 %v5983
      %v6574 = vunpack.c.h.b16 %v5983
      %v6575 = vunpack.c.l.b16 %v5984
      %v6576 = vunpack.c.h.b16 %v5984
      %v6577 = vunpack.c.l.b16 %v5985
      %v6578 = vunpack.c.l.b16 %v5986
      %v6579 = vunpack.c.h.b16 %v5986
      %v6580 = vunpack.c.l.b16 %v5987
      %v6581 = vunpack.c.h.b16 %v5987
      %v6582 = vunpack.c.l.b16 %v5988
      %v6583 = vunpack.c.h.b16 %v5988
      %v6584 = vunpack.c.l.b16 %v5989
      %v6585 = vunpack.c.l.b16 %v5990
      %v6586 = vunpack.c.h.b16 %v5990
      %v6587 = vunpack.c.l.b16 %v5991
      %v6588 = vunpack.c.h.b16 %v5991
      %v6589 = vunpack.c.l.b16 %v5992
      %v6590 = vunpack.c.h.b16 %v5992
      %v6591 = vunpack.c.l.b16 %v5993
      %v6592 = vunpack.c.l.b16 %v5994
      %v6593 = vunpack.c.h.b16 %v5994
      %v6594 = vunpack.c.l.b16 %v5995
      %v6595 = vunpack.c.h.b16 %v5995
      %v6596 = vunpack.c.l.b16 %v5996
      %v6597 = vunpack.c.h.b16 %v5996
      %v6598 = vunpack.c.l.b16 %v5997
      %v6599 = vunpack.c.l.b16 %v5998
      %v6600 = vunpack.c.h.b16 %v5998
      %v6601 = vunpack.c.l.b16 %v5999
      %v6602 = vunpack.c.h.b16 %v5999
      %v6603 = vunpack.c.l.b16 %v6000
      %v6604 = vunpack.c.h.b16 %v6000
      %v6605 = vunpack.c.l.b16 %v6001
      %v6606 = vunpack.c.l.b16 %v6002
      %v6607 = vunpack.c.h.b16 %v6002
      %v6608 = vunpack.c.l.b16 %v6003
      %v6609 = vunpack.c.h.b16 %v6003
      %v6610 = vunpack.c.l.b16 %v6004
      %v6611 = vunpack.c.h.b16 %v6004
      %v6612 = vunpack.c.l.b16 %v6005
      %v6613 = vunpack.c.l.b16 %v6006
      %v6614 = vunpack.c.h.b16 %v6006
      %v6615 = vunpack.c.l.b16 %v6007
      %v6616 = vunpack.c.h.b16 %v6007
      %v6617 = vunpack.c.l.b16 %v6008
      %v6618 = vunpack.c.h.b16 %v6008
      %v6619 = vunpack.c.l.b16 %v6009
      %v6620 = vunpack.c.l.b16 %v6010
      %v6621 = vunpack.c.h.b16 %v6010
      %v6622 = vunpack.c.l.b16 %v6011
      %v6623 = vunpack.c.h.b16 %v6011
      %v6624 = vunpack.c.l.b16 %v6012
      %v6625 = vunpack.c.h.b16 %v6012
      %v6626 = vunpack.c.l.b16 %v6013
      %v6627 = vunpack.c.l.b16 %v6014
      %v6628 = vunpack.c.h.b16 %v6014
      %v6629 = vunpack.c.l.b16 %v6015
      %v6630 = vunpack.c.h.b16 %v6015
      %v6631 = vunpack.c.l.b16 %v6016
      %v6632 = vunpack.c.h.b16 %v6016
      %v6633 = vunpack.c.l.b16 %v6017
      %v6634 = vunpack.c.l.b16 %v6018
      %v6635 = vunpack.c.h.b16 %v6018
      %v6636 = vunpack.c.l.b16 %v6019
      %v6637 = vunpack.c.h.b16 %v6019
      %v6638 = vunpack.c.l.b16 %v6020
      %v6639 = vunpack.c.h.b16 %v6020
      %v6640 = vunpack.c.l.b16 %v6021
      %v6641 = vunpack.c.l.b16 %v6022
      %v6642 = vunpack.c.h.b16 %v6022
      %v6643 = vunpack.c.l.b16 %v6023
      %v6644 = vunpack.c.h.b16 %v6023
      %v6645 = vunpack.c.l.b16 %v6024
      %v6646 = vunpack.c.h.b16 %v6024
      %v6647 = vunpack.c.l.b16 %v6025
      %v6648 = vunpack.c.l.b16 %v6026
      %v6649 = vunpack.c.h.b16 %v6026
      %v6650 = vunpack.c.l.b16 %v6027
      %v6651 = vunpack.c.h.b16 %v6027
      %v6652 = vunpack.c.l.b16 %v6028
      %v6653 = vunpack.c.h.b16 %v6028
      %v6654 = vunpack.c.l.b16 %v6029
      %v6655 = vunpack.c.l.b16 %v6030
      %v6656 = vunpack.c.h.b16 %v6030
      %v6657 = vunpack.c.l.b16 %v6031
      %v6658 = vunpack.c.h.b16 %v6031
      %v6659 = vunpack.c.l.b16 %v6032
      %v6660 = vunpack.c.h.b16 %v6032
      %v6661 = vunpack.c.l.b16 %v6033
      %v6662 = vunpack.c.l.b16 %v6034
      %v6663 = vunpack.c.h.b16 %v6034
      %v6664 = vunpack.c.l.b16 %v6035
      %v6665 = vunpack.c.h.b16 %v6035
      %v6666 = vunpack.c.l.b16 %v6036
      %v6667 = vunpack.c.h.b16 %v6036
      %v6668 = vunpack.c.l.b16 %v6037
      %v6669 = vunpack.c.l.b16 %v6038
      %v6670 = vunpack.c.h.b16 %v6038
      %v6671 = vunpack.c.l.b16 %v6039
      %v6672 = vunpack.c.h.b16 %v6039
      %v6673 = vunpack.c.l.b16 %v6040
      %v6674 = vunpack.c.h.b16 %v6040
      %v6675 = vunpack.c.l.b16 %v6041
      %v6676 = vunpack.c.l.b16 %v6042
      %v6677 = vunpack.c.h.b16 %v6042
      %v6678 = vunpack.c.l.b16 %v6043
      %v6679 = vunpack.c.h.b16 %v6043
      %v6680 = vunpack.c.l.b16 %v6044
      %v6681 = vunpack.c.h.b16 %v6044
      %v6682 = vunpack.c.l.b16 %v6045
      %v6683 = vunpack.c.l.b16 %v6046
      %v6684 = vunpack.c.h.b16 %v6046
      %v6685 = vunpack.c.l.b16 %v6047
      %v6686 = vunpack.c.h.b16 %v6047
      %v6687 = vunpack.c.l.b16 %v6048
      %v6688 = vunpack.c.h.b16 %v6048
      %v6689 = vunpack.c.l.b16 %v6049
      %v6690 = vunpack.c.l.b16 %v6050
      %v6691 = vunpack.c.h.b16 %v6050
      %v6692 = vunpack.c.l.b16 %v6051
      %v6693 = vunpack.c.h.b16 %v6051
      %v6694 = vunpack.c.l.b16 %v6052
      %v6695 = vunpack.c.h.b16 %v6052
      %v6696 = vunpack.c.l.b16 %v6053
      %v6697 = vunpack.c.l.b16 %v6054
      %v6698 = vunpack.c.h.b16 %v6054
      %v6699 = vunpack.c.l.b16 %v6055
      %v6700 = vunpack.c.h.b16 %v6055
      %v6701 = vunpack.c.l.b16 %v6056
      %v6702 = vunpack.c.h.b16 %v6056
      %v6703 = vunpack.c.l.b16 %v6057
      %v6704 = vunpack.c.l.b16 %v6058
      %v6705 = vunpack.c.h.b16 %v6058
      %v6706 = vunpack.c.l.b16 %v6059
      %v6707 = vunpack.c.h.b16 %v6059
      %v6708 = vunpack.c.l.b16 %v6060
      %v6709 = vunpack.c.h.b16 %v6060
      %v6710 = vunpack.c.l.b16 %v6061
      %v6711 = vunpack.c.l.b16 %v6062
      %v6712 = vunpack.c.h.b16 %v6062
      %v6713 = vunpack.c.l.b16 %v6063
      %v6714 = vunpack.c.h.b16 %v6063
      %v6715 = vunpack.c.l.b16 %v6064
      %v6716 = vunpack.c.h.b16 %v6064
      %v6717 = vunpack.c.l.b16 %v6065
      %v6718 = vunpack.c.l.b16 %v6066
      %v6719 = vunpack.c.h.b16 %v6066
      %v6720 = vunpack.c.l.b16 %v6067
      %v6721 = vunpack.c.h.b16 %v6067
      %v6722 = vunpack.c.l.b16 %v6068
      %v6723 = vunpack.c.h.b16 %v6068
      %v6724 = vunpack.c.l.b16 %v6069
      %v6725 = vunpack.c.l.b16 %v6070
      %v6726 = vunpack.c.h.b16 %v6070
      %v6727 = vunpack.c.l.b16 %v6071
      %v6728 = vunpack.c.h.b16 %v6071
      %v6729 = vunpack.c.l.b16 %v6072
      %v6730 = vunpack.c.h.b16 %v6072
      %v6731 = vunpack.c.l.b16 %v6073
      %v6732 = vunpack.c.l.b16 %v6074
      %v6733 = vunpack.c.h.b16 %v6074
      %v6734 = vunpack.c.l.b16 %v6075
      %v6735 = vunpack.c.h.b16 %v6075
      %v6736 = vunpack.c.l.b16 %v6076
      %v6737 = vunpack.c.h.b16 %v6076
      %v6738 = vunpack.c.l.b16 %v6077
      %v6739 = vunpack.c.l.b16 %v6078
      %v6740 = vunpack.c.h.b16 %v6078
      %v6741 = vunpack.c.l.b16 %v6079
      %v6742 = vunpack.c.h.b16 %v6079
      %v6743 = vunpack.c.l.b16 %v6080
      %v6744 = vunpack.c.h.b16 %v6080
      %v6745 = vunpack.c.l.b16 %v6081
      %v6746 = vunpack.c.l.b16 %v6082
      %v6747 = vunpack.c.h.b16 %v6082
      %v6748 = vunpack.c.l.b16 %v6083
      %v6749 = vunpack.c.h.b16 %v6083
      %v6750 = vunpack.c.l.b16 %v6084
      %v6751 = vunpack.c.h.b16 %v6084
      %v6752 = vunpack.c.l.b16 %v6085
      %v6753 = vunpack.c.l.b16 %v6086
      %v6754 = vunpack.c.h.b16 %v6086
      %v6755 = vunpack.c.l.b16 %v6087
      %v6756 = vunpack.c.h.b16 %v6087
      %v6757 = vunpack.c.l.b16 %v6088
      %v6758 = vunpack.c.h.b16 %v6088
      %v6759 = vunpack.c.l.b16 %v6089
      %v6760 = vunpack.c.l.b16 %v6090
      %v6761 = vunpack.c.h.b16 %v6090
      %v6762 = vunpack.c.l.b16 %v6091
      %v6763 = vunpack.c.h.b16 %v6091
      %v6764 = vunpack.c.l.b16 %v6092
      %v6765 = vunpack.c.h.b16 %v6092
      %v6766 = vunpack.c.l.b16 %v6093
      %v6767 = vunpack.c.l.b16 %v6094
      %v6768 = vunpack.c.h.b16 %v6094
      %v6769 = vunpack.c.l.b16 %v6095
      %v6770 = vunpack.c.h.b16 %v6095
      %v6771 = vunpack.c.l.b16 %v6096
      %v6772 = vunpack.c.h.b16 %v6096
      %v6773 = vunpack.c.l.b16 %v6097
      %v6774 = vunpack.c.l.b16 %v6098
      %v6775 = vunpack.c.h.b16 %v6098
      %v6776 = vunpack.c.l.b16 %v6099
      %v6777 = vunpack.c.h.b16 %v6099
      %v6778 = vunpack.c.l.b16 %v6100
      %v6779 = vunpack.c.h.b16 %v6100
      %v6780 = vunpack.c.l.b16 %v6101
      %v6781 = vunpack.c.l.b16 %v6102
      %v6782 = vunpack.c.h.b16 %v6102
      %v6783 = vunpack.c.l.b16 %v6103
      %v6784 = vunpack.c.h.b16 %v6103
      %v6785 = vunpack.c.l.b16 %v6104
      %v6786 = vunpack.c.h.b16 %v6104
      %v6787 = vunpack.c.l.b16 %v6105
      %v6788 = vunpack.c.l.b16 %v6106
      %v6789 = vunpack.c.h.b16 %v6106
      %v6790 = vunpack.c.l.b16 %v6107
      %v6791 = vunpack.c.h.b16 %v6107
      %v6792 = vunpack.c.l.b16 %v6108
      %v6793 = vunpack.c.h.b16 %v6108
      %v6794 = vunpack.c.l.b16 %v6109
      %v6795 = vunpack.c.l.b16 %v6110
      %v6796 = vunpack.c.h.b16 %v6110
      %v6797 = vunpack.c.l.b16 %v6111
      %v6798 = vunpack.c.h.b16 %v6111
      %v6799 = vunpack.c.l.b16 %v6112
      %v6800 = vunpack.c.h.b16 %v6112
      %v6801 = vunpack.c.l.b16 %v6113
      %v6802 = vunpack.c.l.b16 %v6114
      %v6803 = vunpack.c.h.b16 %v6114
      %v6804 = vunpack.c.l.b16 %v6115
      %v6805 = vunpack.c.h.b16 %v6115
      %v6806 = vunpack.c.l.b16 %v6116
      %v6807 = vunpack.c.h.b16 %v6116
      %v6808 = vunpack.c.l.b16 %v6117
      %v6809 = vunpack.c.l.b16 %v6118
      %v6810 = vunpack.c.h.b16 %v6118
      %v6811 = vunpack.c.l.b16 %v6119
      %v6812 = vunpack.c.h.b16 %v6119
      %v6813 = vunpack.c.l.b16 %v6120
      %v6814 = vunpack.c.h.b16 %v6120
      %v6815 = vunpack.c.l.b16 %v6121
      %v6816 = vunpack.c.l.b16 %v6122
      %v6817 = vunpack.c.h.b16 %v6122
      %v6818 = vunpack.c.l.b16 %v6123
      %v6819 = vunpack.c.h.b16 %v6123
      %v6820 = vunpack.c.l.b16 %v6124
      %v6821 = vunpack.c.h.b16 %v6124
      %v6822 = vunpack.c.l.b16 %v6125
      %v6823 = vunpack.c.l.b16 %v6126
      %v6824 = vunpack.c.h.b16 %v6126
      %v6825 = vunpack.c.l.b16 %v6127
      %v6826 = vunpack.c.h.b16 %v6127
      %v6827 = vunpack.c.l.b16 %v6128
      %v6828 = vunpack.c.h.b16 %v6128
      %v6829 = vunpack.c.l.b16 %v6129
      %v6830 = vunpack.c.l.b16 %v6130
      %v6831 = vunpack.c.h.b16 %v6130
      %v6832 = vunpack.c.l.b16 %v6131
      %v6833 = vunpack.c.h.b16 %v6131
      %v6834 = vunpack.c.l.b16 %v6132
      %v6835 = vunpack.c.h.b16 %v6132
      %v6836 = vunpack.c.l.b16 %v6133
      %v6837 = vunpack.c.l.b16 %v6134
      %v6838 = vunpack.c.h.b16 %v6134
      %v6839 = vunpack.c.l.b16 %v6135
      %v6840 = vunpack.c.h.b16 %v6135
      %v6841 = vunpack.c.l.b16 %v6136
      %v6842 = vunpack.c.h.b16 %v6136
      %v6843 = vunpack.c.l.b16 %v6137
      %v6844 = vunpack.c.l.b16 %v6138
      %v6845 = vunpack.c.h.b16 %v6138
      %v6846 = vunpack.c.l.b16 %v6139
      %v6847 = vunpack.c.h.b16 %v6139
      %v6848 = vunpack.c.l.b16 %v6140
      %v6849 = vunpack.c.h.b16 %v6140
      %v6850 = vunpack.c.l.b16 %v6141
      %v6851 = vunpack.c.l.b16 %v6142
      %v6852 = vunpack.c.h.b16 %v6142
      %v6853 = vunpack.c.l.b16 %v6143
      %v6854 = vunpack.c.h.b16 %v6143
      %v6855 = vunpack.c.l.b16 %v6144
      %v6856 = vunpack.c.h.b16 %v6144
      %v6857 = vunpack.c.l.b16 %v6145
      %v6858 = vunpack.c.l.b16 %v6146
      %v6859 = vunpack.c.h.b16 %v6146
      %v6860 = vunpack.c.l.b16 %v6147
      %v6861 = vunpack.c.h.b16 %v6147
      %v6862 = vunpack.c.l.b16 %v6148
      %v6863 = vunpack.c.h.b16 %v6148
      %v6864 = vunpack.c.l.b16 %v6149
      %v6865 = vunpack.c.l.b16 %v6150
      %v6866 = vunpack.c.h.b16 %v6150
      %v6867 = vunpack.c.l.b16 %v6151
      %v6868 = vunpack.c.h.b16 %v6151
      %v6869 = vunpack.c.l.b16 %v6152
      %v6870 = vunpack.c.h.b16 %v6152
      %v6871 = vunpack.c.l.b16 %v6153
      %v6872 = vunpack.c.l.b16 %v6154
      %v6873 = vunpack.c.h.b16 %v6154
      %v6874 = vunpack.c.l.b16 %v6155
      %v6875 = vunpack.c.h.b16 %v6155
      %v6876 = vunpack.c.l.b16 %v6156
      %v6877 = vunpack.c.h.b16 %v6156
      %v6878 = vunpack.c.l.b16 %v6157
      %v6879 = vunpack.c.l.b16 %v6158
      %v6880 = vunpack.c.h.b16 %v6158
      %v6881 = vunpack.c.l.b16 %v6159
      %v6882 = vunpack.c.h.b16 %v6159
      %v6883 = vunpack.c.l.b16 %v6160
      %v6884 = vunpack.c.h.b16 %v6160
      %v6885 = vunpack.c.l.b16 %v6161
      %v6886 = vunpack.c.l.b16 %v6162
      %v6887 = vunpack.c.h.b16 %v6162
      %v6888 = vunpack.c.l.b16 %v6163
      %v6889 = vunpack.c.h.b16 %v6163
      %v6890 = vunpack.c.l.b16 %v6164
      %v6891 = vunpack.c.h.b16 %v6164
      %v6892 = vunpack.c.l.b16 %v6165
      %v6893 = vunpack.c.l.b16 %v6166
      %v6894 = vunpack.c.h.b16 %v6166
      %v6895 = vunpack.c.l.b16 %v6167
      %v6896 = vunpack.c.h.b16 %v6167
      %v6897 = vunpack.c.l.b16 %v6168
      %v6898 = vunpack.c.h.b16 %v6168
      %v6899 = vunpack.c.l.b16 %v6169
      %v6900 = vpack.c.b16 %v6466, %v6459
      %v6901 = vpack.c.b16 %v6467, %v6460
      %v6902 = vpack.c.b16 %v6468, %v6461
      %v6903 = vpack.c.b16 %v6469, %v6462
      %v6904 = vpack.c.b16 %v6470, %v6463
      %v6905 = vpack.c.b16 %v6471, %v6464
      %v6906 = vpack.c.b16 %v6472, %v6465
      %v6907 = vpack.c.b16 %v6480, %v6473
      %v6908 = vpack.c.b16 %v6481, %v6474
      %v6909 = vpack.c.b16 %v6482, %v6475
      %v6910 = vpack.c.b16 %v6483, %v6476
      %v6911 = vpack.c.b16 %v6484, %v6477
      %v6912 = vpack.c.b16 %v6485, %v6478
      %v6913 = vpack.c.b16 %v6486, %v6479
      %v6914 = vpack.c.b16 %v6494, %v6487
      %v6915 = vpack.c.b16 %v6495, %v6488
      %v6916 = vpack.c.b16 %v6496, %v6489
      %v6917 = vpack.c.b16 %v6497, %v6490
      %v6918 = vpack.c.b16 %v6498, %v6491
      %v6919 = vpack.c.b16 %v6499, %v6492
      %v6920 = vpack.c.b16 %v6500, %v6493
      %v6921 = vpack.c.b16 %v6508, %v6501
      %v6922 = vpack.c.b16 %v6509, %v6502
      %v6923 = vpack.c.b16 %v6510, %v6503
      %v6924 = vpack.c.b16 %v6511, %v6504
      %v6925 = vpack.c.b16 %v6512, %v6505
      %v6926 = vpack.c.b16 %v6513, %v6506
      %v6927 = vpack.c.b16 %v6514, %v6507
      %v6928 = vpack.c.b16 %v6522, %v6515
      %v6929 = vpack.c.b16 %v6523, %v6516
      %v6930 = vpack.c.b16 %v6524, %v6517
      %v6931 = vpack.c.b16 %v6525, %v6518
      %v6932 = vpack.c.b16 %v6526, %v6519
      %v6933 = vpack.c.b16 %v6527, %v6520
      %v6934 = vpack.c.b16 %v6528, %v6521
      %v6935 = vpack.c.b16 %v6536, %v6529
      %v6936 = vpack.c.b16 %v6537, %v6530
      %v6937 = vpack.c.b16 %v6538, %v6531
      %v6938 = vpack.c.b16 %v6539, %v6532
      %v6939 = vpack.c.b16 %v6540, %v6533
      %v6940 = vpack.c.b16 %v6541, %v6534
      %v6941 = vpack.c.b16 %v6542, %v6535
      %v6942 = vpack.c.b16 %v6550, %v6543
      %v6943 = vpack.c.b16 %v6551, %v6544
      %v6944 = vpack.c.b16 %v6552, %v6545
      %v6945 = vpack.c.b16 %v6553, %v6546
      %v6946 = vpack.c.b16 %v6554, %v6547
      %v6947 = vpack.c.b16 %v6555, %v6548
      %v6948 = vpack.c.b16 %v6556, %v6549
      %v6949 = vpack.c.b16 %v6564, %v6557
      %v6950 = vpack.c.b16 %v6565, %v6558
      %v6951 = vpack.c.b16 %v6566, %v6559
      %v6952 = vpack.c.b16 %v6567, %v6560
      %v6953 = vpack.c.b16 %v6568, %v6561
      %v6954 = vpack.c.b16 %v6569, %v6562
      %v6955 = vpack.c.b16 %v6570, %v6563
      %v6956 = vpack.c.b16 %v6578, %v6571
      %v6957 = vpack.c.b16 %v6579, %v6572
      %v6958 = vpack.c.b16 %v6580, %v6573
      %v6959 = vpack.c.b16 %v6581, %v6574
      %v6960 = vpack.c.b16 %v6582, %v6575
      %v6961 = vpack.c.b16 %v6583, %v6576
      %v6962 = vpack.c.b16 %v6584, %v6577
      %v6963 = vpack.c.b16 %v6592, %v6585
      %v6964 = vpack.c.b16 %v6593, %v6586
      %v6965 = vpack.c.b16 %v6594, %v6587
      %v6966 = vpack.c.b16 %v6595, %v6588
      %v6967 = vpack.c.b16 %v6596, %v6589
      %v6968 = vpack.c.b16 %v6597, %v6590
      %v6969 = vpack.c.b16 %v6598, %v6591
      %v6970 = vpack.c.b16 %v6606, %v6599
      %v6971 = vpack.c.b16 %v6607, %v6600
      %v6972 = vpack.c.b16 %v6608, %v6601
      %v6973 = vpack.c.b16 %v6609, %v6602
      %v6974 = vpack.c.b16 %v6610, %v6603
      %v6975 = vpack.c.b16 %v6611, %v6604
      %v6976 = vpack.c.b16 %v6612, %v6605
      %v6977 = vpack.c.b16 %v6620, %v6613
      %v6978 = vpack.c.b16 %v6621, %v6614
      %v6979 = vpack.c.b16 %v6622, %v6615
      %v6980 = vpack.c.b16 %v6623, %v6616
      %v6981 = vpack.c.b16 %v6624, %v6617
      %v6982 = vpack.c.b16 %v6625, %v6618
      %v6983 = vpack.c.b16 %v6626, %v6619
      %v6984 = vpack.c.b16 %v6634, %v6627
      %v6985 = vpack.c.b16 %v6635, %v6628
      %v6986 = vpack.c.b16 %v6636, %v6629
      %v6987 = vpack.c.b16 %v6637, %v6630
      %v6988 = vpack.c.b16 %v6638, %v6631
      %v6989 = vpack.c.b16 %v6639, %v6632
      %v6990 = vpack.c.b16 %v6640, %v6633
      %v6991 = vpack.c.b16 %v6648, %v6641
      %v6992 = vpack.c.b16 %v6649, %v6642
      %v6993 = vpack.c.b16 %v6650, %v6643
      %v6994 = vpack.c.b16 %v6651, %v6644
      %v6995 = vpack.c.b16 %v6652, %v6645
      %v6996 = vpack.c.b16 %v6653, %v6646
      %v6997 = vpack.c.b16 %v6654, %v6647
      %v6998 = vpack.c.b16 %v6662, %v6655
      %v6999 = vpack.c.b16 %v6663, %v6656
      %v7000 = vpack.c.b16 %v6664, %v6657
      %v7001 = vpack.c.b16 %v6665, %v6658
      %v7002 = vpack.c.b16 %v6666, %v6659
      %v7003 = vpack.c.b16 %v6667, %v6660
      %v7004 = vpack.c.b16 %v6668, %v6661
      %v7005 = vpack.c.b16 %v6676, %v6669
      %v7006 = vpack.c.b16 %v6677, %v6670
      %v7007 = vpack.c.b16 %v6678, %v6671
      %v7008 = vpack.c.b16 %v6679, %v6672
      %v7009 = vpack.c.b16 %v6680, %v6673
      %v7010 = vpack.c.b16 %v6681, %v6674
      %v7011 = vpack.c.b16 %v6682, %v6675
      %v7012 = vpack.c.b16 %v6690, %v6683
      %v7013 = vpack.c.b16 %v6691, %v6684
      %v7014 = vpack.c.b16 %v6692, %v6685
      %v7015 = vpack.c.b16 %v6693, %v6686
      %v7016 = vpack.c.b16 %v6694, %v6687
      %v7017 = vpack.c.b16 %v6695, %v6688
      %v7018 = vpack.c.b16 %v6696, %v6689
      %v7019 = vpack.c.b16 %v6704, %v6697
      %v7020 = vpack.c.b16 %v6705, %v6698
      %v7021 = vpack.c.b16 %v6706, %v6699
      %v7022 = vpack.c.b16 %v6707, %v6700
      %v7023 = vpack.c.b16 %v6708, %v6701
      %v7024 = vpack.c.b16 %v6709, %v6702
      %v7025 = vpack.c.b16 %v6710, %v6703
      %v7026 = vpack.c.b16 %v6718, %v6711
      %v7027 = vpack.c.b16 %v6719, %v6712
      %v7028 = vpack.c.b16 %v6720, %v6713
      %v7029 = vpack.c.b16 %v6721, %v6714
      %v7030 = vpack.c.b16 %v6722, %v6715
      %v7031 = vpack.c.b16 %v6723, %v6716
      %v7032 = vpack.c.b16 %v6724, %v6717
      %v7033 = vpack.c.b16 %v6732, %v6725
      %v7034 = vpack.c.b16 %v6733, %v6726
      %v7035 = vpack.c.b16 %v6734, %v6727
      %v7036 = vpack.c.b16 %v6735, %v6728
      %v7037 = vpack.c.b16 %v6736, %v6729
      %v7038 = vpack.c.b16 %v6737, %v6730
      %v7039 = vpack.c.b16 %v6738, %v6731
      %v7040 = vpack.c.b16 %v6746, %v6739
      %v7041 = vpack.c.b16 %v6747, %v6740
      %v7042 = vpack.c.b16 %v6748, %v6741
      %v7043 = vpack.c.b16 %v6749, %v6742
      %v7044 = vpack.c.b16 %v6750, %v6743
      %v7045 = vpack.c.b16 %v6751, %v6744
      %v7046 = vpack.c.b16 %v6752, %v6745
      %v7047 = vpack.c.b16 %v6760, %v6753
      %v7048 = vpack.c.b16 %v6761, %v6754
      %v7049 = vpack.c.b16 %v6762, %v6755
      %v7050 = vpack.c.b16 %v6763, %v6756
      %v7051 = vpack.c.b16 %v6764, %v6757
      %v7052 = vpack.c.b16 %v6765, %v6758
      %v7053 = vpack.c.b16 %v6766, %v6759
      %v7054 = vpack.c.b16 %v6774, %v6767
      %v7055 = vpack.c.b16 %v6775, %v6768
      %v7056 = vpack.c.b16 %v6776, %v6769
      %v7057 = vpack.c.b16 %v6777, %v6770
      %v7058 = vpack.c.b16 %v6778, %v6771
      %v7059 = vpack.c.b16 %v6779, %v6772
      %v7060 = vpack.c.b16 %v6780, %v6773
      %v7061 = vpack.c.b16 %v6788, %v6781
      %v7062 = vpack.c.b16 %v6789, %v6782
      %v7063 = vpack.c.b16 %v6790, %v6783
      %v7064 = vpack.c.b16 %v6791, %v6784
      %v7065 = vpack.c.b16 %v6792, %v6785
      %v7066 = vpack.c.b16 %v6793, %v6786
      %v7067 = vpack.c.b16 %v6794, %v6787
      %v7068 = vpack.c.b16 %v6802, %v6795
      %v7069 = vpack.c.b16 %v6803, %v6796
      %v7070 = vpack.c.b16 %v6804, %v6797
      %v7071 = vpack.c.b16 %v6805, %v6798
      %v7072 = vpack.c.b16 %v6806, %v6799
      %v7073 = vpack.c.b16 %v6807, %v6800
      %v7074 = vpack.c.b16 %v6808, %v6801
      %v7075 = vpack.c.b16 %v6816, %v6809
      %v7076 = vpack.c.b16 %v6817, %v6810
      %v7077 = vpack.c.b16 %v6818, %v6811
      %v7078 = vpack.c.b16 %v6819, %v6812
      %v7079 = vpack.c.b16 %v6820, %v6813
      %v7080 = vpack.c.b16 %v6821, %v6814
      %v7081 = vpack.c.b16 %v6822, %v6815
      %v7082 = vpack.c.b16 %v6830, %v6823
      %v7083 = vpack.c.b16 %v6831, %v6824
      %v7084 = vpack.c.b16 %v6832, %v6825
      %v7085 = vpack.c.b16 %v6833, %v6826
      %v7086 = vpack.c.b16 %v6834, %v6827
      %v7087 = vpack.c.b16 %v6835, %v6828
      %v7088 = vpack.c.b16 %v6836, %v6829
      %v7089 = vpack.c.b16 %v6844, %v6837
      %v7090 = vpack.c.b16 %v6845, %v6838
      %v7091 = vpack.c.b16 %v6846, %v6839
      %v7092 = vpack.c.b16 %v6847, %v6840
      %v7093 = vpack.c.b16 %v6848, %v6841
      %v7094 = vpack.c.b16 %v6849, %v6842
      %v7095 = vpack.c.b16 %v6850, %v6843
      %v7096 = vpack.c.b16 %v6858, %v6851
      %v7097 = vpack.c.b16 %v6859, %v6852
      %v7098 = vpack.c.b16 %v6860, %v6853
      %v7099 = vpack.c.b16 %v6861, %v6854
      %v7100 = vpack.c.b16 %v6862, %v6855
      %v7101 = vpack.c.b16 %v6863, %v6856
      %v7102 = vpack.c.b16 %v6864, %v6857
      %v7103 = vpack.c.b16 %v6872, %v6865
      %v7104 = vpack.c.b16 %v6873, %v6866
      %v7105 = vpack.c.b16 %v6874, %v6867
      %v7106 = vpack.c.b16 %v6875, %v6868
      %v7107 = vpack.c.b16 %v6876, %v6869
      %v7108 = vpack.c.b16 %v6877, %v6870
      %v7109 = vpack.c.b16 %v6878, %v6871
      %v7110 = vpack.c.b16 %v6886, %v6879
      %v7111 = vpack.c.b16 %v6887, %v6880
      %v7112 = vpack.c.b16 %v6888, %v6881
      %v7113 = vpack.c.b16 %v6889, %v6882
      %v7114 = vpack.c.b16 %v6890, %v6883
      %v7115 = vpack.c.b16 %v6891, %v6884
      %v7116 = vpack.c.b16 %v6892, %v6885
      %v7117 = vpack.c.b16 %v6893, %v6893
      %v7118 = vpack.c.b16 %v6894, %v6894
      %v7119 = vpack.c.b16 %v6895, %v6895
      %v7120 = vpack.c.b16 %v6896, %v6896
      %v7121 = vpack.c.b16 %v6897, %v6897
      %v7122 = vpack.c.b16 %v6898, %v6898
      %v7123 = vpack.c.b16 %v6899, %v6899
      %v7342 = vsel %vm4266, %v5857, 0
      %v7345 = vsel %vm4266, %v5861, 0
      %v7348 = vsel %vm4266, %v5865, 0
      %v7351 = vsel %vm4266, %v5869, 0
      %v7354 = vsel %vm4266, %v5873, 0
      %v7357 = vsel %vm4266, %v5877, 0
      %v7360 = vsel %vm4266, %v5881, 0
      %v7363 = vsel %vm4266, %v5885, 0
      %v7366 = vsel %vm4266, %v5889, 0
      %v7369 = vsel %vm4266, %v5893, 0
      %v7372 = vsel %vm4266, %v5897, 0
      %v7375 = vsel %vm4266, %v5901, 0
      %v7378 = vsel %vm4266, %v5905, 0
      %v7381 = vsel %vm4266, %v5909, 0
      %v7384 = vsel %vm4266, %v5913, 0
      %v7387 = vsel %vm4266, %v5917, 0
      %v7390 = vsel %vm4315, %v7117, 0
      %v7393 = vsel %vm4315, %v7118, 0
      %v7396 = vsel %vm4315, %v7119, 0
      %v7399 = vsel %vm4315, %v7120, 0
      %v7402 = vsel %vm4315, %v7121, 0
      %v7405 = vsel %vm4315, %v7122, 0
      %v7408 = vsel %vm4315, %v7123, 0
      %7410 = vmatprep.subr.bf16.mxu0 %v6950
      %7411 = vmatpush1.bf16.msra.mxu0 %v6949
      %7412 = vmatprep.subr.bf16.mxu0 %v6943
      %7413 = vmatpush1.bf16.msra.mxu0 %v6942
      %7414 = vmatprep.subr.bf16.mxu0 %v6936
      %7415 = vmatpush1.bf16.msra.mxu0 %v6935
      %7416 = vmatprep.subr.bf16.mxu0 %v6929
      %7417 = vmatpush1.bf16.msra.mxu0 %v6928
      %7418 = vmatprep.subr.bf16.mxu0 %v6922
      %7419 = vmatpush1.bf16.msra.mxu0 %v6921
      %7420 = vmatprep.subr.bf16.mxu0 %v6915
      %7421 = vmatpush1.bf16.msra.mxu0 %v6914
      %7422 = vmatprep.subr.bf16.mxu0 %v6908
      %7423 = vmatpush1.bf16.msra.mxu0 %v6907
      %7424 = vmatprep.subr.bf16.mxu0 %v6901
      %7425 = vmatpush1.bf16.msra.mxu0 %v6900
      %7426 = vmatprep.subr.bf16.mxu0 %v7006
      %7427 = vmatpush2.bf16.msra.mxu0 %v7005
      %7428 = vmatprep.subr.bf16.mxu0 %v6999
      %7429 = vmatpush2.bf16.msra.mxu0 %v6998
      %7430 = vmatprep.subr.bf16.mxu0 %v6992
      %7431 = vmatpush2.bf16.msra.mxu0 %v6991
      %7432 = vmatprep.subr.bf16.mxu0 %v6985
      %7433 = vmatpush2.bf16.msra.mxu0 %v6984
      %7434 = vmatprep.subr.bf16.mxu0 %v6978
      %7435 = vmatpush2.bf16.msra.mxu0 %v6977
      %7436 = vmatprep.subr.bf16.mxu0 %v6971
      %7437 = vmatpush2.bf16.msra.mxu0 %v6970
      %7438 = vmatprep.subr.bf16.mxu0 %v6964
      %7439 = vmatpush2.bf16.msra.mxu0 %v6963
      %7440 = vmatprep.subr.bf16.mxu0 %v6957
      %7441 = vmatpush2.bf16.msra.mxu0 %v6956
      %7442 = vmatprep.mubr.bf16.mxu0 %v5855
      %7443 = vmatmul.mubr.bf16.gmra.mxu0 %v5854
      %v7444 = vpop.f32.mrf.mxu0
      %v7445 = vadd.f32 %v6175, %v7444
      %v7446 = vpop.f32.mrf.mxu0
      %v7447 = vadd.f32 %v6179, %v7446
      %v7448 = vpop.f32.mrf.mxu0
      %v7449 = vadd.f32 %v6175, %v7448
      %v7450 = vpop.f32.mrf.mxu0
      %v7451 = vadd.f32 %v6179, %v7450
      %7452 = vmatprep.mubr.bf16.mxu0 %v5859
      %7453 = vmatmul.mubr.bf16.gmra.mxu0 %v5858
      %v7454 = vpop.f32.mrf.mxu0
      %v7455 = vadd.f32 %v6175, %v7454
      %v7456 = vpop.f32.mrf.mxu0
      %v7457 = vadd.f32 %v6179, %v7456
      %v7458 = vpop.f32.mrf.mxu0
      %v7459 = vadd.f32 %v6175, %v7458
      %v7460 = vpop.f32.mrf.mxu0
      %v7461 = vadd.f32 %v6179, %v7460
      %7462 = vmatprep.mubr.bf16.mxu0 %v5863
      %7463 = vmatmul.mubr.bf16.gmra.mxu0 %v5862
      %v7464 = vpop.f32.mrf.mxu0
      %v7465 = vadd.f32 %v6175, %v7464
      %v7466 = vpop.f32.mrf.mxu0
      %v7467 = vadd.f32 %v6179, %v7466
      %v7468 = vpop.f32.mrf.mxu0
      %v7469 = vadd.f32 %v6175, %v7468
      %v7470 = vpop.f32.mrf.mxu0
      %v7471 = vadd.f32 %v6179, %v7470
      %7472 = vmatprep.mubr.bf16.mxu0 %v5867
      %7473 = vmatmul.mubr.bf16.gmra.mxu0 %v5866
      %v7474 = vpop.f32.mrf.mxu0
      %v7475 = vadd.f32 %v6175, %v7474
      %v7476 = vpop.f32.mrf.mxu0
      %v7477 = vadd.f32 %v6179, %v7476
      %v7478 = vpop.f32.mrf.mxu0
      %v7479 = vadd.f32 %v6175, %v7478
      %v7480 = vpop.f32.mrf.mxu0
      %v7481 = vadd.f32 %v6179, %v7480
      %7482 = vmatprep.mubr.bf16.mxu0 %v5871
      %7483 = vmatmul.mubr.bf16.gmra.mxu0 %v5870
      %v7484 = vpop.f32.mrf.mxu0
      %v7485 = vadd.f32 %v6175, %v7484
      %v7486 = vpop.f32.mrf.mxu0
      %v7487 = vadd.f32 %v6179, %v7486
      %v7488 = vpop.f32.mrf.mxu0
      %v7489 = vadd.f32 %v6175, %v7488
      %v7490 = vpop.f32.mrf.mxu0
      %v7491 = vadd.f32 %v6179, %v7490
      %7492 = vmatprep.mubr.bf16.mxu0 %v5875
      %7493 = vmatmul.mubr.bf16.gmra.mxu0 %v5874
      %v7494 = vpop.f32.mrf.mxu0
      %v7495 = vadd.f32 %v6175, %v7494
      %v7496 = vpop.f32.mrf.mxu0
      %v7497 = vadd.f32 %v6179, %v7496
      %v7498 = vpop.f32.mrf.mxu0
      %v7499 = vadd.f32 %v6175, %v7498
      %v7500 = vpop.f32.mrf.mxu0
      %v7501 = vadd.f32 %v6179, %v7500
      %7502 = vmatprep.mubr.bf16.mxu0 %v5879
      %7503 = vmatmul.mubr.bf16.gmra.mxu0 %v5878
      %v7504 = vpop.f32.mrf.mxu0
      %v7505 = vadd.f32 %v6175, %v7504
      %v7506 = vpop.f32.mrf.mxu0
      %v7507 = vadd.f32 %v6179, %v7506
      %v7508 = vpop.f32.mrf.mxu0
      %v7509 = vadd.f32 %v6175, %v7508
      %v7510 = vpop.f32.mrf.mxu0
      %v7511 = vadd.f32 %v6179, %v7510
      %7512 = vmatprep.mubr.bf16.mxu0 %v5883
      %7513 = vmatmul.mubr.bf16.gmra.mxu0 %v5882
      %v7514 = vpop.f32.mrf.mxu0
      %v7515 = vadd.f32 %v6175, %v7514
      %v7516 = vpop.f32.mrf.mxu0
      %v7517 = vadd.f32 %v6179, %v7516
      %v7518 = vpop.f32.mrf.mxu0
      %v7519 = vadd.f32 %v6175, %v7518
      %v7520 = vpop.f32.mrf.mxu0
      %v7521 = vadd.f32 %v6179, %v7520
      %7522 = vmatprep.mubr.bf16.mxu0 %v5887
      %7523 = vmatmul.mubr.bf16.gmra.mxu0 %v5886
      %v7524 = vpop.f32.mrf.mxu0
      %v7525 = vadd.f32 %v6175, %v7524
      %v7526 = vpop.f32.mrf.mxu0
      %v7527 = vadd.f32 %v6179, %v7526
      %v7528 = vpop.f32.mrf.mxu0
      %v7529 = vadd.f32 %v6175, %v7528
      %v7530 = vpop.f32.mrf.mxu0
      %v7531 = vadd.f32 %v6179, %v7530
      %7532 = vmatprep.mubr.bf16.mxu0 %v5891
      %7533 = vmatmul.mubr.bf16.gmra.mxu0 %v5890
      %v7534 = vpop.f32.mrf.mxu0
      %v7535 = vadd.f32 %v6175, %v7534
      %v7536 = vpop.f32.mrf.mxu0
      %v7537 = vadd.f32 %v6179, %v7536
      %v7538 = vpop.f32.mrf.mxu0
      %v7539 = vadd.f32 %v6175, %v7538
      %v7540 = vpop.f32.mrf.mxu0
      %v7541 = vadd.f32 %v6179, %v7540
      %7542 = vmatprep.mubr.bf16.mxu0 %v5895
      %7543 = vmatmul.mubr.bf16.gmra.mxu0 %v5894
      %v7544 = vpop.f32.mrf.mxu0
      %v7545 = vadd.f32 %v6175, %v7544
      %v7546 = vpop.f32.mrf.mxu0
      %v7547 = vadd.f32 %v6179, %v7546
      %v7548 = vpop.f32.mrf.mxu0
      %v7549 = vadd.f32 %v6175, %v7548
      %v7550 = vpop.f32.mrf.mxu0
      %v7551 = vadd.f32 %v6179, %v7550
      %7552 = vmatprep.mubr.bf16.mxu0 %v5899
      %7553 = vmatmul.mubr.bf16.gmra.mxu0 %v5898
      %v7554 = vpop.f32.mrf.mxu0
      %v7555 = vadd.f32 %v6175, %v7554
      %v7556 = vpop.f32.mrf.mxu0
      %v7557 = vadd.f32 %v6179, %v7556
      %v7558 = vpop.f32.mrf.mxu0
      %v7559 = vadd.f32 %v6175, %v7558
      %v7560 = vpop.f32.mrf.mxu0
      %v7561 = vadd.f32 %v6179, %v7560
      %7562 = vmatprep.mubr.bf16.mxu0 %v5903
      %7563 = vmatmul.mubr.bf16.gmra.mxu0 %v5902
      %v7564 = vpop.f32.mrf.mxu0
      %v7565 = vadd.f32 %v6175, %v7564
      %v7566 = vpop.f32.mrf.mxu0
      %v7567 = vadd.f32 %v6179, %v7566
      %v7568 = vpop.f32.mrf.mxu0
      %v7569 = vadd.f32 %v6175, %v7568
      %v7570 = vpop.f32.mrf.mxu0
      %v7571 = vadd.f32 %v6179, %v7570
      %7572 = vmatprep.mubr.bf16.mxu0 %v5907
      %7573 = vmatmul.mubr.bf16.gmra.mxu0 %v5906
      %v7574 = vpop.f32.mrf.mxu0
      %v7575 = vadd.f32 %v6175, %v7574
      %v7576 = vpop.f32.mrf.mxu0
      %v7577 = vadd.f32 %v6179, %v7576
      %v7578 = vpop.f32.mrf.mxu0
      %v7579 = vadd.f32 %v6175, %v7578
      %v7580 = vpop.f32.mrf.mxu0
      %v7581 = vadd.f32 %v6179, %v7580
      %7582 = vmatprep.mubr.bf16.mxu0 %v5911
      %7583 = vmatmul.mubr.bf16.gmra.mxu0 %v5910
      %v7584 = vpop.f32.mrf.mxu0
      %v7585 = vadd.f32 %v6175, %v7584
      %v7586 = vpop.f32.mrf.mxu0
      %v7587 = vadd.f32 %v6179, %v7586
      %v7588 = vpop.f32.mrf.mxu0
      %v7589 = vadd.f32 %v6175, %v7588
      %v7590 = vpop.f32.mrf.mxu0
      %v7591 = vadd.f32 %v6179, %v7590
      %7592 = vmatprep.mubr.bf16.mxu0 %v5915
      %7593 = vmatmul.mubr.bf16.gmra.mxu0 %v5914
      %v7594 = vpop.f32.mrf.mxu0
      %v7595 = vadd.f32 %v6175, %v7594
      %v7596 = vpop.f32.mrf.mxu0
      %v7597 = vadd.f32 %v6179, %v7596
      %v7598 = vpop.f32.mrf.mxu0
      %v7599 = vadd.f32 %v6175, %v7598
      %v7600 = vpop.f32.mrf.mxu0
      %v7601 = vadd.f32 %v6179, %v7600
      %7602 = vdwg.mxu0
      %7603 = vmatprep.subr.bf16.mxu0 %v7062
      %7604 = vmatpush1.bf16.msra.mxu0 %v7061
      %7605 = vmatprep.subr.bf16.mxu0 %v7055
      %7606 = vmatpush1.bf16.msra.mxu0 %v7054
      %7607 = vmatprep.subr.bf16.mxu0 %v7048
      %7608 = vmatpush1.bf16.msra.mxu0 %v7047
      %7609 = vmatprep.subr.bf16.mxu0 %v7041
      %7610 = vmatpush1.bf16.msra.mxu0 %v7040
      %7611 = vmatprep.subr.bf16.mxu0 %v7034
      %7612 = vmatpush1.bf16.msra.mxu0 %v7033
      %7613 = vmatprep.subr.bf16.mxu0 %v7027
      %7614 = vmatpush1.bf16.msra.mxu0 %v7026
      %7615 = vmatprep.subr.bf16.mxu0 %v7020
      %7616 = vmatpush1.bf16.msra.mxu0 %v7019
      %7617 = vmatprep.subr.bf16.mxu0 %v7013
      %7618 = vmatpush1.bf16.msra.mxu0 %v7012
      %7619 = vmatprep.subr.bf16.mxu0 %v7393
      %7620 = vmatpush2.bf16.msra.mxu0 %v7390
      %7621 = vmatprep.subr.bf16.mxu0 %v7111
      %7622 = vmatpush2.bf16.msra.mxu0 %v7110
      %7623 = vmatprep.subr.bf16.mxu0 %v7104
      %7624 = vmatpush2.bf16.msra.mxu0 %v7103
      %7625 = vmatprep.subr.bf16.mxu0 %v7097
      %7626 = vmatpush2.bf16.msra.mxu0 %v7096
      %7627 = vmatprep.subr.bf16.mxu0 %v7090
      %7628 = vmatpush2.bf16.msra.mxu0 %v7089
      %7629 = vmatprep.subr.bf16.mxu0 %v7083
      %7630 = vmatpush2.bf16.msra.mxu0 %v7082
      %7631 = vmatprep.subr.bf16.mxu0 %v7076
      %7632 = vmatpush2.bf16.msra.mxu0 %v7075
      %7633 = vmatprep.subr.bf16.mxu0 %v7069
      %7634 = vmatpush2.bf16.msra.mxu0 %v7068
      %7635 = vmatprep.mubr.bf16.mxu0 %v7342
      %7636 = vmatmul.mubr.bf16.gmra.mxu0 %v5856
      %v7637 = vpop.f32.mrf.mxu0
      %v7638 = vadd.f32 %v7445, %v7637
      %v7639 = vpop.f32.mrf.mxu0
      %v7640 = vadd.f32 %v7447, %v7639
      %v7641 = vpop.f32.mrf.mxu0
      %v7642 = vadd.f32 %v7449, %v7641
      %v7643 = vpop.f32.mrf.mxu0
      %v7644 = vadd.f32 %v7451, %v7643
      %7645 = vmatprep.mubr.bf16.mxu0 %v7345
      %7646 = vmatmul.mubr.bf16.gmra.mxu0 %v5860
      %v7647 = vpop.f32.mrf.mxu0
      %v7648 = vadd.f32 %v7455, %v7647
      %v7649 = vpop.f32.mrf.mxu0
      %v7650 = vadd.f32 %v7457, %v7649
      %v7651 = vpop.f32.mrf.mxu0
      %v7652 = vadd.f32 %v7459, %v7651
      %v7653 = vpop.f32.mrf.mxu0
      %v7654 = vadd.f32 %v7461, %v7653
      %7655 = vmatprep.mubr.bf16.mxu0 %v7348
      %7656 = vmatmul.mubr.bf16.gmra.mxu0 %v5864
      %v7657 = vpop.f32.mrf.mxu0
      %v7658 = vadd.f32 %v7465, %v7657
      %v7659 = vpop.f32.mrf.mxu0
      %v7660 = vadd.f32 %v7467, %v7659
      %v7661 = vpop.f32.mrf.mxu0
      %v7662 = vadd.f32 %v7469, %v7661
      %v7663 = vpop.f32.mrf.mxu0
      %v7664 = vadd.f32 %v7471, %v7663
      %7665 = vmatprep.mubr.bf16.mxu0 %v7351
      %7666 = vmatmul.mubr.bf16.gmra.mxu0 %v5868
      %v7667 = vpop.f32.mrf.mxu0
      %v7668 = vadd.f32 %v7475, %v7667
      %v7669 = vpop.f32.mrf.mxu0
      %v7670 = vadd.f32 %v7477, %v7669
      %v7671 = vpop.f32.mrf.mxu0
      %v7672 = vadd.f32 %v7479, %v7671
      %v7673 = vpop.f32.mrf.mxu0
      %v7674 = vadd.f32 %v7481, %v7673
      %7675 = vmatprep.mubr.bf16.mxu0 %v7354
      %7676 = vmatmul.mubr.bf16.gmra.mxu0 %v5872
      %v7677 = vpop.f32.mrf.mxu0
      %v7678 = vadd.f32 %v7485, %v7677
      %v7679 = vpop.f32.mrf.mxu0
      %v7680 = vadd.f32 %v7487, %v7679
      %v7681 = vpop.f32.mrf.mxu0
      %v7682 = vadd.f32 %v7489, %v7681
      %v7683 = vpop.f32.mrf.mxu0
      %v7684 = vadd.f32 %v7491, %v7683
      %7685 = vmatprep.mubr.bf16.mxu0 %v7357
      %7686 = vmatmul.mubr.bf16.gmra.mxu0 %v5876
      %v7687 = vpop.f32.mrf.mxu0
      %v7688 = vadd.f32 %v7495, %v7687
      %v7689 = vpop.f32.mrf.mxu0
      %v7690 = vadd.f32 %v7497, %v7689
      %v7691 = vpop.f32.mrf.mxu0
      %v7692 = vadd.f32 %v7499, %v7691
      %v7693 = vpop.f32.mrf.mxu0
      %v7694 = vadd.f32 %v7501, %v7693
      %7695 = vmatprep.mubr.bf16.mxu0 %v7360
      %7696 = vmatmul.mubr.bf16.gmra.mxu0 %v5880
      %v7697 = vpop.f32.mrf.mxu0
      %v7698 = vadd.f32 %v7505, %v7697
      %v7699 = vpop.f32.mrf.mxu0
      %v7700 = vadd.f32 %v7507, %v7699
      %v7701 = vpop.f32.mrf.mxu0
      %v7702 = vadd.f32 %v7509, %v7701
      %v7703 = vpop.f32.mrf.mxu0
      %v7704 = vadd.f32 %v7511, %v7703
      %7705 = vmatprep.mubr.bf16.mxu0 %v7363
      %7706 = vmatmul.mubr.bf16.gmra.mxu0 %v5884
      %v7707 = vpop.f32.mrf.mxu0
      %v7708 = vadd.f32 %v7515, %v7707
      %v7709 = vpop.f32.mrf.mxu0
      %v7710 = vadd.f32 %v7517, %v7709
      %v7711 = vpop.f32.mrf.mxu0
      %v7712 = vadd.f32 %v7519, %v7711
      %v7713 = vpop.f32.mrf.mxu0
      %v7714 = vadd.f32 %v7521, %v7713
      %7715 = vmatprep.mubr.bf16.mxu0 %v7366
      %7716 = vmatmul.mubr.bf16.gmra.mxu0 %v5888
      %v7717 = vpop.f32.mrf.mxu0
      %v7718 = vadd.f32 %v7525, %v7717
      %v7719 = vpop.f32.mrf.mxu0
      %v7720 = vadd.f32 %v7527, %v7719
      %v7721 = vpop.f32.mrf.mxu0
      %v7722 = vadd.f32 %v7529, %v7721
      %v7723 = vpop.f32.mrf.mxu0
      %v7724 = vadd.f32 %v7531, %v7723
      %7725 = vmatprep.mubr.bf16.mxu0 %v7369
      %7726 = vmatmul.mubr.bf16.gmra.mxu0 %v5892
      %v7727 = vpop.f32.mrf.mxu0
      %v7728 = vadd.f32 %v7535, %v7727
      %v7729 = vpop.f32.mrf.mxu0
      %v7730 = vadd.f32 %v7537, %v7729
      %v7731 = vpop.f32.mrf.mxu0
      %v7732 = vadd.f32 %v7539, %v7731
      %v7733 = vpop.f32.mrf.mxu0
      %v7734 = vadd.f32 %v7541, %v7733
      %7735 = vmatprep.mubr.bf16.mxu0 %v7372
      %7736 = vmatmul.mubr.bf16.gmra.mxu0 %v5896
      %v7737 = vpop.f32.mrf.mxu0
      %v7738 = vadd.f32 %v7545, %v7737
      %v7739 = vpop.f32.mrf.mxu0
      %v7740 = vadd.f32 %v7547, %v7739
      %v7741 = vpop.f32.mrf.mxu0
      %v7742 = vadd.f32 %v7549, %v7741
      %v7743 = vpop.f32.mrf.mxu0
      %v7744 = vadd.f32 %v7551, %v7743
      %7745 = vmatprep.mubr.bf16.mxu0 %v7375
      %7746 = vmatmul.mubr.bf16.gmra.mxu0 %v5900
      %v7747 = vpop.f32.mrf.mxu0
      %v7748 = vadd.f32 %v7555, %v7747
      %v7749 = vpop.f32.mrf.mxu0
      %v7750 = vadd.f32 %v7557, %v7749
      %v7751 = vpop.f32.mrf.mxu0
      %v7752 = vadd.f32 %v7559, %v7751
      %v7753 = vpop.f32.mrf.mxu0
      %v7754 = vadd.f32 %v7561, %v7753
      %7755 = vmatprep.mubr.bf16.mxu0 %v7378
      %7756 = vmatmul.mubr.bf16.gmra.mxu0 %v5904
      %v7757 = vpop.f32.mrf.mxu0
      %v7758 = vadd.f32 %v7565, %v7757
      %v7759 = vpop.f32.mrf.mxu0
      %v7760 = vadd.f32 %v7567, %v7759
      %v7761 = vpop.f32.mrf.mxu0
      %v7762 = vadd.f32 %v7569, %v7761
      %v7763 = vpop.f32.mrf.mxu0
      %v7764 = vadd.f32 %v7571, %v7763
      %7765 = vmatprep.mubr.bf16.mxu0 %v7381
      %7766 = vmatmul.mubr.bf16.gmra.mxu0 %v5908
      %v7767 = vpop.f32.mrf.mxu0
      %v7768 = vadd.f32 %v7575, %v7767
      %v7769 = vpop.f32.mrf.mxu0
      %v7770 = vadd.f32 %v7577, %v7769
      %v7771 = vpop.f32.mrf.mxu0
      %v7772 = vadd.f32 %v7579, %v7771
      %v7773 = vpop.f32.mrf.mxu0
      %v7774 = vadd.f32 %v7581, %v7773
      %7775 = vmatprep.mubr.bf16.mxu0 %v7384
      %7776 = vmatmul.mubr.bf16.gmra.mxu0 %v5912
      %v7777 = vpop.f32.mrf.mxu0
      %v7778 = vadd.f32 %v7585, %v7777
      %v7779 = vpop.f32.mrf.mxu0
      %v7780 = vadd.f32 %v7587, %v7779
      %v7781 = vpop.f32.mrf.mxu0
      %v7782 = vadd.f32 %v7589, %v7781
      %v7783 = vpop.f32.mrf.mxu0
      %v7784 = vadd.f32 %v7591, %v7783
      %7785 = vmatprep.mubr.bf16.mxu0 %v7387
      %7786 = vmatmul.mubr.bf16.gmra.mxu0 %v5916
      %v7787 = vpop.f32.mrf.mxu0
      %v7788 = vadd.f32 %v7595, %v7787
      %v7789 = vpop.f32.mrf.mxu0
      %v7790 = vadd.f32 %v7597, %v7789
      %v7791 = vpop.f32.mrf.mxu0
      %v7792 = vadd.f32 %v7599, %v7791
      %v7793 = vpop.f32.mrf.mxu0
      %v7794 = vadd.f32 %v7601, %v7793
      %7795 = vdwg.mxu0
      %7796 = vmatprep.subr.bf16.mxu0 %v6952
      %7797 = vmatpush1.bf16.msra.mxu0 %v6951
      %7798 = vmatprep.subr.bf16.mxu0 %v6945
      %7799 = vmatpush1.bf16.msra.mxu0 %v6944
      %7800 = vmatprep.subr.bf16.mxu0 %v6938
      %7801 = vmatpush1.bf16.msra.mxu0 %v6937
      %7802 = vmatprep.subr.bf16.mxu0 %v6931
      %7803 = vmatpush1.bf16.msra.mxu0 %v6930
      %7804 = vmatprep.subr.bf16.mxu0 %v6924
      %7805 = vmatpush1.bf16.msra.mxu0 %v6923
      %7806 = vmatprep.subr.bf16.mxu0 %v6917
      %7807 = vmatpush1.bf16.msra.mxu0 %v6916
      %7808 = vmatprep.subr.bf16.mxu0 %v6910
      %7809 = vmatpush1.bf16.msra.mxu0 %v6909
      %7810 = vmatprep.subr.bf16.mxu0 %v6903
      %7811 = vmatpush1.bf16.msra.mxu0 %v6902
      %7812 = vmatprep.subr.bf16.mxu0 %v7008
      %7813 = vmatpush2.bf16.msra.mxu0 %v7007
      %7814 = vmatprep.subr.bf16.mxu0 %v7001
      %7815 = vmatpush2.bf16.msra.mxu0 %v7000
      %7816 = vmatprep.subr.bf16.mxu0 %v6994
      %7817 = vmatpush2.bf16.msra.mxu0 %v6993
      %7818 = vmatprep.subr.bf16.mxu0 %v6987
      %7819 = vmatpush2.bf16.msra.mxu0 %v6986
      %7820 = vmatprep.subr.bf16.mxu0 %v6980
      %7821 = vmatpush2.bf16.msra.mxu0 %v6979
      %7822 = vmatprep.subr.bf16.mxu0 %v6973
      %7823 = vmatpush2.bf16.msra.mxu0 %v6972
      %7824 = vmatprep.subr.bf16.mxu0 %v6966
      %7825 = vmatpush2.bf16.msra.mxu0 %v6965
      %7826 = vmatprep.subr.bf16.mxu0 %v6959
      %7827 = vmatpush2.bf16.msra.mxu0 %v6958
      %7828 = vmatprep.mubr.bf16.mxu0 %v5855
      %7829 = vmatmul.mubr.bf16.gmra.mxu0 %v5854
      %v7830 = vpop.f32.mrf.mxu0
      %v7831 = vadd.f32 %v6183, %v7830
      %v7832 = vpop.f32.mrf.mxu0
      %v7833 = vadd.f32 %v6187, %v7832
      %v7834 = vpop.f32.mrf.mxu0
      %v7835 = vadd.f32 %v6183, %v7834
      %v7836 = vpop.f32.mrf.mxu0
      %v7837 = vadd.f32 %v6187, %v7836
      %7838 = vmatprep.mubr.bf16.mxu0 %v5859
      %7839 = vmatmul.mubr.bf16.gmra.mxu0 %v5858
      %v7840 = vpop.f32.mrf.mxu0
      %v7841 = vadd.f32 %v6183, %v7840
      %v7842 = vpop.f32.mrf.mxu0
      %v7843 = vadd.f32 %v6187, %v7842
      %v7844 = vpop.f32.mrf.mxu0
      %v7845 = vadd.f32 %v6183, %v7844
      %v7846 = vpop.f32.mrf.mxu0
      %v7847 = vadd.f32 %v6187, %v7846
      %7848 = vmatprep.mubr.bf16.mxu0 %v5863
      %7849 = vmatmul.mubr.bf16.gmra.mxu0 %v5862
      %v7850 = vpop.f32.mrf.mxu0
      %v7851 = vadd.f32 %v6183, %v7850
      %v7852 = vpop.f32.mrf.mxu0
      %v7853 = vadd.f32 %v6187, %v7852
      %v7854 = vpop.f32.mrf.mxu0
      %v7855 = vadd.f32 %v6183, %v7854
      %v7856 = vpop.f32.mrf.mxu0
      %v7857 = vadd.f32 %v6187, %v7856
      %7858 = vmatprep.mubr.bf16.mxu0 %v5867
      %7859 = vmatmul.mubr.bf16.gmra.mxu0 %v5866
      %v7860 = vpop.f32.mrf.mxu0
      %v7861 = vadd.f32 %v6183, %v7860
      %v7862 = vpop.f32.mrf.mxu0
      %v7863 = vadd.f32 %v6187, %v7862
      %v7864 = vpop.f32.mrf.mxu0
      %v7865 = vadd.f32 %v6183, %v7864
      %v7866 = vpop.f32.mrf.mxu0
      %v7867 = vadd.f32 %v6187, %v7866
      %7868 = vmatprep.mubr.bf16.mxu0 %v5871
      %7869 = vmatmul.mubr.bf16.gmra.mxu0 %v5870
      %v7870 = vpop.f32.mrf.mxu0
      %v7871 = vadd.f32 %v6183, %v7870
      %v7872 = vpop.f32.mrf.mxu0
      %v7873 = vadd.f32 %v6187, %v7872
      %v7874 = vpop.f32.mrf.mxu0
      %v7875 = vadd.f32 %v6183, %v7874
      %v7876 = vpop.f32.mrf.mxu0
      %v7877 = vadd.f32 %v6187, %v7876
      %7878 = vmatprep.mubr.bf16.mxu0 %v5875
      %7879 = vmatmul.mubr.bf16.gmra.mxu0 %v5874
      %v7880 = vpop.f32.mrf.mxu0
      %v7881 = vadd.f32 %v6183, %v7880
      %v7882 = vpop.f32.mrf.mxu0
      %v7883 = vadd.f32 %v6187, %v7882
      %v7884 = vpop.f32.mrf.mxu0
      %v7885 = vadd.f32 %v6183, %v7884
      %v7886 = vpop.f32.mrf.mxu0
      %v7887 = vadd.f32 %v6187, %v7886
      %7888 = vmatprep.mubr.bf16.mxu0 %v5879
      %7889 = vmatmul.mubr.bf16.gmra.mxu0 %v5878
      %v7890 = vpop.f32.mrf.mxu0
      %v7891 = vadd.f32 %v6183, %v7890
      %v7892 = vpop.f32.mrf.mxu0
      %v7893 = vadd.f32 %v6187, %v7892
      %v7894 = vpop.f32.mrf.mxu0
      %v7895 = vadd.f32 %v6183, %v7894
      %v7896 = vpop.f32.mrf.mxu0
      %v7897 = vadd.f32 %v6187, %v7896
      %7898 = vmatprep.mubr.bf16.mxu0 %v5883
      %7899 = vmatmul.mubr.bf16.gmra.mxu0 %v5882
      %v7900 = vpop.f32.mrf.mxu0
      %v7901 = vadd.f32 %v6183, %v7900
      %v7902 = vpop.f32.mrf.mxu0
      %v7903 = vadd.f32 %v6187, %v7902
      %v7904 = vpop.f32.mrf.mxu0
      %v7905 = vadd.f32 %v6183, %v7904
      %v7906 = vpop.f32.mrf.mxu0
      %v7907 = vadd.f32 %v6187, %v7906
      %7908 = vmatprep.mubr.bf16.mxu0 %v5887
      %7909 = vmatmul.mubr.bf16.gmra.mxu0 %v5886
      %v7910 = vpop.f32.mrf.mxu0
      %v7911 = vadd.f32 %v6183, %v7910
      %v7912 = vpop.f32.mrf.mxu0
      %v7913 = vadd.f32 %v6187, %v7912
      %v7914 = vpop.f32.mrf.mxu0
      %v7915 = vadd.f32 %v6183, %v7914
      %v7916 = vpop.f32.mrf.mxu0
      %v7917 = vadd.f32 %v6187, %v7916
      %7918 = vmatprep.mubr.bf16.mxu0 %v5891
      %7919 = vmatmul.mubr.bf16.gmra.mxu0 %v5890
      %v7920 = vpop.f32.mrf.mxu0
      %v7921 = vadd.f32 %v6183, %v7920
      %v7922 = vpop.f32.mrf.mxu0
      %v7923 = vadd.f32 %v6187, %v7922
      %v7924 = vpop.f32.mrf.mxu0
      %v7925 = vadd.f32 %v6183, %v7924
      %v7926 = vpop.f32.mrf.mxu0
      %v7927 = vadd.f32 %v6187, %v7926
      %7928 = vmatprep.mubr.bf16.mxu0 %v5895
      %7929 = vmatmul.mubr.bf16.gmra.mxu0 %v5894
      %v7930 = vpop.f32.mrf.mxu0
      %v7931 = vadd.f32 %v6183, %v7930
      %v7932 = vpop.f32.mrf.mxu0
      %v7933 = vadd.f32 %v6187, %v7932
      %v7934 = vpop.f32.mrf.mxu0
      %v7935 = vadd.f32 %v6183, %v7934
      %v7936 = vpop.f32.mrf.mxu0
      %v7937 = vadd.f32 %v6187, %v7936
      %7938 = vmatprep.mubr.bf16.mxu0 %v5899
      %7939 = vmatmul.mubr.bf16.gmra.mxu0 %v5898
      %v7940 = vpop.f32.mrf.mxu0
      %v7941 = vadd.f32 %v6183, %v7940
      %v7942 = vpop.f32.mrf.mxu0
      %v7943 = vadd.f32 %v6187, %v7942
      %v7944 = vpop.f32.mrf.mxu0
      %v7945 = vadd.f32 %v6183, %v7944
      %v7946 = vpop.f32.mrf.mxu0
      %v7947 = vadd.f32 %v6187, %v7946
      %7948 = vmatprep.mubr.bf16.mxu0 %v5903
      %7949 = vmatmul.mubr.bf16.gmra.mxu0 %v5902
      %v7950 = vpop.f32.mrf.mxu0
      %v7951 = vadd.f32 %v6183, %v7950
      %v7952 = vpop.f32.mrf.mxu0
      %v7953 = vadd.f32 %v6187, %v7952
      %v7954 = vpop.f32.mrf.mxu0
      %v7955 = vadd.f32 %v6183, %v7954
      %v7956 = vpop.f32.mrf.mxu0
      %v7957 = vadd.f32 %v6187, %v7956
      %7958 = vmatprep.mubr.bf16.mxu0 %v5907
      %7959 = vmatmul.mubr.bf16.gmra.mxu0 %v5906
      %v7960 = vpop.f32.mrf.mxu0
      %v7961 = vadd.f32 %v6183, %v7960
      %v7962 = vpop.f32.mrf.mxu0
      %v7963 = vadd.f32 %v6187, %v7962
      %v7964 = vpop.f32.mrf.mxu0
      %v7965 = vadd.f32 %v6183, %v7964
      %v7966 = vpop.f32.mrf.mxu0
      %v7967 = vadd.f32 %v6187, %v7966
      %7968 = vmatprep.mubr.bf16.mxu0 %v5911
      %7969 = vmatmul.mubr.bf16.gmra.mxu0 %v5910
      %v7970 = vpop.f32.mrf.mxu0
      %v7971 = vadd.f32 %v6183, %v7970
      %v7972 = vpop.f32.mrf.mxu0
      %v7973 = vadd.f32 %v6187, %v7972
      %v7974 = vpop.f32.mrf.mxu0
      %v7975 = vadd.f32 %v6183, %v7974
      %v7976 = vpop.f32.mrf.mxu0
      %v7977 = vadd.f32 %v6187, %v7976
      %7978 = vmatprep.mubr.bf16.mxu0 %v5915
      %7979 = vmatmul.mubr.bf16.gmra.mxu0 %v5914
      %v7980 = vpop.f32.mrf.mxu0
      %v7981 = vadd.f32 %v6183, %v7980
      %v7982 = vpop.f32.mrf.mxu0
      %v7983 = vadd.f32 %v6187, %v7982
      %v7984 = vpop.f32.mrf.mxu0
      %v7985 = vadd.f32 %v6183, %v7984
      %v7986 = vpop.f32.mrf.mxu0
      %v7987 = vadd.f32 %v6187, %v7986
      %7988 = vdwg.mxu0
      %7989 = vmatprep.subr.bf16.mxu0 %v7064
      %7990 = vmatpush1.bf16.msra.mxu0 %v7063
      %7991 = vmatprep.subr.bf16.mxu0 %v7057
      %7992 = vmatpush1.bf16.msra.mxu0 %v7056
      %7993 = vmatprep.subr.bf16.mxu0 %v7050
      %7994 = vmatpush1.bf16.msra.mxu0 %v7049
      %7995 = vmatprep.subr.bf16.mxu0 %v7043
      %7996 = vmatpush1.bf16.msra.mxu0 %v7042
      %7997 = vmatprep.subr.bf16.mxu0 %v7036
      %7998 = vmatpush1.bf16.msra.mxu0 %v7035
      %7999 = vmatprep.subr.bf16.mxu0 %v7029
      %8000 = vmatpush1.bf16.msra.mxu0 %v7028
      %8001 = vmatprep.subr.bf16.mxu0 %v7022
      %8002 = vmatpush1.bf16.msra.mxu0 %v7021
      %8003 = vmatprep.subr.bf16.mxu0 %v7015
      %8004 = vmatpush1.bf16.msra.mxu0 %v7014
      %8005 = vmatprep.subr.bf16.mxu0 %v7399
      %8006 = vmatpush2.bf16.msra.mxu0 %v7396
      %8007 = vmatprep.subr.bf16.mxu0 %v7113
      %8008 = vmatpush2.bf16.msra.mxu0 %v7112
      %8009 = vmatprep.subr.bf16.mxu0 %v7106
      %8010 = vmatpush2.bf16.msra.mxu0 %v7105
      %8011 = vmatprep.subr.bf16.mxu0 %v7099
      %8012 = vmatpush2.bf16.msra.mxu0 %v7098
      %8013 = vmatprep.subr.bf16.mxu0 %v7092
      %8014 = vmatpush2.bf16.msra.mxu0 %v7091
      %8015 = vmatprep.subr.bf16.mxu0 %v7085
      %8016 = vmatpush2.bf16.msra.mxu0 %v7084
      %8017 = vmatprep.subr.bf16.mxu0 %v7078
      %8018 = vmatpush2.bf16.msra.mxu0 %v7077
      %8019 = vmatprep.subr.bf16.mxu0 %v7071
      %8020 = vmatpush2.bf16.msra.mxu0 %v7070
      %8021 = vmatprep.mubr.bf16.mxu0 %v7342
      %8022 = vmatmul.mubr.bf16.gmra.mxu0 %v5856
      %v8023 = vpop.f32.mrf.mxu0
      %v8024 = vadd.f32 %v7831, %v8023
      %v8025 = vpop.f32.mrf.mxu0
      %v8026 = vadd.f32 %v7833, %v8025
      %v8027 = vpop.f32.mrf.mxu0
      %v8028 = vadd.f32 %v7835, %v8027
      %v8029 = vpop.f32.mrf.mxu0
      %v8030 = vadd.f32 %v7837, %v8029
      %8031 = vmatprep.mubr.bf16.mxu0 %v7345
      %8032 = vmatmul.mubr.bf16.gmra.mxu0 %v5860
      %v8033 = vpop.f32.mrf.mxu0
      %v8034 = vadd.f32 %v7841, %v8033
      %v8035 = vpop.f32.mrf.mxu0
      %v8036 = vadd.f32 %v7843, %v8035
      %v8037 = vpop.f32.mrf.mxu0
      %v8038 = vadd.f32 %v7845, %v8037
      %v8039 = vpop.f32.mrf.mxu0
      %v8040 = vadd.f32 %v7847, %v8039
      %8041 = vmatprep.mubr.bf16.mxu0 %v7348
      %8042 = vmatmul.mubr.bf16.gmra.mxu0 %v5864
      %v8043 = vpop.f32.mrf.mxu0
      %v8044 = vadd.f32 %v7851, %v8043
      %v8045 = vpop.f32.mrf.mxu0
      %v8046 = vadd.f32 %v7853, %v8045
      %v8047 = vpop.f32.mrf.mxu0
      %v8048 = vadd.f32 %v7855, %v8047
      %v8049 = vpop.f32.mrf.mxu0
      %v8050 = vadd.f32 %v7857, %v8049
      %8051 = vmatprep.mubr.bf16.mxu0 %v7351
      %8052 = vmatmul.mubr.bf16.gmra.mxu0 %v5868
      %v8053 = vpop.f32.mrf.mxu0
      %v8054 = vadd.f32 %v7861, %v8053
      %v8055 = vpop.f32.mrf.mxu0
      %v8056 = vadd.f32 %v7863, %v8055
      %v8057 = vpop.f32.mrf.mxu0
      %v8058 = vadd.f32 %v7865, %v8057
      %v8059 = vpop.f32.mrf.mxu0
      %v8060 = vadd.f32 %v7867, %v8059
      %8061 = vmatprep.mubr.bf16.mxu0 %v7354
      %8062 = vmatmul.mubr.bf16.gmra.mxu0 %v5872
      %v8063 = vpop.f32.mrf.mxu0
      %v8064 = vadd.f32 %v7871, %v8063
      %v8065 = vpop.f32.mrf.mxu0
      %v8066 = vadd.f32 %v7873, %v8065
      %v8067 = vpop.f32.mrf.mxu0
      %v8068 = vadd.f32 %v7875, %v8067
      %v8069 = vpop.f32.mrf.mxu0
      %v8070 = vadd.f32 %v7877, %v8069
      %8071 = vmatprep.mubr.bf16.mxu0 %v7357
      %8072 = vmatmul.mubr.bf16.gmra.mxu0 %v5876
      %v8073 = vpop.f32.mrf.mxu0
      %v8074 = vadd.f32 %v7881, %v8073
      %v8075 = vpop.f32.mrf.mxu0
      %v8076 = vadd.f32 %v7883, %v8075
      %v8077 = vpop.f32.mrf.mxu0
      %v8078 = vadd.f32 %v7885, %v8077
      %v8079 = vpop.f32.mrf.mxu0
      %v8080 = vadd.f32 %v7887, %v8079
      %8081 = vmatprep.mubr.bf16.mxu0 %v7360
      %8082 = vmatmul.mubr.bf16.gmra.mxu0 %v5880
      %v8083 = vpop.f32.mrf.mxu0
      %v8084 = vadd.f32 %v7891, %v8083
      %v8085 = vpop.f32.mrf.mxu0
      %v8086 = vadd.f32 %v7893, %v8085
      %v8087 = vpop.f32.mrf.mxu0
      %v8088 = vadd.f32 %v7895, %v8087
      %v8089 = vpop.f32.mrf.mxu0
      %v8090 = vadd.f32 %v7897, %v8089
      %8091 = vmatprep.mubr.bf16.mxu0 %v7363
      %8092 = vmatmul.mubr.bf16.gmra.mxu0 %v5884
      %v8093 = vpop.f32.mrf.mxu0
      %v8094 = vadd.f32 %v7901, %v8093
      %v8095 = vpop.f32.mrf.mxu0
      %v8096 = vadd.f32 %v7903, %v8095
      %v8097 = vpop.f32.mrf.mxu0
      %v8098 = vadd.f32 %v7905, %v8097
      %v8099 = vpop.f32.mrf.mxu0
      %v8100 = vadd.f32 %v7907, %v8099
      %8101 = vmatprep.mubr.bf16.mxu0 %v7366
      %8102 = vmatmul.mubr.bf16.gmra.mxu0 %v5888
      %v8103 = vpop.f32.mrf.mxu0
      %v8104 = vadd.f32 %v7911, %v8103
      %v8105 = vpop.f32.mrf.mxu0
      %v8106 = vadd.f32 %v7913, %v8105
      %v8107 = vpop.f32.mrf.mxu0
      %v8108 = vadd.f32 %v7915, %v8107
      %v8109 = vpop.f32.mrf.mxu0
      %v8110 = vadd.f32 %v7917, %v8109
      %8111 = vmatprep.mubr.bf16.mxu0 %v7369
      %8112 = vmatmul.mubr.bf16.gmra.mxu0 %v5892
      %v8113 = vpop.f32.mrf.mxu0
      %v8114 = vadd.f32 %v7921, %v8113
      %v8115 = vpop.f32.mrf.mxu0
      %v8116 = vadd.f32 %v7923, %v8115
      %v8117 = vpop.f32.mrf.mxu0
      %v8118 = vadd.f32 %v7925, %v8117
      %v8119 = vpop.f32.mrf.mxu0
      %v8120 = vadd.f32 %v7927, %v8119
      %8121 = vmatprep.mubr.bf16.mxu0 %v7372
      %8122 = vmatmul.mubr.bf16.gmra.mxu0 %v5896
      %v8123 = vpop.f32.mrf.mxu0
      %v8124 = vadd.f32 %v7931, %v8123
      %v8125 = vpop.f32.mrf.mxu0
      %v8126 = vadd.f32 %v7933, %v8125
      %v8127 = vpop.f32.mrf.mxu0
      %v8128 = vadd.f32 %v7935, %v8127
      %v8129 = vpop.f32.mrf.mxu0
      %v8130 = vadd.f32 %v7937, %v8129
      %8131 = vmatprep.mubr.bf16.mxu0 %v7375
      %8132 = vmatmul.mubr.bf16.gmra.mxu0 %v5900
      %v8133 = vpop.f32.mrf.mxu0
      %v8134 = vadd.f32 %v7941, %v8133
      %v8135 = vpop.f32.mrf.mxu0
      %v8136 = vadd.f32 %v7943, %v8135
      %v8137 = vpop.f32.mrf.mxu0
      %v8138 = vadd.f32 %v7945, %v8137
      %v8139 = vpop.f32.mrf.mxu0
      %v8140 = vadd.f32 %v7947, %v8139
      %8141 = vmatprep.mubr.bf16.mxu0 %v7378
      %8142 = vmatmul.mubr.bf16.gmra.mxu0 %v5904
      %v8143 = vpop.f32.mrf.mxu0
      %v8144 = vadd.f32 %v7951, %v8143
      %v8145 = vpop.f32.mrf.mxu0
      %v8146 = vadd.f32 %v7953, %v8145
      %v8147 = vpop.f32.mrf.mxu0
      %v8148 = vadd.f32 %v7955, %v8147
      %v8149 = vpop.f32.mrf.mxu0
      %v8150 = vadd.f32 %v7957, %v8149
      %8151 = vmatprep.mubr.bf16.mxu0 %v7381
      %8152 = vmatmul.mubr.bf16.gmra.mxu0 %v5908
      %v8153 = vpop.f32.mrf.mxu0
      %v8154 = vadd.f32 %v7961, %v8153
      %v8155 = vpop.f32.mrf.mxu0
      %v8156 = vadd.f32 %v7963, %v8155
      %v8157 = vpop.f32.mrf.mxu0
      %v8158 = vadd.f32 %v7965, %v8157
      %v8159 = vpop.f32.mrf.mxu0
      %v8160 = vadd.f32 %v7967, %v8159
      %8161 = vmatprep.mubr.bf16.mxu0 %v7384
      %8162 = vmatmul.mubr.bf16.gmra.mxu0 %v5912
      %v8163 = vpop.f32.mrf.mxu0
      %v8164 = vadd.f32 %v7971, %v8163
      %v8165 = vpop.f32.mrf.mxu0
      %v8166 = vadd.f32 %v7973, %v8165
      %v8167 = vpop.f32.mrf.mxu0
      %v8168 = vadd.f32 %v7975, %v8167
      %v8169 = vpop.f32.mrf.mxu0
      %v8170 = vadd.f32 %v7977, %v8169
      %8171 = vmatprep.mubr.bf16.mxu0 %v7387
      %8172 = vmatmul.mubr.bf16.gmra.mxu0 %v5916
      %v8173 = vpop.f32.mrf.mxu0
      %v8174 = vadd.f32 %v7981, %v8173
      %v8175 = vpop.f32.mrf.mxu0
      %v8176 = vadd.f32 %v7983, %v8175
      %v8177 = vpop.f32.mrf.mxu0
      %v8178 = vadd.f32 %v7985, %v8177
      %v8179 = vpop.f32.mrf.mxu0
      %v8180 = vadd.f32 %v7987, %v8179
      %8181 = vdwg.mxu0
      %8182 = vmatprep.subr.bf16.mxu0 %v6954
      %8183 = vmatpush1.bf16.msra.mxu0 %v6953
      %8184 = vmatprep.subr.bf16.mxu0 %v6947
      %8185 = vmatpush1.bf16.msra.mxu0 %v6946
      %8186 = vmatprep.subr.bf16.mxu0 %v6940
      %8187 = vmatpush1.bf16.msra.mxu0 %v6939
      %8188 = vmatprep.subr.bf16.mxu0 %v6933
      %8189 = vmatpush1.bf16.msra.mxu0 %v6932
      %8190 = vmatprep.subr.bf16.mxu0 %v6926
      %8191 = vmatpush1.bf16.msra.mxu0 %v6925
      %8192 = vmatprep.subr.bf16.mxu0 %v6919
      %8193 = vmatpush1.bf16.msra.mxu0 %v6918
      %8194 = vmatprep.subr.bf16.mxu0 %v6912
      %8195 = vmatpush1.bf16.msra.mxu0 %v6911
      %8196 = vmatprep.subr.bf16.mxu0 %v6905
      %8197 = vmatpush1.bf16.msra.mxu0 %v6904
      %8198 = vmatprep.subr.bf16.mxu0 %v7010
      %8199 = vmatpush2.bf16.msra.mxu0 %v7009
      %8200 = vmatprep.subr.bf16.mxu0 %v7003
      %8201 = vmatpush2.bf16.msra.mxu0 %v7002
      %8202 = vmatprep.subr.bf16.mxu0 %v6996
      %8203 = vmatpush2.bf16.msra.mxu0 %v6995
      %8204 = vmatprep.subr.bf16.mxu0 %v6989
      %8205 = vmatpush2.bf16.msra.mxu0 %v6988
      %8206 = vmatprep.subr.bf16.mxu0 %v6982
      %8207 = vmatpush2.bf16.msra.mxu0 %v6981
      %8208 = vmatprep.subr.bf16.mxu0 %v6975
      %8209 = vmatpush2.bf16.msra.mxu0 %v6974
      %8210 = vmatprep.subr.bf16.mxu0 %v6968
      %8211 = vmatpush2.bf16.msra.mxu0 %v6967
      %8212 = vmatprep.subr.bf16.mxu0 %v6961
      %8213 = vmatpush2.bf16.msra.mxu0 %v6960
      %8214 = vmatprep.mubr.bf16.mxu0 %v5855
      %8215 = vmatmul.mubr.bf16.gmra.mxu0 %v5854
      %v8216 = vpop.f32.mrf.mxu0
      %v8217 = vadd.f32 %v6191, %v8216
      %v8218 = vpop.f32.mrf.mxu0
      %v8219 = vadd.f32 %v6195, %v8218
      %v8220 = vpop.f32.mrf.mxu0
      %v8221 = vadd.f32 %v6191, %v8220
      %v8222 = vpop.f32.mrf.mxu0
      %v8223 = vadd.f32 %v6195, %v8222
      %8224 = vmatprep.mubr.bf16.mxu0 %v5859
      %8225 = vmatmul.mubr.bf16.gmra.mxu0 %v5858
      %v8226 = vpop.f32.mrf.mxu0
      %v8227 = vadd.f32 %v6191, %v8226
      %v8228 = vpop.f32.mrf.mxu0
      %v8229 = vadd.f32 %v6195, %v8228
      %v8230 = vpop.f32.mrf.mxu0
      %v8231 = vadd.f32 %v6191, %v8230
      %v8232 = vpop.f32.mrf.mxu0
      %v8233 = vadd.f32 %v6195, %v8232
      %8234 = vmatprep.mubr.bf16.mxu0 %v5863
      %8235 = vmatmul.mubr.bf16.gmra.mxu0 %v5862
      %v8236 = vpop.f32.mrf.mxu0
      %v8237 = vadd.f32 %v6191, %v8236
      %v8238 = vpop.f32.mrf.mxu0
      %v8239 = vadd.f32 %v6195, %v8238
      %v8240 = vpop.f32.mrf.mxu0
      %v8241 = vadd.f32 %v6191, %v8240
      %v8242 = vpop.f32.mrf.mxu0
      %v8243 = vadd.f32 %v6195, %v8242
      %8244 = vmatprep.mubr.bf16.mxu0 %v5867
      %8245 = vmatmul.mubr.bf16.gmra.mxu0 %v5866
      %v8246 = vpop.f32.mrf.mxu0
      %v8247 = vadd.f32 %v6191, %v8246
      %v8248 = vpop.f32.mrf.mxu0
      %v8249 = vadd.f32 %v6195, %v8248
      %v8250 = vpop.f32.mrf.mxu0
      %v8251 = vadd.f32 %v6191, %v8250
      %v8252 = vpop.f32.mrf.mxu0
      %v8253 = vadd.f32 %v6195, %v8252
      %8254 = vmatprep.mubr.bf16.mxu0 %v5871
      %8255 = vmatmul.mubr.bf16.gmra.mxu0 %v5870
      %v8256 = vpop.f32.mrf.mxu0
      %v8257 = vadd.f32 %v6191, %v8256
      %v8258 = vpop.f32.mrf.mxu0
      %v8259 = vadd.f32 %v6195, %v8258
      %v8260 = vpop.f32.mrf.mxu0
      %v8261 = vadd.f32 %v6191, %v8260
      %v8262 = vpop.f32.mrf.mxu0
      %v8263 = vadd.f32 %v6195, %v8262
      %8264 = vmatprep.mubr.bf16.mxu0 %v5875
      %8265 = vmatmul.mubr.bf16.gmra.mxu0 %v5874
      %v8266 = vpop.f32.mrf.mxu0
      %v8267 = vadd.f32 %v6191, %v8266
      %v8268 = vpop.f32.mrf.mxu0
      %v8269 = vadd.f32 %v6195, %v8268
      %v8270 = vpop.f32.mrf.mxu0
      %v8271 = vadd.f32 %v6191, %v8270
      %v8272 = vpop.f32.mrf.mxu0
      %v8273 = vadd.f32 %v6195, %v8272
      %8274 = vmatprep.mubr.bf16.mxu0 %v5879
      %8275 = vmatmul.mubr.bf16.gmra.mxu0 %v5878
      %v8276 = vpop.f32.mrf.mxu0
      %v8277 = vadd.f32 %v6191, %v8276
      %v8278 = vpop.f32.mrf.mxu0
      %v8279 = vadd.f32 %v6195, %v8278
      %v8280 = vpop.f32.mrf.mxu0
      %v8281 = vadd.f32 %v6191, %v8280
      %v8282 = vpop.f32.mrf.mxu0
      %v8283 = vadd.f32 %v6195, %v8282
      %8284 = vmatprep.mubr.bf16.mxu0 %v5883
      %8285 = vmatmul.mubr.bf16.gmra.mxu0 %v5882
      %v8286 = vpop.f32.mrf.mxu0
      %v8287 = vadd.f32 %v6191, %v8286
      %v8288 = vpop.f32.mrf.mxu0
      %v8289 = vadd.f32 %v6195, %v8288
      %v8290 = vpop.f32.mrf.mxu0
      %v8291 = vadd.f32 %v6191, %v8290
      %v8292 = vpop.f32.mrf.mxu0
      %v8293 = vadd.f32 %v6195, %v8292
      %8294 = vmatprep.mubr.bf16.mxu0 %v5887
      %8295 = vmatmul.mubr.bf16.gmra.mxu0 %v5886
      %v8296 = vpop.f32.mrf.mxu0
      %v8297 = vadd.f32 %v6191, %v8296
      %v8298 = vpop.f32.mrf.mxu0
      %v8299 = vadd.f32 %v6195, %v8298
      %v8300 = vpop.f32.mrf.mxu0
      %v8301 = vadd.f32 %v6191, %v8300
      %v8302 = vpop.f32.mrf.mxu0
      %v8303 = vadd.f32 %v6195, %v8302
      %8304 = vmatprep.mubr.bf16.mxu0 %v5891
      %8305 = vmatmul.mubr.bf16.gmra.mxu0 %v5890
      %v8306 = vpop.f32.mrf.mxu0
      %v8307 = vadd.f32 %v6191, %v8306
      %v8308 = vpop.f32.mrf.mxu0
      %v8309 = vadd.f32 %v6195, %v8308
      %v8310 = vpop.f32.mrf.mxu0
      %v8311 = vadd.f32 %v6191, %v8310
      %v8312 = vpop.f32.mrf.mxu0
      %v8313 = vadd.f32 %v6195, %v8312
      %8314 = vmatprep.mubr.bf16.mxu0 %v5895
      %8315 = vmatmul.mubr.bf16.gmra.mxu0 %v5894
      %v8316 = vpop.f32.mrf.mxu0
      %v8317 = vadd.f32 %v6191, %v8316
      %v8318 = vpop.f32.mrf.mxu0
      %v8319 = vadd.f32 %v6195, %v8318
      %v8320 = vpop.f32.mrf.mxu0
      %v8321 = vadd.f32 %v6191, %v8320
      %v8322 = vpop.f32.mrf.mxu0
      %v8323 = vadd.f32 %v6195, %v8322
      %8324 = vmatprep.mubr.bf16.mxu0 %v5899
      %8325 = vmatmul.mubr.bf16.gmra.mxu0 %v5898
      %v8326 = vpop.f32.mrf.mxu0
      %v8327 = vadd.f32 %v6191, %v8326
      %v8328 = vpop.f32.mrf.mxu0
      %v8329 = vadd.f32 %v6195, %v8328
      %v8330 = vpop.f32.mrf.mxu0
      %v8331 = vadd.f32 %v6191, %v8330
      %v8332 = vpop.f32.mrf.mxu0
      %v8333 = vadd.f32 %v6195, %v8332
      %8334 = vmatprep.mubr.bf16.mxu0 %v5903
      %8335 = vmatmul.mubr.bf16.gmra.mxu0 %v5902
      %v8336 = vpop.f32.mrf.mxu0
      %v8337 = vadd.f32 %v6191, %v8336
      %v8338 = vpop.f32.mrf.mxu0
      %v8339 = vadd.f32 %v6195, %v8338
      %v8340 = vpop.f32.mrf.mxu0
      %v8341 = vadd.f32 %v6191, %v8340
      %v8342 = vpop.f32.mrf.mxu0
      %v8343 = vadd.f32 %v6195, %v8342
      %8344 = vmatprep.mubr.bf16.mxu0 %v5907
      %8345 = vmatmul.mubr.bf16.gmra.mxu0 %v5906
      %v8346 = vpop.f32.mrf.mxu0
      %v8347 = vadd.f32 %v6191, %v8346
      %v8348 = vpop.f32.mrf.mxu0
      %v8349 = vadd.f32 %v6195, %v8348
      %v8350 = vpop.f32.mrf.mxu0
      %v8351 = vadd.f32 %v6191, %v8350
      %v8352 = vpop.f32.mrf.mxu0
      %v8353 = vadd.f32 %v6195, %v8352
      %8354 = vmatprep.mubr.bf16.mxu0 %v5911
      %8355 = vmatmul.mubr.bf16.gmra.mxu0 %v5910
      %v8356 = vpop.f32.mrf.mxu0
      %v8357 = vadd.f32 %v6191, %v8356
      %v8358 = vpop.f32.mrf.mxu0
      %v8359 = vadd.f32 %v6195, %v8358
      %v8360 = vpop.f32.mrf.mxu0
      %v8361 = vadd.f32 %v6191, %v8360
      %v8362 = vpop.f32.mrf.mxu0
      %v8363 = vadd.f32 %v6195, %v8362
      %8364 = vmatprep.mubr.bf16.mxu0 %v5915
      %8365 = vmatmul.mubr.bf16.gmra.mxu0 %v5914
      %v8366 = vpop.f32.mrf.mxu0
      %v8367 = vadd.f32 %v6191, %v8366
      %v8368 = vpop.f32.mrf.mxu0
      %v8369 = vadd.f32 %v6195, %v8368
      %v8370 = vpop.f32.mrf.mxu0
      %v8371 = vadd.f32 %v6191, %v8370
      %v8372 = vpop.f32.mrf.mxu0
      %v8373 = vadd.f32 %v6195, %v8372
      %8374 = vdwg.mxu0
      %8375 = vmatprep.subr.bf16.mxu0 %v7066
      %8376 = vmatpush1.bf16.msra.mxu0 %v7065
      %8377 = vmatprep.subr.bf16.mxu0 %v7059
      %8378 = vmatpush1.bf16.msra.mxu0 %v7058
      %8379 = vmatprep.subr.bf16.mxu0 %v7052
      %8380 = vmatpush1.bf16.msra.mxu0 %v7051
      %8381 = vmatprep.subr.bf16.mxu0 %v7045
      %8382 = vmatpush1.bf16.msra.mxu0 %v7044
      %8383 = vmatprep.subr.bf16.mxu0 %v7038
      %8384 = vmatpush1.bf16.msra.mxu0 %v7037
      %8385 = vmatprep.subr.bf16.mxu0 %v7031
      %8386 = vmatpush1.bf16.msra.mxu0 %v7030
      %8387 = vmatprep.subr.bf16.mxu0 %v7024
      %8388 = vmatpush1.bf16.msra.mxu0 %v7023
      %8389 = vmatprep.subr.bf16.mxu0 %v7017
      %8390 = vmatpush1.bf16.msra.mxu0 %v7016
      %8391 = vmatprep.subr.bf16.mxu0 %v7405
      %8392 = vmatpush2.bf16.msra.mxu0 %v7402
      %8393 = vmatprep.subr.bf16.mxu0 %v7115
      %8394 = vmatpush2.bf16.msra.mxu0 %v7114
      %8395 = vmatprep.subr.bf16.mxu0 %v7108
      %8396 = vmatpush2.bf16.msra.mxu0 %v7107
      %8397 = vmatprep.subr.bf16.mxu0 %v7101
      %8398 = vmatpush2.bf16.msra.mxu0 %v7100
      %8399 = vmatprep.subr.bf16.mxu0 %v7094
      %8400 = vmatpush2.bf16.msra.mxu0 %v7093
      %8401 = vmatprep.subr.bf16.mxu0 %v7087
      %8402 = vmatpush2.bf16.msra.mxu0 %v7086
      %8403 = vmatprep.subr.bf16.mxu0 %v7080
      %8404 = vmatpush2.bf16.msra.mxu0 %v7079
      %8405 = vmatprep.subr.bf16.mxu0 %v7073
      %8406 = vmatpush2.bf16.msra.mxu0 %v7072
      %8407 = vmatprep.mubr.bf16.mxu0 %v7342
      %8408 = vmatmul.mubr.bf16.gmra.mxu0 %v5856
      %v8409 = vpop.f32.mrf.mxu0
      %v8410 = vadd.f32 %v8217, %v8409
      %v8411 = vpop.f32.mrf.mxu0
      %v8412 = vadd.f32 %v8219, %v8411
      %v8413 = vpop.f32.mrf.mxu0
      %v8414 = vadd.f32 %v8221, %v8413
      %v8415 = vpop.f32.mrf.mxu0
      %v8416 = vadd.f32 %v8223, %v8415
      %8417 = vmatprep.mubr.bf16.mxu0 %v7345
      %8418 = vmatmul.mubr.bf16.gmra.mxu0 %v5860
      %v8419 = vpop.f32.mrf.mxu0
      %v8420 = vadd.f32 %v8227, %v8419
      %v8421 = vpop.f32.mrf.mxu0
      %v8422 = vadd.f32 %v8229, %v8421
      %v8423 = vpop.f32.mrf.mxu0
      %v8424 = vadd.f32 %v8231, %v8423
      %v8425 = vpop.f32.mrf.mxu0
      %v8426 = vadd.f32 %v8233, %v8425
      %8427 = vmatprep.mubr.bf16.mxu0 %v7348
      %8428 = vmatmul.mubr.bf16.gmra.mxu0 %v5864
      %v8429 = vpop.f32.mrf.mxu0
      %v8430 = vadd.f32 %v8237, %v8429
      %v8431 = vpop.f32.mrf.mxu0
      %v8432 = vadd.f32 %v8239, %v8431
      %v8433 = vpop.f32.mrf.mxu0
      %v8434 = vadd.f32 %v8241, %v8433
      %v8435 = vpop.f32.mrf.mxu0
      %v8436 = vadd.f32 %v8243, %v8435
      %8437 = vmatprep.mubr.bf16.mxu0 %v7351
      %8438 = vmatmul.mubr.bf16.gmra.mxu0 %v5868
      %v8439 = vpop.f32.mrf.mxu0
      %v8440 = vadd.f32 %v8247, %v8439
      %v8441 = vpop.f32.mrf.mxu0
      %v8442 = vadd.f32 %v8249, %v8441
      %v8443 = vpop.f32.mrf.mxu0
      %v8444 = vadd.f32 %v8251, %v8443
      %v8445 = vpop.f32.mrf.mxu0
      %v8446 = vadd.f32 %v8253, %v8445
      %8447 = vmatprep.mubr.bf16.mxu0 %v7354
      %8448 = vmatmul.mubr.bf16.gmra.mxu0 %v5872
      %v8449 = vpop.f32.mrf.mxu0
      %v8450 = vadd.f32 %v8257, %v8449
      %v8451 = vpop.f32.mrf.mxu0
      %v8452 = vadd.f32 %v8259, %v8451
      %v8453 = vpop.f32.mrf.mxu0
      %v8454 = vadd.f32 %v8261, %v8453
      %v8455 = vpop.f32.mrf.mxu0
      %v8456 = vadd.f32 %v8263, %v8455
      %8457 = vmatprep.mubr.bf16.mxu0 %v7357
      %8458 = vmatmul.mubr.bf16.gmra.mxu0 %v5876
      %v8459 = vpop.f32.mrf.mxu0
      %v8460 = vadd.f32 %v8267, %v8459
      %v8461 = vpop.f32.mrf.mxu0
      %v8462 = vadd.f32 %v8269, %v8461
      %v8463 = vpop.f32.mrf.mxu0
      %v8464 = vadd.f32 %v8271, %v8463
      %v8465 = vpop.f32.mrf.mxu0
      %v8466 = vadd.f32 %v8273, %v8465
      %8467 = vmatprep.mubr.bf16.mxu0 %v7360
      %8468 = vmatmul.mubr.bf16.gmra.mxu0 %v5880
      %v8469 = vpop.f32.mrf.mxu0
      %v8470 = vadd.f32 %v8277, %v8469
      %v8471 = vpop.f32.mrf.mxu0
      %v8472 = vadd.f32 %v8279, %v8471
      %v8473 = vpop.f32.mrf.mxu0
      %v8474 = vadd.f32 %v8281, %v8473
      %v8475 = vpop.f32.mrf.mxu0
      %v8476 = vadd.f32 %v8283, %v8475
      %8477 = vmatprep.mubr.bf16.mxu0 %v7363
      %8478 = vmatmul.mubr.bf16.gmra.mxu0 %v5884
      %v8479 = vpop.f32.mrf.mxu0
      %v8480 = vadd.f32 %v8287, %v8479
      %v8481 = vpop.f32.mrf.mxu0
      %v8482 = vadd.f32 %v8289, %v8481
      %v8483 = vpop.f32.mrf.mxu0
      %v8484 = vadd.f32 %v8291, %v8483
      %v8485 = vpop.f32.mrf.mxu0
      %v8486 = vadd.f32 %v8293, %v8485
      %8487 = vmatprep.mubr.bf16.mxu0 %v7366
      %8488 = vmatmul.mubr.bf16.gmra.mxu0 %v5888
      %v8489 = vpop.f32.mrf.mxu0
      %v8490 = vadd.f32 %v8297, %v8489
      %v8491 = vpop.f32.mrf.mxu0
      %v8492 = vadd.f32 %v8299, %v8491
      %v8493 = vpop.f32.mrf.mxu0
      %v8494 = vadd.f32 %v8301, %v8493
      %v8495 = vpop.f32.mrf.mxu0
      %v8496 = vadd.f32 %v8303, %v8495
      %8497 = vmatprep.mubr.bf16.mxu0 %v7369
      %8498 = vmatmul.mubr.bf16.gmra.mxu0 %v5892
      %v8499 = vpop.f32.mrf.mxu0
      %v8500 = vadd.f32 %v8307, %v8499
      %v8501 = vpop.f32.mrf.mxu0
      %v8502 = vadd.f32 %v8309, %v8501
      %v8503 = vpop.f32.mrf.mxu0
      %v8504 = vadd.f32 %v8311, %v8503
      %v8505 = vpop.f32.mrf.mxu0
      %v8506 = vadd.f32 %v8313, %v8505
      %8507 = vmatprep.mubr.bf16.mxu0 %v7372
      %8508 = vmatmul.mubr.bf16.gmra.mxu0 %v5896
      %v8509 = vpop.f32.mrf.mxu0
      %v8510 = vadd.f32 %v8317, %v8509
      %v8511 = vpop.f32.mrf.mxu0
      %v8512 = vadd.f32 %v8319, %v8511
      %v8513 = vpop.f32.mrf.mxu0
      %v8514 = vadd.f32 %v8321, %v8513
      %v8515 = vpop.f32.mrf.mxu0
      %v8516 = vadd.f32 %v8323, %v8515
      %8517 = vmatprep.mubr.bf16.mxu0 %v7375
      %8518 = vmatmul.mubr.bf16.gmra.mxu0 %v5900
      %v8519 = vpop.f32.mrf.mxu0
      %v8520 = vadd.f32 %v8327, %v8519
      %v8521 = vpop.f32.mrf.mxu0
      %v8522 = vadd.f32 %v8329, %v8521
      %v8523 = vpop.f32.mrf.mxu0
      %v8524 = vadd.f32 %v8331, %v8523
      %v8525 = vpop.f32.mrf.mxu0
      %v8526 = vadd.f32 %v8333, %v8525
      %8527 = vmatprep.mubr.bf16.mxu0 %v7378
      %8528 = vmatmul.mubr.bf16.gmra.mxu0 %v5904
      %v8529 = vpop.f32.mrf.mxu0
      %v8530 = vadd.f32 %v8337, %v8529
      %v8531 = vpop.f32.mrf.mxu0
      %v8532 = vadd.f32 %v8339, %v8531
      %v8533 = vpop.f32.mrf.mxu0
      %v8534 = vadd.f32 %v8341, %v8533
      %v8535 = vpop.f32.mrf.mxu0
      %v8536 = vadd.f32 %v8343, %v8535
      %8537 = vmatprep.mubr.bf16.mxu0 %v7381
      %8538 = vmatmul.mubr.bf16.gmra.mxu0 %v5908
      %v8539 = vpop.f32.mrf.mxu0
      %v8540 = vadd.f32 %v8347, %v8539
      %v8541 = vpop.f32.mrf.mxu0
      %v8542 = vadd.f32 %v8349, %v8541
      %v8543 = vpop.f32.mrf.mxu0
      %v8544 = vadd.f32 %v8351, %v8543
      %v8545 = vpop.f32.mrf.mxu0
      %v8546 = vadd.f32 %v8353, %v8545
      %8547 = vmatprep.mubr.bf16.mxu0 %v7384
      %8548 = vmatmul.mubr.bf16.gmra.mxu0 %v5912
      %v8549 = vpop.f32.mrf.mxu0
      %v8550 = vadd.f32 %v8357, %v8549
      %v8551 = vpop.f32.mrf.mxu0
      %v8552 = vadd.f32 %v8359, %v8551
      %v8553 = vpop.f32.mrf.mxu0
      %v8554 = vadd.f32 %v8361, %v8553
      %v8555 = vpop.f32.mrf.mxu0
      %v8556 = vadd.f32 %v8363, %v8555
      %8557 = vmatprep.mubr.bf16.mxu0 %v7387
      %8558 = vmatmul.mubr.bf16.gmra.mxu0 %v5916
      %v8559 = vpop.f32.mrf.mxu0
      %v8560 = vadd.f32 %v8367, %v8559
      %v8561 = vpop.f32.mrf.mxu0
      %v8562 = vadd.f32 %v8369, %v8561
      %v8563 = vpop.f32.mrf.mxu0
      %v8564 = vadd.f32 %v8371, %v8563
      %v8565 = vpop.f32.mrf.mxu0
      %v8566 = vadd.f32 %v8373, %v8565
      %8567 = vdwg.mxu0
      %8568 = vmatprep.subr.bf16.mxu0 0
      %8569 = vmatpush1.bf16.msra.mxu0 %v6955
      %8570 = vmatprep.subr.bf16.mxu0 0
      %8571 = vmatpush1.bf16.msra.mxu0 %v6948
      %8572 = vmatprep.subr.bf16.mxu0 0
      %8573 = vmatpush1.bf16.msra.mxu0 %v6941
      %8574 = vmatprep.subr.bf16.mxu0 0
      %8575 = vmatpush1.bf16.msra.mxu0 %v6934
      %8576 = vmatprep.subr.bf16.mxu0 0
      %8577 = vmatpush1.bf16.msra.mxu0 %v6927
      %8578 = vmatprep.subr.bf16.mxu0 0
      %8579 = vmatpush1.bf16.msra.mxu0 %v6920
      %8580 = vmatprep.subr.bf16.mxu0 0
      %8581 = vmatpush1.bf16.msra.mxu0 %v6913
      %8582 = vmatprep.subr.bf16.mxu0 0
      %8583 = vmatpush1.bf16.msra.mxu0 %v6906
      %8584 = vmatprep.subr.bf16.mxu0 0
      %8585 = vmatpush2.bf16.msra.mxu0 %v7011
      %8586 = vmatprep.subr.bf16.mxu0 0
      %8587 = vmatpush2.bf16.msra.mxu0 %v7004
      %8588 = vmatprep.subr.bf16.mxu0 0
      %8589 = vmatpush2.bf16.msra.mxu0 %v6997
      %8590 = vmatprep.subr.bf16.mxu0 0
      %8591 = vmatpush2.bf16.msra.mxu0 %v6990
      %8592 = vmatprep.subr.bf16.mxu0 0
      %8593 = vmatpush2.bf16.msra.mxu0 %v6983
      %8594 = vmatprep.subr.bf16.mxu0 0
      %8595 = vmatpush2.bf16.msra.mxu0 %v6976
      %8596 = vmatprep.subr.bf16.mxu0 0
      %8597 = vmatpush2.bf16.msra.mxu0 %v6969
      %8598 = vmatprep.subr.bf16.mxu0 0
      %8599 = vmatpush2.bf16.msra.mxu0 %v6962
      %8600 = vmatprep.mubr.bf16.mxu0 %v5855
      %8601 = vmatmul.mubr.bf16.gmra.mxu0 %v5854
      %v8602 = vpop.f32.mrf.mxu0
      %v8603 = vadd.f32 %v6199, %v8602
      %v8604 = vpop.f32.mrf.mxu0
      %v8605 = vpop.f32.mrf.mxu0
      %v8606 = vadd.f32 %v6199, %v8605
      %v8607 = vpop.f32.mrf.mxu0
      %8608 = vmatprep.mubr.bf16.mxu0 %v5859
      %8609 = vmatmul.mubr.bf16.gmra.mxu0 %v5858
      %v8610 = vpop.f32.mrf.mxu0
      %v8611 = vadd.f32 %v6199, %v8610
      %v8612 = vpop.f32.mrf.mxu0
      %v8613 = vpop.f32.mrf.mxu0
      %v8614 = vadd.f32 %v6199, %v8613
      %v8615 = vpop.f32.mrf.mxu0
      %8616 = vmatprep.mubr.bf16.mxu0 %v5863
      %8617 = vmatmul.mubr.bf16.gmra.mxu0 %v5862
      %v8618 = vpop.f32.mrf.mxu0
      %v8619 = vadd.f32 %v6199, %v8618
      %v8620 = vpop.f32.mrf.mxu0
      %v8621 = vpop.f32.mrf.mxu0
      %v8622 = vadd.f32 %v6199, %v8621
      %v8623 = vpop.f32.mrf.mxu0
      %8624 = vmatprep.mubr.bf16.mxu0 %v5867
      %8625 = vmatmul.mubr.bf16.gmra.mxu0 %v5866
      %v8626 = vpop.f32.mrf.mxu0
      %v8627 = vadd.f32 %v6199, %v8626
      %v8628 = vpop.f32.mrf.mxu0
      %v8629 = vpop.f32.mrf.mxu0
      %v8630 = vadd.f32 %v6199, %v8629
      %v8631 = vpop.f32.mrf.mxu0
      %8632 = vmatprep.mubr.bf16.mxu0 %v5871
      %8633 = vmatmul.mubr.bf16.gmra.mxu0 %v5870
      %v8634 = vpop.f32.mrf.mxu0
      %v8635 = vadd.f32 %v6199, %v8634
      %v8636 = vpop.f32.mrf.mxu0
      %v8637 = vpop.f32.mrf.mxu0
      %v8638 = vadd.f32 %v6199, %v8637
      %v8639 = vpop.f32.mrf.mxu0
      %8640 = vmatprep.mubr.bf16.mxu0 %v5875
      %8641 = vmatmul.mubr.bf16.gmra.mxu0 %v5874
      %v8642 = vpop.f32.mrf.mxu0
      %v8643 = vadd.f32 %v6199, %v8642
      %v8644 = vpop.f32.mrf.mxu0
      %v8645 = vpop.f32.mrf.mxu0
      %v8646 = vadd.f32 %v6199, %v8645
      %v8647 = vpop.f32.mrf.mxu0
      %8648 = vmatprep.mubr.bf16.mxu0 %v5879
      %8649 = vmatmul.mubr.bf16.gmra.mxu0 %v5878
      %v8650 = vpop.f32.mrf.mxu0
      %v8651 = vadd.f32 %v6199, %v8650
      %v8652 = vpop.f32.mrf.mxu0
      %v8653 = vpop.f32.mrf.mxu0
      %v8654 = vadd.f32 %v6199, %v8653
      %v8655 = vpop.f32.mrf.mxu0
      %8656 = vmatprep.mubr.bf16.mxu0 %v5883
      %8657 = vmatmul.mubr.bf16.gmra.mxu0 %v5882
      %v8658 = vpop.f32.mrf.mxu0
      %v8659 = vadd.f32 %v6199, %v8658
      %v8660 = vpop.f32.mrf.mxu0
      %v8661 = vpop.f32.mrf.mxu0
      %v8662 = vadd.f32 %v6199, %v8661
      %v8663 = vpop.f32.mrf.mxu0
      %8664 = vmatprep.mubr.bf16.mxu0 %v5887
      %8665 = vmatmul.mubr.bf16.gmra.mxu0 %v5886
      %v8666 = vpop.f32.mrf.mxu0
      %v8667 = vadd.f32 %v6199, %v8666
      %v8668 = vpop.f32.mrf.mxu0
      %v8669 = vpop.f32.mrf.mxu0
      %v8670 = vadd.f32 %v6199, %v8669
      %v8671 = vpop.f32.mrf.mxu0
      %8672 = vmatprep.mubr.bf16.mxu0 %v5891
      %8673 = vmatmul.mubr.bf16.gmra.mxu0 %v5890
      %v8674 = vpop.f32.mrf.mxu0
      %v8675 = vadd.f32 %v6199, %v8674
      %v8676 = vpop.f32.mrf.mxu0
      %v8677 = vpop.f32.mrf.mxu0
      %v8678 = vadd.f32 %v6199, %v8677
      %v8679 = vpop.f32.mrf.mxu0
      %8680 = vmatprep.mubr.bf16.mxu0 %v5895
      %8681 = vmatmul.mubr.bf16.gmra.mxu0 %v5894
      %v8682 = vpop.f32.mrf.mxu0
      %v8683 = vadd.f32 %v6199, %v8682
      %v8684 = vpop.f32.mrf.mxu0
      %v8685 = vpop.f32.mrf.mxu0
      %v8686 = vadd.f32 %v6199, %v8685
      %v8687 = vpop.f32.mrf.mxu0
      %8688 = vmatprep.mubr.bf16.mxu0 %v5899
      %8689 = vmatmul.mubr.bf16.gmra.mxu0 %v5898
      %v8690 = vpop.f32.mrf.mxu0
      %v8691 = vadd.f32 %v6199, %v8690
      %v8692 = vpop.f32.mrf.mxu0
      %v8693 = vpop.f32.mrf.mxu0
      %v8694 = vadd.f32 %v6199, %v8693
      %v8695 = vpop.f32.mrf.mxu0
      %8696 = vmatprep.mubr.bf16.mxu0 %v5903
      %8697 = vmatmul.mubr.bf16.gmra.mxu0 %v5902
      %v8698 = vpop.f32.mrf.mxu0
      %v8699 = vadd.f32 %v6199, %v8698
      %v8700 = vpop.f32.mrf.mxu0
      %v8701 = vpop.f32.mrf.mxu0
      %v8702 = vadd.f32 %v6199, %v8701
      %v8703 = vpop.f32.mrf.mxu0
      %8704 = vmatprep.mubr.bf16.mxu0 %v5907
      %8705 = vmatmul.mubr.bf16.gmra.mxu0 %v5906
      %v8706 = vpop.f32.mrf.mxu0
      %v8707 = vadd.f32 %v6199, %v8706
      %v8708 = vpop.f32.mrf.mxu0
      %v8709 = vpop.f32.mrf.mxu0
      %v8710 = vadd.f32 %v6199, %v8709
      %v8711 = vpop.f32.mrf.mxu0
      %8712 = vmatprep.mubr.bf16.mxu0 %v5911
      %8713 = vmatmul.mubr.bf16.gmra.mxu0 %v5910
      %v8714 = vpop.f32.mrf.mxu0
      %v8715 = vadd.f32 %v6199, %v8714
      %v8716 = vpop.f32.mrf.mxu0
      %v8717 = vpop.f32.mrf.mxu0
      %v8718 = vadd.f32 %v6199, %v8717
      %v8719 = vpop.f32.mrf.mxu0
      %8720 = vmatprep.mubr.bf16.mxu0 %v5915
      %8721 = vmatmul.mubr.bf16.gmra.mxu0 %v5914
      %v8722 = vpop.f32.mrf.mxu0
      %v8723 = vadd.f32 %v6199, %v8722
      %v8724 = vpop.f32.mrf.mxu0
      %v8725 = vpop.f32.mrf.mxu0
      %v8726 = vadd.f32 %v6199, %v8725
      %v8727 = vpop.f32.mrf.mxu0
      %8728 = vdwg.mxu0
      %8729 = vmatprep.subr.bf16.mxu0 0
      %8730 = vmatpush1.bf16.msra.mxu0 %v7067
      %8731 = vmatprep.subr.bf16.mxu0 0
      %8732 = vmatpush1.bf16.msra.mxu0 %v7060
      %8733 = vmatprep.subr.bf16.mxu0 0
      %8734 = vmatpush1.bf16.msra.mxu0 %v7053
      %8735 = vmatprep.subr.bf16.mxu0 0
      %8736 = vmatpush1.bf16.msra.mxu0 %v7046
      %8737 = vmatprep.subr.bf16.mxu0 0
      %8738 = vmatpush1.bf16.msra.mxu0 %v7039
      %8739 = vmatprep.subr.bf16.mxu0 0
      %8740 = vmatpush1.bf16.msra.mxu0 %v7032
      %8741 = vmatprep.subr.bf16.mxu0 0
      %8742 = vmatpush1.bf16.msra.mxu0 %v7025
      %8743 = vmatprep.subr.bf16.mxu0 0
      %8744 = vmatpush1.bf16.msra.mxu0 %v7018
      %8745 = vmatprep.subr.bf16.mxu0 0
      %8746 = vmatpush2.bf16.msra.mxu0 %v7408
      %8747 = vmatprep.subr.bf16.mxu0 0
      %8748 = vmatpush2.bf16.msra.mxu0 %v7116
      %8749 = vmatprep.subr.bf16.mxu0 0
      %8750 = vmatpush2.bf16.msra.mxu0 %v7109
      %8751 = vmatprep.subr.bf16.mxu0 0
      %8752 = vmatpush2.bf16.msra.mxu0 %v7102
      %8753 = vmatprep.subr.bf16.mxu0 0
      %8754 = vmatpush2.bf16.msra.mxu0 %v7095
      %8755 = vmatprep.subr.bf16.mxu0 0
      %8756 = vmatpush2.bf16.msra.mxu0 %v7088
      %8757 = vmatprep.subr.bf16.mxu0 0
      %8758 = vmatpush2.bf16.msra.mxu0 %v7081
      %8759 = vmatprep.subr.bf16.mxu0 0
      %8760 = vmatpush2.bf16.msra.mxu0 %v7074
      %8761 = vmatprep.mubr.bf16.mxu0 %v7342
      %8762 = vmatmul.mubr.bf16.gmra.mxu0 %v5856
      %v8763 = vpop.f32.mrf.mxu0
      %v8764 = vadd.f32 %v8603, %v8763
      %v8765 = vpop.f32.mrf.mxu0
      %v8766 = vpop.f32.mrf.mxu0
      %v8767 = vadd.f32 %v8606, %v8766
      %v8768 = vpop.f32.mrf.mxu0
      %8769 = vmatprep.mubr.bf16.mxu0 %v7345
      %8770 = vmatmul.mubr.bf16.gmra.mxu0 %v5860
      %v8771 = vpop.f32.mrf.mxu0
      %v8772 = vadd.f32 %v8611, %v8771
      %v8773 = vpop.f32.mrf.mxu0
      %v8774 = vpop.f32.mrf.mxu0
      %v8775 = vadd.f32 %v8614, %v8774
      %v8776 = vpop.f32.mrf.mxu0
      %8777 = vmatprep.mubr.bf16.mxu0 %v7348
      %8778 = vmatmul.mubr.bf16.gmra.mxu0 %v5864
      %v8779 = vpop.f32.mrf.mxu0
      %v8780 = vadd.f32 %v8619, %v8779
      %v8781 = vpop.f32.mrf.mxu0
      %v8782 = vpop.f32.mrf.mxu0
      %v8783 = vadd.f32 %v8622, %v8782
      %v8784 = vpop.f32.mrf.mxu0
      %8785 = vmatprep.mubr.bf16.mxu0 %v7351
      %8786 = vmatmul.mubr.bf16.gmra.mxu0 %v5868
      %v8787 = vpop.f32.mrf.mxu0
      %v8788 = vadd.f32 %v8627, %v8787
      %v8789 = vpop.f32.mrf.mxu0
      %v8790 = vpop.f32.mrf.mxu0
      %v8791 = vadd.f32 %v8630, %v8790
      %v8792 = vpop.f32.mrf.mxu0
      %8793 = vmatprep.mubr.bf16.mxu0 %v7354
      %8794 = vmatmul.mubr.bf16.gmra.mxu0 %v5872
      %v8795 = vpop.f32.mrf.mxu0
      %v8796 = vadd.f32 %v8635, %v8795
      %v8797 = vpop.f32.mrf.mxu0
      %v8798 = vpop.f32.mrf.mxu0
      %v8799 = vadd.f32 %v8638, %v8798
      %v8800 = vpop.f32.mrf.mxu0
      %8801 = vmatprep.mubr.bf16.mxu0 %v7357
      %8802 = vmatmul.mubr.bf16.gmra.mxu0 %v5876
      %v8803 = vpop.f32.mrf.mxu0
      %v8804 = vadd.f32 %v8643, %v8803
      %v8805 = vpop.f32.mrf.mxu0
      %v8806 = vpop.f32.mrf.mxu0
      %v8807 = vadd.f32 %v8646, %v8806
      %v8808 = vpop.f32.mrf.mxu0
      %8809 = vmatprep.mubr.bf16.mxu0 %v7360
      %8810 = vmatmul.mubr.bf16.gmra.mxu0 %v5880
      %v8811 = vpop.f32.mrf.mxu0
      %v8812 = vadd.f32 %v8651, %v8811
      %v8813 = vpop.f32.mrf.mxu0
      %v8814 = vpop.f32.mrf.mxu0
      %v8815 = vadd.f32 %v8654, %v8814
      %v8816 = vpop.f32.mrf.mxu0
      %8817 = vmatprep.mubr.bf16.mxu0 %v7363
      %8818 = vmatmul.mubr.bf16.gmra.mxu0 %v5884
      %v8819 = vpop.f32.mrf.mxu0
      %v8820 = vadd.f32 %v8659, %v8819
      %v8821 = vpop.f32.mrf.mxu0
      %v8822 = vpop.f32.mrf.mxu0
      %v8823 = vadd.f32 %v8662, %v8822
      %v8824 = vpop.f32.mrf.mxu0
      %8825 = vmatprep.mubr.bf16.mxu0 %v7366
      %8826 = vmatmul.mubr.bf16.gmra.mxu0 %v5888
      %v8827 = vpop.f32.mrf.mxu0
      %v8828 = vadd.f32 %v8667, %v8827
      %v8829 = vpop.f32.mrf.mxu0
      %v8830 = vpop.f32.mrf.mxu0
      %v8831 = vadd.f32 %v8670, %v8830
      %v8832 = vpop.f32.mrf.mxu0
      %8833 = vmatprep.mubr.bf16.mxu0 %v7369
      %8834 = vmatmul.mubr.bf16.gmra.mxu0 %v5892
      %v8835 = vpop.f32.mrf.mxu0
      %v8836 = vadd.f32 %v8675, %v8835
      %v8837 = vpop.f32.mrf.mxu0
      %v8838 = vpop.f32.mrf.mxu0
      %v8839 = vadd.f32 %v8678, %v8838
      %v8840 = vpop.f32.mrf.mxu0
      %8841 = vmatprep.mubr.bf16.mxu0 %v7372
      %8842 = vmatmul.mubr.bf16.gmra.mxu0 %v5896
      %v8843 = vpop.f32.mrf.mxu0
      %v8844 = vadd.f32 %v8683, %v8843
      %v8845 = vpop.f32.mrf.mxu0
      %v8846 = vpop.f32.mrf.mxu0
      %v8847 = vadd.f32 %v8686, %v8846
      %v8848 = vpop.f32.mrf.mxu0
      %8849 = vmatprep.mubr.bf16.mxu0 %v7375
      %8850 = vmatmul.mubr.bf16.gmra.mxu0 %v5900
      %v8851 = vpop.f32.mrf.mxu0
      %v8852 = vadd.f32 %v8691, %v8851
      %v8853 = vpop.f32.mrf.mxu0
      %v8854 = vpop.f32.mrf.mxu0
      %v8855 = vadd.f32 %v8694, %v8854
      %v8856 = vpop.f32.mrf.mxu0
      %8857 = vmatprep.mubr.bf16.mxu0 %v7378
      %8858 = vmatmul.mubr.bf16.gmra.mxu0 %v5904
      %v8859 = vpop.f32.mrf.mxu0
      %v8860 = vadd.f32 %v8699, %v8859
      %v8861 = vpop.f32.mrf.mxu0
      %v8862 = vpop.f32.mrf.mxu0
      %v8863 = vadd.f32 %v8702, %v8862
      %v8864 = vpop.f32.mrf.mxu0
      %8865 = vmatprep.mubr.bf16.mxu0 %v7381
      %8866 = vmatmul.mubr.bf16.gmra.mxu0 %v5908
      %v8867 = vpop.f32.mrf.mxu0
      %v8868 = vadd.f32 %v8707, %v8867
      %v8869 = vpop.f32.mrf.mxu0
      %v8870 = vpop.f32.mrf.mxu0
      %v8871 = vadd.f32 %v8710, %v8870
      %v8872 = vpop.f32.mrf.mxu0
      %8873 = vmatprep.mubr.bf16.mxu0 %v7384
      %8874 = vmatmul.mubr.bf16.gmra.mxu0 %v5912
      %v8875 = vpop.f32.mrf.mxu0
      %v8876 = vadd.f32 %v8715, %v8875
      %v8877 = vpop.f32.mrf.mxu0
      %v8878 = vpop.f32.mrf.mxu0
      %v8879 = vadd.f32 %v8718, %v8878
      %v8880 = vpop.f32.mrf.mxu0
      %8881 = vmatprep.mubr.bf16.mxu0 %v7387
      %8882 = vmatmul.mubr.bf16.gmra.mxu0 %v5916
      %v8883 = vpop.f32.mrf.mxu0
      %v8884 = vadd.f32 %v8723, %v8883
      %v8885 = vpop.f32.mrf.mxu0
      %v8886 = vpop.f32.mrf.mxu0
      %v8887 = vadd.f32 %v8726, %v8886
      %v8888 = vpop.f32.mrf.mxu0
      %8889 = vdwg.mxu0
      %v8890 = vmul.f32 %v7638, 0.5
      %v8891 = vmul.f32 %v7640, 0.5
      %v8892 = vmul.f32 %v8024, 0.5
      %v8893 = vmul.f32 %v8026, 0.5
      %v8894 = vmul.f32 %v8410, 0.5
      %v8895 = vmul.f32 %v8412, 0.5
      %v8896 = vmul.f32 %v8764, 0.5
      %v8897 = vmul.f32 %v7642, 0.5
      %v8898 = vmul.f32 %v7644, 0.5
      %v8899 = vmul.f32 %v8028, 0.5
      %v8900 = vmul.f32 %v8030, 0.5
      %v8901 = vmul.f32 %v8414, 0.5
      %v8902 = vmul.f32 %v8416, 0.5
      %v8903 = vmul.f32 %v8767, 0.5
      %v8904 = vmul.f32 %v7648, 0.5
      %v8905 = vmul.f32 %v7650, 0.5
      %v8906 = vmul.f32 %v8034, 0.5
      %v8907 = vmul.f32 %v8036, 0.5
      %v8908 = vmul.f32 %v8420, 0.5
      %v8909 = vmul.f32 %v8422, 0.5
      %v8910 = vmul.f32 %v8772, 0.5
      %v8911 = vmul.f32 %v7652, 0.5
      %v8912 = vmul.f32 %v7654, 0.5
      %v8913 = vmul.f32 %v8038, 0.5
      %v8914 = vmul.f32 %v8040, 0.5
      %v8915 = vmul.f32 %v8424, 0.5
      %v8916 = vmul.f32 %v8426, 0.5
      %v8917 = vmul.f32 %v8775, 0.5
      %v8918 = vmul.f32 %v7658, 0.5
      %v8919 = vmul.f32 %v7660, 0.5
      %v8920 = vmul.f32 %v8044, 0.5
      %v8921 = vmul.f32 %v8046, 0.5
      %v8922 = vmul.f32 %v8430, 0.5
      %v8923 = vmul.f32 %v8432, 0.5
      %v8924 = vmul.f32 %v8780, 0.5
      %v8925 = vmul.f32 %v7662, 0.5
      %v8926 = vmul.f32 %v7664, 0.5
      %v8927 = vmul.f32 %v8048, 0.5
      %v8928 = vmul.f32 %v8050, 0.5
      %v8929 = vmul.f32 %v8434, 0.5
      %v8930 = vmul.f32 %v8436, 0.5
      %v8931 = vmul.f32 %v8783, 0.5
      %v8932 = vmul.f32 %v7668, 0.5
      %v8933 = vmul.f32 %v7670, 0.5
      %v8934 = vmul.f32 %v8054, 0.5
      %v8935 = vmul.f32 %v8056, 0.5
      %v8936 = vmul.f32 %v8440, 0.5
      %v8937 = vmul.f32 %v8442, 0.5
      %v8938 = vmul.f32 %v8788, 0.5
      %v8939 = vmul.f32 %v7672, 0.5
      %v8940 = vmul.f32 %v7674, 0.5
      %v8941 = vmul.f32 %v8058, 0.5
      %v8942 = vmul.f32 %v8060, 0.5
      %v8943 = vmul.f32 %v8444, 0.5
      %v8944 = vmul.f32 %v8446, 0.5
      %v8945 = vmul.f32 %v8791, 0.5
      %v8946 = vmul.f32 %v7678, 0.5
      %v8947 = vmul.f32 %v7680, 0.5
      %v8948 = vmul.f32 %v8064, 0.5
      %v8949 = vmul.f32 %v8066, 0.5
      %v8950 = vmul.f32 %v8450, 0.5
      %v8951 = vmul.f32 %v8452, 0.5
      %v8952 = vmul.f32 %v8796, 0.5
      %v8953 = vmul.f32 %v7682, 0.5
      %v8954 = vmul.f32 %v7684, 0.5
      %v8955 = vmul.f32 %v8068, 0.5
      %v8956 = vmul.f32 %v8070, 0.5
      %v8957 = vmul.f32 %v8454, 0.5
      %v8958 = vmul.f32 %v8456, 0.5
      %v8959 = vmul.f32 %v8799, 0.5
      %v8960 = vmul.f32 %v7688, 0.5
      %v8961 = vmul.f32 %v7690, 0.5
      %v8962 = vmul.f32 %v8074, 0.5
      %v8963 = vmul.f32 %v8076, 0.5
      %v8964 = vmul.f32 %v8460, 0.5
      %v8965 = vmul.f32 %v8462, 0.5
      %v8966 = vmul.f32 %v8804, 0.5
      %v8967 = vmul.f32 %v7692, 0.5
      %v8968 = vmul.f32 %v7694, 0.5
      %v8969 = vmul.f32 %v8078, 0.5
      %v8970 = vmul.f32 %v8080, 0.5
      %v8971 = vmul.f32 %v8464, 0.5
      %v8972 = vmul.f32 %v8466, 0.5
      %v8973 = vmul.f32 %v8807, 0.5
      %v8974 = vmul.f32 %v7698, 0.5
      %v8975 = vmul.f32 %v7700, 0.5
      %v8976 = vmul.f32 %v8084, 0.5
      %v8977 = vmul.f32 %v8086, 0.5
      %v8978 = vmul.f32 %v8470, 0.5
      %v8979 = vmul.f32 %v8472, 0.5
      %v8980 = vmul.f32 %v8812, 0.5
      %v8981 = vmul.f32 %v7702, 0.5
      %v8982 = vmul.f32 %v7704, 0.5
      %v8983 = vmul.f32 %v8088, 0.5
      %v8984 = vmul.f32 %v8090, 0.5
      %v8985 = vmul.f32 %v8474, 0.5
      %v8986 = vmul.f32 %v8476, 0.5
      %v8987 = vmul.f32 %v8815, 0.5
      %v8988 = vmul.f32 %v7708, 0.5
      %v8989 = vmul.f32 %v7710, 0.5
      %v8990 = vmul.f32 %v8094, 0.5
      %v8991 = vmul.f32 %v8096, 0.5
      %v8992 = vmul.f32 %v8480, 0.5
      %v8993 = vmul.f32 %v8482, 0.5
      %v8994 = vmul.f32 %v8820, 0.5
      %v8995 = vmul.f32 %v7712, 0.5
      %v8996 = vmul.f32 %v7714, 0.5
      %v8997 = vmul.f32 %v8098, 0.5
      %v8998 = vmul.f32 %v8100, 0.5
      %v8999 = vmul.f32 %v8484, 0.5
      %v9000 = vmul.f32 %v8486, 0.5
      %v9001 = vmul.f32 %v8823, 0.5
      %v9002 = vmul.f32 %v7718, 0.5
      %v9003 = vmul.f32 %v7720, 0.5
      %v9004 = vmul.f32 %v8104, 0.5
      %v9005 = vmul.f32 %v8106, 0.5
      %v9006 = vmul.f32 %v8490, 0.5
      %v9007 = vmul.f32 %v8492, 0.5
      %v9008 = vmul.f32 %v8828, 0.5
      %v9009 = vmul.f32 %v7722, 0.5
      %v9010 = vmul.f32 %v7724, 0.5
      %v9011 = vmul.f32 %v8108, 0.5
      %v9012 = vmul.f32 %v8110, 0.5
      %v9013 = vmul.f32 %v8494, 0.5
      %v9014 = vmul.f32 %v8496, 0.5
      %v9015 = vmul.f32 %v8831, 0.5
      %v9016 = vmul.f32 %v7728, 0.5
      %v9017 = vmul.f32 %v7730, 0.5
      %v9018 = vmul.f32 %v8114, 0.5
      %v9019 = vmul.f32 %v8116, 0.5
      %v9020 = vmul.f32 %v8500, 0.5
      %v9021 = vmul.f32 %v8502, 0.5
      %v9022 = vmul.f32 %v8836, 0.5
      %v9023 = vmul.f32 %v7732, 0.5
      %v9024 = vmul.f32 %v7734, 0.5
      %v9025 = vmul.f32 %v8118, 0.5
      %v9026 = vmul.f32 %v8120, 0.5
      %v9027 = vmul.f32 %v8504, 0.5
      %v9028 = vmul.f32 %v8506, 0.5
      %v9029 = vmul.f32 %v8839, 0.5
      %v9030 = vmul.f32 %v7738, 0.5
      %v9031 = vmul.f32 %v7740, 0.5
      %v9032 = vmul.f32 %v8124, 0.5
      %v9033 = vmul.f32 %v8126, 0.5
      %v9034 = vmul.f32 %v8510, 0.5
      %v9035 = vmul.f32 %v8512, 0.5
      %v9036 = vmul.f32 %v8844, 0.5
      %v9037 = vmul.f32 %v7742, 0.5
      %v9038 = vmul.f32 %v7744, 0.5
      %v9039 = vmul.f32 %v8128, 0.5
      %v9040 = vmul.f32 %v8130, 0.5
      %v9041 = vmul.f32 %v8514, 0.5
      %v9042 = vmul.f32 %v8516, 0.5
      %v9043 = vmul.f32 %v8847, 0.5
      %v9044 = vmul.f32 %v7748, 0.5
      %v9045 = vmul.f32 %v7750, 0.5
      %v9046 = vmul.f32 %v8134, 0.5
      %v9047 = vmul.f32 %v8136, 0.5
      %v9048 = vmul.f32 %v8520, 0.5
      %v9049 = vmul.f32 %v8522, 0.5
      %v9050 = vmul.f32 %v8852, 0.5
      %v9051 = vmul.f32 %v7752, 0.5
      %v9052 = vmul.f32 %v7754, 0.5
      %v9053 = vmul.f32 %v8138, 0.5
      %v9054 = vmul.f32 %v8140, 0.5
      %v9055 = vmul.f32 %v8524, 0.5
      %v9056 = vmul.f32 %v8526, 0.5
      %v9057 = vmul.f32 %v8855, 0.5
      %v9058 = vmul.f32 %v7758, 0.5
      %v9059 = vmul.f32 %v7760, 0.5
      %v9060 = vmul.f32 %v8144, 0.5
      %v9061 = vmul.f32 %v8146, 0.5
      %v9062 = vmul.f32 %v8530, 0.5
      %v9063 = vmul.f32 %v8532, 0.5
      %v9064 = vmul.f32 %v8860, 0.5
      %v9065 = vmul.f32 %v7762, 0.5
      %v9066 = vmul.f32 %v7764, 0.5
      %v9067 = vmul.f32 %v8148, 0.5
      %v9068 = vmul.f32 %v8150, 0.5
      %v9069 = vmul.f32 %v8534, 0.5
      %v9070 = vmul.f32 %v8536, 0.5
      %v9071 = vmul.f32 %v8863, 0.5
      %v9072 = vmul.f32 %v7768, 0.5
      %v9073 = vmul.f32 %v7770, 0.5
      %v9074 = vmul.f32 %v8154, 0.5
      %v9075 = vmul.f32 %v8156, 0.5
      %v9076 = vmul.f32 %v8540, 0.5
      %v9077 = vmul.f32 %v8542, 0.5
      %v9078 = vmul.f32 %v8868, 0.5
      %v9079 = vmul.f32 %v7772, 0.5
      %v9080 = vmul.f32 %v7774, 0.5
      %v9081 = vmul.f32 %v8158, 0.5
      %v9082 = vmul.f32 %v8160, 0.5
      %v9083 = vmul.f32 %v8544, 0.5
      %v9084 = vmul.f32 %v8546, 0.5
      %v9085 = vmul.f32 %v8871, 0.5
      %v9086 = vmul.f32 %v7778, 0.5
      %v9087 = vmul.f32 %v7780, 0.5
      %v9088 = vmul.f32 %v8164, 0.5
      %v9089 = vmul.f32 %v8166, 0.5
      %v9090 = vmul.f32 %v8550, 0.5
      %v9091 = vmul.f32 %v8552, 0.5
      %v9092 = vmul.f32 %v8876, 0.5
      %v9093 = vmul.f32 %v7782, 0.5
      %v9094 = vmul.f32 %v7784, 0.5
      %v9095 = vmul.f32 %v8168, 0.5
      %v9096 = vmul.f32 %v8170, 0.5
      %v9097 = vmul.f32 %v8554, 0.5
      %v9098 = vmul.f32 %v8556, 0.5
      %v9099 = vmul.f32 %v8879, 0.5
      %v9100 = vmul.f32 %v7788, 0.5
      %v9101 = vmul.f32 %v7790, 0.5
      %v9102 = vmul.f32 %v8174, 0.5
      %v9103 = vmul.f32 %v8176, 0.5
      %v9104 = vmul.f32 %v8560, 0.5
      %v9105 = vmul.f32 %v8562, 0.5
      %v9106 = vmul.f32 %v8884, 0.5
      %v9107 = vmul.f32 %v7792, 0.5
      %v9108 = vmul.f32 %v7794, 0.5
      %v9109 = vmul.f32 %v8178, 0.5
      %v9110 = vmul.f32 %v8180, 0.5
      %v9111 = vmul.f32 %v8564, 0.5
      %v9112 = vmul.f32 %v8566, 0.5
      %v9113 = vmul.f32 %v8887, 0.5
      %v9114 = vtanh.pop %v8890
      %v9115 = vtanh.pop %v8891
      %v9116 = vtanh.pop %v8892
      %v9117 = vtanh.pop %v8893
      %v9118 = vtanh.pop %v8894
      %v9119 = vtanh.pop %v8895
      %v9120 = vtanh.pop %v8896
      %v9121 = vtanh.pop %v8897
      %v9122 = vtanh.pop %v8898
      %v9123 = vtanh.pop %v8899
      %v9124 = vtanh.pop %v8900
      %v9125 = vtanh.pop %v8901
      %v9126 = vtanh.pop %v8902
      %v9127 = vtanh.pop %v8903
      %v9128 = vtanh.pop %v8904
      %v9129 = vtanh.pop %v8905
      %v9130 = vtanh.pop %v8906
      %v9131 = vtanh.pop %v8907
      %v9132 = vtanh.pop %v8908
      %v9133 = vtanh.pop %v8909
      %v9134 = vtanh.pop %v8910
      %v9135 = vtanh.pop %v8911
      %v9136 = vtanh.pop %v8912
      %v9137 = vtanh.pop %v8913
      %v9138 = vtanh.pop %v8914
      %v9139 = vtanh.pop %v8915
      %v9140 = vtanh.pop %v8916
      %v9141 = vtanh.pop %v8917
      %v9142 = vtanh.pop %v8918
      %v9143 = vtanh.pop %v8919
      %v9144 = vtanh.pop %v8920
      %v9145 = vtanh.pop %v8921
      %v9146 = vtanh.pop %v8922
      %v9147 = vtanh.pop %v8923
      %v9148 = vtanh.pop %v8924
      %v9149 = vtanh.pop %v8925
      %v9150 = vtanh.pop %v8926
      %v9151 = vtanh.pop %v8927
      %v9152 = vtanh.pop %v8928
      %v9153 = vtanh.pop %v8929
      %v9154 = vtanh.pop %v8930
      %v9155 = vtanh.pop %v8931
      %v9156 = vtanh.pop %v8932
      %v9157 = vtanh.pop %v8933
      %v9158 = vtanh.pop %v8934
      %v9159 = vtanh.pop %v8935
      %v9160 = vtanh.pop %v8936
      %v9161 = vtanh.pop %v8937
      %v9162 = vtanh.pop %v8938
      %v9163 = vtanh.pop %v8939
      %v9164 = vtanh.pop %v8940
      %v9165 = vtanh.pop %v8941
      %v9166 = vtanh.pop %v8942
      %v9167 = vtanh.pop %v8943
      %v9168 = vtanh.pop %v8944
      %v9169 = vtanh.pop %v8945
      %v9170 = vtanh.pop %v8946
      %v9171 = vtanh.pop %v8947
      %v9172 = vtanh.pop %v8948
      %v9173 = vtanh.pop %v8949
      %v9174 = vtanh.pop %v8950
      %v9175 = vtanh.pop %v8951
      %v9176 = vtanh.pop %v8952
      %v9177 = vtanh.pop %v8953
      %v9178 = vtanh.pop %v8954
      %v9179 = vtanh.pop %v8955
      %v9180 = vtanh.pop %v8956
      %v9181 = vtanh.pop %v8957
      %v9182 = vtanh.pop %v8958
      %v9183 = vtanh.pop %v8959
      %v9184 = vtanh.pop %v8960
      %v9185 = vtanh.pop %v8961
      %v9186 = vtanh.pop %v8962
      %v9187 = vtanh.pop %v8963
      %v9188 = vtanh.pop %v8964
      %v9189 = vtanh.pop %v8965
      %v9190 = vtanh.pop %v8966
      %v9191 = vtanh.pop %v8967
      %v9192 = vtanh.pop %v8968
      %v9193 = vtanh.pop %v8969
      %v9194 = vtanh.pop %v8970
      %v9195 = vtanh.pop %v8971
      %v9196 = vtanh.pop %v8972
      %v9197 = vtanh.pop %v8973
      %v9198 = vtanh.pop %v8974
      %v9199 = vtanh.pop %v8975
      %v9200 = vtanh.pop %v8976
      %v9201 = vtanh.pop %v8977
      %v9202 = vtanh.pop %v8978
      %v9203 = vtanh.pop %v8979
      %v9204 = vtanh.pop %v8980
      %v9205 = vtanh.pop %v8981
      %v9206 = vtanh.pop %v8982
      %v9207 = vtanh.pop %v8983
      %v9208 = vtanh.pop %v8984
      %v9209 = vtanh.pop %v8985
      %v9210 = vtanh.pop %v8986
      %v9211 = vtanh.pop %v8987
      %v9212 = vtanh.pop %v8988
      %v9213 = vtanh.pop %v8989
      %v9214 = vtanh.pop %v8990
      %v9215 = vtanh.pop %v8991
      %v9216 = vtanh.pop %v8992
      %v9217 = vtanh.pop %v8993
      %v9218 = vtanh.pop %v8994
      %v9219 = vtanh.pop %v8995
      %v9220 = vtanh.pop %v8996
      %v9221 = vtanh.pop %v8997
      %v9222 = vtanh.pop %v8998
      %v9223 = vtanh.pop %v8999
      %v9224 = vtanh.pop %v9000
      %v9225 = vtanh.pop %v9001
      %v9226 = vtanh.pop %v9002
      %v9227 = vtanh.pop %v9003
      %v9228 = vtanh.pop %v9004
      %v9229 = vtanh.pop %v9005
      %v9230 = vtanh.pop %v9006
      %v9231 = vtanh.pop %v9007
      %v9232 = vtanh.pop %v9008
      %v9233 = vtanh.pop %v9009
      %v9234 = vtanh.pop %v9010
      %v9235 = vtanh.pop %v9011
      %v9236 = vtanh.pop %v9012
      %v9237 = vtanh.pop %v9013
      %v9238 = vtanh.pop %v9014
      %v9239 = vtanh.pop %v9015
      %v9240 = vtanh.pop %v9016
      %v9241 = vtanh.pop %v9017
      %v9242 = vtanh.pop %v9018
      %v9243 = vtanh.pop %v9019
      %v9244 = vtanh.pop %v9020
      %v9245 = vtanh.pop %v9021
      %v9246 = vtanh.pop %v9022
      %v9247 = vtanh.pop %v9023
      %v9248 = vtanh.pop %v9024
      %v9249 = vtanh.pop %v9025
      %v9250 = vtanh.pop %v9026
      %v9251 = vtanh.pop %v9027
      %v9252 = vtanh.pop %v9028
      %v9253 = vtanh.pop %v9029
      %v9254 = vtanh.pop %v9030
      %v9255 = vtanh.pop %v9031
      %v9256 = vtanh.pop %v9032
      %v9257 = vtanh.pop %v9033
      %v9258 = vtanh.pop %v9034
      %v9259 = vtanh.pop %v9035
      %v9260 = vtanh.pop %v9036
      %v9261 = vtanh.pop %v9037
      %v9262 = vtanh.pop %v9038
      %v9263 = vtanh.pop %v9039
      %v9264 = vtanh.pop %v9040
      %v9265 = vtanh.pop %v9041
      %v9266 = vtanh.pop %v9042
      %v9267 = vtanh.pop %v9043
      %v9268 = vtanh.pop %v9044
      %v9269 = vtanh.pop %v9045
      %v9270 = vtanh.pop %v9046
      %v9271 = vtanh.pop %v9047
      %v9272 = vtanh.pop %v9048
      %v9273 = vtanh.pop %v9049
      %v9274 = vtanh.pop %v9050
      %v9275 = vtanh.pop %v9051
      %v9276 = vtanh.pop %v9052
      %v9277 = vtanh.pop %v9053
      %v9278 = vtanh.pop %v9054
      %v9279 = vtanh.pop %v9055
      %v9280 = vtanh.pop %v9056
      %v9281 = vtanh.pop %v9057
      %v9282 = vtanh.pop %v9058
      %v9283 = vtanh.pop %v9059
      %v9284 = vtanh.pop %v9060
      %v9285 = vtanh.pop %v9061
      %v9286 = vtanh.pop %v9062
      %v9287 = vtanh.pop %v9063
      %v9288 = vtanh.pop %v9064
      %v9289 = vtanh.pop %v9065
      %v9290 = vtanh.pop %v9066
      %v9291 = vtanh.pop %v9067
      %v9292 = vtanh.pop %v9068
      %v9293 = vtanh.pop %v9069
      %v9294 = vtanh.pop %v9070
      %v9295 = vtanh.pop %v9071
      %v9296 = vtanh.pop %v9072
      %v9297 = vtanh.pop %v9073
      %v9298 = vtanh.pop %v9074
      %v9299 = vtanh.pop %v9075
      %v9300 = vtanh.pop %v9076
      %v9301 = vtanh.pop %v9077
      %v9302 = vtanh.pop %v9078
      %v9303 = vtanh.pop %v9079
      %v9304 = vtanh.pop %v9080
      %v9305 = vtanh.pop %v9081
      %v9306 = vtanh.pop %v9082
      %v9307 = vtanh.pop %v9083
      %v9308 = vtanh.pop %v9084
      %v9309 = vtanh.pop %v9085
      %v9310 = vtanh.pop %v9086
      %v9311 = vtanh.pop %v9087
      %v9312 = vtanh.pop %v9088
      %v9313 = vtanh.pop %v9089
      %v9314 = vtanh.pop %v9090
      %v9315 = vtanh.pop %v9091
      %v9316 = vtanh.pop %v9092
      %v9317 = vtanh.pop %v9093
      %v9318 = vtanh.pop %v9094
      %v9319 = vtanh.pop %v9095
      %v9320 = vtanh.pop %v9096
      %v9321 = vtanh.pop %v9097
      %v9322 = vtanh.pop %v9098
      %v9323 = vtanh.pop %v9099
      %v9324 = vtanh.pop %v9100
      %v9325 = vtanh.pop %v9101
      %v9326 = vtanh.pop %v9102
      %v9327 = vtanh.pop %v9103
      %v9328 = vtanh.pop %v9104
      %v9329 = vtanh.pop %v9105
      %v9330 = vtanh.pop %v9106
      %v9331 = vtanh.pop %v9107
      %v9332 = vtanh.pop %v9108
      %v9333 = vtanh.pop %v9109
      %v9334 = vtanh.pop %v9110
      %v9335 = vtanh.pop %v9111
      %v9336 = vtanh.pop %v9112
      %v9337 = vtanh.pop %v9113
      %v9338 = vadd.f32 %v9114, 1.0
      %v9339 = vadd.f32 %v9115, 1.0
      %v9340 = vadd.f32 %v9116, 1.0
      %v9341 = vadd.f32 %v9117, 1.0
      %v9342 = vadd.f32 %v9118, 1.0
      %v9343 = vadd.f32 %v9119, 1.0
      %v9344 = vadd.f32 %v9120, 1.0
      %v9345 = vadd.f32 %v9121, 1.0
      %v9346 = vadd.f32 %v9122, 1.0
      %v9347 = vadd.f32 %v9123, 1.0
      %v9348 = vadd.f32 %v9124, 1.0
      %v9349 = vadd.f32 %v9125, 1.0
      %v9350 = vadd.f32 %v9126, 1.0
      %v9351 = vadd.f32 %v9127, 1.0
      %v9352 = vadd.f32 %v9128, 1.0
      %v9353 = vadd.f32 %v9129, 1.0
      %v9354 = vadd.f32 %v9130, 1.0
      %v9355 = vadd.f32 %v9131, 1.0
      %v9356 = vadd.f32 %v9132, 1.0
      %v9357 = vadd.f32 %v9133, 1.0
      %v9358 = vadd.f32 %v9134, 1.0
      %v9359 = vadd.f32 %v9135, 1.0
      %v9360 = vadd.f32 %v9136, 1.0
      %v9361 = vadd.f32 %v9137, 1.0
      %v9362 = vadd.f32 %v9138, 1.0
      %v9363 = vadd.f32 %v9139, 1.0
      %v9364 = vadd.f32 %v9140, 1.0
      %v9365 = vadd.f32 %v9141, 1.0
      %v9366 = vadd.f32 %v9142, 1.0
      %v9367 = vadd.f32 %v9143, 1.0
      %v9368 = vadd.f32 %v9144, 1.0
      %v9369 = vadd.f32 %v9145, 1.0
      %v9370 = vadd.f32 %v9146, 1.0
      %v9371 = vadd.f32 %v9147, 1.0
      %v9372 = vadd.f32 %v9148, 1.0
      %v9373 = vadd.f32 %v9149, 1.0
      %v9374 = vadd.f32 %v9150, 1.0
      %v9375 = vadd.f32 %v9151, 1.0
      %v9376 = vadd.f32 %v9152, 1.0
      %v9377 = vadd.f32 %v9153, 1.0
      %v9378 = vadd.f32 %v9154, 1.0
      %v9379 = vadd.f32 %v9155, 1.0
      %v9380 = vadd.f32 %v9156, 1.0
      %v9381 = vadd.f32 %v9157, 1.0
      %v9382 = vadd.f32 %v9158, 1.0
      %v9383 = vadd.f32 %v9159, 1.0
      %v9384 = vadd.f32 %v9160, 1.0
      %v9385 = vadd.f32 %v9161, 1.0
      %v9386 = vadd.f32 %v9162, 1.0
      %v9387 = vadd.f32 %v9163, 1.0
      %v9388 = vadd.f32 %v9164, 1.0
      %v9389 = vadd.f32 %v9165, 1.0
      %v9390 = vadd.f32 %v9166, 1.0
      %v9391 = vadd.f32 %v9167, 1.0
      %v9392 = vadd.f32 %v9168, 1.0
      %v9393 = vadd.f32 %v9169, 1.0
      %v9394 = vadd.f32 %v9170, 1.0
      %v9395 = vadd.f32 %v9171, 1.0
      %v9396 = vadd.f32 %v9172, 1.0
      %v9397 = vadd.f32 %v9173, 1.0
      %v9398 = vadd.f32 %v9174, 1.0
      %v9399 = vadd.f32 %v9175, 1.0
      %v9400 = vadd.f32 %v9176, 1.0
      %v9401 = vadd.f32 %v9177, 1.0
      %v9402 = vadd.f32 %v9178, 1.0
      %v9403 = vadd.f32 %v9179, 1.0
      %v9404 = vadd.f32 %v9180, 1.0
      %v9405 = vadd.f32 %v9181, 1.0
      %v9406 = vadd.f32 %v9182, 1.0
      %v9407 = vadd.f32 %v9183, 1.0
      %v9408 = vadd.f32 %v9184, 1.0
      %v9409 = vadd.f32 %v9185, 1.0
      %v9410 = vadd.f32 %v9186, 1.0
      %v9411 = vadd.f32 %v9187, 1.0
      %v9412 = vadd.f32 %v9188, 1.0
      %v9413 = vadd.f32 %v9189, 1.0
      %v9414 = vadd.f32 %v9190, 1.0
      %v9415 = vadd.f32 %v9191, 1.0
      %v9416 = vadd.f32 %v9192, 1.0
      %v9417 = vadd.f32 %v9193, 1.0
      %v9418 = vadd.f32 %v9194, 1.0
      %v9419 = vadd.f32 %v9195, 1.0
      %v9420 = vadd.f32 %v9196, 1.0
      %v9421 = vadd.f32 %v9197, 1.0
      %v9422 = vadd.f32 %v9198, 1.0
      %v9423 = vadd.f32 %v9199, 1.0
      %v9424 = vadd.f32 %v9200, 1.0
      %v9425 = vadd.f32 %v9201, 1.0
      %v9426 = vadd.f32 %v9202, 1.0
      %v9427 = vadd.f32 %v9203, 1.0
      %v9428 = vadd.f32 %v9204, 1.0
      %v9429 = vadd.f32 %v9205, 1.0
      %v9430 = vadd.f32 %v9206, 1.0
      %v9431 = vadd.f32 %v9207, 1.0
      %v9432 = vadd.f32 %v9208, 1.0
      %v9433 = vadd.f32 %v9209, 1.0
      %v9434 = vadd.f32 %v9210, 1.0
      %v9435 = vadd.f32 %v9211, 1.0
      %v9436 = vadd.f32 %v9212, 1.0
      %v9437 = vadd.f32 %v9213, 1.0
      %v9438 = vadd.f32 %v9214, 1.0
      %v9439 = vadd.f32 %v9215, 1.0
      %v9440 = vadd.f32 %v9216, 1.0
      %v9441 = vadd.f32 %v9217, 1.0
      %v9442 = vadd.f32 %v9218, 1.0
      %v9443 = vadd.f32 %v9219, 1.0
      %v9444 = vadd.f32 %v9220, 1.0
      %v9445 = vadd.f32 %v9221, 1.0
      %v9446 = vadd.f32 %v9222, 1.0
      %v9447 = vadd.f32 %v9223, 1.0
      %v9448 = vadd.f32 %v9224, 1.0
      %v9449 = vadd.f32 %v9225, 1.0
      %v9450 = vadd.f32 %v9226, 1.0
      %v9451 = vadd.f32 %v9227, 1.0
      %v9452 = vadd.f32 %v9228, 1.0
      %v9453 = vadd.f32 %v9229, 1.0
      %v9454 = vadd.f32 %v9230, 1.0
      %v9455 = vadd.f32 %v9231, 1.0
      %v9456 = vadd.f32 %v9232, 1.0
      %v9457 = vadd.f32 %v9233, 1.0
      %v9458 = vadd.f32 %v9234, 1.0
      %v9459 = vadd.f32 %v9235, 1.0
      %v9460 = vadd.f32 %v9236, 1.0
      %v9461 = vadd.f32 %v9237, 1.0
      %v9462 = vadd.f32 %v9238, 1.0
      %v9463 = vadd.f32 %v9239, 1.0
      %v9464 = vadd.f32 %v9240, 1.0
      %v9465 = vadd.f32 %v9241, 1.0
      %v9466 = vadd.f32 %v9242, 1.0
      %v9467 = vadd.f32 %v9243, 1.0
      %v9468 = vadd.f32 %v9244, 1.0
      %v9469 = vadd.f32 %v9245, 1.0
      %v9470 = vadd.f32 %v9246, 1.0
      %v9471 = vadd.f32 %v9247, 1.0
      %v9472 = vadd.f32 %v9248, 1.0
      %v9473 = vadd.f32 %v9249, 1.0
      %v9474 = vadd.f32 %v9250, 1.0
      %v9475 = vadd.f32 %v9251, 1.0
      %v9476 = vadd.f32 %v9252, 1.0
      %v9477 = vadd.f32 %v9253, 1.0
      %v9478 = vadd.f32 %v9254, 1.0
      %v9479 = vadd.f32 %v9255, 1.0
      %v9480 = vadd.f32 %v9256, 1.0
      %v9481 = vadd.f32 %v9257, 1.0
      %v9482 = vadd.f32 %v9258, 1.0
      %v9483 = vadd.f32 %v9259, 1.0
      %v9484 = vadd.f32 %v9260, 1.0
      %v9485 = vadd.f32 %v9261, 1.0
      %v9486 = vadd.f32 %v9262, 1.0
      %v9487 = vadd.f32 %v9263, 1.0
      %v9488 = vadd.f32 %v9264, 1.0
      %v9489 = vadd.f32 %v9265, 1.0
      %v9490 = vadd.f32 %v9266, 1.0
      %v9491 = vadd.f32 %v9267, 1.0
      %v9492 = vadd.f32 %v9268, 1.0
      %v9493 = vadd.f32 %v9269, 1.0
      %v9494 = vadd.f32 %v9270, 1.0
      %v9495 = vadd.f32 %v9271, 1.0
      %v9496 = vadd.f32 %v9272, 1.0
      %v9497 = vadd.f32 %v9273, 1.0
      %v9498 = vadd.f32 %v9274, 1.0
      %v9499 = vadd.f32 %v9275, 1.0
      %v9500 = vadd.f32 %v9276, 1.0
      %v9501 = vadd.f32 %v9277, 1.0
      %v9502 = vadd.f32 %v9278, 1.0
      %v9503 = vadd.f32 %v9279, 1.0
      %v9504 = vadd.f32 %v9280, 1.0
      %v9505 = vadd.f32 %v9281, 1.0
      %v9506 = vadd.f32 %v9282, 1.0
      %v9507 = vadd.f32 %v9283, 1.0
      %v9508 = vadd.f32 %v9284, 1.0
      %v9509 = vadd.f32 %v9285, 1.0
      %v9510 = vadd.f32 %v9286, 1.0
      %v9511 = vadd.f32 %v9287, 1.0
      %v9512 = vadd.f32 %v9288, 1.0
      %v9513 = vadd.f32 %v9289, 1.0
      %v9514 = vadd.f32 %v9290, 1.0
      %v9515 = vadd.f32 %v9291, 1.0
      %v9516 = vadd.f32 %v9292, 1.0
      %v9517 = vadd.f32 %v9293, 1.0
      %v9518 = vadd.f32 %v9294, 1.0
      %v9519 = vadd.f32 %v9295, 1.0
      %v9520 = vadd.f32 %v9296, 1.0
      %v9521 = vadd.f32 %v9297, 1.0
      %v9522 = vadd.f32 %v9298, 1.0
      %v9523 = vadd.f32 %v9299, 1.0
      %v9524 = vadd.f32 %v9300, 1.0
      %v9525 = vadd.f32 %v9301, 1.0
      %v9526 = vadd.f32 %v9302, 1.0
      %v9527 = vadd.f32 %v9303, 1.0
      %v9528 = vadd.f32 %v9304, 1.0
      %v9529 = vadd.f32 %v9305, 1.0
      %v9530 = vadd.f32 %v9306, 1.0
      %v9531 = vadd.f32 %v9307, 1.0
      %v9532 = vadd.f32 %v9308, 1.0
      %v9533 = vadd.f32 %v9309, 1.0
      %v9534 = vadd.f32 %v9310, 1.0
      %v9535 = vadd.f32 %v9311, 1.0
      %v9536 = vadd.f32 %v9312, 1.0
      %v9537 = vadd.f32 %v9313, 1.0
      %v9538 = vadd.f32 %v9314, 1.0
      %v9539 = vadd.f32 %v9315, 1.0
      %v9540 = vadd.f32 %v9316, 1.0
      %v9541 = vadd.f32 %v9317, 1.0
      %v9542 = vadd.f32 %v9318, 1.0
      %v9543 = vadd.f32 %v9319, 1.0
      %v9544 = vadd.f32 %v9320, 1.0
      %v9545 = vadd.f32 %v9321, 1.0
      %v9546 = vadd.f32 %v9322, 1.0
      %v9547 = vadd.f32 %v9323, 1.0
      %v9548 = vadd.f32 %v9324, 1.0
      %v9549 = vadd.f32 %v9325, 1.0
      %v9550 = vadd.f32 %v9326, 1.0
      %v9551 = vadd.f32 %v9327, 1.0
      %v9552 = vadd.f32 %v9328, 1.0
      %v9553 = vadd.f32 %v9329, 1.0
      %v9554 = vadd.f32 %v9330, 1.0
      %v9555 = vadd.f32 %v9331, 1.0
      %v9556 = vadd.f32 %v9332, 1.0
      %v9557 = vadd.f32 %v9333, 1.0
      %v9558 = vadd.f32 %v9334, 1.0
      %v9559 = vadd.f32 %v9335, 1.0
      %v9560 = vadd.f32 %v9336, 1.0
      %v9561 = vadd.f32 %v9337, 1.0
      %v9562 = vmul.f32 %v9338, 0.5
      %v9563 = vmul.f32 %v9339, 0.5
      %v9564 = vmul.f32 %v9340, 0.5
      %v9565 = vmul.f32 %v9341, 0.5
      %v9566 = vmul.f32 %v9342, 0.5
      %v9567 = vmul.f32 %v9343, 0.5
      %v9568 = vmul.f32 %v9344, 0.5
      %v9569 = vmul.f32 %v9345, 0.5
      %v9570 = vmul.f32 %v9346, 0.5
      %v9571 = vmul.f32 %v9347, 0.5
      %v9572 = vmul.f32 %v9348, 0.5
      %v9573 = vmul.f32 %v9349, 0.5
      %v9574 = vmul.f32 %v9350, 0.5
      %v9575 = vmul.f32 %v9351, 0.5
      %v9576 = vmul.f32 %v9352, 0.5
      %v9577 = vmul.f32 %v9353, 0.5
      %v9578 = vmul.f32 %v9354, 0.5
      %v9579 = vmul.f32 %v9355, 0.5
      %v9580 = vmul.f32 %v9356, 0.5
      %v9581 = vmul.f32 %v9357, 0.5
      %v9582 = vmul.f32 %v9358, 0.5
      %v9583 = vmul.f32 %v9359, 0.5
      %v9584 = vmul.f32 %v9360, 0.5
      %v9585 = vmul.f32 %v9361, 0.5
      %v9586 = vmul.f32 %v9362, 0.5
      %v9587 = vmul.f32 %v9363, 0.5
      %v9588 = vmul.f32 %v9364, 0.5
      %v9589 = vmul.f32 %v9365, 0.5
      %v9590 = vmul.f32 %v9366, 0.5
      %v9591 = vmul.f32 %v9367, 0.5
      %v9592 = vmul.f32 %v9368, 0.5
      %v9593 = vmul.f32 %v9369, 0.5
      %v9594 = vmul.f32 %v9370, 0.5
      %v9595 = vmul.f32 %v9371, 0.5
      %v9596 = vmul.f32 %v9372, 0.5
      %v9597 = vmul.f32 %v9373, 0.5
      %v9598 = vmul.f32 %v9374, 0.5
      %v9599 = vmul.f32 %v9375, 0.5
      %v9600 = vmul.f32 %v9376, 0.5
      %v9601 = vmul.f32 %v9377, 0.5
      %v9602 = vmul.f32 %v9378, 0.5
      %v9603 = vmul.f32 %v9379, 0.5
      %v9604 = vmul.f32 %v9380, 0.5
      %v9605 = vmul.f32 %v9381, 0.5
      %v9606 = vmul.f32 %v9382, 0.5
      %v9607 = vmul.f32 %v9383, 0.5
      %v9608 = vmul.f32 %v9384, 0.5
      %v9609 = vmul.f32 %v9385, 0.5
      %v9610 = vmul.f32 %v9386, 0.5
      %v9611 = vmul.f32 %v9387, 0.5
      %v9612 = vmul.f32 %v9388, 0.5
      %v9613 = vmul.f32 %v9389, 0.5
      %v9614 = vmul.f32 %v9390, 0.5
      %v9615 = vmul.f32 %v9391, 0.5
      %v9616 = vmul.f32 %v9392, 0.5
      %v9617 = vmul.f32 %v9393, 0.5
      %v9618 = vmul.f32 %v9394, 0.5
      %v9619 = vmul.f32 %v9395, 0.5
      %v9620 = vmul.f32 %v9396, 0.5
      %v9621 = vmul.f32 %v9397, 0.5
      %v9622 = vmul.f32 %v9398, 0.5
      %v9623 = vmul.f32 %v9399, 0.5
      %v9624 = vmul.f32 %v9400, 0.5
      %v9625 = vmul.f32 %v9401, 0.5
      %v9626 = vmul.f32 %v9402, 0.5
      %v9627 = vmul.f32 %v9403, 0.5
      %v9628 = vmul.f32 %v9404, 0.5
      %v9629 = vmul.f32 %v9405, 0.5
      %v9630 = vmul.f32 %v9406, 0.5
      %v9631 = vmul.f32 %v9407, 0.5
      %v9632 = vmul.f32 %v9408, 0.5
      %v9633 = vmul.f32 %v9409, 0.5
      %v9634 = vmul.f32 %v9410, 0.5
      %v9635 = vmul.f32 %v9411, 0.5
      %v9636 = vmul.f32 %v9412, 0.5
      %v9637 = vmul.f32 %v9413, 0.5
      %v9638 = vmul.f32 %v9414, 0.5
      %v9639 = vmul.f32 %v9415, 0.5
      %v9640 = vmul.f32 %v9416, 0.5
      %v9641 = vmul.f32 %v9417, 0.5
      %v9642 = vmul.f32 %v9418, 0.5
      %v9643 = vmul.f32 %v9419, 0.5
      %v9644 = vmul.f32 %v9420, 0.5
      %v9645 = vmul.f32 %v9421, 0.5
      %v9646 = vmul.f32 %v9422, 0.5
      %v9647 = vmul.f32 %v9423, 0.5
      %v9648 = vmul.f32 %v9424, 0.5
      %v9649 = vmul.f32 %v9425, 0.5
      %v9650 = vmul.f32 %v9426, 0.5
      %v9651 = vmul.f32 %v9427, 0.5
      %v9652 = vmul.f32 %v9428, 0.5
      %v9653 = vmul.f32 %v9429, 0.5
      %v9654 = vmul.f32 %v9430, 0.5
      %v9655 = vmul.f32 %v9431, 0.5
      %v9656 = vmul.f32 %v9432, 0.5
      %v9657 = vmul.f32 %v9433, 0.5
      %v9658 = vmul.f32 %v9434, 0.5
      %v9659 = vmul.f32 %v9435, 0.5
      %v9660 = vmul.f32 %v9436, 0.5
      %v9661 = vmul.f32 %v9437, 0.5
      %v9662 = vmul.f32 %v9438, 0.5
      %v9663 = vmul.f32 %v9439, 0.5
      %v9664 = vmul.f32 %v9440, 0.5
      %v9665 = vmul.f32 %v9441, 0.5
      %v9666 = vmul.f32 %v9442, 0.5
      %v9667 = vmul.f32 %v9443, 0.5
      %v9668 = vmul.f32 %v9444, 0.5
      %v9669 = vmul.f32 %v9445, 0.5
      %v9670 = vmul.f32 %v9446, 0.5
      %v9671 = vmul.f32 %v9447, 0.5
      %v9672 = vmul.f32 %v9448, 0.5
      %v9673 = vmul.f32 %v9449, 0.5
      %v9674 = vmul.f32 %v9450, 0.5
      %v9675 = vmul.f32 %v9451, 0.5
      %v9676 = vmul.f32 %v9452, 0.5
      %v9677 = vmul.f32 %v9453, 0.5
      %v9678 = vmul.f32 %v9454, 0.5
      %v9679 = vmul.f32 %v9455, 0.5
      %v9680 = vmul.f32 %v9456, 0.5
      %v9681 = vmul.f32 %v9457, 0.5
      %v9682 = vmul.f32 %v9458, 0.5
      %v9683 = vmul.f32 %v9459, 0.5
      %v9684 = vmul.f32 %v9460, 0.5
      %v9685 = vmul.f32 %v9461, 0.5
      %v9686 = vmul.f32 %v9462, 0.5
      %v9687 = vmul.f32 %v9463, 0.5
      %v9688 = vmul.f32 %v9464, 0.5
      %v9689 = vmul.f32 %v9465, 0.5
      %v9690 = vmul.f32 %v9466, 0.5
      %v9691 = vmul.f32 %v9467, 0.5
      %v9692 = vmul.f32 %v9468, 0.5
      %v9693 = vmul.f32 %v9469, 0.5
      %v9694 = vmul.f32 %v9470, 0.5
      %v9695 = vmul.f32 %v9471, 0.5
      %v9696 = vmul.f32 %v9472, 0.5
      %v9697 = vmul.f32 %v9473, 0.5
      %v9698 = vmul.f32 %v9474, 0.5
      %v9699 = vmul.f32 %v9475, 0.5
      %v9700 = vmul.f32 %v9476, 0.5
      %v9701 = vmul.f32 %v9477, 0.5
      %v9702 = vmul.f32 %v9478, 0.5
      %v9703 = vmul.f32 %v9479, 0.5
      %v9704 = vmul.f32 %v9480, 0.5
      %v9705 = vmul.f32 %v9481, 0.5
      %v9706 = vmul.f32 %v9482, 0.5
      %v9707 = vmul.f32 %v9483, 0.5
      %v9708 = vmul.f32 %v9484, 0.5
      %v9709 = vmul.f32 %v9485, 0.5
      %v9710 = vmul.f32 %v9486, 0.5
      %v9711 = vmul.f32 %v9487, 0.5
      %v9712 = vmul.f32 %v9488, 0.5
      %v9713 = vmul.f32 %v9489, 0.5
      %v9714 = vmul.f32 %v9490, 0.5
      %v9715 = vmul.f32 %v9491, 0.5
      %v9716 = vmul.f32 %v9492, 0.5
      %v9717 = vmul.f32 %v9493, 0.5
      %v9718 = vmul.f32 %v9494, 0.5
      %v9719 = vmul.f32 %v9495, 0.5
      %v9720 = vmul.f32 %v9496, 0.5
      %v9721 = vmul.f32 %v9497, 0.5
      %v9722 = vmul.f32 %v9498, 0.5
      %v9723 = vmul.f32 %v9499, 0.5
      %v9724 = vmul.f32 %v9500, 0.5
      %v9725 = vmul.f32 %v9501, 0.5
      %v9726 = vmul.f32 %v9502, 0.5
      %v9727 = vmul.f32 %v9503, 0.5
      %v9728 = vmul.f32 %v9504, 0.5
      %v9729 = vmul.f32 %v9505, 0.5
      %v9730 = vmul.f32 %v9506, 0.5
      %v9731 = vmul.f32 %v9507, 0.5
      %v9732 = vmul.f32 %v9508, 0.5
      %v9733 = vmul.f32 %v9509, 0.5
      %v9734 = vmul.f32 %v9510, 0.5
      %v9735 = vmul.f32 %v9511, 0.5
      %v9736 = vmul.f32 %v9512, 0.5
      %v9737 = vmul.f32 %v9513, 0.5
      %v9738 = vmul.f32 %v9514, 0.5
      %v9739 = vmul.f32 %v9515, 0.5
      %v9740 = vmul.f32 %v9516, 0.5
      %v9741 = vmul.f32 %v9517, 0.5
      %v9742 = vmul.f32 %v9518, 0.5
      %v9743 = vmul.f32 %v9519, 0.5
      %v9744 = vmul.f32 %v9520, 0.5
      %v9745 = vmul.f32 %v9521, 0.5
      %v9746 = vmul.f32 %v9522, 0.5
      %v9747 = vmul.f32 %v9523, 0.5
      %v9748 = vmul.f32 %v9524, 0.5
      %v9749 = vmul.f32 %v9525, 0.5
      %v9750 = vmul.f32 %v9526, 0.5
      %v9751 = vmul.f32 %v9527, 0.5
      %v9752 = vmul.f32 %v9528, 0.5
      %v9753 = vmul.f32 %v9529, 0.5
      %v9754 = vmul.f32 %v9530, 0.5
      %v9755 = vmul.f32 %v9531, 0.5
      %v9756 = vmul.f32 %v9532, 0.5
      %v9757 = vmul.f32 %v9533, 0.5
      %v9758 = vmul.f32 %v9534, 0.5
      %v9759 = vmul.f32 %v9535, 0.5
      %v9760 = vmul.f32 %v9536, 0.5
      %v9761 = vmul.f32 %v9537, 0.5
      %v9762 = vmul.f32 %v9538, 0.5
      %v9763 = vmul.f32 %v9539, 0.5
      %v9764 = vmul.f32 %v9540, 0.5
      %v9765 = vmul.f32 %v9541, 0.5
      %v9766 = vmul.f32 %v9542, 0.5
      %v9767 = vmul.f32 %v9543, 0.5
      %v9768 = vmul.f32 %v9544, 0.5
      %v9769 = vmul.f32 %v9545, 0.5
      %v9770 = vmul.f32 %v9546, 0.5
      %v9771 = vmul.f32 %v9547, 0.5
      %v9772 = vmul.f32 %v9548, 0.5
      %v9773 = vmul.f32 %v9549, 0.5
      %v9774 = vmul.f32 %v9550, 0.5
      %v9775 = vmul.f32 %v9551, 0.5
      %v9776 = vmul.f32 %v9552, 0.5
      %v9777 = vmul.f32 %v9553, 0.5
      %v9778 = vmul.f32 %v9554, 0.5
      %v9779 = vmul.f32 %v9555, 0.5
      %v9780 = vmul.f32 %v9556, 0.5
      %v9781 = vmul.f32 %v9557, 0.5
      %v9782 = vmul.f32 %v9558, 0.5
      %v9783 = vmul.f32 %v9559, 0.5
      %v9784 = vmul.f32 %v9560, 0.5
      %v9785 = vmul.f32 %v9561, 0.5
      %9818 = vrot.lane.b32.xlu0 %v4929, 30
      %v9819 = vpop.permute.xlu0 %9818
      %9820 = vrot.lane.b32.xlu0 %v4930, 30
      %v9821 = vpop.permute.xlu0 %9820
      %9822 = vrot.lane.b32.xlu0 %v4931, 30
      %v9823 = vpop.permute.xlu0 %9822
      %9824 = vrot.lane.b32.xlu0 %v4932, 30
      %v9825 = vpop.permute.xlu0 %9824
      %9826 = vrot.lane.b32.xlu0 %v4933, 30
      %v9827 = vpop.permute.xlu0 %9826
      %9828 = vrot.lane.b32.xlu0 %v4934, 30
      %v9829 = vpop.permute.xlu0 %9828
      %9830 = vrot.lane.b32.xlu0 %v4935, 30
      %v9831 = vpop.permute.xlu0 %9830
      %9832 = vrot.lane.b32.xlu0 %v4936, 30
      %v9833 = vpop.permute.xlu0 %9832
      %9834 = vrot.lane.b32.xlu0 %v4937, 30
      %v9835 = vpop.permute.xlu0 %9834
      %9836 = vrot.lane.b32.xlu0 %v4938, 30
      %v9837 = vpop.permute.xlu0 %9836
      %9838 = vrot.lane.b32.xlu0 %v4939, 30
      %v9839 = vpop.permute.xlu0 %9838
      %9840 = vrot.lane.b32.xlu0 %v4940, 30
      %v9841 = vpop.permute.xlu0 %9840
      %9842 = vrot.lane.b32.xlu0 %v4941, 30
      %v9843 = vpop.permute.xlu0 %9842
      %9844 = vrot.lane.b32.xlu0 %v4942, 30
      %v9845 = vpop.permute.xlu0 %9844
      %9846 = vrot.lane.b32.xlu0 %v4943, 30
      %v9847 = vpop.permute.xlu0 %9846
      %9848 = vrot.lane.b32.xlu0 %v4944, 30
      %v9849 = vpop.permute.xlu0 %9848
      %9850 = vrot.lane.b32.xlu0 %v4945, 30
      %v9851 = vpop.permute.xlu0 %9850
      %9852 = vrot.lane.b32.xlu0 %v4946, 30
      %v9853 = vpop.permute.xlu0 %9852
      %9854 = vrot.lane.b32.xlu0 %v4947, 30
      %v9855 = vpop.permute.xlu0 %9854
      %9856 = vrot.lane.b32.xlu0 %v4948, 30
      %v9857 = vpop.permute.xlu0 %9856
      %9858 = vrot.lane.b32.xlu0 %v4949, 30
      %v9859 = vpop.permute.xlu0 %9858
      %9860 = vrot.lane.b32.xlu0 %v4950, 30
      %v9861 = vpop.permute.xlu0 %9860
      %9862 = vrot.lane.b32.xlu0 %v4951, 30
      %v9863 = vpop.permute.xlu0 %9862
      %9864 = vrot.lane.b32.xlu0 %v4952, 30
      %v9865 = vpop.permute.xlu0 %9864
      %9866 = vrot.lane.b32.xlu0 %v4953, 30
      %v9867 = vpop.permute.xlu0 %9866
      %9868 = vrot.lane.b32.xlu0 %v4954, 30
      %v9869 = vpop.permute.xlu0 %9868
      %9870 = vrot.lane.b32.xlu0 %v4955, 30
      %v9871 = vpop.permute.xlu0 %9870
      %9872 = vrot.lane.b32.xlu0 %v4956, 30
      %v9873 = vpop.permute.xlu0 %9872
      %9874 = vrot.lane.b32.xlu0 %v4957, 30
      %v9875 = vpop.permute.xlu0 %9874
      %9876 = vrot.lane.b32.xlu0 %v4958, 30
      %v9877 = vpop.permute.xlu0 %9876
      %9878 = vrot.lane.b32.xlu0 %v4959, 30
      %v9879 = vpop.permute.xlu0 %9878
      %9880 = vrot.lane.b32.xlu0 %v4960, 30
      %v9881 = vpop.permute.xlu0 %9880
      %vm9914 = vcmask 244736
      %v9915 = vsel %vm9914, %v4515, %v9819
      %v9916 = vsel %vm9914, %v4518, %v9821
      %v9917 = vsel %vm9914, %v4523, %v9823
      %v9918 = vsel %vm9914, %v4526, %v9825
      %v9919 = vsel %vm9914, %v4531, %v9827
      %v9920 = vsel %vm9914, %v4534, %v9829
      %v9921 = vsel %vm9914, %v4539, %v9831
      %v9922 = vsel %vm9914, %v4542, %v9833
      %v9923 = vsel %vm9914, %v4547, %v9835
      %v9924 = vsel %vm9914, %v4550, %v9837
      %v9925 = vsel %vm9914, %v4555, %v9839
      %v9926 = vsel %vm9914, %v4558, %v9841
      %v9927 = vsel %vm9914, %v4563, %v9843
      %v9928 = vsel %vm9914, %v4566, %v9845
      %v9929 = vsel %vm9914, %v4571, %v9847
      %v9930 = vsel %vm9914, %v4574, %v9849
      %v9931 = vsel %vm9914, %v4579, %v9851
      %v9932 = vsel %vm9914, %v4582, %v9853
      %v9933 = vsel %vm9914, %v4587, %v9855
      %v9934 = vsel %vm9914, %v4590, %v9857
      %v9935 = vsel %vm9914, %v4595, %v9859
      %v9936 = vsel %vm9914, %v4598, %v9861
      %v9937 = vsel %vm9914, %v4603, %v9863
      %v9938 = vsel %vm9914, %v4606, %v9865
      %v9939 = vsel %vm9914, %v4611, %v9867
      %v9940 = vsel %vm9914, %v4614, %v9869
      %v9941 = vsel %vm9914, %v4619, %v9871
      %v9942 = vsel %vm9914, %v4622, %v9873
      %v9943 = vsel %vm9914, %v4627, %v9875
      %v9944 = vsel %vm9914, %v4630, %v9877
      %v9945 = vsel %vm9914, %v4635, %v9879
      %v9946 = vsel %vm9914, %v4638, %v9881
      %vm9947 = vcmask 367616
      %9948 = vst.msk [vmem:[%s422] sm:$0xff] %vm9947, %v9915
      %9949 = vst.msk [vmem:[%s422 + $0x8] sm:$0xff] %vm9947, %v9916
      %9950 = vst.msk [vmem:[%s422 + $0x10] sm:$0xff] %vm9947, %v9917
      %9951 = vst.msk [vmem:[%s422 + $0x18] sm:$0xff] %vm9947, %v9918
      %9952 = vst.msk [vmem:[%s422 + $0x20] sm:$0xff] %vm9947, %v9919
      %9953 = vst.msk [vmem:[%s422 + $0x28] sm:$0xff] %vm9947, %v9920
      %9954 = vst.msk [vmem:[%s422 + $0x30] sm:$0xff] %vm9947, %v9921
      %9955 = vst.msk [vmem:[%s422 + $0x38] sm:$0xff] %vm9947, %v9922
      %9956 = vst.msk [vmem:[%s422 + $0x40] sm:$0xff] %vm9947, %v9923
      %9957 = vst.msk [vmem:[%s422 + $0x48] sm:$0xff] %vm9947, %v9924
      %9958 = vst.msk [vmem:[%s422 + $0x50] sm:$0xff] %vm9947, %v9925
      %9959 = vst.msk [vmem:[%s422 + $0x58] sm:$0xff] %vm9947, %v9926
      %9960 = vst.msk [vmem:[%s422 + $0x60] sm:$0xff] %vm9947, %v9927
      %9961 = vst.msk [vmem:[%s422 + $0x68] sm:$0xff] %vm9947, %v9928
      %9962 = vst.msk [vmem:[%s422 + $0x70] sm:$0xff] %vm9947, %v9929
      %9963 = vst.msk [vmem:[%s422 + $0x78] sm:$0xff] %vm9947, %v9930
      %9964 = vst.msk [vmem:[%s422 + $0x80] sm:$0xff] %vm9947, %v9931
      %9965 = vst.msk [vmem:[%s422 + $0x88] sm:$0xff] %vm9947, %v9932
      %9966 = vst.msk [vmem:[%s422 + $0x90] sm:$0xff] %vm9947, %v9933
      %9967 = vst.msk [vmem:[%s422 + $0x98] sm:$0xff] %vm9947, %v9934
      %9968 = vst.msk [vmem:[%s422 + $0xa0] sm:$0xff] %vm9947, %v9935
      %9969 = vst.msk [vmem:[%s422 + $0xa8] sm:$0xff] %vm9947, %v9936
      %9970 = vst.msk [vmem:[%s422 + $0xb0] sm:$0xff] %vm9947, %v9937
      %9971 = vst.msk [vmem:[%s422 + $0xb8] sm:$0xff] %vm9947, %v9938
      %9972 = vst.msk [vmem:[%s422 + $0xc0] sm:$0xff] %vm9947, %v9939
      %9973 = vst.msk [vmem:[%s422 + $0xc8] sm:$0xff] %vm9947, %v9940
      %9974 = vst.msk [vmem:[%s422 + $0xd0] sm:$0xff] %vm9947, %v9941
      %9975 = vst.msk [vmem:[%s422 + $0xd8] sm:$0xff] %vm9947, %v9942
      %9976 = vst.msk [vmem:[%s422 + $0xe0] sm:$0xff] %vm9947, %v9943
      %9977 = vst.msk [vmem:[%s422 + $0xe8] sm:$0xff] %vm9947, %v9944
      %9978 = vst.msk [vmem:[%s422 + $0xf0] sm:$0xff] %vm9947, %v9945
      %9979 = vst.msk [vmem:[%s422 + $0xf8] sm:$0xff] %vm9947, %v9946
      %9980 = vst [vmem:[%s429] sm:$0xff] %v9562
      %9981 = vst [vmem:[%s429 + $0x8] sm:$0xff] %v9563
      %9982 = vst [vmem:[%s429 + $0x10] sm:$0xff] %v9564
      %9983 = vst [vmem:[%s429 + $0x18] sm:$0xff] %v9565
      %9984 = vst [vmem:[%s429 + $0x20] sm:$0xff] %v9566
      %9985 = vst [vmem:[%s429 + $0x28] sm:$0xff] %v9567
      %9986 = vst.msk [vmem:[%s429 + $0x30] sm:$0xff] %vm1966, %v9568
      %9987 = vst [vmem:[%s429 + $0x38] sm:$0xff] %v9569
      %9988 = vst [vmem:[%s429 + $0x40] sm:$0xff] %v9570
      %9989 = vst [vmem:[%s429 + $0x48] sm:$0xff] %v9571
      %9990 = vst [vmem:[%s429 + $0x50] sm:$0xff] %v9572
      %9991 = vst [vmem:[%s429 + $0x58] sm:$0xff] %v9573
      %9992 = vst [vmem:[%s429 + $0x60] sm:$0xff] %v9574
      %9993 = vst.msk [vmem:[%s429 + $0x68] sm:$0xff] %vm1966, %v9575
      %9994 = vst [vmem:[%s429 + $0x70] sm:$0xff] %v9576
      %9995 = vst [vmem:[%s429 + $0x78] sm:$0xff] %v9577
      %9996 = vst [vmem:[%s429 + $0x80] sm:$0xff] %v9578
      %9997 = vst [vmem:[%s429 + $0x88] sm:$0xff] %v9579
      %9998 = vst [vmem:[%s429 + $0x90] sm:$0xff] %v9580
      %9999 = vst [vmem:[%s429 + $0x98] sm:$0xff] %v9581
      %10000 = vst.msk [vmem:[%s429 + $0xa0] sm:$0xff] %vm1966, %v9582
      %10001 = vst [vmem:[%s429 + $0xa8] sm:$0xff] %v9583
      %10002 = vst [vmem:[%s429 + $0xb0] sm:$0xff] %v9584
      %10003 = vst [vmem:[%s429 + $0xb8] sm:$0xff] %v9585
      %10004 = vst [vmem:[%s429 + $0xc0] sm:$0xff] %v9586
      %10005 = vst [vmem:[%s429 + $0xc8] sm:$0xff] %v9587
      %10006 = vst [vmem:[%s429 + $0xd0] sm:$0xff] %v9588
      %10007 = vst.msk [vmem:[%s429 + $0xd8] sm:$0xff] %vm1966, %v9589
      %10008 = vst [vmem:[%s429 + $0xe0] sm:$0xff] %v9590
      %10009 = vst [vmem:[%s429 + $0xe8] sm:$0xff] %v9591
      %10010 = vst [vmem:[%s429 + $0xf0] sm:$0xff] %v9592
      %10011 = vst [vmem:[%s429 + $0xf8] sm:$0xff] %v9593
      %10012 = vst [vmem:[%s429 + $0x100] sm:$0xff] %v9594
      %10013 = vst [vmem:[%s429 + $0x108] sm:$0xff] %v9595
      %10014 = vst.msk [vmem:[%s429 + $0x110] sm:$0xff] %vm1966, %v9596
      %10015 = vst [vmem:[%s429 + $0x118] sm:$0xff] %v9597
      %10016 = vst [vmem:[%s429 + $0x120] sm:$0xff] %v9598
      %10017 = vst [vmem:[%s429 + $0x128] sm:$0xff] %v9599
      %10018 = vst [vmem:[%s429 + $0x130] sm:$0xff] %v9600
      %10019 = vst [vmem:[%s429 + $0x138] sm:$0xff] %v9601
      %10020 = vst [vmem:[%s429 + $0x140] sm:$0xff] %v9602
      %10021 = vst.msk [vmem:[%s429 + $0x148] sm:$0xff] %vm1966, %v9603
      %10022 = vst [vmem:[%s429 + $0x150] sm:$0xff] %v9604
      %10023 = vst [vmem:[%s429 + $0x158] sm:$0xff] %v9605
      %10024 = vst [vmem:[%s429 + $0x160] sm:$0xff] %v9606
      %10025 = vst [vmem:[%s429 + $0x168] sm:$0xff] %v9607
      %10026 = vst [vmem:[%s429 + $0x170] sm:$0xff] %v9608
      %10027 = vst [vmem:[%s429 + $0x178] sm:$0xff] %v9609
      %10028 = vst.msk [vmem:[%s429 + $0x180] sm:$0xff] %vm1966, %v9610
      %10029 = vst [vmem:[%s429 + $0x188] sm:$0xff] %v9611
      %10030 = vst [vmem:[%s429 + $0x190] sm:$0xff] %v9612
      %10031 = vst [vmem:[%s429 + $0x198] sm:$0xff] %v9613
      %10032 = vst [vmem:[%s429 + $0x1a0] sm:$0xff] %v9614
      %10033 = vst [vmem:[%s429 + $0x1a8] sm:$0xff] %v9615
      %10034 = vst [vmem:[%s429 + $0x1b0] sm:$0xff] %v9616
      %10035 = vst.msk [vmem:[%s429 + $0x1b8] sm:$0xff] %vm1966, %v9617
      %10036 = vst [vmem:[%s429 + $0x1c0] sm:$0xff] %v9618
      %10037 = vst [vmem:[%s429 + $0x1c8] sm:$0xff] %v9619
      %10038 = vst [vmem:[%s429 + $0x1d0] sm:$0xff] %v9620
      %10039 = vst [vmem:[%s429 + $0x1d8] sm:$0xff] %v9621
      %10040 = vst [vmem:[%s429 + $0x1e0] sm:$0xff] %v9622
      %10041 = vst [vmem:[%s429 + $0x1e8] sm:$0xff] %v9623
      %10042 = vst.msk [vmem:[%s429 + $0x1f0] sm:$0xff] %vm1966, %v9624
      %10043 = vst [vmem:[%s429 + $0x1f8] sm:$0xff] %v9625
      %10044 = vst [vmem:[%s429 + $0x200] sm:$0xff] %v9626
      %10045 = vst [vmem:[%s429 + $0x208] sm:$0xff] %v9627
      %10046 = vst [vmem:[%s429 + $0x210] sm:$0xff] %v9628
      %10047 = vst [vmem:[%s429 + $0x218] sm:$0xff] %v9629
      %10048 = vst [vmem:[%s429 + $0x220] sm:$0xff] %v9630
      %10049 = vst.msk [vmem:[%s429 + $0x228] sm:$0xff] %vm1966, %v9631
      %10050 = vst [vmem:[%s429 + $0x230] sm:$0xff] %v9632
      %10051 = vst [vmem:[%s429 + $0x238] sm:$0xff] %v9633
      %10052 = vst [vmem:[%s429 + $0x240] sm:$0xff] %v9634
      %10053 = vst [vmem:[%s429 + $0x248] sm:$0xff] %v9635
      %10054 = vst [vmem:[%s429 + $0x250] sm:$0xff] %v9636
      %10055 = vst [vmem:[%s429 + $0x258] sm:$0xff] %v9637
      %10056 = vst.msk [vmem:[%s429 + $0x260] sm:$0xff] %vm1966, %v9638
      %10057 = vst [vmem:[%s429 + $0x268] sm:$0xff] %v9639
      %10058 = vst [vmem:[%s429 + $0x270] sm:$0xff] %v9640
      %10059 = vst [vmem:[%s429 + $0x278] sm:$0xff] %v9641
      %10060 = vst [vmem:[%s429 + $0x280] sm:$0xff] %v9642
      %10061 = vst [vmem:[%s429 + $0x288] sm:$0xff] %v9643
      %10062 = vst [vmem:[%s429 + $0x290] sm:$0xff] %v9644
      %10063 = vst.msk [vmem:[%s429 + $0x298] sm:$0xff] %vm1966, %v9645
      %10064 = vst [vmem:[%s429 + $0x2a0] sm:$0xff] %v9646
      %10065 = vst [vmem:[%s429 + $0x2a8] sm:$0xff] %v9647
      %10066 = vst [vmem:[%s429 + $0x2b0] sm:$0xff] %v9648
      %10067 = vst [vmem:[%s429 + $0x2b8] sm:$0xff] %v9649
      %10068 = vst [vmem:[%s429 + $0x2c0] sm:$0xff] %v9650
      %10069 = vst [vmem:[%s429 + $0x2c8] sm:$0xff] %v9651
      %10070 = vst.msk [vmem:[%s429 + $0x2d0] sm:$0xff] %vm1966, %v9652
      %10071 = vst [vmem:[%s429 + $0x2d8] sm:$0xff] %v9653
      %10072 = vst [vmem:[%s429 + $0x2e0] sm:$0xff] %v9654
      %10073 = vst [vmem:[%s429 + $0x2e8] sm:$0xff] %v9655
      %10074 = vst [vmem:[%s429 + $0x2f0] sm:$0xff] %v9656
      %10075 = vst [vmem:[%s429 + $0x2f8] sm:$0xff] %v9657
      %10076 = vst [vmem:[%s429 + $0x300] sm:$0xff] %v9658
      %10077 = vst.msk [vmem:[%s429 + $0x308] sm:$0xff] %vm1966, %v9659
      %10078 = vst [vmem:[%s429 + $0x310] sm:$0xff] %v9660
      %10079 = vst [vmem:[%s429 + $0x318] sm:$0xff] %v9661
      %10080 = vst [vmem:[%s429 + $0x320] sm:$0xff] %v9662
      %10081 = vst [vmem:[%s429 + $0x328] sm:$0xff] %v9663
      %10082 = vst [vmem:[%s429 + $0x330] sm:$0xff] %v9664
      %10083 = vst [vmem:[%s429 + $0x338] sm:$0xff] %v9665
      %10084 = vst.msk [vmem:[%s429 + $0x340] sm:$0xff] %vm1966, %v9666
      %10085 = vst [vmem:[%s429 + $0x348] sm:$0xff] %v9667
      %10086 = vst [vmem:[%s429 + $0x350] sm:$0xff] %v9668
      %10087 = vst [vmem:[%s429 + $0x358] sm:$0xff] %v9669
      %10088 = vst [vmem:[%s429 + $0x360] sm:$0xff] %v9670
      %10089 = vst [vmem:[%s429 + $0x368] sm:$0xff] %v9671
      %10090 = vst [vmem:[%s429 + $0x370] sm:$0xff] %v9672
      %10091 = vst.msk [vmem:[%s429 + $0x378] sm:$0xff] %vm1966, %v9673
      %10092 = vst [vmem:[%s429 + $0x380] sm:$0xff] %v9674
      %10093 = vst [vmem:[%s429 + $0x388] sm:$0xff] %v9675
      %10094 = vst [vmem:[%s429 + $0x390] sm:$0xff] %v9676
      %10095 = vst [vmem:[%s429 + $0x398] sm:$0xff] %v9677
      %10096 = vst [vmem:[%s429 + $0x3a0] sm:$0xff] %v9678
      %10097 = vst [vmem:[%s429 + $0x3a8] sm:$0xff] %v9679
      %10098 = vst.msk [vmem:[%s429 + $0x3b0] sm:$0xff] %vm1966, %v9680
      %10099 = vst [vmem:[%s429 + $0x3b8] sm:$0xff] %v9681
      %10100 = vst [vmem:[%s429 + $0x3c0] sm:$0xff] %v9682
      %10101 = vst [vmem:[%s429 + $0x3c8] sm:$0xff] %v9683
      %10102 = vst [vmem:[%s429 + $0x3d0] sm:$0xff] %v9684
      %10103 = vst [vmem:[%s429 + $0x3d8] sm:$0xff] %v9685
      %10104 = vst [vmem:[%s429 + $0x3e0] sm:$0xff] %v9686
      %10105 = vst.msk [vmem:[%s429 + $0x3e8] sm:$0xff] %vm1966, %v9687
      %10106 = vst [vmem:[%s429 + $0x3f0] sm:$0xff] %v9688
      %10107 = vst [vmem:[%s429 + $0x3f8] sm:$0xff] %v9689
      %10108 = vst [vmem:[%s429 + $0x400] sm:$0xff] %v9690
      %10109 = vst [vmem:[%s429 + $0x408] sm:$0xff] %v9691
      %10110 = vst [vmem:[%s429 + $0x410] sm:$0xff] %v9692
      %10111 = vst [vmem:[%s429 + $0x418] sm:$0xff] %v9693
      %10112 = vst.msk [vmem:[%s429 + $0x420] sm:$0xff] %vm1966, %v9694
      %10113 = vst [vmem:[%s429 + $0x428] sm:$0xff] %v9695
      %10114 = vst [vmem:[%s429 + $0x430] sm:$0xff] %v9696
      %10115 = vst [vmem:[%s429 + $0x438] sm:$0xff] %v9697
      %10116 = vst [vmem:[%s429 + $0x440] sm:$0xff] %v9698
      %10117 = vst [vmem:[%s429 + $0x448] sm:$0xff] %v9699
      %10118 = vst [vmem:[%s429 + $0x450] sm:$0xff] %v9700
      %10119 = vst.msk [vmem:[%s429 + $0x458] sm:$0xff] %vm1966, %v9701
      %10120 = vst [vmem:[%s429 + $0x460] sm:$0xff] %v9702
      %10121 = vst [vmem:[%s429 + $0x468] sm:$0xff] %v9703
      %10122 = vst [vmem:[%s429 + $0x470] sm:$0xff] %v9704
      %10123 = vst [vmem:[%s429 + $0x478] sm:$0xff] %v9705
      %10124 = vst [vmem:[%s429 + $0x480] sm:$0xff] %v9706
      %10125 = vst [vmem:[%s429 + $0x488] sm:$0xff] %v9707
      %10126 = vst.msk [vmem:[%s429 + $0x490] sm:$0xff] %vm1966, %v9708
      %10127 = vst [vmem:[%s429 + $0x498] sm:$0xff] %v9709
      %10128 = vst [vmem:[%s429 + $0x4a0] sm:$0xff] %v9710
      %10129 = vst [vmem:[%s429 + $0x4a8] sm:$0xff] %v9711
      %10130 = vst [vmem:[%s429 + $0x4b0] sm:$0xff] %v9712
      %10131 = vst [vmem:[%s429 + $0x4b8] sm:$0xff] %v9713
      %10132 = vst [vmem:[%s429 + $0x4c0] sm:$0xff] %v9714
      %10133 = vst.msk [vmem:[%s429 + $0x4c8] sm:$0xff] %vm1966, %v9715
      %10134 = vst [vmem:[%s429 + $0x4d0] sm:$0xff] %v9716
      %10135 = vst [vmem:[%s429 + $0x4d8] sm:$0xff] %v9717
      %10136 = vst [vmem:[%s429 + $0x4e0] sm:$0xff] %v9718
      %10137 = vst [vmem:[%s429 + $0x4e8] sm:$0xff] %v9719
      %10138 = vst [vmem:[%s429 + $0x4f0] sm:$0xff] %v9720
      %10139 = vst [vmem:[%s429 + $0x4f8] sm:$0xff] %v9721
      %10140 = vst.msk [vmem:[%s429 + $0x500] sm:$0xff] %vm1966, %v9722
      %10141 = vst [vmem:[%s429 + $0x508] sm:$0xff] %v9723
      %10142 = vst [vmem:[%s429 + $0x510] sm:$0xff] %v9724
      %10143 = vst [vmem:[%s429 + $0x518] sm:$0xff] %v9725
      %10144 = vst [vmem:[%s429 + $0x520] sm:$0xff] %v9726
      %10145 = vst [vmem:[%s429 + $0x528] sm:$0xff] %v9727
      %10146 = vst [vmem:[%s429 + $0x530] sm:$0xff] %v9728
      %10147 = vst.msk [vmem:[%s429 + $0x538] sm:$0xff] %vm1966, %v9729
      %10148 = vst [vmem:[%s429 + $0x540] sm:$0xff] %v9730
      %10149 = vst [vmem:[%s429 + $0x548] sm:$0xff] %v9731
      %10150 = vst [vmem:[%s429 + $0x550] sm:$0xff] %v9732
      %10151 = vst [vmem:[%s429 + $0x558] sm:$0xff] %v9733
      %10152 = vst [vmem:[%s429 + $0x560] sm:$0xff] %v9734
      %10153 = vst [vmem:[%s429 + $0x568] sm:$0xff] %v9735
      %10154 = vst.msk [vmem:[%s429 + $0x570] sm:$0xff] %vm1966, %v9736
      %10155 = vst [vmem:[%s429 + $0x578] sm:$0xff] %v9737
      %10156 = vst [vmem:[%s429 + $0x580] sm:$0xff] %v9738
      %10157 = vst [vmem:[%s429 + $0x588] sm:$0xff] %v9739
      %10158 = vst [vmem:[%s429 + $0x590] sm:$0xff] %v9740
      %10159 = vst [vmem:[%s429 + $0x598] sm:$0xff] %v9741
      %10160 = vst [vmem:[%s429 + $0x5a0] sm:$0xff] %v9742
      %10161 = vst.msk [vmem:[%s429 + $0x5a8] sm:$0xff] %vm1966, %v9743
      %10162 = vst [vmem:[%s429 + $0x5b0] sm:$0xff] %v9744
      %10163 = vst [vmem:[%s429 + $0x5b8] sm:$0xff] %v9745
      %10164 = vst [vmem:[%s429 + $0x5c0] sm:$0xff] %v9746
      %10165 = vst [vmem:[%s429 + $0x5c8] sm:$0xff] %v9747
      %10166 = vst [vmem:[%s429 + $0x5d0] sm:$0xff] %v9748
      %10167 = vst [vmem:[%s429 + $0x5d8] sm:$0xff] %v9749
      %10168 = vst.msk [vmem:[%s429 + $0x5e0] sm:$0xff] %vm1966, %v9750
      %10169 = vst [vmem:[%s429 + $0x5e8] sm:$0xff] %v9751
      %10170 = vst [vmem:[%s429 + $0x5f0] sm:$0xff] %v9752
      %10171 = vst [vmem:[%s429 + $0x5f8] sm:$0xff] %v9753
      %10172 = vst [vmem:[%s429 + $0x600] sm:$0xff] %v9754
      %10173 = vst [vmem:[%s429 + $0x608] sm:$0xff] %v9755
      %10174 = vst [vmem:[%s429 + $0x610] sm:$0xff] %v9756
      %10175 = vst.msk [vmem:[%s429 + $0x618] sm:$0xff] %vm1966, %v9757
      %10176 = vst [vmem:[%s429 + $0x620] sm:$0xff] %v9758
      %10177 = vst [vmem:[%s429 + $0x628] sm:$0xff] %v9759
      %10178 = vst [vmem:[%s429 + $0x630] sm:$0xff] %v9760
      %10179 = vst [vmem:[%s429 + $0x638] sm:$0xff] %v9761
      %10180 = vst [vmem:[%s429 + $0x640] sm:$0xff] %v9762
      %10181 = vst [vmem:[%s429 + $0x648] sm:$0xff] %v9763
      %10182 = vst.msk [vmem:[%s429 + $0x650] sm:$0xff] %vm1966, %v9764
      %10183 = vst [vmem:[%s429 + $0x658] sm:$0xff] %v9765
      %10184 = vst [vmem:[%s429 + $0x660] sm:$0xff] %v9766
      %10185 = vst [vmem:[%s429 + $0x668] sm:$0xff] %v9767
      %10186 = vst [vmem:[%s429 + $0x670] sm:$0xff] %v9768
      %10187 = vst [vmem:[%s429 + $0x678] sm:$0xff] %v9769
      %10188 = vst [vmem:[%s429 + $0x680] sm:$0xff] %v9770
      %10189 = vst.msk [vmem:[%s429 + $0x688] sm:$0xff] %vm1966, %v9771
      %10190 = vst [vmem:[%s429 + $0x690] sm:$0xff] %v9772
      %10191 = vst [vmem:[%s429 + $0x698] sm:$0xff] %v9773
      %10192 = vst [vmem:[%s429 + $0x6a0] sm:$0xff] %v9774
      %10193 = vst [vmem:[%s429 + $0x6a8] sm:$0xff] %v9775
      %10194 = vst [vmem:[%s429 + $0x6b0] sm:$0xff] %v9776
      %10195 = vst [vmem:[%s429 + $0x6b8] sm:$0xff] %v9777
      %10196 = vst.msk [vmem:[%s429 + $0x6c0] sm:$0xff] %vm1966, %v9778
      %10197 = vst [vmem:[%s429 + $0x6c8] sm:$0xff] %v9779
      %10198 = vst [vmem:[%s429 + $0x6d0] sm:$0xff] %v9780
      %10199 = vst [vmem:[%s429 + $0x6d8] sm:$0xff] %v9781
      %10200 = vst [vmem:[%s429 + $0x6e0] sm:$0xff] %v9782
      %10201 = vst [vmem:[%s429 + $0x6e8] sm:$0xff] %v9783
      %10202 = vst [vmem:[%s429 + $0x6f0] sm:$0xff] %v9784
      %10203 = vst.msk [vmem:[%s429 + $0x6f8] sm:$0xff] %vm1966, %v9785
      %s10204 = smul.u32 32, %s23
      %p10205 = scmp.lt.s32.totalorder %s10204, 63
      %s10206 = scalar_select %p10205, %s10204, 63
      %s10207 = smul.addr %s10206, 8
      %s10208 = scalar_lea.vmem %s10, %s10207
      %s10209 = smul.u32 32, %s23
      %p10210 = scmp.lt.s32.totalorder %s10209, 63
      %s10211 = scalar_select %p10210, %s10209, 63
      %s10212 = smul.addr %s10211, 7
      %s10213 = smul.addr %s10212, 8
      %s10214 = scalar_lea.vmem %s11, %s10213
      // Predicated region
      $region61: #{_lambda_.1} parent=59 // pred_check
        %p10215 = pneg %p261
      $region62: #{_lambda_.1} parent=59 // pred_check_branch
        %10217 = sbr.rel (%p10215) target = $region64
      $region63: #{_lambda_.1} parent=59 // pred_region
        %s10218 = smul.u32 32, %s23
      $region64: #{_lambda_.1} parent=59 // pred_fallthru
        _
      // Predicated region
      $region65: #{_lambda_.1} parent=59 // pred_check
        %p10219 = pneg %p287
      $region66: #{_lambda_.1} parent=59 // pred_check_branch
        %10221 = sbr.rel (%p10219) target = $region68
      $region67: #{_lambda_.1} parent=59 // pred_region
        %s10222 = smul.u32 32, %s23
      $region68: #{_lambda_.1} parent=59 // pred_fallthru
        _
    $region60: #{_lambda_.1} parent=5 // pred_fallthru
      _
    %p10223 = scmp.le.s32.totalorder 2, %s18
    // Predicated region
    $region69: #{_lambda_.1} parent=5 // pred_check
      %p10224 = pneg %p10223
    $region70: #{_lambda_.1} parent=5 // pred_check_branch
      %10226 = sbr.rel (%p10224) target = $region72
    $region71: #{_lambda_.1} parent=5 // pred_region
      %s10227 = ssub.s32 %s18, 2
      // Predicated region
      $region73: #{_lambda_.1} parent=71 // pred_check
        %p10228 = pneg %p267
      $region74: #{_lambda_.1} parent=71 // pred_check_branch
        %10230 = sbr.rel (%p10228) target = $region76
      $region75: #{_lambda_.1} parent=71 // pred_region
        %s10231 = smul.u32 32, %s24
        %p10232 = scmp.lt.s32.totalorder %s10231, 63
        %s10233 = scalar_select %p10232, %s10231, 63
        %s10234 = smul.addr %s10233, 8
        %s10235 = scalar_lea.vmem %s10, %s10234
      $region76: #{_lambda_.1} parent=71 // pred_fallthru
        _
      // Predicated region
      $region77: #{_lambda_.1} parent=71 // pred_check
        %p10236 = pneg %p293
      $region78: #{_lambda_.1} parent=71 // pred_check_branch
        %10238 = sbr.rel (%p10236) target = $region80
      $region79: #{_lambda_.1} parent=71 // pred_region
        %s10239 = smul.u32 32, %s24
        %p10240 = scmp.lt.s32.totalorder %s10239, 63
        %s10241 = scalar_select %p10240, %s10239, 63
        %s10242 = smul.addr %s10241, 7
        %s10243 = smul.addr %s10242, 8
        %s10244 = scalar_lea.vmem %s11, %s10243
      $region80: #{_lambda_.1} parent=71 // pred_fallthru
        _
    $region72: #{_lambda_.1} parent=5 // pred_fallthru
      _
  $region6: #{_lambda_.1} parent=0 // loop_footer
    %s22 = sadd.s32 1, %s18
  $region7: #{_lambda_.1} parent=0 // loop_footer_branch
    %17 = sbr.rel target = $region3
  $region8: #{_lambda_.1} parent=0 // loop_exit
    _

</llo_original>
